<compile_context>
chip_gen: v7x
topology: tpu7x:2x2x1
jax: 0.10.0
libtpu: 0.0.40
codegen_flags: <defaults>
</compile_context>

<pallas_src>
import math
import functools

import jax
import jax.numpy as jnp
from jax.experimental import pallas as pl
from jax.experimental.pallas import tpu as pltpu

# ----------------------------- model config (small, synthetic) -----------------------------
VOCAB = 384
HIDDEN = 128
NUM_LAYERS = 2
NUM_HEADS = 2
HEAD_DIM = HIDDEN // NUM_HEADS
INTERMEDIATE = 256
MAX_POS = 128
LN_EPS = 1e-12


# ----------------------------- in-kernel helpers -----------------------------

def _layernorm_f32(x, g, b):
    mean = jnp.mean(x, axis=-1, keepdims=True)
    xc = x - mean
    var = jnp.mean(xc * xc, axis=-1, keepdims=True)
    return xc * jax.lax.rsqrt(var + LN_EPS) * g + b


def _gelu_f32(h):
    # TODO(synk): HF BERT default uses erf-based GELU; tanh approximation used here (EUP tanh).
    c = math.sqrt(2.0 / math.pi)
    return 0.5 * h * (1.0 + jnp.tanh(c * (h + 0.044715 * h * h * h)))


# ----------------------------- fused encoder kernel -----------------------------

def _bert_encoder_kernel(
    emb_ref,      # (1, S, H)  f32   summed embeddings for this batch element
    bias_ref,     # (1, 1, S)  f32   additive attention key mask
    embln_ref,    # (2, H)     f32   embedding LN gamma / beta
    wqkv_ref,     # (L, H, 3H) bf16  fused QKV weight (Q columns pre-scaled by 1/sqrt(Dh))
    wo_ref,       # (L, H, H)  bf16
    w1_ref,       # (L, H, I)  bf16
    w2_ref,       # (L, I, H)  bf16
    bqkv_ref,     # (L, 1, 3H) f32
    b1_ref,       # (L, 1, I)  f32
    vec_ref,      # (L, 6, H)  f32   rows: bo, ln1_g, ln1_b, b2, ln2_g, ln2_b
    o_ref,        # (1, S, H)  f32
):
    bias = bias_ref[0]                                  # (1, S)
    eln = embln_ref[...]                                # (2, H)

    # Embedding LayerNorm (residual-free), fused into the same kernel.
    x = _layernorm_f32(emb_ref[0], eln[0:1, :], eln[1:2, :])   # (S, H) f32

    for li in range(NUM_LAYERS):                        # fully unrolled layer loop (weights VMEM-resident)
        vec = vec_ref[li]                               # (6, H)
        bo, ln1g, ln1b = vec[0:1, :], vec[1:2, :], vec[2:3, :]
        b2, ln2g, ln2b = vec[3:4, :], vec[4:5, :], vec[5:6, :]
        wo = wo_ref[li]                                 # (H, H) bf16

        # ---- fused QKV projection: (S, H) @ (H, 3H), bf16 MXU operands, f32 accumulation ----
        qkv = (
            jnp.dot(x.astype(jnp.bfloat16), wqkv_ref[li],
                    preferred_element_type=jnp.float32)
            + bqkv_ref[li]
        )                                               # (S, 3H) f32

        # ---- per-head attention; heads merged through the output projection (no concat) ----
        attn = None
        for h in range(NUM_HEADS):
            q = qkv[:, h * HEAD_DIM:(h + 1) * HEAD_DIM]
            k = qkv[:, HIDDEN + h * HEAD_DIM:HIDDEN + (h + 1) * HEAD_DIM]
            v = qkv[:, 2 * HIDDEN + h * HEAD_DIM:2 * HIDDEN + (h + 1) * HEAD_DIM]
            # q @ k^T without an explicit transpose; 1/sqrt(Dh) already folded into wq.
            s = jax.lax.dot_general(
                q.astype(jnp.bfloat16), k.astype(jnp.bfloat16),
                (((1,), (1,)), ((), ())),
                preferred_element_type=jnp.float32,
            ) + bias                                    # (S, S) f32
            m = jnp.max(s, axis=-1, keepdims=True)
            p = jnp.exp(s - m)
            p = p * pl.reciprocal(jnp.sum(p, axis=-1, keepdims=True), approx=False)
            ctx = jnp.dot(p.astype(jnp.bfloat16), v.astype(jnp.bfloat16),
                          preferred_element_type=jnp.float32)      # (S, Dh) f32
            # merge this head via its rows of Wo -> lane-dense (S, H); no lane concat / relayout
            part = jnp.dot(ctx.astype(jnp.bfloat16),
                           wo[h * HEAD_DIM:(h + 1) * HEAD_DIM, :],
                           preferred_element_type=jnp.float32)     # (S, H) f32
            attn = part if attn is None else attn + part
        attn = attn + bo

        # ---- residual-add + LayerNorm 1 ----
        x1 = _layernorm_f32(attn + x, ln1g, ln1b)

        # ---- feed-forward (GELU) + residual-add + LayerNorm 2 ----
        hmid = (
            jnp.dot(x1.astype(jnp.bfloat16), w1_ref[li],
                    preferred_element_type=jnp.float32)
            + b1_ref[li]
        )
        hmid = _gelu_f32(hmid)
        ff = (
            jnp.dot(hmid.astype(jnp.bfloat16), w2_ref[li],
                    preferred_element_type=jnp.float32)
            + b2
        )
        x = _layernorm_f32(ff + x1, ln2g, ln2b)

    o_ref[0] = x


# ----------------------------- Pallas wrapper -----------------------------

def bert_encoder(emb, bias, p):
    """emb: (B, S, H) f32 summed embeddings; bias: (B, 1, S) f32 additive mask."""
    B, S, H = emb.shape
    L = NUM_LAYERS

    def rep(shape):
        nd = len(shape)
        return pl.BlockSpec(shape, lambda b, nd=nd: (0,) * nd)   # same block every grid step

    return pl.pallas_call(
        _bert_encoder_kernel,
        out_shape=jax.ShapeDtypeStruct((B, S, H), jnp.float32),
        grid=(B,),
        in_specs=[
            pl.BlockSpec((1, S, H), lambda b: (b, 0, 0)),        # emb
            pl.BlockSpec((1, 1, S), lambda b: (b, 0, 0)),        # attention bias
            rep((2, H)),                                         # emb LN gamma/beta
            rep((L, H, 3 * H)),                                  # wqkv (bf16)
            rep((L, H, H)),                                      # wo   (bf16)
            rep((L, H, INTERMEDIATE)),                           # w1   (bf16)
            rep((L, INTERMEDIATE, H)),                           # w2   (bf16)
            rep((L, 1, 3 * H)),                                  # bqkv (f32)
            rep((L, 1, INTERMEDIATE)),                           # b1   (f32)
            rep((L, 6, H)),                                      # packed bo/ln1/b2/ln2 vectors
        ],
        out_specs=pl.BlockSpec((1, S, H), lambda b: (b, 0, 0)),
        compiler_params=pltpu.CompilerParams(
            dimension_semantics=("parallel",)),                  # both TCs on v7x
    )(emb, bias, p["emb_ln"], p["wqkv"], p["wo"], p["w1"], p["w2"],
      p["bqkv"], p["b1"], p["vecs"])


# ----------------------------- parameter construction -----------------------------

def init_params(key):
    def nrm(k, shape, scale=0.02):
        return scale * jax.random.normal(k, shape, dtype=jnp.float32)

    keys = jax.random.split(key, 3 + NUM_LAYERS)

    wqkv, wo, w1, w2 = [], [], [], []
    for li in range(NUM_LAYERS):
        lk = jax.random.split(keys[3 + li], 6)
        # fold the attention scale 1/sqrt(HEAD_DIM) into the Q projection weight
        wq = nrm(lk[0], (HIDDEN, HIDDEN)) * (1.0 / math.sqrt(HEAD_DIM))
        wk = nrm(lk[1], (HIDDEN, HIDDEN))
        wv = nrm(lk[2], (HIDDEN, HIDDEN))
        wqkv.append(jnp.concatenate([wq, wk, wv], axis=1))       # (H, 3H)
        wo.append(nrm(lk[3], (HIDDEN, HIDDEN)))
        w1.append(nrm(lk[4], (HIDDEN, INTERMEDIATE)))
        w2.append(nrm(lk[5], (INTERMEDIATE, HIDDEN)))

    # packed per-layer vectors: rows = [bo, ln1_g, ln1_b, b2, ln2_g, ln2_b]
    vec_rows = jnp.stack([
        jnp.zeros((HIDDEN,)), jnp.ones((HIDDEN,)), jnp.zeros((HIDDEN,)),
        jnp.zeros((HIDDEN,)), jnp.ones((HIDDEN,)), jnp.zeros((HIDDEN,)),
    ], axis=0).astype(jnp.float32)                               # (6, H)

    return {
        "word_emb": nrm(keys[0], (VOCAB, HIDDEN)),
        "pos_emb": nrm(keys[1], (MAX_POS, HIDDEN)),
        "type_emb": nrm(keys[2], (2, HIDDEN)),
        "emb_ln": jnp.stack([jnp.ones((HIDDEN,)), jnp.zeros((HIDDEN,))],
                            axis=0).astype(jnp.float32),         # (2, H)
        "wqkv": jnp.stack(wqkv).astype(jnp.bfloat16),            # (L, H, 3H)
        "wo":   jnp.stack(wo).astype(jnp.bfloat16),              # (L, H, H)
        "w1":   jnp.stack(w1).astype(jnp.bfloat16),              # (L, H, I)
        "w2":   jnp.stack(w2).astype(jnp.bfloat16),              # (L, I, H)
        "bqkv": jnp.zeros((NUM_LAYERS, 1, 3 * HIDDEN), jnp.float32),
        "b1":   jnp.zeros((NUM_LAYERS, 1, INTERMEDIATE), jnp.float32),
        "vecs": jnp.tile(vec_rows[None], (NUM_LAYERS, 1, 1)),    # (L, 6, H)
    }


# ----------------------------- forward pass -----------------------------

@jax.jit
def scibert_forward(params, input_ids, attention_mask):
    """Equivalent of SciBERT_add_tokens.forward -> last_hidden_state (B, S, HIDDEN)."""
    B, S = input_ids.shape

    # ---- embeddings (glue: gathers stay in plain JAX) ----
    word = jnp.take(params["word_emb"], input_ids, axis=0)          # (B, S, H)
    pos = params["pos_emb"][:S][None, :, :]                         # (1, S, H)
    tok = params["type_emb"][0][None, None, :]                      # (1, 1, H)
    emb = word + pos + tok                                          # (B, S, H) f32

    # additive attention bias from the (B, S) {0,1} mask
    bias = jnp.where(attention_mask > 0, 0.0, -1e9).astype(jnp.float32).reshape(B, 1, S)

    # whole encoder (embedding LN + all layers) in ONE fused Pallas kernel
    return bert_encoder(emb, bias, params)


# ----------------------------- main -----------------------------

if __name__ == "__main__":
    key = jax.random.PRNGKey(0)
    k_param, k_ids = jax.random.split(key)

    params = init_params(k_param)

    B, S = 2, 128
    input_ids = jax.random.randint(k_ids, (B, S), 0, VOCAB, dtype=jnp.int32)
    attention_mask = jnp.ones((B, S), dtype=jnp.int32)
    # pad out the tail of the second sequence to exercise the mask path
    attention_mask = attention_mask.at[1, 96:].set(0)

    out = scibert_forward(params, input_ids, attention_mask)
    out = jax.block_until_ready(out)

    assert out.shape == (B, S, HIDDEN), out.shape
    assert out.dtype == jnp.float32
    assert bool(jnp.all(jnp.isfinite(out)))
    print("KERNEL_OK")
</pallas_src>

<mosaic_0001>
module attributes {stable_mosaic.version = 11 : i64} {
  func.func @_bert_encoder_kernel(%arg0: i32, %arg1: memref<1x128x128xf32, #tpu.memory_space<vmem>>, %arg2: memref<1x1x128xf32, #tpu.memory_space<vmem>>, %arg3: memref<2x128xf32, #tpu.memory_space<vmem>>, %arg4: memref<2x128x384xbf16, #tpu.memory_space<vmem>>, %arg5: memref<2x128x128xbf16, #tpu.memory_space<vmem>>, %arg6: memref<2x128x256xbf16, #tpu.memory_space<vmem>>, %arg7: memref<2x256x128xbf16, #tpu.memory_space<vmem>>, %arg8: memref<2x1x384xf32, #tpu.memory_space<vmem>>, %arg9: memref<2x1x256xf32, #tpu.memory_space<vmem>>, %arg10: memref<2x6x128xf32, #tpu.memory_space<vmem>>, %arg11: memref<1x128x128xf32, #tpu.memory_space<vmem>>) attributes {dimension_semantics = [#tpu.dimension_semantics<parallel>], iteration_bounds = array<i64: 2>, scalar_prefetch = 0 : i64, scratch_operands = 0 : i64, tpu.core_type = #tpu.core_type<tc>, window_params = [{transform_indices = @transform_0, window_bounds = array<i64: 1, 128, 128>}, {transform_indices = @transform_1, window_bounds = array<i64: 1, 1, 128>}, {pipeline_mode = #tpu.pipeline_mode<synchronous>, transform_indices = @transform_2, window_bounds = array<i64: 2, 128>}, {pipeline_mode = #tpu.pipeline_mode<synchronous>, transform_indices = @transform_3, window_bounds = array<i64: 2, 128, 384>}, {pipeline_mode = #tpu.pipeline_mode<synchronous>, transform_indices = @transform_4, window_bounds = array<i64: 2, 128, 128>}, {pipeline_mode = #tpu.pipeline_mode<synchronous>, transform_indices = @transform_5, window_bounds = array<i64: 2, 128, 256>}, {pipeline_mode = #tpu.pipeline_mode<synchronous>, transform_indices = @transform_6, window_bounds = array<i64: 2, 256, 128>}, {pipeline_mode = #tpu.pipeline_mode<synchronous>, transform_indices = @transform_7, window_bounds = array<i64: 2, 1, 384>}, {pipeline_mode = #tpu.pipeline_mode<synchronous>, transform_indices = @transform_8, window_bounds = array<i64: 2, 1, 256>}, {pipeline_mode = #tpu.pipeline_mode<synchronous>, transform_indices = @transform_9, window_bounds = array<i64: 2, 6, 128>}, {transform_indices = @transform_10, window_bounds = array<i64: 1, 128, 128>}]} {
    %c0 = arith.constant 0 : index
    %c0_0 = arith.constant 0 : index
    %c0_1 = arith.constant 0 : index
    %0 = vector.load %arg2[%c0, %c0_0, %c0_1] : memref<1x1x128xf32, #tpu.memory_space<vmem>>, vector<1x1x128xf32>
    %1 = vector.shape_cast %0 : vector<1x1x128xf32> to vector<1x128xf32>
    %c0_2 = arith.constant 0 : index
    %c0_3 = arith.constant 0 : index
    %2 = vector.load %arg3[%c0_2, %c0_3] : memref<2x128xf32, #tpu.memory_space<vmem>>, vector<2x128xf32>
    %c0_4 = arith.constant 0 : index
    %c0_5 = arith.constant 0 : index
    %c0_6 = arith.constant 0 : index
    %3 = vector.load %arg1[%c0_4, %c0_5, %c0_6] : memref<1x128x128xf32, #tpu.memory_space<vmem>>, vector<1x128x128xf32>
    %4 = vector.shape_cast %3 : vector<1x128x128xf32> to vector<128x128xf32>
    %5 = vector.extract_strided_slice %2 {offsets = [0, 0], sizes = [1, 128], strides = [1, 1]} : vector<2x128xf32> to vector<1x128xf32>
    %6 = vector.extract_strided_slice %2 {offsets = [1, 0], sizes = [1, 128], strides = [1, 1]} : vector<2x128xf32> to vector<1x128xf32>
    %cst = arith.constant dense<0.000000e+00> : vector<128xf32>
    %7 = vector.multi_reduction <add>, %4, %cst [1] : vector<128x128xf32> to vector<128xf32>
    %8 = vector.shape_cast %7 : vector<128xf32> to vector<128x1xf32>
    %cst_7 = arith.constant 1.280000e+02 : f32
    %9 = vector.broadcast %cst_7 : f32 to vector<128x1xf32>
    %10 = arith.divf %8, %9 : vector<128x1xf32>
    %11 = vector.broadcast %10 : vector<128x1xf32> to vector<128x128xf32>
    %12 = arith.subf %4, %11 : vector<128x128xf32>
    %13 = arith.mulf %12, %12 : vector<128x128xf32>
    %cst_8 = arith.constant dense<0.000000e+00> : vector<128xf32>
    %14 = vector.multi_reduction <add>, %13, %cst_8 [1] : vector<128x128xf32> to vector<128xf32>
    %15 = vector.shape_cast %14 : vector<128xf32> to vector<128x1xf32>
    %cst_9 = arith.constant 1.280000e+02 : f32
    %16 = vector.broadcast %cst_9 : f32 to vector<128x1xf32>
    %17 = arith.divf %15, %16 : vector<128x1xf32>
    %cst_10 = arith.constant 9.99999996E-13 : f32
    %18 = vector.broadcast %cst_10 : f32 to vector<128x1xf32>
    %19 = arith.addf %17, %18 : vector<128x1xf32>
    %20 = math.rsqrt %19 : vector<128x1xf32>
    %21 = vector.broadcast %20 : vector<128x1xf32> to vector<128x128xf32>
    %22 = arith.mulf %12, %21 : vector<128x128xf32>
    %23 = vector.broadcast %5 : vector<1x128xf32> to vector<128x128xf32>
    %24 = arith.mulf %22, %23 : vector<128x128xf32>
    %25 = vector.broadcast %6 : vector<1x128xf32> to vector<128x128xf32>
    %26 = arith.addf %24, %25 : vector<128x128xf32>
    %c0_11 = arith.constant 0 : index
    %c0_12 = arith.constant 0 : index
    %c0_13 = arith.constant 0 : index
    %27 = vector.load %arg10[%c0_11, %c0_12, %c0_13] : memref<2x6x128xf32, #tpu.memory_space<vmem>>, vector<1x6x128xf32>
    %28 = vector.shape_cast %27 : vector<1x6x128xf32> to vector<6x128xf32>
    %29 = vector.extract_strided_slice %28 {offsets = [0, 0], sizes = [1, 128], strides = [1, 1]} : vector<6x128xf32> to vector<1x128xf32>
    %30 = vector.extract_strided_slice %28 {offsets = [1, 0], sizes = [1, 128], strides = [1, 1]} : vector<6x128xf32> to vector<1x128xf32>
    %31 = vector.extract_strided_slice %28 {offsets = [2, 0], sizes = [1, 128], strides = [1, 1]} : vector<6x128xf32> to vector<1x128xf32>
    %32 = vector.extract_strided_slice %28 {offsets = [3, 0], sizes = [1, 128], strides = [1, 1]} : vector<6x128xf32> to vector<1x128xf32>
    %33 = vector.extract_strided_slice %28 {offsets = [4, 0], sizes = [1, 128], strides = [1, 1]} : vector<6x128xf32> to vector<1x128xf32>
    %34 = vector.extract_strided_slice %28 {offsets = [5, 0], sizes = [1, 128], strides = [1, 1]} : vector<6x128xf32> to vector<1x128xf32>
    %c0_14 = arith.constant 0 : index
    %c0_15 = arith.constant 0 : index
    %c0_16 = arith.constant 0 : index
    %35 = vector.load %arg5[%c0_14, %c0_15, %c0_16] : memref<2x128x128xbf16, #tpu.memory_space<vmem>>, vector<1x128x128xbf16>
    %36 = vector.shape_cast %35 : vector<1x128x128xbf16> to vector<128x128xbf16>
    %37 = arith.truncf %26 : vector<128x128xf32> to vector<128x128xbf16>
    %c0_17 = arith.constant 0 : index
    %c0_18 = arith.constant 0 : index
    %c0_19 = arith.constant 0 : index
    %38 = vector.load %arg4[%c0_17, %c0_18, %c0_19] : memref<2x128x384xbf16, #tpu.memory_space<vmem>>, vector<1x128x384xbf16>
    %39 = vector.shape_cast %38 : vector<1x128x384xbf16> to vector<128x384xbf16>
    %cst_20 = arith.constant dense<0.000000e+00> : vector<128x384xf32>
    %40 = tpu.matmul %37, %39, %cst_20 {dimension_numbers = #tpu.dot_dimension_numbers<[1], [0], [0], [1], [0, 0, 1, 1], [], []>} : vector<128x128xbf16>, vector<128x384xbf16>, vector<128x384xf32> -> vector<128x384xf32>
    %c0_21 = arith.constant 0 : index
    %c0_22 = arith.constant 0 : index
    %c0_23 = arith.constant 0 : index
    %41 = vector.load %arg8[%c0_21, %c0_22, %c0_23] : memref<2x1x384xf32, #tpu.memory_space<vmem>>, vector<1x1x384xf32>
    %42 = vector.shape_cast %41 : vector<1x1x384xf32> to vector<1x384xf32>
    %43 = vector.broadcast %42 : vector<1x384xf32> to vector<128x384xf32>
    %44 = arith.addf %40, %43 : vector<128x384xf32>
    %45 = vector.extract_strided_slice %44 {offsets = [0, 0], sizes = [128, 64], strides = [1, 1]} : vector<128x384xf32> to vector<128x64xf32>
    %46 = vector.extract_strided_slice %44 {offsets = [0, 128], sizes = [128, 64], strides = [1, 1]} : vector<128x384xf32> to vector<128x64xf32>
    %47 = vector.extract_strided_slice %44 {offsets = [0, 256], sizes = [128, 64], strides = [1, 1]} : vector<128x384xf32> to vector<128x64xf32>
    %48 = arith.truncf %45 : vector<128x64xf32> to vector<128x64xbf16>
    %49 = arith.truncf %46 : vector<128x64xf32> to vector<128x64xbf16>
    %cst_24 = arith.constant dense<0.000000e+00> : vector<128x128xf32>
    %50 = tpu.matmul %48, %49, %cst_24 {dimension_numbers = #tpu.dot_dimension_numbers<[1], [1], [0], [0], [0, 0, 1, 0], [], []>} : vector<128x64xbf16>, vector<128x64xbf16>, vector<128x128xf32> -> vector<128x128xf32>
    %51 = vector.broadcast %1 : vector<1x128xf32> to vector<128x128xf32>
    %52 = arith.addf %50, %51 : vector<128x128xf32>
    %cst_25 = arith.constant dense<0xFF800000> : vector<128xf32>
    %53 = vector.multi_reduction <maximumf>, %52, %cst_25 [1] : vector<128x128xf32> to vector<128xf32>
    %54 = vector.shape_cast %53 : vector<128xf32> to vector<128x1xf32>
    %55 = vector.broadcast %54 : vector<128x1xf32> to vector<128x128xf32>
    %56 = arith.subf %52, %55 : vector<128x128xf32>
    %57 = math.exp %56 : vector<128x128xf32>
    %cst_26 = arith.constant dense<0.000000e+00> : vector<128xf32>
    %58 = vector.multi_reduction <add>, %57, %cst_26 [1] : vector<128x128xf32> to vector<128xf32>
    %59 = vector.shape_cast %58 : vector<128xf32> to vector<128x1xf32>
    %60 = tpu.reciprocal %59 : vector<128x1xf32> -> vector<128x1xf32>
    %61 = vector.broadcast %60 : vector<128x1xf32> to vector<128x128xf32>
    %62 = arith.mulf %57, %61 : vector<128x128xf32>
    %63 = arith.truncf %62 : vector<128x128xf32> to vector<128x128xbf16>
    %64 = arith.truncf %47 : vector<128x64xf32> to vector<128x64xbf16>
    %cst_27 = arith.constant dense<0.000000e+00> : vector<128x64xf32>
    %65 = tpu.matmul %63, %64, %cst_27 {dimension_numbers = #tpu.dot_dimension_numbers<[1], [0], [0], [1], [0, 0, 1, 1], [], []>} : vector<128x128xbf16>, vector<128x64xbf16>, vector<128x64xf32> -> vector<128x64xf32>
    %66 = arith.truncf %65 : vector<128x64xf32> to vector<128x64xbf16>
    %67 = vector.extract_strided_slice %36 {offsets = [0, 0], sizes = [64, 128], strides = [1, 1]} : vector<128x128xbf16> to vector<64x128xbf16>
    %cst_28 = arith.constant dense<0.000000e+00> : vector<128x128xf32>
    %68 = tpu.matmul %66, %67, %cst_28 {dimension_numbers = #tpu.dot_dimension_numbers<[1], [0], [0], [1], [0, 0, 1, 1], [], []>} : vector<128x64xbf16>, vector<64x128xbf16>, vector<128x128xf32> -> vector<128x128xf32>
    %69 = vector.extract_strided_slice %44 {offsets = [0, 64], sizes = [128, 64], strides = [1, 1]} : vector<128x384xf32> to vector<128x64xf32>
    %70 = vector.extract_strided_slice %44 {offsets = [0, 192], sizes = [128, 64], strides = [1, 1]} : vector<128x384xf32> to vector<128x64xf32>
    %71 = vector.extract_strided_slice %44 {offsets = [0, 320], sizes = [128, 64], strides = [1, 1]} : vector<128x384xf32> to vector<128x64xf32>
    %72 = arith.truncf %69 : vector<128x64xf32> to vector<128x64xbf16>
    %73 = arith.truncf %70 : vector<128x64xf32> to vector<128x64xbf16>
    %cst_29 = arith.constant dense<0.000000e+00> : vector<128x128xf32>
    %74 = tpu.matmul %72, %73, %cst_29 {dimension_numbers = #tpu.dot_dimension_numbers<[1], [1], [0], [0], [0, 0, 1, 0], [], []>} : vector<128x64xbf16>, vector<128x64xbf16>, vector<128x128xf32> -> vector<128x128xf32>
    %75 = vector.broadcast %1 : vector<1x128xf32> to vector<128x128xf32>
    %76 = arith.addf %74, %75 : vector<128x128xf32>
    %cst_30 = arith.constant dense<0xFF800000> : vector<128xf32>
    %77 = vector.multi_reduction <maximumf>, %76, %cst_30 [1] : vector<128x128xf32> to vector<128xf32>
    %78 = vector.shape_cast %77 : vector<128xf32> to vector<128x1xf32>
    %79 = vector.broadcast %78 : vector<128x1xf32> to vector<128x128xf32>
    %80 = arith.subf %76, %79 : vector<128x128xf32>
    %81 = math.exp %80 : vector<128x128xf32>
    %cst_31 = arith.constant dense<0.000000e+00> : vector<128xf32>
    %82 = vector.multi_reduction <add>, %81, %cst_31 [1] : vector<128x128xf32> to vector<128xf32>
    %83 = vector.shape_cast %82 : vector<128xf32> to vector<128x1xf32>
    %84 = tpu.reciprocal %83 : vector<128x1xf32> -> vector<128x1xf32>
    %85 = vector.broadcast %84 : vector<128x1xf32> to vector<128x128xf32>
    %86 = arith.mulf %81, %85 : vector<128x128xf32>
    %87 = arith.truncf %86 : vector<128x128xf32> to vector<128x128xbf16>
    %88 = arith.truncf %71 : vector<128x64xf32> to vector<128x64xbf16>
    %cst_32 = arith.constant dense<0.000000e+00> : vector<128x64xf32>
    %89 = tpu.matmul %87, %88, %cst_32 {dimension_numbers = #tpu.dot_dimension_numbers<[1], [0], [0], [1], [0, 0, 1, 1], [], []>} : vector<128x128xbf16>, vector<128x64xbf16>, vector<128x64xf32> -> vector<128x64xf32>
    %90 = arith.truncf %89 : vector<128x64xf32> to vector<128x64xbf16>
    %91 = vector.extract_strided_slice %36 {offsets = [64, 0], sizes = [64, 128], strides = [1, 1]} : vector<128x128xbf16> to vector<64x128xbf16>
    %cst_33 = arith.constant dense<0.000000e+00> : vector<128x128xf32>
    %92 = tpu.matmul %90, %91, %cst_33 {dimension_numbers = #tpu.dot_dimension_numbers<[1], [0], [0], [1], [0, 0, 1, 1], [], []>} : vector<128x64xbf16>, vector<64x128xbf16>, vector<128x128xf32> -> vector<128x128xf32>
    %93 = arith.addf %68, %92 : vector<128x128xf32>
    %94 = vector.broadcast %29 : vector<1x128xf32> to vector<128x128xf32>
    %95 = arith.addf %93, %94 : vector<128x128xf32>
    %96 = arith.addf %95, %26 : vector<128x128xf32>
    %cst_34 = arith.constant dense<0.000000e+00> : vector<128xf32>
    %97 = vector.multi_reduction <add>, %96, %cst_34 [1] : vector<128x128xf32> to vector<128xf32>
    %98 = vector.shape_cast %97 : vector<128xf32> to vector<128x1xf32>
    %cst_35 = arith.constant 1.280000e+02 : f32
    %99 = vector.broadcast %cst_35 : f32 to vector<128x1xf32>
    %100 = arith.divf %98, %99 : vector<128x1xf32>
    %101 = vector.broadcast %100 : vector<128x1xf32> to vector<128x128xf32>
    %102 = arith.subf %96, %101 : vector<128x128xf32>
    %103 = arith.mulf %102, %102 : vector<128x128xf32>
    %cst_36 = arith.constant dense<0.000000e+00> : vector<128xf32>
    %104 = vector.multi_reduction <add>, %103, %cst_36 [1] : vector<128x128xf32> to vector<128xf32>
    %105 = vector.shape_cast %104 : vector<128xf32> to vector<128x1xf32>
    %cst_37 = arith.constant 1.280000e+02 : f32
    %106 = vector.broadcast %cst_37 : f32 to vector<128x1xf32>
    %107 = arith.divf %105, %106 : vector<128x1xf32>
    %cst_38 = arith.constant 9.99999996E-13 : f32
    %108 = vector.broadcast %cst_38 : f32 to vector<128x1xf32>
    %109 = arith.addf %107, %108 : vector<128x1xf32>
    %110 = math.rsqrt %109 : vector<128x1xf32>
    %111 = vector.broadcast %110 : vector<128x1xf32> to vector<128x128xf32>
    %112 = arith.mulf %102, %111 : vector<128x128xf32>
    %113 = vector.broadcast %30 : vector<1x128xf32> to vector<128x128xf32>
    %114 = arith.mulf %112, %113 : vector<128x128xf32>
    %115 = vector.broadcast %31 : vector<1x128xf32> to vector<128x128xf32>
    %116 = arith.addf %114, %115 : vector<128x128xf32>
    %117 = arith.truncf %116 : vector<128x128xf32> to vector<128x128xbf16>
    %c0_39 = arith.constant 0 : index
    %c0_40 = arith.constant 0 : index
    %c0_41 = arith.constant 0 : index
    %118 = vector.load %arg6[%c0_39, %c0_40, %c0_41] : memref<2x128x256xbf16, #tpu.memory_space<vmem>>, vector<1x128x256xbf16>
    %119 = vector.shape_cast %118 : vector<1x128x256xbf16> to vector<128x256xbf16>
    %cst_42 = arith.constant dense<0.000000e+00> : vector<128x256xf32>
    %120 = tpu.matmul %117, %119, %cst_42 {dimension_numbers = #tpu.dot_dimension_numbers<[1], [0], [0], [1], [0, 0, 1, 1], [], []>} : vector<128x128xbf16>, vector<128x256xbf16>, vector<128x256xf32> -> vector<128x256xf32>
    %c0_43 = arith.constant 0 : index
    %c0_44 = arith.constant 0 : index
    %c0_45 = arith.constant 0 : index
    %121 = vector.load %arg9[%c0_43, %c0_44, %c0_45] : memref<2x1x256xf32, #tpu.memory_space<vmem>>, vector<1x1x256xf32>
    %122 = vector.shape_cast %121 : vector<1x1x256xf32> to vector<1x256xf32>
    %123 = vector.broadcast %122 : vector<1x256xf32> to vector<128x256xf32>
    %124 = arith.addf %120, %123 : vector<128x256xf32>
    %cst_46 = arith.constant 5.000000e-01 : f32
    %125 = vector.broadcast %cst_46 : f32 to vector<128x256xf32>
    %126 = arith.mulf %125, %124 : vector<128x256xf32>
    %cst_47 = arith.constant 4.471500e-02 : f32
    %127 = vector.broadcast %cst_47 : f32 to vector<128x256xf32>
    %128 = arith.mulf %127, %124 : vector<128x256xf32>
    %129 = arith.mulf %128, %124 : vector<128x256xf32>
    %130 = arith.mulf %129, %124 : vector<128x256xf32>
    %131 = arith.addf %124, %130 : vector<128x256xf32>
    %cst_48 = arith.constant 0.797884583 : f32
    %132 = vector.broadcast %cst_48 : f32 to vector<128x256xf32>
    %133 = arith.mulf %132, %131 : vector<128x256xf32>
    %134 = math.tanh %133 : vector<128x256xf32>
    %cst_49 = arith.constant 1.000000e+00 : f32
    %135 = vector.broadcast %cst_49 : f32 to vector<128x256xf32>
    %136 = arith.addf %135, %134 : vector<128x256xf32>
    %137 = arith.mulf %126, %136 : vector<128x256xf32>
    %138 = arith.truncf %137 : vector<128x256xf32> to vector<128x256xbf16>
    %c0_50 = arith.constant 0 : index
    %c0_51 = arith.constant 0 : index
    %c0_52 = arith.constant 0 : index
    %139 = vector.load %arg7[%c0_50, %c0_51, %c0_52] : memref<2x256x128xbf16, #tpu.memory_space<vmem>>, vector<1x256x128xbf16>
    %140 = vector.shape_cast %139 : vector<1x256x128xbf16> to vector<256x128xbf16>
    %cst_53 = arith.constant dense<0.000000e+00> : vector<128x128xf32>
    %141 = tpu.matmul %138, %140, %cst_53 {dimension_numbers = #tpu.dot_dimension_numbers<[1], [0], [0], [1], [0, 0, 1, 1], [], []>} : vector<128x256xbf16>, vector<256x128xbf16>, vector<128x128xf32> -> vector<128x128xf32>
    %142 = vector.broadcast %32 : vector<1x128xf32> to vector<128x128xf32>
    %143 = arith.addf %141, %142 : vector<128x128xf32>
    %144 = arith.addf %143, %116 : vector<128x128xf32>
    %cst_54 = arith.constant dense<0.000000e+00> : vector<128xf32>
    %145 = vector.multi_reduction <add>, %144, %cst_54 [1] : vector<128x128xf32> to vector<128xf32>
    %146 = vector.shape_cast %145 : vector<128xf32> to vector<128x1xf32>
    %cst_55 = arith.constant 1.280000e+02 : f32
    %147 = vector.broadcast %cst_55 : f32 to vector<128x1xf32>
    %148 = arith.divf %146, %147 : vector<128x1xf32>
    %149 = vector.broadcast %148 : vector<128x1xf32> to vector<128x128xf32>
    %150 = arith.subf %144, %149 : vector<128x128xf32>
    %151 = arith.mulf %150, %150 : vector<128x128xf32>
    %cst_56 = arith.constant dense<0.000000e+00> : vector<128xf32>
    %152 = vector.multi_reduction <add>, %151, %cst_56 [1] : vector<128x128xf32> to vector<128xf32>
    %153 = vector.shape_cast %152 : vector<128xf32> to vector<128x1xf32>
    %cst_57 = arith.constant 1.280000e+02 : f32
    %154 = vector.broadcast %cst_57 : f32 to vector<128x1xf32>
    %155 = arith.divf %153, %154 : vector<128x1xf32>
    %cst_58 = arith.constant 9.99999996E-13 : f32
    %156 = vector.broadcast %cst_58 : f32 to vector<128x1xf32>
    %157 = arith.addf %155, %156 : vector<128x1xf32>
    %158 = math.rsqrt %157 : vector<128x1xf32>
    %159 = vector.broadcast %158 : vector<128x1xf32> to vector<128x128xf32>
    %160 = arith.mulf %150, %159 : vector<128x128xf32>
    %161 = vector.broadcast %33 : vector<1x128xf32> to vector<128x128xf32>
    %162 = arith.mulf %160, %161 : vector<128x128xf32>
    %163 = vector.broadcast %34 : vector<1x128xf32> to vector<128x128xf32>
    %164 = arith.addf %162, %163 : vector<128x128xf32>
    %c1 = arith.constant 1 : index
    %c0_59 = arith.constant 0 : index
    %c0_60 = arith.constant 0 : index
    %165 = vector.load %arg10[%c1, %c0_59, %c0_60] : memref<2x6x128xf32, #tpu.memory_space<vmem>>, vector<1x6x128xf32>
    %166 = vector.shape_cast %165 : vector<1x6x128xf32> to vector<6x128xf32>
    %167 = vector.extract_strided_slice %166 {offsets = [0, 0], sizes = [1, 128], strides = [1, 1]} : vector<6x128xf32> to vector<1x128xf32>
    %168 = vector.extract_strided_slice %166 {offsets = [1, 0], sizes = [1, 128], strides = [1, 1]} : vector<6x128xf32> to vector<1x128xf32>
    %169 = vector.extract_strided_slice %166 {offsets = [2, 0], sizes = [1, 128], strides = [1, 1]} : vector<6x128xf32> to vector<1x128xf32>
    %170 = vector.extract_strided_slice %166 {offsets = [3, 0], sizes = [1, 128], strides = [1, 1]} : vector<6x128xf32> to vector<1x128xf32>
    %171 = vector.extract_strided_slice %166 {offsets = [4, 0], sizes = [1, 128], strides = [1, 1]} : vector<6x128xf32> to vector<1x128xf32>
    %172 = vector.extract_strided_slice %166 {offsets = [5, 0], sizes = [1, 128], strides = [1, 1]} : vector<6x128xf32> to vector<1x128xf32>
    %c1_61 = arith.constant 1 : index
    %c0_62 = arith.constant 0 : index
    %c0_63 = arith.constant 0 : index
    %173 = vector.load %arg5[%c1_61, %c0_62, %c0_63] : memref<2x128x128xbf16, #tpu.memory_space<vmem>>, vector<1x128x128xbf16>
    %174 = vector.shape_cast %173 : vector<1x128x128xbf16> to vector<128x128xbf16>
    %175 = arith.truncf %164 : vector<128x128xf32> to vector<128x128xbf16>
    %c1_64 = arith.constant 1 : index
    %c0_65 = arith.constant 0 : index
    %c0_66 = arith.constant 0 : index
    %176 = vector.load %arg4[%c1_64, %c0_65, %c0_66] : memref<2x128x384xbf16, #tpu.memory_space<vmem>>, vector<1x128x384xbf16>
    %177 = vector.shape_cast %176 : vector<1x128x384xbf16> to vector<128x384xbf16>
    %cst_67 = arith.constant dense<0.000000e+00> : vector<128x384xf32>
    %178 = tpu.matmul %175, %177, %cst_67 {dimension_numbers = #tpu.dot_dimension_numbers<[1], [0], [0], [1], [0, 0, 1, 1], [], []>} : vector<128x128xbf16>, vector<128x384xbf16>, vector<128x384xf32> -> vector<128x384xf32>
    %c1_68 = arith.constant 1 : index
    %c0_69 = arith.constant 0 : index
    %c0_70 = arith.constant 0 : index
    %179 = vector.load %arg8[%c1_68, %c0_69, %c0_70] : memref<2x1x384xf32, #tpu.memory_space<vmem>>, vector<1x1x384xf32>
    %180 = vector.shape_cast %179 : vector<1x1x384xf32> to vector<1x384xf32>
    %181 = vector.broadcast %180 : vector<1x384xf32> to vector<128x384xf32>
    %182 = arith.addf %178, %181 : vector<128x384xf32>
    %183 = vector.extract_strided_slice %182 {offsets = [0, 0], sizes = [128, 64], strides = [1, 1]} : vector<128x384xf32> to vector<128x64xf32>
    %184 = vector.extract_strided_slice %182 {offsets = [0, 128], sizes = [128, 64], strides = [1, 1]} : vector<128x384xf32> to vector<128x64xf32>
    %185 = vector.extract_strided_slice %182 {offsets = [0, 256], sizes = [128, 64], strides = [1, 1]} : vector<128x384xf32> to vector<128x64xf32>
    %186 = arith.truncf %183 : vector<128x64xf32> to vector<128x64xbf16>
    %187 = arith.truncf %184 : vector<128x64xf32> to vector<128x64xbf16>
    %cst_71 = arith.constant dense<0.000000e+00> : vector<128x128xf32>
    %188 = tpu.matmul %186, %187, %cst_71 {dimension_numbers = #tpu.dot_dimension_numbers<[1], [1], [0], [0], [0, 0, 1, 0], [], []>} : vector<128x64xbf16>, vector<128x64xbf16>, vector<128x128xf32> -> vector<128x128xf32>
    %189 = vector.broadcast %1 : vector<1x128xf32> to vector<128x128xf32>
    %190 = arith.addf %188, %189 : vector<128x128xf32>
    %cst_72 = arith.constant dense<0xFF800000> : vector<128xf32>
    %191 = vector.multi_reduction <maximumf>, %190, %cst_72 [1] : vector<128x128xf32> to vector<128xf32>
    %192 = vector.shape_cast %191 : vector<128xf32> to vector<128x1xf32>
    %193 = vector.broadcast %192 : vector<128x1xf32> to vector<128x128xf32>
    %194 = arith.subf %190, %193 : vector<128x128xf32>
    %195 = math.exp %194 : vector<128x128xf32>
    %cst_73 = arith.constant dense<0.000000e+00> : vector<128xf32>
    %196 = vector.multi_reduction <add>, %195, %cst_73 [1] : vector<128x128xf32> to vector<128xf32>
    %197 = vector.shape_cast %196 : vector<128xf32> to vector<128x1xf32>
    %198 = tpu.reciprocal %197 : vector<128x1xf32> -> vector<128x1xf32>
    %199 = vector.broadcast %198 : vector<128x1xf32> to vector<128x128xf32>
    %200 = arith.mulf %195, %199 : vector<128x128xf32>
    %201 = arith.truncf %200 : vector<128x128xf32> to vector<128x128xbf16>
    %202 = arith.truncf %185 : vector<128x64xf32> to vector<128x64xbf16>
    %cst_74 = arith.constant dense<0.000000e+00> : vector<128x64xf32>
    %203 = tpu.matmul %201, %202, %cst_74 {dimension_numbers = #tpu.dot_dimension_numbers<[1], [0], [0], [1], [0, 0, 1, 1], [], []>} : vector<128x128xbf16>, vector<128x64xbf16>, vector<128x64xf32> -> vector<128x64xf32>
    %204 = arith.truncf %203 : vector<128x64xf32> to vector<128x64xbf16>
    %205 = vector.extract_strided_slice %174 {offsets = [0, 0], sizes = [64, 128], strides = [1, 1]} : vector<128x128xbf16> to vector<64x128xbf16>
    %cst_75 = arith.constant dense<0.000000e+00> : vector<128x128xf32>
    %206 = tpu.matmul %204, %205, %cst_75 {dimension_numbers = #tpu.dot_dimension_numbers<[1], [0], [0], [1], [0, 0, 1, 1], [], []>} : vector<128x64xbf16>, vector<64x128xbf16>, vector<128x128xf32> -> vector<128x128xf32>
    %207 = vector.extract_strided_slice %182 {offsets = [0, 64], sizes = [128, 64], strides = [1, 1]} : vector<128x384xf32> to vector<128x64xf32>
    %208 = vector.extract_strided_slice %182 {offsets = [0, 192], sizes = [128, 64], strides = [1, 1]} : vector<128x384xf32> to vector<128x64xf32>
    %209 = vector.extract_strided_slice %182 {offsets = [0, 320], sizes = [128, 64], strides = [1, 1]} : vector<128x384xf32> to vector<128x64xf32>
    %210 = arith.truncf %207 : vector<128x64xf32> to vector<128x64xbf16>
    %211 = arith.truncf %208 : vector<128x64xf32> to vector<128x64xbf16>
    %cst_76 = arith.constant dense<0.000000e+00> : vector<128x128xf32>
    %212 = tpu.matmul %210, %211, %cst_76 {dimension_numbers = #tpu.dot_dimension_numbers<[1], [1], [0], [0], [0, 0, 1, 0], [], []>} : vector<128x64xbf16>, vector<128x64xbf16>, vector<128x128xf32> -> vector<128x128xf32>
    %213 = vector.broadcast %1 : vector<1x128xf32> to vector<128x128xf32>
    %214 = arith.addf %212, %213 : vector<128x128xf32>
    %cst_77 = arith.constant dense<0xFF800000> : vector<128xf32>
    %215 = vector.multi_reduction <maximumf>, %214, %cst_77 [1] : vector<128x128xf32> to vector<128xf32>
    %216 = vector.shape_cast %215 : vector<128xf32> to vector<128x1xf32>
    %217 = vector.broadcast %216 : vector<128x1xf32> to vector<128x128xf32>
    %218 = arith.subf %214, %217 : vector<128x128xf32>
    %219 = math.exp %218 : vector<128x128xf32>
    %cst_78 = arith.constant dense<0.000000e+00> : vector<128xf32>
    %220 = vector.multi_reduction <add>, %219, %cst_78 [1] : vector<128x128xf32> to vector<128xf32>
    %221 = vector.shape_cast %220 : vector<128xf32> to vector<128x1xf32>
    %222 = tpu.reciprocal %221 : vector<128x1xf32> -> vector<128x1xf32>
    %223 = vector.broadcast %222 : vector<128x1xf32> to vector<128x128xf32>
    %224 = arith.mulf %219, %223 : vector<128x128xf32>
    %225 = arith.truncf %224 : vector<128x128xf32> to vector<128x128xbf16>
    %226 = arith.truncf %209 : vector<128x64xf32> to vector<128x64xbf16>
    %cst_79 = arith.constant dense<0.000000e+00> : vector<128x64xf32>
    %227 = tpu.matmul %225, %226, %cst_79 {dimension_numbers = #tpu.dot_dimension_numbers<[1], [0], [0], [1], [0, 0, 1, 1], [], []>} : vector<128x128xbf16>, vector<128x64xbf16>, vector<128x64xf32> -> vector<128x64xf32>
    %228 = arith.truncf %227 : vector<128x64xf32> to vector<128x64xbf16>
    %229 = vector.extract_strided_slice %174 {offsets = [64, 0], sizes = [64, 128], strides = [1, 1]} : vector<128x128xbf16> to vector<64x128xbf16>
    %cst_80 = arith.constant dense<0.000000e+00> : vector<128x128xf32>
    %230 = tpu.matmul %228, %229, %cst_80 {dimension_numbers = #tpu.dot_dimension_numbers<[1], [0], [0], [1], [0, 0, 1, 1], [], []>} : vector<128x64xbf16>, vector<64x128xbf16>, vector<128x128xf32> -> vector<128x128xf32>
    %231 = arith.addf %206, %230 : vector<128x128xf32>
    %232 = vector.broadcast %167 : vector<1x128xf32> to vector<128x128xf32>
    %233 = arith.addf %231, %232 : vector<128x128xf32>
    %234 = arith.addf %233, %164 : vector<128x128xf32>
    %cst_81 = arith.constant dense<0.000000e+00> : vector<128xf32>
    %235 = vector.multi_reduction <add>, %234, %cst_81 [1] : vector<128x128xf32> to vector<128xf32>
    %236 = vector.shape_cast %235 : vector<128xf32> to vector<128x1xf32>
    %cst_82 = arith.constant 1.280000e+02 : f32
    %237 = vector.broadcast %cst_82 : f32 to vector<128x1xf32>
    %238 = arith.divf %236, %237 : vector<128x1xf32>
    %239 = vector.broadcast %238 : vector<128x1xf32> to vector<128x128xf32>
    %240 = arith.subf %234, %239 : vector<128x128xf32>
    %241 = arith.mulf %240, %240 : vector<128x128xf32>
    %cst_83 = arith.constant dense<0.000000e+00> : vector<128xf32>
    %242 = vector.multi_reduction <add>, %241, %cst_83 [1] : vector<128x128xf32> to vector<128xf32>
    %243 = vector.shape_cast %242 : vector<128xf32> to vector<128x1xf32>
    %cst_84 = arith.constant 1.280000e+02 : f32
    %244 = vector.broadcast %cst_84 : f32 to vector<128x1xf32>
    %245 = arith.divf %243, %244 : vector<128x1xf32>
    %cst_85 = arith.constant 9.99999996E-13 : f32
    %246 = vector.broadcast %cst_85 : f32 to vector<128x1xf32>
    %247 = arith.addf %245, %246 : vector<128x1xf32>
    %248 = math.rsqrt %247 : vector<128x1xf32>
    %249 = vector.broadcast %248 : vector<128x1xf32> to vector<128x128xf32>
    %250 = arith.mulf %240, %249 : vector<128x128xf32>
    %251 = vector.broadcast %168 : vector<1x128xf32> to vector<128x128xf32>
    %252 = arith.mulf %250, %251 : vector<128x128xf32>
    %253 = vector.broadcast %169 : vector<1x128xf32> to vector<128x128xf32>
    %254 = arith.addf %252, %253 : vector<128x128xf32>
    %255 = arith.truncf %254 : vector<128x128xf32> to vector<128x128xbf16>
    %c1_86 = arith.constant 1 : index
    %c0_87 = arith.constant 0 : index
    %c0_88 = arith.constant 0 : index
    %256 = vector.load %arg6[%c1_86, %c0_87, %c0_88] : memref<2x128x256xbf16, #tpu.memory_space<vmem>>, vector<1x128x256xbf16>
    %257 = vector.shape_cast %256 : vector<1x128x256xbf16> to vector<128x256xbf16>
    %cst_89 = arith.constant dense<0.000000e+00> : vector<128x256xf32>
    %258 = tpu.matmul %255, %257, %cst_89 {dimension_numbers = #tpu.dot_dimension_numbers<[1], [0], [0], [1], [0, 0, 1, 1], [], []>} : vector<128x128xbf16>, vector<128x256xbf16>, vector<128x256xf32> -> vector<128x256xf32>
    %c1_90 = arith.constant 1 : index
    %c0_91 = arith.constant 0 : index
    %c0_92 = arith.constant 0 : index
    %259 = vector.load %arg9[%c1_90, %c0_91, %c0_92] : memref<2x1x256xf32, #tpu.memory_space<vmem>>, vector<1x1x256xf32>
    %260 = vector.shape_cast %259 : vector<1x1x256xf32> to vector<1x256xf32>
    %261 = vector.broadcast %260 : vector<1x256xf32> to vector<128x256xf32>
    %262 = arith.addf %258, %261 : vector<128x256xf32>
    %cst_93 = arith.constant 5.000000e-01 : f32
    %263 = vector.broadcast %cst_93 : f32 to vector<128x256xf32>
    %264 = arith.mulf %263, %262 : vector<128x256xf32>
    %cst_94 = arith.constant 4.471500e-02 : f32
    %265 = vector.broadcast %cst_94 : f32 to vector<128x256xf32>
    %266 = arith.mulf %265, %262 : vector<128x256xf32>
    %267 = arith.mulf %266, %262 : vector<128x256xf32>
    %268 = arith.mulf %267, %262 : vector<128x256xf32>
    %269 = arith.addf %262, %268 : vector<128x256xf32>
    %cst_95 = arith.constant 0.797884583 : f32
    %270 = vector.broadcast %cst_95 : f32 to vector<128x256xf32>
    %271 = arith.mulf %270, %269 : vector<128x256xf32>
    %272 = math.tanh %271 : vector<128x256xf32>
    %cst_96 = arith.constant 1.000000e+00 : f32
    %273 = vector.broadcast %cst_96 : f32 to vector<128x256xf32>
    %274 = arith.addf %273, %272 : vector<128x256xf32>
    %275 = arith.mulf %264, %274 : vector<128x256xf32>
    %276 = arith.truncf %275 : vector<128x256xf32> to vector<128x256xbf16>
    %c1_97 = arith.constant 1 : index
    %c0_98 = arith.constant 0 : index
    %c0_99 = arith.constant 0 : index
    %277 = vector.load %arg7[%c1_97, %c0_98, %c0_99] : memref<2x256x128xbf16, #tpu.memory_space<vmem>>, vector<1x256x128xbf16>
    %278 = vector.shape_cast %277 : vector<1x256x128xbf16> to vector<256x128xbf16>
    %cst_100 = arith.constant dense<0.000000e+00> : vector<128x128xf32>
    %279 = tpu.matmul %276, %278, %cst_100 {dimension_numbers = #tpu.dot_dimension_numbers<[1], [0], [0], [1], [0, 0, 1, 1], [], []>} : vector<128x256xbf16>, vector<256x128xbf16>, vector<128x128xf32> -> vector<128x128xf32>
    %280 = vector.broadcast %170 : vector<1x128xf32> to vector<128x128xf32>
    %281 = arith.addf %279, %280 : vector<128x128xf32>
    %282 = arith.addf %281, %254 : vector<128x128xf32>
    %cst_101 = arith.constant dense<0.000000e+00> : vector<128xf32>
    %283 = vector.multi_reduction <add>, %282, %cst_101 [1] : vector<128x128xf32> to vector<128xf32>
    %284 = vector.shape_cast %283 : vector<128xf32> to vector<128x1xf32>
    %cst_102 = arith.constant 1.280000e+02 : f32
    %285 = vector.broadcast %cst_102 : f32 to vector<128x1xf32>
    %286 = arith.divf %284, %285 : vector<128x1xf32>
    %287 = vector.broadcast %286 : vector<128x1xf32> to vector<128x128xf32>
    %288 = arith.subf %282, %287 : vector<128x128xf32>
    %289 = arith.mulf %288, %288 : vector<128x128xf32>
    %cst_103 = arith.constant dense<0.000000e+00> : vector<128xf32>
    %290 = vector.multi_reduction <add>, %289, %cst_103 [1] : vector<128x128xf32> to vector<128xf32>
    %291 = vector.shape_cast %290 : vector<128xf32> to vector<128x1xf32>
    %cst_104 = arith.constant 1.280000e+02 : f32
    %292 = vector.broadcast %cst_104 : f32 to vector<128x1xf32>
    %293 = arith.divf %291, %292 : vector<128x1xf32>
    %cst_105 = arith.constant 9.99999996E-13 : f32
    %294 = vector.broadcast %cst_105 : f32 to vector<128x1xf32>
    %295 = arith.addf %293, %294 : vector<128x1xf32>
    %296 = math.rsqrt %295 : vector<128x1xf32>
    %297 = vector.broadcast %296 : vector<128x1xf32> to vector<128x128xf32>
    %298 = arith.mulf %288, %297 : vector<128x128xf32>
    %299 = vector.broadcast %171 : vector<1x128xf32> to vector<128x128xf32>
    %300 = arith.mulf %298, %299 : vector<128x128xf32>
    %301 = vector.broadcast %172 : vector<1x128xf32> to vector<128x128xf32>
    %302 = arith.addf %300, %301 : vector<128x128xf32>
    %c0_106 = arith.constant 0 : index
    %c0_107 = arith.constant 0 : index
    %c0_108 = arith.constant 0 : index
    %303 = vector.load %arg11[%c0_106, %c0_107, %c0_108] : memref<1x128x128xf32, #tpu.memory_space<vmem>>, vector<1x128x128xf32>
    %304 = vector.shape_cast %303 : vector<1x128x128xf32> to vector<128x128xf32>
    %305 = vector.shape_cast %302 : vector<128x128xf32> to vector<1x128x128xf32>
    tpu.vector_store %arg11[%c0_106, %c0_107, %c0_108], %305 {strides = array<i32>} : memref<1x128x128xf32, #tpu.memory_space<vmem>>, vector<1x128x128xf32>,
    return
  }
  func.func @transform_0(%arg0: i32) -> (i32, i32, i32) {
    %c0_i32 = arith.constant 0 : i32
    %c0_i32_0 = arith.constant 0 : i32
    %c0_i32_1 = arith.constant 0 : i32
    return %arg0, %c0_i32, %c0_i32_0 : i32, i32, i32
  }
  func.func @transform_1(%arg0: i32) -> (i32, i32, i32) {
    %c0_i32 = arith.constant 0 : i32
    %c0_i32_0 = arith.constant 0 : i32
    %c0_i32_1 = arith.constant 0 : i32
    return %arg0, %c0_i32, %c0_i32_0 : i32, i32, i32
  }
  func.func @transform_2(%arg0: i32) -> (i32, i32) {
    %c0_i32 = arith.constant 0 : i32
    %c0_i32_0 = arith.constant 0 : i32
    %c0_i32_1 = arith.constant 0 : i32
    return %c0_i32, %c0_i32_0 : i32, i32
  }
  func.func @transform_3(%arg0: i32) -> (i32, i32, i32) {
    %c0_i32 = arith.constant 0 : i32
    %c0_i32_0 = arith.constant 0 : i32
    %c0_i32_1 = arith.constant 0 : i32
    %c0_i32_2 = arith.constant 0 : i32
    return %c0_i32, %c0_i32_0, %c0_i32_1 : i32, i32, i32
  }
  func.func @transform_4(%arg0: i32) -> (i32, i32, i32) {
    %c0_i32 = arith.constant 0 : i32
    %c0_i32_0 = arith.constant 0 : i32
    %c0_i32_1 = arith.constant 0 : i32
    %c0_i32_2 = arith.constant 0 : i32
    return %c0_i32, %c0_i32_0, %c0_i32_1 : i32, i32, i32
  }
  func.func @transform_5(%arg0: i32) -> (i32, i32, i32) {
    %c0_i32 = arith.constant 0 : i32
    %c0_i32_0 = arith.constant 0 : i32
    %c0_i32_1 = arith.constant 0 : i32
    %c0_i32_2 = arith.constant 0 : i32
    return %c0_i32, %c0_i32_0, %c0_i32_1 : i32, i32, i32
  }
  func.func @transform_6(%arg0: i32) -> (i32, i32, i32) {
    %c0_i32 = arith.constant 0 : i32
    %c0_i32_0 = arith.constant 0 : i32
    %c0_i32_1 = arith.constant 0 : i32
    %c0_i32_2 = arith.constant 0 : i32
    return %c0_i32, %c0_i32_0, %c0_i32_1 : i32, i32, i32
  }
  func.func @transform_7(%arg0: i32) -> (i32, i32, i32) {
    %c0_i32 = arith.constant 0 : i32
    %c0_i32_0 = arith.constant 0 : i32
    %c0_i32_1 = arith.constant 0 : i32
    %c0_i32_2 = arith.constant 0 : i32
    return %c0_i32, %c0_i32_0, %c0_i32_1 : i32, i32, i32
  }
  func.func @transform_8(%arg0: i32) -> (i32, i32, i32) {
    %c0_i32 = arith.constant 0 : i32
    %c0_i32_0 = arith.constant 0 : i32
    %c0_i32_1 = arith.constant 0 : i32
    %c0_i32_2 = arith.constant 0 : i32
    return %c0_i32, %c0_i32_0, %c0_i32_1 : i32, i32, i32
  }
  func.func @transform_9(%arg0: i32) -> (i32, i32, i32) {
    %c0_i32 = arith.constant 0 : i32
    %c0_i32_0 = arith.constant 0 : i32
    %c0_i32_1 = arith.constant 0 : i32
    %c0_i32_2 = arith.constant 0 : i32
    return %c0_i32, %c0_i32_0, %c0_i32_1 : i32, i32, i32
  }
  func.func @transform_10(%arg0: i32) -> (i32, i32, i32) {
    %c0_i32 = arith.constant 0 : i32
    %c0_i32_0 = arith.constant 0 : i32
    %c0_i32_1 = arith.constant 0 : i32
    return %arg0, %c0_i32, %c0_i32_0 : i32, i32, i32
  }
}

</mosaic_0001>

<llo_original>
// kernel: scibert_forward.1
$region0: #{scibert_forward.1}
  #allocation0 [shape = 'u32[]', space=smem, size = 0x4, offset = 0x4, fixed_abs, tag = 'smem constant byte address 0x4 - core index']
  #allocation1 [shape = 'u32[144,128]{1,0:T(1,128)}', space=vmem, size = 0x12000, scoped, tag = 'internal scratch']
  %s0 = inlined_call_operand.vmem [shape: f32[2,128,128], index: 0, kind: input, shape index: {}]
  %s1 = inlined_call_operand.vmem [shape: f32[2,1,128], index: 1, kind: input, shape index: {}]
  %s2 = inlined_call_operand.vmem [shape: f32[2,128], index: 2, kind: input, shape index: {}]
  %s3 = inlined_call_operand.vmem [shape: bf16[2,128,384], index: 3, kind: input, shape index: {}]
  %s4 = inlined_call_operand.vmem [shape: bf16[2,128,128], index: 4, kind: input, shape index: {}]
  %s5 = inlined_call_operand.vmem [shape: bf16[2,128,256], index: 5, kind: input, shape index: {}]
  %s6 = inlined_call_operand.vmem [shape: bf16[2,256,128], index: 6, kind: input, shape index: {}]
  %s7 = inlined_call_operand.vmem [shape: f32[2,1,384], index: 7, kind: input, shape index: {}]
  %s8 = inlined_call_operand.vmem [shape: f32[2,1,256], index: 8, kind: input, shape index: {}]
  %s9 = inlined_call_operand.vmem [shape: f32[2,6,128], index: 9, kind: input, shape index: {}]
  %s10 = inlined_call_operand.hbm [shape: f32[2,128,128], index: 10, kind: output, shape index: {}]
  %s11 = sld [smem:[#allocation0]]
  $region73: #{scibert_forward.1} parent=0
    _
  %s13 = ssub.s32 1, %s11
  %s14 = scalar_select 0, %s13, %s11
  $region1: #{scibert_forward.1} parent=0
    #allocation2 [shape = 'u8[131072]{0}', space=vmem, size = 0x20000, scoped, tag = 'output window, operand 0']
    #allocation3 [shape = 's32[2]{0}', space=sflag, size = 0x8, scoped, tag = 'scoped memory for scibert_forward.1']
    %15 = vsyncpa [#allocation3], 0
    %s16 = scalar_lea.sflag [#allocation3], 1
    %17 = vsyncpa %s16, 0
    loop: start=0, step=1, limit=4
    $region2: #{scibert_forward.1} parent=1 // loop_pre_header
      _
    $region3: #{scibert_forward.1} parent=1 // loop_header
      %s19 = sphi 0, %s23
      %p20 = scmp.ge.s32.totalorder %s19, 4
      %s29 = sphi 0, %s31
      %s32 = sphi 0, %s29
      %s33 = sphi 0, %s32
      %s49 = sphi 0, %s33
      %s55 = sphi 0, %s57
      %s58 = sphi 0, %s55
      %s59 = sphi 0, %s58
      %s75 = sphi 0, %s59
      %s79 = sphi 0, %s79
      %s81 = sphi 0, %s79
      %s82 = sphi 0, %s81
      %s96 = sphi 0, %s82
      %s100 = sphi 0, %s100
      %s102 = sphi 0, %s100
      %s103 = sphi 0, %s102
      %s117 = sphi 0, %s103
      %s121 = sphi 0, %s121
      %s123 = sphi 0, %s121
      %s124 = sphi 0, %s123
      %s138 = sphi 0, %s124
      %s142 = sphi 0, %s142
      %s144 = sphi 0, %s142
      %s145 = sphi 0, %s144
      %s159 = sphi 0, %s145
      %s163 = sphi 0, %s163
      %s165 = sphi 0, %s163
      %s166 = sphi 0, %s165
      %s180 = sphi 0, %s166
      %s184 = sphi 0, %s184
      %s186 = sphi 0, %s184
      %s187 = sphi 0, %s186
      %s201 = sphi 0, %s187
      %s205 = sphi 0, %s205
      %s207 = sphi 0, %s205
      %s208 = sphi 0, %s207
      %s222 = sphi 0, %s208
      %s226 = sphi 0, %s226
      %s228 = sphi 0, %s226
      %s229 = sphi 0, %s228
      %s243 = sphi 0, %s229
      %s249 = sphi 0, %s251
      %s252 = sphi 0, %s249
      %s253 = sphi 0, %s252
      %s269 = sphi 0, %s253
    $region4: #{scibert_forward.1} parent=1 // loop_header_branch
      %22 = sbr.rel (%p20) target = $region8
    $region5: #{scibert_forward.1} parent=1 // loop_body
      %s24 = ssub.s32 %s19, 1
      %s25 = ssub.s32 %s19, 2
      %s26 = sadd.s32 %s19, 1
      %s27 = ssub.s32 %s19, %s26
      %p28 = scmp.eq.s32.totalorder %s27, 0
      %s30 = sadd.s32 %s29, 1
      %s31 = scalar_select %p28, %s29, %s30
      %p34 = pneg %p28
      %p35 = scmp.eq.s32.totalorder %s19, 1
      %p36 = por %p34, %p35
      %p37 = scmp.ne.s32.totalorder %s29, %s32
      %p38 = scmp.eq.s32.totalorder %s19, 0
      %p39 = por %p37, %p38
      %p40 = scmp.ne.s32.totalorder %s29, %s32
      %p41 = scmp.eq.s32.totalorder %s24, 1
      %p42 = por %p40, %p41
      %p43 = scmp.ne.s32.totalorder %s32, %s33
      %p44 = scmp.eq.s32.totalorder %s24, 0
      %p45 = por %p43, %p44
      %p46 = scmp.ne.s32.totalorder %s32, %s33
      %p47 = scmp.eq.s32.totalorder %s25, 1
      %p48 = por %p46, %p47
      %p50 = scmp.ne.s32.totalorder %s33, %s49
      %p51 = scmp.eq.s32.totalorder %s25, 0
      %p52 = por %p50, %p51
      %s53 = ssub.s32 %s19, %s26
      %p54 = scmp.eq.s32.totalorder %s53, 0
      %s56 = sadd.s32 %s55, 1
      %s57 = scalar_select %p54, %s55, %s56
      %p60 = pneg %p54
      %p61 = scmp.eq.s32.totalorder %s19, 1
      %p62 = por %p60, %p61
      %p63 = scmp.ne.s32.totalorder %s55, %s58
      %p64 = scmp.eq.s32.totalorder %s19, 0
      %p65 = por %p63, %p64
      %p66 = scmp.ne.s32.totalorder %s55, %s58
      %p67 = scmp.eq.s32.totalorder %s24, 1
      %p68 = por %p66, %p67
      %p69 = scmp.ne.s32.totalorder %s58, %s59
      %p70 = scmp.eq.s32.totalorder %s24, 0
      %p71 = por %p69, %p70
      %p72 = scmp.ne.s32.totalorder %s58, %s59
      %p73 = scmp.eq.s32.totalorder %s25, 1
      %p74 = por %p72, %p73
      %p76 = scmp.ne.s32.totalorder %s59, %s75
      %p77 = scmp.eq.s32.totalorder %s25, 0
      %p78 = por %p76, %p77
      %s80 = sadd.s32 %s79, 1
      %p83 = scmp.eq.s32.totalorder %s19, 1
      %p84 = scmp.ne.s32.totalorder %s79, %s81
      %p85 = scmp.eq.s32.totalorder %s19, 0
      %p86 = por %p84, %p85
      %p87 = scmp.ne.s32.totalorder %s79, %s81
      %p88 = scmp.eq.s32.totalorder %s24, 1
      %p89 = por %p87, %p88
      %p90 = scmp.ne.s32.totalorder %s81, %s82
      %p91 = scmp.eq.s32.totalorder %s24, 0
      %p92 = por %p90, %p91
      %p93 = scmp.ne.s32.totalorder %s81, %s82
      %p94 = scmp.eq.s32.totalorder %s25, 1
      %p95 = por %p93, %p94
      %p97 = scmp.ne.s32.totalorder %s82, %s96
      %p98 = scmp.eq.s32.totalorder %s25, 0
      %p99 = por %p97, %p98
      %s101 = sadd.s32 %s100, 1
      %p104 = scmp.eq.s32.totalorder %s19, 1
      %p105 = scmp.ne.s32.totalorder %s100, %s102
      %p106 = scmp.eq.s32.totalorder %s19, 0
      %p107 = por %p105, %p106
      %p108 = scmp.ne.s32.totalorder %s100, %s102
      %p109 = scmp.eq.s32.totalorder %s24, 1
      %p110 = por %p108, %p109
      %p111 = scmp.ne.s32.totalorder %s102, %s103
      %p112 = scmp.eq.s32.totalorder %s24, 0
      %p113 = por %p111, %p112
      %p114 = scmp.ne.s32.totalorder %s102, %s103
      %p115 = scmp.eq.s32.totalorder %s25, 1
      %p116 = por %p114, %p115
      %p118 = scmp.ne.s32.totalorder %s103, %s117
      %p119 = scmp.eq.s32.totalorder %s25, 0
      %p120 = por %p118, %p119
      %s122 = sadd.s32 %s121, 1
      %p125 = scmp.eq.s32.totalorder %s19, 1
      %p126 = scmp.ne.s32.totalorder %s121, %s123
      %p127 = scmp.eq.s32.totalorder %s19, 0
      %p128 = por %p126, %p127
      %p129 = scmp.ne.s32.totalorder %s121, %s123
      %p130 = scmp.eq.s32.totalorder %s24, 1
      %p131 = por %p129, %p130
      %p132 = scmp.ne.s32.totalorder %s123, %s124
      %p133 = scmp.eq.s32.totalorder %s24, 0
      %p134 = por %p132, %p133
      %p135 = scmp.ne.s32.totalorder %s123, %s124
      %p136 = scmp.eq.s32.totalorder %s25, 1
      %p137 = por %p135, %p136
      %p139 = scmp.ne.s32.totalorder %s124, %s138
      %p140 = scmp.eq.s32.totalorder %s25, 0
      %p141 = por %p139, %p140
      %s143 = sadd.s32 %s142, 1
      %p146 = scmp.eq.s32.totalorder %s19, 1
      %p147 = scmp.ne.s32.totalorder %s142, %s144
      %p148 = scmp.eq.s32.totalorder %s19, 0
      %p149 = por %p147, %p148
      %p150 = scmp.ne.s32.totalorder %s142, %s144
      %p151 = scmp.eq.s32.totalorder %s24, 1
      %p152 = por %p150, %p151
      %p153 = scmp.ne.s32.totalorder %s144, %s145
      %p154 = scmp.eq.s32.totalorder %s24, 0
      %p155 = por %p153, %p154
      %p156 = scmp.ne.s32.totalorder %s144, %s145
      %p157 = scmp.eq.s32.totalorder %s25, 1
      %p158 = por %p156, %p157
      %p160 = scmp.ne.s32.totalorder %s145, %s159
      %p161 = scmp.eq.s32.totalorder %s25, 0
      %p162 = por %p160, %p161
      %s164 = sadd.s32 %s163, 1
      %p167 = scmp.eq.s32.totalorder %s19, 1
      %p168 = scmp.ne.s32.totalorder %s163, %s165
      %p169 = scmp.eq.s32.totalorder %s19, 0
      %p170 = por %p168, %p169
      %p171 = scmp.ne.s32.totalorder %s163, %s165
      %p172 = scmp.eq.s32.totalorder %s24, 1
      %p173 = por %p171, %p172
      %p174 = scmp.ne.s32.totalorder %s165, %s166
      %p175 = scmp.eq.s32.totalorder %s24, 0
      %p176 = por %p174, %p175
      %p177 = scmp.ne.s32.totalorder %s165, %s166
      %p178 = scmp.eq.s32.totalorder %s25, 1
      %p179 = por %p177, %p178
      %p181 = scmp.ne.s32.totalorder %s166, %s180
      %p182 = scmp.eq.s32.totalorder %s25, 0
      %p183 = por %p181, %p182
      %s185 = sadd.s32 %s184, 1
      %p188 = scmp.eq.s32.totalorder %s19, 1
      %p189 = scmp.ne.s32.totalorder %s184, %s186
      %p190 = scmp.eq.s32.totalorder %s19, 0
      %p191 = por %p189, %p190
      %p192 = scmp.ne.s32.totalorder %s184, %s186
      %p193 = scmp.eq.s32.totalorder %s24, 1
      %p194 = por %p192, %p193
      %p195 = scmp.ne.s32.totalorder %s186, %s187
      %p196 = scmp.eq.s32.totalorder %s24, 0
      %p197 = por %p195, %p196
      %p198 = scmp.ne.s32.totalorder %s186, %s187
      %p199 = scmp.eq.s32.totalorder %s25, 1
      %p200 = por %p198, %p199
      %p202 = scmp.ne.s32.totalorder %s187, %s201
      %p203 = scmp.eq.s32.totalorder %s25, 0
      %p204 = por %p202, %p203
      %s206 = sadd.s32 %s205, 1
      %p209 = scmp.eq.s32.totalorder %s19, 1
      %p210 = scmp.ne.s32.totalorder %s205, %s207
      %p211 = scmp.eq.s32.totalorder %s19, 0
      %p212 = por %p210, %p211
      %p213 = scmp.ne.s32.totalorder %s205, %s207
      %p214 = scmp.eq.s32.totalorder %s24, 1
      %p215 = por %p213, %p214
      %p216 = scmp.ne.s32.totalorder %s207, %s208
      %p217 = scmp.eq.s32.totalorder %s24, 0
      %p218 = por %p216, %p217
      %p219 = scmp.ne.s32.totalorder %s207, %s208
      %p220 = scmp.eq.s32.totalorder %s25, 1
      %p221 = por %p219, %p220
      %p223 = scmp.ne.s32.totalorder %s208, %s222
      %p224 = scmp.eq.s32.totalorder %s25, 0
      %p225 = por %p223, %p224
      %s227 = sadd.s32 %s226, 1
      %p230 = scmp.eq.s32.totalorder %s19, 1
      %p231 = scmp.ne.s32.totalorder %s226, %s228
      %p232 = scmp.eq.s32.totalorder %s19, 0
      %p233 = por %p231, %p232
      %p234 = scmp.ne.s32.totalorder %s226, %s228
      %p235 = scmp.eq.s32.totalorder %s24, 1
      %p236 = por %p234, %p235
      %p237 = scmp.ne.s32.totalorder %s228, %s229
      %p238 = scmp.eq.s32.totalorder %s24, 0
      %p239 = por %p237, %p238
      %p240 = scmp.ne.s32.totalorder %s228, %s229
      %p241 = scmp.eq.s32.totalorder %s25, 1
      %p242 = por %p240, %p241
      %p244 = scmp.ne.s32.totalorder %s229, %s243
      %p245 = scmp.eq.s32.totalorder %s25, 0
      %p246 = por %p244, %p245
      %s247 = ssub.s32 %s19, %s26
      %p248 = scmp.eq.s32.totalorder %s247, 0
      %s250 = sadd.s32 %s249, 1
      %s251 = scalar_select %p248, %s249, %s250
      %p254 = pneg %p248
      %p255 = scmp.eq.s32.totalorder %s19, 1
      %p256 = por %p254, %p255
      %p257 = scmp.ne.s32.totalorder %s249, %s252
      %p258 = scmp.eq.s32.totalorder %s19, 0
      %p259 = por %p257, %p258
      %p260 = scmp.ne.s32.totalorder %s249, %s252
      %p261 = scmp.eq.s32.totalorder %s24, 1
      %p262 = por %p260, %p261
      %p263 = scmp.ne.s32.totalorder %s252, %s253
      %p264 = scmp.eq.s32.totalorder %s24, 0
      %p265 = por %p263, %p264
      %p266 = scmp.ne.s32.totalorder %s252, %s253
      %p267 = scmp.eq.s32.totalorder %s25, 1
      %p268 = por %p266, %p267
      %p270 = scmp.ne.s32.totalorder %s253, %s269
      %p271 = scmp.eq.s32.totalorder %s25, 0
      %p272 = por %p270, %p271
      %p273 = scmp.le.s32.totalorder 1, %s19
      %p274 = scmp.lt.s32.totalorder %s19, 3
      %p275 = pnand %p273, %p274
      %p276 = pneg %p275
      // Predicated region
      $region9: #{scibert_forward.1} parent=5 // pred_check
        _
      $region10: #{scibert_forward.1} parent=5 // pred_check_branch
        %278 = sbr.rel (%p275) target = $region12
      $region11: #{scibert_forward.1} parent=5 // pred_region
        %s279 = ssub.s32 %s19, 1
        // Predicated region
        $region13: #{scibert_forward.1} parent=11 // pred_check
          %p280 = pneg %p92
        $region14: #{scibert_forward.1} parent=11 // pred_check_branch
          %282 = sbr.rel (%p280) target = $region16
        $region15: #{scibert_forward.1} parent=11 // pred_region
          _
        $region16: #{scibert_forward.1} parent=11 // pred_fallthru
          _
        // Predicated region
        $region17: #{scibert_forward.1} parent=11 // pred_check
          %p283 = pneg %p113
        $region18: #{scibert_forward.1} parent=11 // pred_check_branch
          %285 = sbr.rel (%p283) target = $region20
        $region19: #{scibert_forward.1} parent=11 // pred_region
          _
        $region20: #{scibert_forward.1} parent=11 // pred_fallthru
          _
        // Predicated region
        $region21: #{scibert_forward.1} parent=11 // pred_check
          %p286 = pneg %p134
        $region22: #{scibert_forward.1} parent=11 // pred_check_branch
          %288 = sbr.rel (%p286) target = $region24
        $region23: #{scibert_forward.1} parent=11 // pred_region
          _
        $region24: #{scibert_forward.1} parent=11 // pred_fallthru
          _
        // Predicated region
        $region25: #{scibert_forward.1} parent=11 // pred_check
          %p289 = pneg %p155
        $region26: #{scibert_forward.1} parent=11 // pred_check_branch
          %291 = sbr.rel (%p289) target = $region28
        $region27: #{scibert_forward.1} parent=11 // pred_region
          _
        $region28: #{scibert_forward.1} parent=11 // pred_fallthru
          _
        // Predicated region
        $region29: #{scibert_forward.1} parent=11 // pred_check
          %p292 = pneg %p176
        $region30: #{scibert_forward.1} parent=11 // pred_check_branch
          %294 = sbr.rel (%p292) target = $region32
        $region31: #{scibert_forward.1} parent=11 // pred_region
          _
        $region32: #{scibert_forward.1} parent=11 // pred_fallthru
          _
        // Predicated region
        $region33: #{scibert_forward.1} parent=11 // pred_check
          %p295 = pneg %p197
        $region34: #{scibert_forward.1} parent=11 // pred_check_branch
          %297 = sbr.rel (%p295) target = $region36
        $region35: #{scibert_forward.1} parent=11 // pred_region
          _
        $region36: #{scibert_forward.1} parent=11 // pred_fallthru
          _
        // Predicated region
        $region37: #{scibert_forward.1} parent=11 // pred_check
          %p298 = pneg %p218
        $region38: #{scibert_forward.1} parent=11 // pred_check_branch
          %300 = sbr.rel (%p298) target = $region40
        $region39: #{scibert_forward.1} parent=11 // pred_region
          _
        $region40: #{scibert_forward.1} parent=11 // pred_fallthru
          _
        // Predicated region
        $region41: #{scibert_forward.1} parent=11 // pred_check
          %p301 = pneg %p239
        $region42: #{scibert_forward.1} parent=11 // pred_check_branch
          %303 = sbr.rel (%p301) target = $region44
        $region43: #{scibert_forward.1} parent=11 // pred_region
          _
        $region44: #{scibert_forward.1} parent=11 // pred_fallthru
          _
      $region12: #{scibert_forward.1} parent=5 // pred_fallthru
        _
      %p304 = scmp.lt.s32.totalorder %s19, 2
      // Predicated region
      $region45: #{scibert_forward.1} parent=5 // pred_check
        %p305 = pneg %p304
      $region46: #{scibert_forward.1} parent=5 // pred_check_branch
        %307 = sbr.rel (%p305) target = $region48
      $region47: #{scibert_forward.1} parent=5 // pred_region
        // Predicated region
        $region49: #{scibert_forward.1} parent=47 // pred_check
          %p308 = pneg %p39
        $region50: #{scibert_forward.1} parent=47 // pred_check_branch
          %310 = sbr.rel (%p308) target = $region52
        $region51: #{scibert_forward.1} parent=47 // pred_region
          %p311 = scmp.lt.s32.totalorder %s19, 1
          %s312 = scalar_select %p311, %s19, 1
          %s313 = smul.addr %s312, 16
          %s314 = smul.addr %s313, 8
          %s315 = scalar_lea.vmem %s0, %s314
        $region52: #{scibert_forward.1} parent=47 // pred_fallthru
          _
        // Predicated region
        $region53: #{scibert_forward.1} parent=47 // pred_check
          %p316 = pneg %p65
        $region54: #{scibert_forward.1} parent=47 // pred_check_branch
          %318 = sbr.rel (%p316) target = $region56
        $region55: #{scibert_forward.1} parent=47 // pred_region
          %p319 = scmp.lt.s32.totalorder %s19, 1
          %s320 = scalar_select %p319, %s19, 1
          %s321 = scalar_lea.vmem %s1, %s320
        $region56: #{scibert_forward.1} parent=47 // pred_fallthru
          _
      $region48: #{scibert_forward.1} parent=5 // pred_fallthru
        _
      %p322 = scmp.le.s32.totalorder 1, %s19
      %p323 = scmp.lt.s32.totalorder %s19, 3
      %p324 = pnand %p322, %p323
      %p325 = pneg %p324
      // Predicated region
      $region57: #{scibert_forward.1} parent=5 // pred_check
        _
      $region58: #{scibert_forward.1} parent=5 // pred_check_branch
        %327 = sbr.rel (%p324) target = $region60
      $region59: #{scibert_forward.1} parent=5 // pred_region
        %s328 = ssub.s32 %s19, 1
        %p329 = scmp.lt.s32.totalorder %s24, 1
        %s330 = scalar_select %p329, %s24, 1
        %s331 = smul.addr %s330, 16
        %s332 = smul.addr %s331, 8
        %s333 = scalar_lea.vmem %s0, %s332
        %p334 = pneg %p45
        %p335 = pneg %p42
        %p336 = scmp.lt.s32.totalorder %s24, 1
        %s337 = scalar_select %p336, %s24, 1
        %s338 = scalar_lea.vmem %s1, %s337
        %p339 = pneg %p71
        %p340 = pneg %p68
        %p341 = pneg %p92
        %p342 = pneg %p89
        %p343 = pneg %p113
        %p344 = pneg %p110
        %p345 = pneg %p134
        %p346 = pneg %p131
        %p347 = pneg %p155
        %p348 = pneg %p152
        %p349 = pneg %p176
        %p350 = pneg %p173
        %p351 = pneg %p197
        %p352 = pneg %p194
        %p353 = pneg %p218
        %p354 = pneg %p215
        %p355 = pneg %p239
        %p356 = pneg %p236
        %p357 = pneg %p265
        %p358 = pneg %p262
        %s359 = sand.u32 %s252, 1
        %s360 = scalar_lea.sflag [#allocation3], %s359
        %s361 = sand.u32 %s252, 1
        %s362 = smul.addr %s361, 128
        %s363 = scalar_lea.vmem [#allocation2], %s362
        %p364 = scmp.lt.s32.totalorder %s24, 1
        %s365 = scalar_select %p364, %s24, 1
        %s366 = smul.addr %s365, 16
        %s367 = smul.addr %s366, 8
        %s368 = scalar_lea.vmem %s0, %s367
        %p369 = scmp.lt.s32.totalorder %s24, 1
        %s370 = scalar_select %p369, %s24, 1
        %s371 = scalar_lea.vmem %s1, %s370
        %v373 = vld [vmem:[%s371] sm:$0x1]
        %v374 = vld [vmem:[%s2] sm:$0x3]
        %v375 = vld [vmem:[%s368] sm:$0xff]
        %v376 = vld [vmem:[%s368 + $0x8] sm:$0xff]
        %v377 = vld [vmem:[%s368 + $0x10] sm:$0xff]
        %v378 = vld [vmem:[%s368 + $0x18] sm:$0xff]
        %v379 = vld [vmem:[%s368 + $0x20] sm:$0xff]
        %v380 = vld [vmem:[%s368 + $0x28] sm:$0xff]
        %v381 = vld [vmem:[%s368 + $0x30] sm:$0xff]
        %v382 = vld [vmem:[%s368 + $0x38] sm:$0xff]
        %v383 = vld [vmem:[%s368 + $0x40] sm:$0xff]
        %v384 = vld [vmem:[%s368 + $0x48] sm:$0xff]
        %v385 = vld [vmem:[%s368 + $0x50] sm:$0xff]
        %v386 = vld [vmem:[%s368 + $0x58] sm:$0xff]
        %v387 = vld [vmem:[%s368 + $0x60] sm:$0xff]
        %v388 = vld [vmem:[%s368 + $0x68] sm:$0xff]
        %v389 = vld [vmem:[%s368 + $0x70] sm:$0xff]
        %v390 = vld [vmem:[%s368 + $0x78] sm:$0xff]
        %391 = vadd.xlane.f32.xlu0 %v375
        %v392 = vpop.xlane.xlu0 %391
        %393 = vadd.xlane.f32.xlu0 %v376
        %v394 = vpop.xlane.xlu0 %393
        %395 = vadd.xlane.f32.xlu0 %v377
        %v396 = vpop.xlane.xlu0 %395
        %397 = vadd.xlane.f32.xlu0 %v378
        %v398 = vpop.xlane.xlu0 %397
        %399 = vadd.xlane.f32.xlu0 %v379
        %v400 = vpop.xlane.xlu0 %399
        %401 = vadd.xlane.f32.xlu0 %v380
        %v402 = vpop.xlane.xlu0 %401
        %403 = vadd.xlane.f32.xlu0 %v381
        %v404 = vpop.xlane.xlu0 %403
        %405 = vadd.xlane.f32.xlu0 %v382
        %v406 = vpop.xlane.xlu0 %405
        %407 = vadd.xlane.f32.xlu0 %v383
        %v408 = vpop.xlane.xlu0 %407
        %409 = vadd.xlane.f32.xlu0 %v384
        %v410 = vpop.xlane.xlu0 %409
        %411 = vadd.xlane.f32.xlu0 %v385
        %v412 = vpop.xlane.xlu0 %411
        %413 = vadd.xlane.f32.xlu0 %v386
        %v414 = vpop.xlane.xlu0 %413
        %415 = vadd.xlane.f32.xlu0 %v387
        %v416 = vpop.xlane.xlu0 %415
        %417 = vadd.xlane.f32.xlu0 %v388
        %v418 = vpop.xlane.xlu0 %417
        %419 = vadd.xlane.f32.xlu0 %v389
        %v420 = vpop.xlane.xlu0 %419
        %421 = vadd.xlane.f32.xlu0 %v390
        %v422 = vpop.xlane.xlu0 %421
        %v423 = vrcp.pop 128.0
        %v424 = vmul.f32 %v392, %v423
        %v425 = vmul.f32 %v394, %v423
        %v426 = vmul.f32 %v396, %v423
        %v427 = vmul.f32 %v398, %v423
        %v428 = vmul.f32 %v400, %v423
        %v429 = vmul.f32 %v402, %v423
        %v430 = vmul.f32 %v404, %v423
        %v431 = vmul.f32 %v406, %v423
        %v432 = vmul.f32 %v408, %v423
        %v433 = vmul.f32 %v410, %v423
        %v434 = vmul.f32 %v412, %v423
        %v435 = vmul.f32 %v414, %v423
        %v436 = vmul.f32 %v416, %v423
        %v437 = vmul.f32 %v418, %v423
        %v438 = vmul.f32 %v420, %v423
        %v439 = vmul.f32 %v422, %v423
        %v440 = vsub.f32 %v375, %v424
        %v441 = vsub.f32 %v376, %v425
        %v442 = vsub.f32 %v377, %v426
        %v443 = vsub.f32 %v378, %v427
        %v444 = vsub.f32 %v379, %v428
        %v445 = vsub.f32 %v380, %v429
        %v446 = vsub.f32 %v381, %v430
        %v447 = vsub.f32 %v382, %v431
        %v448 = vsub.f32 %v383, %v432
        %v449 = vsub.f32 %v384, %v433
        %v450 = vsub.f32 %v385, %v434
        %v451 = vsub.f32 %v386, %v435
        %v452 = vsub.f32 %v387, %v436
        %v453 = vsub.f32 %v388, %v437
        %v454 = vsub.f32 %v389, %v438
        %v455 = vsub.f32 %v390, %v439
        %v456 = vmul.f32 %v440, %v440
        %v457 = vmul.f32 %v441, %v441
        %v458 = vmul.f32 %v442, %v442
        %v459 = vmul.f32 %v443, %v443
        %v460 = vmul.f32 %v444, %v444
        %v461 = vmul.f32 %v445, %v445
        %v462 = vmul.f32 %v446, %v446
        %v463 = vmul.f32 %v447, %v447
        %v464 = vmul.f32 %v448, %v448
        %v465 = vmul.f32 %v449, %v449
        %v466 = vmul.f32 %v450, %v450
        %v467 = vmul.f32 %v451, %v451
        %v468 = vmul.f32 %v452, %v452
        %v469 = vmul.f32 %v453, %v453
        %v470 = vmul.f32 %v454, %v454
        %v471 = vmul.f32 %v455, %v455
        %472 = vadd.xlane.f32.xlu0 %v456
        %v473 = vpop.xlane.xlu0 %472
        %474 = vadd.xlane.f32.xlu0 %v457
        %v475 = vpop.xlane.xlu0 %474
        %476 = vadd.xlane.f32.xlu0 %v458
        %v477 = vpop.xlane.xlu0 %476
        %478 = vadd.xlane.f32.xlu0 %v459
        %v479 = vpop.xlane.xlu0 %478
        %480 = vadd.xlane.f32.xlu0 %v460
        %v481 = vpop.xlane.xlu0 %480
        %482 = vadd.xlane.f32.xlu0 %v461
        %v483 = vpop.xlane.xlu0 %482
        %484 = vadd.xlane.f32.xlu0 %v462
        %v485 = vpop.xlane.xlu0 %484
        %486 = vadd.xlane.f32.xlu0 %v463
        %v487 = vpop.xlane.xlu0 %486
        %488 = vadd.xlane.f32.xlu0 %v464
        %v489 = vpop.xlane.xlu0 %488
        %490 = vadd.xlane.f32.xlu0 %v465
        %v491 = vpop.xlane.xlu0 %490
        %492 = vadd.xlane.f32.xlu0 %v466
        %v493 = vpop.xlane.xlu0 %492
        %494 = vadd.xlane.f32.xlu0 %v467
        %v495 = vpop.xlane.xlu0 %494
        %496 = vadd.xlane.f32.xlu0 %v468
        %v497 = vpop.xlane.xlu0 %496
        %498 = vadd.xlane.f32.xlu0 %v469
        %v499 = vpop.xlane.xlu0 %498
        %500 = vadd.xlane.f32.xlu0 %v470
        %v501 = vpop.xlane.xlu0 %500
        %502 = vadd.xlane.f32.xlu0 %v471
        %v503 = vpop.xlane.xlu0 %502
        %v504 = vmul.f32 %v473, %v423
        %v505 = vmul.f32 %v475, %v423
        %v506 = vmul.f32 %v477, %v423
        %v507 = vmul.f32 %v479, %v423
        %v508 = vmul.f32 %v481, %v423
        %v509 = vmul.f32 %v483, %v423
        %v510 = vmul.f32 %v485, %v423
        %v511 = vmul.f32 %v487, %v423
        %v512 = vmul.f32 %v489, %v423
        %v513 = vmul.f32 %v491, %v423
        %v514 = vmul.f32 %v493, %v423
        %v515 = vmul.f32 %v495, %v423
        %v516 = vmul.f32 %v497, %v423
        %v517 = vmul.f32 %v499, %v423
        %v518 = vmul.f32 %v501, %v423
        %v519 = vmul.f32 %v503, %v423
        %v520 = vadd.f32 %v504, 1e-12
        %v521 = vadd.f32 %v505, 1e-12
        %v522 = vadd.f32 %v506, 1e-12
        %v523 = vadd.f32 %v507, 1e-12
        %v524 = vadd.f32 %v508, 1e-12
        %v525 = vadd.f32 %v509, 1e-12
        %v526 = vadd.f32 %v510, 1e-12
        %v527 = vadd.f32 %v511, 1e-12
        %v528 = vadd.f32 %v512, 1e-12
        %v529 = vadd.f32 %v513, 1e-12
        %v530 = vadd.f32 %v514, 1e-12
        %v531 = vadd.f32 %v515, 1e-12
        %v532 = vadd.f32 %v516, 1e-12
        %v533 = vadd.f32 %v517, 1e-12
        %v534 = vadd.f32 %v518, 1e-12
        %v535 = vadd.f32 %v519, 1e-12
        %v536 = vrsqrt.pop %v520
        %v537 = vrsqrt.pop %v521
        %v538 = vrsqrt.pop %v522
        %v539 = vrsqrt.pop %v523
        %v540 = vrsqrt.pop %v524
        %v541 = vrsqrt.pop %v525
        %v542 = vrsqrt.pop %v526
        %v543 = vrsqrt.pop %v527
        %v544 = vrsqrt.pop %v528
        %v545 = vrsqrt.pop %v529
        %v546 = vrsqrt.pop %v530
        %v547 = vrsqrt.pop %v531
        %v548 = vrsqrt.pop %v532
        %v549 = vrsqrt.pop %v533
        %v550 = vrsqrt.pop %v534
        %v551 = vrsqrt.pop %v535
        %v552 = vmul.f32 %v440, %v536
        %v553 = vmul.f32 %v441, %v537
        %v554 = vmul.f32 %v442, %v538
        %v555 = vmul.f32 %v443, %v539
        %v556 = vmul.f32 %v444, %v540
        %v557 = vmul.f32 %v445, %v541
        %v558 = vmul.f32 %v446, %v542
        %v559 = vmul.f32 %v447, %v543
        %v560 = vmul.f32 %v448, %v544
        %v561 = vmul.f32 %v449, %v545
        %v562 = vmul.f32 %v450, %v546
        %v563 = vmul.f32 %v451, %v547
        %v564 = vmul.f32 %v452, %v548
        %v565 = vmul.f32 %v453, %v549
        %v566 = vmul.f32 %v454, %v550
        %v567 = vmul.f32 %v455, %v551
        %v568 = vlaneseq
        %v569 = vshrl.u32 %v568, 7
        %v570 = vsub.s32 0, %v569
        %v571 = vrot.slane %v374, %v570
        %v572 = vmul.f32 %v552, %v571
        %v573 = vmul.f32 %v553, %v571
        %v574 = vmul.f32 %v554, %v571
        %v575 = vmul.f32 %v555, %v571
        %v576 = vmul.f32 %v556, %v571
        %v577 = vmul.f32 %v557, %v571
        %v578 = vmul.f32 %v558, %v571
        %v579 = vmul.f32 %v559, %v571
        %v580 = vmul.f32 %v560, %v571
        %v581 = vmul.f32 %v561, %v571
        %v582 = vmul.f32 %v562, %v571
        %v583 = vmul.f32 %v563, %v571
        %v584 = vmul.f32 %v564, %v571
        %v585 = vmul.f32 %v565, %v571
        %v586 = vmul.f32 %v566, %v571
        %v587 = vmul.f32 %v567, %v571
        %v588 = vlaneseq
        %v589 = vshrl.u32 %v588, 7
        %v590 = vsub.s32 1, %v589
        %v591 = vrot.slane %v374, %v590
        %v592 = vadd.f32 %v572, %v591
        %v593 = vadd.f32 %v573, %v591
        %v594 = vadd.f32 %v574, %v591
        %v595 = vadd.f32 %v575, %v591
        %v596 = vadd.f32 %v576, %v591
        %v597 = vadd.f32 %v577, %v591
        %v598 = vadd.f32 %v578, %v591
        %v599 = vadd.f32 %v579, %v591
        %v600 = vadd.f32 %v580, %v591
        %v601 = vadd.f32 %v581, %v591
        %v602 = vadd.f32 %v582, %v591
        %v603 = vadd.f32 %v583, %v591
        %v604 = vadd.f32 %v584, %v591
        %v605 = vadd.f32 %v585, %v591
        %v606 = vadd.f32 %v586, %v591
        %v607 = vadd.f32 %v587, %v591
        %v608 = vld [vmem:[%s9] sm:$0x3f]
        %v609 = vld [vmem:[%s4] sm:$0xf]
        %v610 = vld [vmem:[%s4 + $0x4] sm:$0xf]
        %v611 = vld [vmem:[%s4 + $0x8] sm:$0xf]
        %v612 = vld [vmem:[%s4 + $0xc] sm:$0xf]
        %v613 = vld [vmem:[%s4 + $0x10] sm:$0xf]
        %v614 = vld [vmem:[%s4 + $0x14] sm:$0xf]
        %v615 = vld [vmem:[%s4 + $0x18] sm:$0xf]
        %v616 = vld [vmem:[%s4 + $0x1c] sm:$0xf]
        %v617 = vld [vmem:[%s4 + $0x20] sm:$0xf]
        %v618 = vld [vmem:[%s4 + $0x24] sm:$0xf]
        %v619 = vld [vmem:[%s4 + $0x28] sm:$0xf]
        %v620 = vld [vmem:[%s4 + $0x2c] sm:$0xf]
        %v621 = vld [vmem:[%s4 + $0x30] sm:$0xf]
        %v622 = vld [vmem:[%s4 + $0x34] sm:$0xf]
        %v623 = vld [vmem:[%s4 + $0x38] sm:$0xf]
        %v624 = vld [vmem:[%s4 + $0x3c] sm:$0xf]
        %v625 = vpack.c.bf16 %v593, %v592
        %v626 = vpack.c.bf16 %v595, %v594
        %v627 = vpack.c.bf16 %v597, %v596
        %v628 = vpack.c.bf16 %v599, %v598
        %v629 = vpack.c.bf16 %v601, %v600
        %v630 = vpack.c.bf16 %v603, %v602
        %v631 = vpack.c.bf16 %v605, %v604
        %v632 = vpack.c.bf16 %v607, %v606
        %v633 = vld [vmem:[%s3] sm:$0xff]
        %v634 = vld [vmem:[%s3 + $0x8] sm:$0xf]
        %v635 = vld [vmem:[%s3 + $0xc] sm:$0xff]
        %v636 = vld [vmem:[%s3 + $0x14] sm:$0xf]
        %v637 = vld [vmem:[%s3 + $0x18] sm:$0xff]
        %v638 = vld [vmem:[%s3 + $0x20] sm:$0xf]
        %v639 = vld [vmem:[%s3 + $0x24] sm:$0xff]
        %v640 = vld [vmem:[%s3 + $0x2c] sm:$0xf]
        %v641 = vld [vmem:[%s3 + $0x30] sm:$0xff]
        %v642 = vld [vmem:[%s3 + $0x38] sm:$0xf]
        %v643 = vld [vmem:[%s3 + $0x3c] sm:$0xff]
        %v644 = vld [vmem:[%s3 + $0x44] sm:$0xf]
        %v645 = vld [vmem:[%s3 + $0x48] sm:$0xff]
        %v646 = vld [vmem:[%s3 + $0x50] sm:$0xf]
        %v647 = vld [vmem:[%s3 + $0x54] sm:$0xff]
        %v648 = vld [vmem:[%s3 + $0x5c] sm:$0xf]
        %v649 = vld [vmem:[%s3 + $0x60] sm:$0xff]
        %v650 = vld [vmem:[%s3 + $0x68] sm:$0xf]
        %v651 = vld [vmem:[%s3 + $0x6c] sm:$0xff]
        %v652 = vld [vmem:[%s3 + $0x74] sm:$0xf]
        %v653 = vld [vmem:[%s3 + $0x78] sm:$0xff]
        %v654 = vld [vmem:[%s3 + $0x80] sm:$0xf]
        %v655 = vld [vmem:[%s3 + $0x84] sm:$0xff]
        %v656 = vld [vmem:[%s3 + $0x8c] sm:$0xf]
        %v657 = vld [vmem:[%s3 + $0x90] sm:$0xff]
        %v658 = vld [vmem:[%s3 + $0x98] sm:$0xf]
        %v659 = vld [vmem:[%s3 + $0x9c] sm:$0xff]
        %v660 = vld [vmem:[%s3 + $0xa4] sm:$0xf]
        %v661 = vld [vmem:[%s3 + $0xa8] sm:$0xff]
        %v662 = vld [vmem:[%s3 + $0xb0] sm:$0xf]
        %v663 = vld [vmem:[%s3 + $0xb4] sm:$0xff]
        %v664 = vld [vmem:[%s3 + $0xbc] sm:$0xf]
        %v665 = vld [vmem:[%s7] sm:$0x7]
        %v667 = vlaneseq
        %v668 = vshrl.u32 %v667, 7
        %v669 = vsub.s32 0, %v668
        %v670 = vrot.slane %v665, %v669
        %v671 = vlaneseq
        %v672 = vshrl.u32 %v671, 7
        %v673 = vsub.s32 1, %v672
        %v674 = vrot.slane %v665, %v673
        %v675 = vlaneseq
        %v676 = vshrl.u32 %v675, 7
        %v677 = vsub.s32 2, %v676
        %v678 = vrot.slane %v665, %v677
        %v714 = vunpack.c.l.b16 %v633
        %v715 = vunpack.c.h.b16 %v633
        %v716 = vunpack.c.l.b16 %v634
        %v717 = vunpack.c.l.b16 %v635
        %v718 = vunpack.c.h.b16 %v635
        %v719 = vunpack.c.l.b16 %v636
        %v720 = vunpack.c.l.b16 %v637
        %v721 = vunpack.c.h.b16 %v637
        %v722 = vunpack.c.l.b16 %v638
        %v723 = vunpack.c.l.b16 %v639
        %v724 = vunpack.c.h.b16 %v639
        %v725 = vunpack.c.l.b16 %v640
        %v726 = vunpack.c.l.b16 %v641
        %v727 = vunpack.c.h.b16 %v641
        %v728 = vunpack.c.l.b16 %v642
        %v729 = vunpack.c.l.b16 %v643
        %v730 = vunpack.c.h.b16 %v643
        %v731 = vunpack.c.l.b16 %v644
        %v732 = vunpack.c.l.b16 %v645
        %v733 = vunpack.c.h.b16 %v645
        %v734 = vunpack.c.l.b16 %v646
        %v735 = vunpack.c.l.b16 %v647
        %v736 = vunpack.c.h.b16 %v647
        %v737 = vunpack.c.l.b16 %v648
        %v738 = vunpack.c.l.b16 %v649
        %v739 = vunpack.c.h.b16 %v649
        %v740 = vunpack.c.l.b16 %v650
        %v741 = vunpack.c.l.b16 %v651
        %v742 = vunpack.c.h.b16 %v651
        %v743 = vunpack.c.l.b16 %v652
        %v744 = vunpack.c.l.b16 %v653
        %v745 = vunpack.c.h.b16 %v653
        %v746 = vunpack.c.l.b16 %v654
        %v747 = vunpack.c.l.b16 %v655
        %v748 = vunpack.c.h.b16 %v655
        %v749 = vunpack.c.l.b16 %v656
        %v750 = vunpack.c.l.b16 %v657
        %v751 = vunpack.c.h.b16 %v657
        %v752 = vunpack.c.l.b16 %v658
        %v753 = vunpack.c.l.b16 %v659
        %v754 = vunpack.c.h.b16 %v659
        %v755 = vunpack.c.l.b16 %v660
        %v756 = vunpack.c.l.b16 %v661
        %v757 = vunpack.c.h.b16 %v661
        %v758 = vunpack.c.l.b16 %v662
        %v759 = vunpack.c.l.b16 %v663
        %v760 = vunpack.c.h.b16 %v663
        %v761 = vunpack.c.l.b16 %v664
        %v762 = vpack.c.b16 %v717, %v714
        %v763 = vpack.c.b16 %v718, %v715
        %v764 = vpack.c.b16 %v719, %v716
        %v765 = vpack.c.b16 %v723, %v720
        %v766 = vpack.c.b16 %v724, %v721
        %v767 = vpack.c.b16 %v725, %v722
        %v768 = vpack.c.b16 %v729, %v726
        %v769 = vpack.c.b16 %v730, %v727
        %v770 = vpack.c.b16 %v731, %v728
        %v771 = vpack.c.b16 %v735, %v732
        %v772 = vpack.c.b16 %v736, %v733
        %v773 = vpack.c.b16 %v737, %v734
        %v774 = vpack.c.b16 %v741, %v738
        %v775 = vpack.c.b16 %v742, %v739
        %v776 = vpack.c.b16 %v743, %v740
        %v777 = vpack.c.b16 %v747, %v744
        %v778 = vpack.c.b16 %v748, %v745
        %v779 = vpack.c.b16 %v749, %v746
        %v780 = vpack.c.b16 %v753, %v750
        %v781 = vpack.c.b16 %v754, %v751
        %v782 = vpack.c.b16 %v755, %v752
        %v783 = vpack.c.b16 %v759, %v756
        %v784 = vpack.c.b16 %v760, %v757
        %v785 = vpack.c.b16 %v761, %v758
        %810 = vmatprep.subr.bf16.mxu0 %v763
        %811 = vmatpush1.bf16.msra.mxu0 %v762
        %812 = vmatprep.subr.bf16.mxu0 %v766
        %813 = vmatpush1.bf16.msra.mxu0 %v765
        %814 = vmatprep.subr.bf16.mxu0 %v769
        %815 = vmatpush1.bf16.msra.mxu0 %v768
        %816 = vmatprep.subr.bf16.mxu0 %v772
        %817 = vmatpush1.bf16.msra.mxu0 %v771
        %818 = vmatprep.subr.bf16.mxu0 %v775
        %819 = vmatpush1.bf16.msra.mxu0 %v774
        %820 = vmatprep.subr.bf16.mxu0 %v778
        %821 = vmatpush1.bf16.msra.mxu0 %v777
        %822 = vmatprep.subr.bf16.mxu0 %v781
        %823 = vmatpush1.bf16.msra.mxu0 %v780
        %824 = vmatprep.subr.bf16.mxu0 %v784
        %825 = vmatpush1.bf16.msra.mxu0 %v783
        %826 = vmatprep.subr.bf16.mxu0 0
        %827 = vmatpush1.bf16.msra.mxu0 0
        %828 = vmatprep.subr.bf16.mxu0 0
        %829 = vmatpush1.bf16.msra.mxu0 0
        %830 = vmatprep.subr.bf16.mxu0 0
        %831 = vmatpush1.bf16.msra.mxu0 0
        %832 = vmatprep.subr.bf16.mxu0 0
        %833 = vmatpush1.bf16.msra.mxu0 0
        %834 = vmatprep.subr.bf16.mxu0 0
        %835 = vmatpush1.bf16.msra.mxu0 0
        %836 = vmatprep.subr.bf16.mxu0 0
        %837 = vmatpush1.bf16.msra.mxu0 0
        %838 = vmatprep.subr.bf16.mxu0 0
        %839 = vmatpush1.bf16.msra.mxu0 0
        %840 = vmatprep.subr.bf16.mxu0 0
        %841 = vmatpush1.bf16.msra.mxu0 0
        %842 = vmatprep.mubr.bf16.mxu0 0
        %843 = vmatmul.mubr.bf16.gmra.mrb[0].mxu0 %v625
        %v844 = vpop.f32.mrb[0].mxu0
        %v845 = vadd.f32 %v670, %v844
        %v846 = vpop.f32.mrb[0].mxu0
        %v847 = vadd.f32 %v674, %v846
        %v848 = vpop.f32.mrb[0].mxu0
        %v849 = vadd.f32 %v670, %v848
        %v850 = vpop.f32.mrb[0].mxu0
        %v851 = vadd.f32 %v674, %v850
        %852 = vmatprep.mubr.bf16.mxu0 0
        %853 = vmatmul.mubr.bf16.gmra.mrb[0].mxu0 %v626
        %v854 = vpop.f32.mrb[0].mxu0
        %v855 = vadd.f32 %v670, %v854
        %v856 = vpop.f32.mrb[0].mxu0
        %v857 = vadd.f32 %v674, %v856
        %v858 = vpop.f32.mrb[0].mxu0
        %v859 = vadd.f32 %v670, %v858
        %v860 = vpop.f32.mrb[0].mxu0
        %v861 = vadd.f32 %v674, %v860
        %862 = vmatprep.mubr.bf16.mxu0 0
        %863 = vmatmul.mubr.bf16.gmra.mrb[0].mxu0 %v627
        %v864 = vpop.f32.mrb[0].mxu0
        %v865 = vadd.f32 %v670, %v864
        %v866 = vpop.f32.mrb[0].mxu0
        %v867 = vadd.f32 %v674, %v866
        %v868 = vpop.f32.mrb[0].mxu0
        %v869 = vadd.f32 %v670, %v868
        %v870 = vpop.f32.mrb[0].mxu0
        %v871 = vadd.f32 %v674, %v870
        %872 = vmatprep.mubr.bf16.mxu0 0
        %873 = vmatmul.mubr.bf16.gmra.mrb[0].mxu0 %v628
        %v874 = vpop.f32.mrb[0].mxu0
        %v875 = vadd.f32 %v670, %v874
        %v876 = vpop.f32.mrb[0].mxu0
        %v877 = vadd.f32 %v674, %v876
        %v878 = vpop.f32.mrb[0].mxu0
        %v879 = vadd.f32 %v670, %v878
        %v880 = vpop.f32.mrb[0].mxu0
        %v881 = vadd.f32 %v674, %v880
        %882 = vmatprep.mubr.bf16.mxu0 0
        %883 = vmatmul.mubr.bf16.gmra.mrb[0].mxu0 %v629
        %v884 = vpop.f32.mrb[0].mxu0
        %v885 = vadd.f32 %v670, %v884
        %v886 = vpop.f32.mrb[0].mxu0
        %v887 = vadd.f32 %v674, %v886
        %v888 = vpop.f32.mrb[0].mxu0
        %v889 = vadd.f32 %v670, %v888
        %v890 = vpop.f32.mrb[0].mxu0
        %v891 = vadd.f32 %v674, %v890
        %892 = vmatprep.mubr.bf16.mxu0 0
        %893 = vmatmul.mubr.bf16.gmra.mrb[0].mxu0 %v630
        %v894 = vpop.f32.mrb[0].mxu0
        %v895 = vadd.f32 %v670, %v894
        %v896 = vpop.f32.mrb[0].mxu0
        %v897 = vadd.f32 %v674, %v896
        %v898 = vpop.f32.mrb[0].mxu0
        %v899 = vadd.f32 %v670, %v898
        %v900 = vpop.f32.mrb[0].mxu0
        %v901 = vadd.f32 %v674, %v900
        %902 = vmatprep.mubr.bf16.mxu0 0
        %903 = vmatmul.mubr.bf16.gmra.mrb[0].mxu0 %v631
        %v904 = vpop.f32.mrb[0].mxu0
        %v905 = vadd.f32 %v670, %v904
        %v906 = vpop.f32.mrb[0].mxu0
        %v907 = vadd.f32 %v674, %v906
        %v908 = vpop.f32.mrb[0].mxu0
        %v909 = vadd.f32 %v670, %v908
        %v910 = vpop.f32.mrb[0].mxu0
        %v911 = vadd.f32 %v674, %v910
        %912 = vmatprep.mubr.bf16.mxu0 0
        %913 = vmatmul.mubr.bf16.gmra.mrb[0].mxu0 %v632
        %v914 = vpop.f32.mrb[0].mxu0
        %v915 = vadd.f32 %v670, %v914
        %v916 = vpop.f32.mrb[0].mxu0
        %v917 = vadd.f32 %v674, %v916
        %v918 = vpop.f32.mrb[0].mxu0
        %v919 = vadd.f32 %v670, %v918
        %v920 = vpop.f32.mrb[0].mxu0
        %v921 = vadd.f32 %v674, %v920
        %922 = vdwg.mxu0
        %923 = vmatprep.subr.bf16.mxu0 0
        %924 = vmatpush1.bf16.msra.mxu0 %v764
        %925 = vmatprep.subr.bf16.mxu0 0
        %926 = vmatpush1.bf16.msra.mxu0 %v767
        %927 = vmatprep.subr.bf16.mxu0 0
        %928 = vmatpush1.bf16.msra.mxu0 %v770
        %929 = vmatprep.subr.bf16.mxu0 0
        %930 = vmatpush1.bf16.msra.mxu0 %v773
        %931 = vmatprep.subr.bf16.mxu0 0
        %932 = vmatpush1.bf16.msra.mxu0 %v776
        %933 = vmatprep.subr.bf16.mxu0 0
        %934 = vmatpush1.bf16.msra.mxu0 %v779
        %935 = vmatprep.subr.bf16.mxu0 0
        %936 = vmatpush1.bf16.msra.mxu0 %v782
        %937 = vmatprep.subr.bf16.mxu0 0
        %938 = vmatpush1.bf16.msra.mxu0 %v785
        %939 = vmatprep.subr.bf16.mxu0 0
        %940 = vmatpush1.bf16.msra.mxu0 0
        %941 = vmatprep.subr.bf16.mxu0 0
        %942 = vmatpush1.bf16.msra.mxu0 0
        %943 = vmatprep.subr.bf16.mxu0 0
        %944 = vmatpush1.bf16.msra.mxu0 0
        %945 = vmatprep.subr.bf16.mxu0 0
        %946 = vmatpush1.bf16.msra.mxu0 0
        %947 = vmatprep.subr.bf16.mxu0 0
        %948 = vmatpush1.bf16.msra.mxu0 0
        %949 = vmatprep.subr.bf16.mxu0 0
        %950 = vmatpush1.bf16.msra.mxu0 0
        %951 = vmatprep.subr.bf16.mxu0 0
        %952 = vmatpush1.bf16.msra.mxu0 0
        %953 = vmatprep.subr.bf16.mxu0 0
        %954 = vmatpush1.bf16.msra.mxu0 0
        %955 = vmatprep.mubr.bf16.mxu0 0
        %956 = vmatmul.mubr.bf16.gmra.mrb[0].mxu0 %v625
        %v957 = vpop.f32.mrb[0].mxu0
        %v958 = vadd.f32 %v678, %v957
        %v959 = vpop.f32.mrb[0].mxu0
        %v960 = vpop.f32.mrb[0].mxu0
        %v961 = vadd.f32 %v678, %v960
        %v962 = vpop.f32.mrb[0].mxu0
        %963 = vmatprep.mubr.bf16.mxu0 0
        %964 = vmatmul.mubr.bf16.gmra.mrb[0].mxu0 %v626
        %v965 = vpop.f32.mrb[0].mxu0
        %v966 = vadd.f32 %v678, %v965
        %v967 = vpop.f32.mrb[0].mxu0
        %v968 = vpop.f32.mrb[0].mxu0
        %v969 = vadd.f32 %v678, %v968
        %v970 = vpop.f32.mrb[0].mxu0
        %971 = vmatprep.mubr.bf16.mxu0 0
        %972 = vmatmul.mubr.bf16.gmra.mrb[0].mxu0 %v627
        %v973 = vpop.f32.mrb[0].mxu0
        %v974 = vadd.f32 %v678, %v973
        %v975 = vpop.f32.mrb[0].mxu0
        %v976 = vpop.f32.mrb[0].mxu0
        %v977 = vadd.f32 %v678, %v976
        %v978 = vpop.f32.mrb[0].mxu0
        %979 = vmatprep.mubr.bf16.mxu0 0
        %980 = vmatmul.mubr.bf16.gmra.mrb[0].mxu0 %v628
        %v981 = vpop.f32.mrb[0].mxu0
        %v982 = vadd.f32 %v678, %v981
        %v983 = vpop.f32.mrb[0].mxu0
        %v984 = vpop.f32.mrb[0].mxu0
        %v985 = vadd.f32 %v678, %v984
        %v986 = vpop.f32.mrb[0].mxu0
        %987 = vmatprep.mubr.bf16.mxu0 0
        %988 = vmatmul.mubr.bf16.gmra.mrb[0].mxu0 %v629
        %v989 = vpop.f32.mrb[0].mxu0
        %v990 = vadd.f32 %v678, %v989
        %v991 = vpop.f32.mrb[0].mxu0
        %v992 = vpop.f32.mrb[0].mxu0
        %v993 = vadd.f32 %v678, %v992
        %v994 = vpop.f32.mrb[0].mxu0
        %995 = vmatprep.mubr.bf16.mxu0 0
        %996 = vmatmul.mubr.bf16.gmra.mrb[0].mxu0 %v630
        %v997 = vpop.f32.mrb[0].mxu0
        %v998 = vadd.f32 %v678, %v997
        %v999 = vpop.f32.mrb[0].mxu0
        %v1000 = vpop.f32.mrb[0].mxu0
        %v1001 = vadd.f32 %v678, %v1000
        %v1002 = vpop.f32.mrb[0].mxu0
        %1003 = vmatprep.mubr.bf16.mxu0 0
        %1004 = vmatmul.mubr.bf16.gmra.mrb[0].mxu0 %v631
        %v1005 = vpop.f32.mrb[0].mxu0
        %v1006 = vadd.f32 %v678, %v1005
        %v1007 = vpop.f32.mrb[0].mxu0
        %v1008 = vpop.f32.mrb[0].mxu0
        %v1009 = vadd.f32 %v678, %v1008
        %v1010 = vpop.f32.mrb[0].mxu0
        %1011 = vmatprep.mubr.bf16.mxu0 0
        %1012 = vmatmul.mubr.bf16.gmra.mrb[0].mxu0 %v632
        %v1013 = vpop.f32.mrb[0].mxu0
        %v1014 = vadd.f32 %v678, %v1013
        %v1015 = vpop.f32.mrb[0].mxu0
        %v1016 = vpop.f32.mrb[0].mxu0
        %v1017 = vadd.f32 %v678, %v1016
        %v1018 = vpop.f32.mrb[0].mxu0
        %1019 = vdwg.mxu0
        %v1020 = vpack.c.bf16 %v849, %v845
        %v1021 = vpack.c.bf16 %v859, %v855
        %v1022 = vpack.c.bf16 %v869, %v865
        %v1023 = vpack.c.bf16 %v879, %v875
        %v1024 = vpack.c.bf16 %v889, %v885
        %v1025 = vpack.c.bf16 %v899, %v895
        %v1026 = vpack.c.bf16 %v909, %v905
        %v1027 = vpack.c.bf16 %v919, %v915
        %v1028 = vpack.c.bf16 %v851, %v847
        %v1029 = vpack.c.bf16 %v861, %v857
        %v1030 = vpack.c.bf16 %v871, %v867
        %v1031 = vpack.c.bf16 %v881, %v877
        %v1032 = vpack.c.bf16 %v891, %v887
        %v1033 = vpack.c.bf16 %v901, %v897
        %v1034 = vpack.c.bf16 %v911, %v907
        %v1035 = vpack.c.bf16 %v921, %v917
        %v1037 = vlaneseq
        %v1038 = vshrl.u32 %v1037, 7
        %v1039 = vsub.s32 0, %v1038
        %v1040 = vrot.slane %v373, %v1039
        %vm1042 = vcmask 523264
        %v1044 = vsel %vm1042, %v1020, 0
        %v1047 = vsel %vm1042, %v1021, 0
        %v1050 = vsel %vm1042, %v1022, 0
        %v1053 = vsel %vm1042, %v1023, 0
        %v1056 = vsel %vm1042, %v1024, 0
        %v1059 = vsel %vm1042, %v1025, 0
        %v1062 = vsel %vm1042, %v1026, 0
        %v1065 = vsel %vm1042, %v1027, 0
        %v1068 = vsel %vm1042, %v1028, 0
        %v1071 = vsel %vm1042, %v1029, 0
        %v1074 = vsel %vm1042, %v1030, 0
        %v1077 = vsel %vm1042, %v1031, 0
        %v1080 = vsel %vm1042, %v1032, 0
        %v1083 = vsel %vm1042, %v1033, 0
        %v1086 = vsel %vm1042, %v1034, 0
        %v1089 = vsel %vm1042, %v1035, 0
        %1091 = vmatprep.subr.bf16.mxu0 0
        %1092 = vmatpush1.bf16.xpose.msra.mxu0 %v1068
        %1093 = vmatprep.subr.bf16.mxu0 0
        %1094 = vmatpush1.bf16.xpose.msra.mxu0 %v1071
        %1095 = vmatprep.subr.bf16.mxu0 0
        %1096 = vmatpush1.bf16.xpose.msra.mxu0 %v1074
        %1097 = vmatprep.subr.bf16.mxu0 0
        %1098 = vmatpush1.bf16.xpose.msra.mxu0 %v1077
        %1099 = vmatprep.subr.bf16.mxu0 0
        %1100 = vmatpush1.bf16.xpose.msra.mxu0 %v1080
        %1101 = vmatprep.subr.bf16.mxu0 0
        %1102 = vmatpush1.bf16.xpose.msra.mxu0 %v1083
        %1103 = vmatprep.subr.bf16.mxu0 0
        %1104 = vmatpush1.bf16.xpose.msra.mxu0 %v1086
        %1105 = vmatprep.subr.bf16.mxu0 0
        %1106 = vmatpush1.bf16.xpose.msra.mxu0 %v1089
        %1107 = vmatprep.subr.bf16.mxu0 0
        %1108 = vmatpush1.bf16.xpose.msra.mxu0 0
        %1109 = vmatprep.subr.bf16.mxu0 0
        %1110 = vmatpush1.bf16.xpose.msra.mxu0 0
        %1111 = vmatprep.subr.bf16.mxu0 0
        %1112 = vmatpush1.bf16.xpose.msra.mxu0 0
        %1113 = vmatprep.subr.bf16.mxu0 0
        %1114 = vmatpush1.bf16.xpose.msra.mxu0 0
        %1115 = vmatprep.subr.bf16.mxu0 0
        %1116 = vmatpush1.bf16.xpose.msra.mxu0 0
        %1117 = vmatprep.subr.bf16.mxu0 0
        %1118 = vmatpush1.bf16.xpose.msra.mxu0 0
        %1119 = vmatprep.subr.bf16.mxu0 0
        %1120 = vmatpush1.bf16.xpose.msra.mxu0 0
        %1121 = vmatprep.subr.bf16.mxu0 0
        %1122 = vmatpush1.bf16.xpose.msra.mxu0 0
        %1123 = vmatprep.mubr.bf16.mxu0 0
        %1124 = vmatmul.mubr.bf16.gmra.mrb[0].mxu0 %v1044
        %v1125 = vpop.f32.mrb[0].mxu0
        %v1126 = vadd.f32 %v1040, %v1125
        %v1127 = vpop.f32.mrb[0].mxu0
        %v1128 = vpop.f32.mrb[0].mxu0
        %v1129 = vadd.f32 %v1040, %v1128
        %v1130 = vpop.f32.mrb[0].mxu0
        %1131 = vmatprep.mubr.bf16.mxu0 0
        %1132 = vmatmul.mubr.bf16.gmra.mrb[0].mxu0 %v1047
        %v1133 = vpop.f32.mrb[0].mxu0
        %v1134 = vadd.f32 %v1040, %v1133
        %v1135 = vpop.f32.mrb[0].mxu0
        %v1136 = vpop.f32.mrb[0].mxu0
        %v1137 = vadd.f32 %v1040, %v1136
        %v1138 = vpop.f32.mrb[0].mxu0
        %1139 = vmatprep.mubr.bf16.mxu0 0
        %1140 = vmatmul.mubr.bf16.gmra.mrb[0].mxu0 %v1050
        %v1141 = vpop.f32.mrb[0].mxu0
        %v1142 = vadd.f32 %v1040, %v1141
        %v1143 = vpop.f32.mrb[0].mxu0
        %v1144 = vpop.f32.mrb[0].mxu0
        %v1145 = vadd.f32 %v1040, %v1144
        %v1146 = vpop.f32.mrb[0].mxu0
        %1147 = vmatprep.mubr.bf16.mxu0 0
        %1148 = vmatmul.mubr.bf16.gmra.mrb[0].mxu0 %v1053
        %v1149 = vpop.f32.mrb[0].mxu0
        %v1150 = vadd.f32 %v1040, %v1149
        %v1151 = vpop.f32.mrb[0].mxu0
        %v1152 = vpop.f32.mrb[0].mxu0
        %v1153 = vadd.f32 %v1040, %v1152
        %v1154 = vpop.f32.mrb[0].mxu0
        %1155 = vmatprep.mubr.bf16.mxu0 0
        %1156 = vmatmul.mubr.bf16.gmra.mrb[0].mxu0 %v1056
        %v1157 = vpop.f32.mrb[0].mxu0
        %v1158 = vadd.f32 %v1040, %v1157
        %v1159 = vpop.f32.mrb[0].mxu0
        %v1160 = vpop.f32.mrb[0].mxu0
        %v1161 = vadd.f32 %v1040, %v1160
        %v1162 = vpop.f32.mrb[0].mxu0
        %1163 = vmatprep.mubr.bf16.mxu0 0
        %1164 = vmatmul.mubr.bf16.gmra.mrb[0].mxu0 %v1059
        %v1165 = vpop.f32.mrb[0].mxu0
        %v1166 = vadd.f32 %v1040, %v1165
        %v1167 = vpop.f32.mrb[0].mxu0
        %v1168 = vpop.f32.mrb[0].mxu0
        %v1169 = vadd.f32 %v1040, %v1168
        %v1170 = vpop.f32.mrb[0].mxu0
        %1171 = vmatprep.mubr.bf16.mxu0 0
        %1172 = vmatmul.mubr.bf16.gmra.mrb[0].mxu0 %v1062
        %v1173 = vpop.f32.mrb[0].mxu0
        %v1174 = vadd.f32 %v1040, %v1173
        %v1175 = vpop.f32.mrb[0].mxu0
        %v1176 = vpop.f32.mrb[0].mxu0
        %v1177 = vadd.f32 %v1040, %v1176
        %v1178 = vpop.f32.mrb[0].mxu0
        %1179 = vmatprep.mubr.bf16.mxu0 0
        %1180 = vmatmul.mubr.bf16.gmra.mrb[0].mxu0 %v1065
        %v1181 = vpop.f32.mrb[0].mxu0
        %v1182 = vadd.f32 %v1040, %v1181
        %v1183 = vpop.f32.mrb[0].mxu0
        %v1184 = vpop.f32.mrb[0].mxu0
        %v1185 = vadd.f32 %v1040, %v1184
        %v1186 = vpop.f32.mrb[0].mxu0
        %1187 = vdwg.mxu0
        %1188 = vmax.xlane.f32.xlu0 %v1126
        %v1189 = vpop.xlane.xlu0 %1188
        %1190 = vmax.xlane.f32.xlu0 %v1129
        %v1191 = vpop.xlane.xlu0 %1190
        %1192 = vmax.xlane.f32.xlu0 %v1134
        %v1193 = vpop.xlane.xlu0 %1192
        %1194 = vmax.xlane.f32.xlu0 %v1137
        %v1195 = vpop.xlane.xlu0 %1194
        %1196 = vmax.xlane.f32.xlu0 %v1142
        %v1197 = vpop.xlane.xlu0 %1196
        %1198 = vmax.xlane.f32.xlu0 %v1145
        %v1199 = vpop.xlane.xlu0 %1198
        %1200 = vmax.xlane.f32.xlu0 %v1150
        %v1201 = vpop.xlane.xlu0 %1200
        %1202 = vmax.xlane.f32.xlu0 %v1153
        %v1203 = vpop.xlane.xlu0 %1202
        %1204 = vmax.xlane.f32.xlu0 %v1158
        %v1205 = vpop.xlane.xlu0 %1204
        %1206 = vmax.xlane.f32.xlu0 %v1161
        %v1207 = vpop.xlane.xlu0 %1206
        %1208 = vmax.xlane.f32.xlu0 %v1166
        %v1209 = vpop.xlane.xlu0 %1208
        %1210 = vmax.xlane.f32.xlu0 %v1169
        %v1211 = vpop.xlane.xlu0 %1210
        %1212 = vmax.xlane.f32.xlu0 %v1174
        %v1213 = vpop.xlane.xlu0 %1212
        %1214 = vmax.xlane.f32.xlu0 %v1177
        %v1215 = vpop.xlane.xlu0 %1214
        %1216 = vmax.xlane.f32.xlu0 %v1182
        %v1217 = vpop.xlane.xlu0 %1216
        %1218 = vmax.xlane.f32.xlu0 %v1185
        %v1219 = vpop.xlane.xlu0 %1218
        %v1220 = vsub.f32 %v1126, %v1189
        %v1221 = vsub.f32 %v1129, %v1191
        %v1222 = vsub.f32 %v1134, %v1193
        %v1223 = vsub.f32 %v1137, %v1195
        %v1224 = vsub.f32 %v1142, %v1197
        %v1225 = vsub.f32 %v1145, %v1199
        %v1226 = vsub.f32 %v1150, %v1201
        %v1227 = vsub.f32 %v1153, %v1203
        %v1228 = vsub.f32 %v1158, %v1205
        %v1229 = vsub.f32 %v1161, %v1207
        %v1230 = vsub.f32 %v1166, %v1209
        %v1231 = vsub.f32 %v1169, %v1211
        %v1232 = vsub.f32 %v1174, %v1213
        %v1233 = vsub.f32 %v1177, %v1215
        %v1234 = vsub.f32 %v1182, %v1217
        %v1235 = vsub.f32 %v1185, %v1219
        %v1236 = vmul.f32 %v1220, 1.442695
        %v1237 = vpow.pop %v1236
        %v1238 = vmul.f32 %v1221, 1.442695
        %v1239 = vpow.pop %v1238
        %v1240 = vmul.f32 %v1222, 1.442695
        %v1241 = vpow.pop %v1240
        %v1242 = vmul.f32 %v1223, 1.442695
        %v1243 = vpow.pop %v1242
        %v1244 = vmul.f32 %v1224, 1.442695
        %v1245 = vpow.pop %v1244
        %v1246 = vmul.f32 %v1225, 1.442695
        %v1247 = vpow.pop %v1246
        %v1248 = vmul.f32 %v1226, 1.442695
        %v1249 = vpow.pop %v1248
        %v1250 = vmul.f32 %v1227, 1.442695
        %v1251 = vpow.pop %v1250
        %v1252 = vmul.f32 %v1228, 1.442695
        %v1253 = vpow.pop %v1252
        %v1254 = vmul.f32 %v1229, 1.442695
        %v1255 = vpow.pop %v1254
        %v1256 = vmul.f32 %v1230, 1.442695
        %v1257 = vpow.pop %v1256
        %v1258 = vmul.f32 %v1231, 1.442695
        %v1259 = vpow.pop %v1258
        %v1260 = vmul.f32 %v1232, 1.442695
        %v1261 = vpow.pop %v1260
        %v1262 = vmul.f32 %v1233, 1.442695
        %v1263 = vpow.pop %v1262
        %v1264 = vmul.f32 %v1234, 1.442695
        %v1265 = vpow.pop %v1264
        %v1266 = vmul.f32 %v1235, 1.442695
        %v1267 = vpow.pop %v1266
        %1268 = vadd.xlane.f32.xlu0 %v1237
        %v1269 = vpop.xlane.xlu0 %1268
        %1270 = vadd.xlane.f32.xlu0 %v1239
        %v1271 = vpop.xlane.xlu0 %1270
        %1272 = vadd.xlane.f32.xlu0 %v1241
        %v1273 = vpop.xlane.xlu0 %1272
        %1274 = vadd.xlane.f32.xlu0 %v1243
        %v1275 = vpop.xlane.xlu0 %1274
        %1276 = vadd.xlane.f32.xlu0 %v1245
        %v1277 = vpop.xlane.xlu0 %1276
        %1278 = vadd.xlane.f32.xlu0 %v1247
        %v1279 = vpop.xlane.xlu0 %1278
        %1280 = vadd.xlane.f32.xlu0 %v1249
        %v1281 = vpop.xlane.xlu0 %1280
        %1282 = vadd.xlane.f32.xlu0 %v1251
        %v1283 = vpop.xlane.xlu0 %1282
        %1284 = vadd.xlane.f32.xlu0 %v1253
        %v1285 = vpop.xlane.xlu0 %1284
        %1286 = vadd.xlane.f32.xlu0 %v1255
        %v1287 = vpop.xlane.xlu0 %1286
        %1288 = vadd.xlane.f32.xlu0 %v1257
        %v1289 = vpop.xlane.xlu0 %1288
        %1290 = vadd.xlane.f32.xlu0 %v1259
        %v1291 = vpop.xlane.xlu0 %1290
        %1292 = vadd.xlane.f32.xlu0 %v1261
        %v1293 = vpop.xlane.xlu0 %1292
        %1294 = vadd.xlane.f32.xlu0 %v1263
        %v1295 = vpop.xlane.xlu0 %1294
        %1296 = vadd.xlane.f32.xlu0 %v1265
        %v1297 = vpop.xlane.xlu0 %1296
        %1298 = vadd.xlane.f32.xlu0 %v1267
        %v1299 = vpop.xlane.xlu0 %1298
        %v1300 = vrcp.pop %v1269
        %v1301 = vrcp.pop %v1271
        %v1302 = vrcp.pop %v1273
        %v1303 = vrcp.pop %v1275
        %v1304 = vrcp.pop %v1277
        %v1305 = vrcp.pop %v1279
        %v1306 = vrcp.pop %v1281
        %v1307 = vrcp.pop %v1283
        %v1308 = vrcp.pop %v1285
        %v1309 = vrcp.pop %v1287
        %v1310 = vrcp.pop %v1289
        %v1311 = vrcp.pop %v1291
        %v1312 = vrcp.pop %v1293
        %v1313 = vrcp.pop %v1295
        %v1314 = vrcp.pop %v1297
        %v1315 = vrcp.pop %v1299
        %v1316 = vmul.f32 %v1237, %v1300
        %v1317 = vmul.f32 %v1239, %v1301
        %v1318 = vmul.f32 %v1241, %v1302
        %v1319 = vmul.f32 %v1243, %v1303
        %v1320 = vmul.f32 %v1245, %v1304
        %v1321 = vmul.f32 %v1247, %v1305
        %v1322 = vmul.f32 %v1249, %v1306
        %v1323 = vmul.f32 %v1251, %v1307
        %v1324 = vmul.f32 %v1253, %v1308
        %v1325 = vmul.f32 %v1255, %v1309
        %v1326 = vmul.f32 %v1257, %v1310
        %v1327 = vmul.f32 %v1259, %v1311
        %v1328 = vmul.f32 %v1261, %v1312
        %v1329 = vmul.f32 %v1263, %v1313
        %v1330 = vmul.f32 %v1265, %v1314
        %v1331 = vmul.f32 %v1267, %v1315
        %v1332 = vpack.c.bf16 %v1317, %v1316
        %v1333 = vpack.c.bf16 %v1319, %v1318
        %v1334 = vpack.c.bf16 %v1321, %v1320
        %v1335 = vpack.c.bf16 %v1323, %v1322
        %v1336 = vpack.c.bf16 %v1325, %v1324
        %v1337 = vpack.c.bf16 %v1327, %v1326
        %v1338 = vpack.c.bf16 %v1329, %v1328
        %v1339 = vpack.c.bf16 %v1331, %v1330
        %v1340 = vpack.c.bf16 %v961, %v958
        %v1341 = vpack.c.bf16 %v969, %v966
        %v1342 = vpack.c.bf16 %v977, %v974
        %v1343 = vpack.c.bf16 %v985, %v982
        %v1344 = vpack.c.bf16 %v993, %v990
        %v1345 = vpack.c.bf16 %v1001, %v998
        %v1346 = vpack.c.bf16 %v1009, %v1006
        %v1347 = vpack.c.bf16 %v1017, %v1014
        %1348 = vmatprep.subr.bf16.mxu0 0
        %1349 = vmatpush1.bf16.msra.mxu0 %v1340
        %1350 = vmatprep.subr.bf16.mxu0 0
        %1351 = vmatpush1.bf16.msra.mxu0 %v1341
        %1352 = vmatprep.subr.bf16.mxu0 0
        %1353 = vmatpush1.bf16.msra.mxu0 %v1342
        %1354 = vmatprep.subr.bf16.mxu0 0
        %1355 = vmatpush1.bf16.msra.mxu0 %v1343
        %1356 = vmatprep.subr.bf16.mxu0 0
        %1357 = vmatpush1.bf16.msra.mxu0 %v1344
        %1358 = vmatprep.subr.bf16.mxu0 0
        %1359 = vmatpush1.bf16.msra.mxu0 %v1345
        %1360 = vmatprep.subr.bf16.mxu0 0
        %1361 = vmatpush1.bf16.msra.mxu0 %v1346
        %1362 = vmatprep.subr.bf16.mxu0 0
        %1363 = vmatpush1.bf16.msra.mxu0 %v1347
        %1364 = vmatprep.subr.bf16.mxu0 0
        %1365 = vmatpush1.bf16.msra.mxu0 0
        %1366 = vmatprep.subr.bf16.mxu0 0
        %1367 = vmatpush1.bf16.msra.mxu0 0
        %1368 = vmatprep.subr.bf16.mxu0 0
        %1369 = vmatpush1.bf16.msra.mxu0 0
        %1370 = vmatprep.subr.bf16.mxu0 0
        %1371 = vmatpush1.bf16.msra.mxu0 0
        %1372 = vmatprep.subr.bf16.mxu0 0
        %1373 = vmatpush1.bf16.msra.mxu0 0
        %1374 = vmatprep.subr.bf16.mxu0 0
        %1375 = vmatpush1.bf16.msra.mxu0 0
        %1376 = vmatprep.subr.bf16.mxu0 0
        %1377 = vmatpush1.bf16.msra.mxu0 0
        %1378 = vmatprep.subr.bf16.mxu0 0
        %1379 = vmatpush1.bf16.msra.mxu0 0
        %1380 = vmatprep.mubr.bf16.mxu0 0
        %1381 = vmatmul.mubr.bf16.gmra.mrb[0].mxu0 %v1332
        %v1382 = vpop.f32.mrb[0].mxu0
        %v1383 = vadd.f32 0.0, %v1382
        %v1384 = vpop.f32.mrb[0].mxu0
        %v1385 = vpop.f32.mrb[0].mxu0
        %v1386 = vadd.f32 0.0, %v1385
        %v1387 = vpop.f32.mrb[0].mxu0
        %1388 = vmatprep.mubr.bf16.mxu0 0
        %1389 = vmatmul.mubr.bf16.gmra.mrb[0].mxu0 %v1333
        %v1390 = vpop.f32.mrb[0].mxu0
        %v1391 = vadd.f32 0.0, %v1390
        %v1392 = vpop.f32.mrb[0].mxu0
        %v1393 = vpop.f32.mrb[0].mxu0
        %v1394 = vadd.f32 0.0, %v1393
        %v1395 = vpop.f32.mrb[0].mxu0
        %1396 = vmatprep.mubr.bf16.mxu0 0
        %1397 = vmatmul.mubr.bf16.gmra.mrb[0].mxu0 %v1334
        %v1398 = vpop.f32.mrb[0].mxu0
        %v1399 = vadd.f32 0.0, %v1398
        %v1400 = vpop.f32.mrb[0].mxu0
        %v1401 = vpop.f32.mrb[0].mxu0
        %v1402 = vadd.f32 0.0, %v1401
        %v1403 = vpop.f32.mrb[0].mxu0
        %1404 = vmatprep.mubr.bf16.mxu0 0
        %1405 = vmatmul.mubr.bf16.gmra.mrb[0].mxu0 %v1335
        %v1406 = vpop.f32.mrb[0].mxu0
        %v1407 = vadd.f32 0.0, %v1406
        %v1408 = vpop.f32.mrb[0].mxu0
        %v1409 = vpop.f32.mrb[0].mxu0
        %v1410 = vadd.f32 0.0, %v1409
        %v1411 = vpop.f32.mrb[0].mxu0
        %1412 = vmatprep.mubr.bf16.mxu0 0
        %1413 = vmatmul.mubr.bf16.gmra.mrb[0].mxu0 %v1336
        %v1414 = vpop.f32.mrb[0].mxu0
        %v1415 = vadd.f32 0.0, %v1414
        %v1416 = vpop.f32.mrb[0].mxu0
        %v1417 = vpop.f32.mrb[0].mxu0
        %v1418 = vadd.f32 0.0, %v1417
        %v1419 = vpop.f32.mrb[0].mxu0
        %1420 = vmatprep.mubr.bf16.mxu0 0
        %1421 = vmatmul.mubr.bf16.gmra.mrb[0].mxu0 %v1337
        %v1422 = vpop.f32.mrb[0].mxu0
        %v1423 = vadd.f32 0.0, %v1422
        %v1424 = vpop.f32.mrb[0].mxu0
        %v1425 = vpop.f32.mrb[0].mxu0
        %v1426 = vadd.f32 0.0, %v1425
        %v1427 = vpop.f32.mrb[0].mxu0
        %1428 = vmatprep.mubr.bf16.mxu0 0
        %1429 = vmatmul.mubr.bf16.gmra.mrb[0].mxu0 %v1338
        %v1430 = vpop.f32.mrb[0].mxu0
        %v1431 = vadd.f32 0.0, %v1430
        %v1432 = vpop.f32.mrb[0].mxu0
        %v1433 = vpop.f32.mrb[0].mxu0
        %v1434 = vadd.f32 0.0, %v1433
        %v1435 = vpop.f32.mrb[0].mxu0
        %1436 = vmatprep.mubr.bf16.mxu0 0
        %1437 = vmatmul.mubr.bf16.gmra.mrb[0].mxu0 %v1339
        %v1438 = vpop.f32.mrb[0].mxu0
        %v1439 = vadd.f32 0.0, %v1438
        %v1440 = vpop.f32.mrb[0].mxu0
        %v1441 = vpop.f32.mrb[0].mxu0
        %v1442 = vadd.f32 0.0, %v1441
        %v1443 = vpop.f32.mrb[0].mxu0
        %1444 = vdwg.mxu0
        %v1445 = vpack.c.bf16 %v1386, %v1383
        %v1446 = vpack.c.bf16 %v1394, %v1391
        %v1447 = vpack.c.bf16 %v1402, %v1399
        %v1448 = vpack.c.bf16 %v1410, %v1407
        %v1449 = vpack.c.bf16 %v1418, %v1415
        %v1450 = vpack.c.bf16 %v1426, %v1423
        %v1451 = vpack.c.bf16 %v1434, %v1431
        %v1452 = vpack.c.bf16 %v1442, %v1439
        %1461 = vrot.lane.b32.xlu0 %v1020, 64
        %v1462 = vpop.permute.xlu0 %1461
        %1463 = vrot.lane.b32.xlu0 %v1021, 64
        %v1464 = vpop.permute.xlu0 %1463
        %1465 = vrot.lane.b32.xlu0 %v1022, 64
        %v1466 = vpop.permute.xlu0 %1465
        %1467 = vrot.lane.b32.xlu0 %v1023, 64
        %v1468 = vpop.permute.xlu0 %1467
        %1469 = vrot.lane.b32.xlu0 %v1024, 64
        %v1470 = vpop.permute.xlu0 %1469
        %1471 = vrot.lane.b32.xlu0 %v1025, 64
        %v1472 = vpop.permute.xlu0 %1471
        %1473 = vrot.lane.b32.xlu0 %v1026, 64
        %v1474 = vpop.permute.xlu0 %1473
        %1475 = vrot.lane.b32.xlu0 %v1027, 64
        %v1476 = vpop.permute.xlu0 %1475
        %1485 = vrot.lane.b32.xlu0 %v1028, 64
        %v1486 = vpop.permute.xlu0 %1485
        %1487 = vrot.lane.b32.xlu0 %v1029, 64
        %v1488 = vpop.permute.xlu0 %1487
        %1489 = vrot.lane.b32.xlu0 %v1030, 64
        %v1490 = vpop.permute.xlu0 %1489
        %1491 = vrot.lane.b32.xlu0 %v1031, 64
        %v1492 = vpop.permute.xlu0 %1491
        %1493 = vrot.lane.b32.xlu0 %v1032, 64
        %v1494 = vpop.permute.xlu0 %1493
        %1495 = vrot.lane.b32.xlu0 %v1033, 64
        %v1496 = vpop.permute.xlu0 %1495
        %1497 = vrot.lane.b32.xlu0 %v1034, 64
        %v1498 = vpop.permute.xlu0 %1497
        %1499 = vrot.lane.b32.xlu0 %v1035, 64
        %v1500 = vpop.permute.xlu0 %1499
        %v1502 = vsel %vm1042, %v1462, 0
        %v1505 = vsel %vm1042, %v1464, 0
        %v1508 = vsel %vm1042, %v1466, 0
        %v1511 = vsel %vm1042, %v1468, 0
        %v1514 = vsel %vm1042, %v1470, 0
        %v1517 = vsel %vm1042, %v1472, 0
        %v1520 = vsel %vm1042, %v1474, 0
        %v1523 = vsel %vm1042, %v1476, 0
        %v1526 = vsel %vm1042, %v1486, 0
        %v1529 = vsel %vm1042, %v1488, 0
        %v1532 = vsel %vm1042, %v1490, 0
        %v1535 = vsel %vm1042, %v1492, 0
        %v1538 = vsel %vm1042, %v1494, 0
        %v1541 = vsel %vm1042, %v1496, 0
        %v1544 = vsel %vm1042, %v1498, 0
        %v1547 = vsel %vm1042, %v1500, 0
        %1549 = vmatprep.subr.bf16.mxu0 0
        %1550 = vmatpush1.bf16.xpose.msra.mxu0 %v1526
        %1551 = vmatprep.subr.bf16.mxu0 0
        %1552 = vmatpush1.bf16.xpose.msra.mxu0 %v1529
        %1553 = vmatprep.subr.bf16.mxu0 0
        %1554 = vmatpush1.bf16.xpose.msra.mxu0 %v1532
        %1555 = vmatprep.subr.bf16.mxu0 0
        %1556 = vmatpush1.bf16.xpose.msra.mxu0 %v1535
        %1557 = vmatprep.subr.bf16.mxu0 0
        %1558 = vmatpush1.bf16.xpose.msra.mxu0 %v1538
        %1559 = vmatprep.subr.bf16.mxu0 0
        %1560 = vmatpush1.bf16.xpose.msra.mxu0 %v1541
        %1561 = vmatprep.subr.bf16.mxu0 0
        %1562 = vmatpush1.bf16.xpose.msra.mxu0 %v1544
        %1563 = vmatprep.subr.bf16.mxu0 0
        %1564 = vmatpush1.bf16.xpose.msra.mxu0 %v1547
        %1565 = vmatprep.subr.bf16.mxu0 0
        %1566 = vmatpush1.bf16.xpose.msra.mxu0 0
        %1567 = vmatprep.subr.bf16.mxu0 0
        %1568 = vmatpush1.bf16.xpose.msra.mxu0 0
        %1569 = vmatprep.subr.bf16.mxu0 0
        %1570 = vmatpush1.bf16.xpose.msra.mxu0 0
        %1571 = vmatprep.subr.bf16.mxu0 0
        %1572 = vmatpush1.bf16.xpose.msra.mxu0 0
        %1573 = vmatprep.subr.bf16.mxu0 0
        %1574 = vmatpush1.bf16.xpose.msra.mxu0 0
        %1575 = vmatprep.subr.bf16.mxu0 0
        %1576 = vmatpush1.bf16.xpose.msra.mxu0 0
        %1577 = vmatprep.subr.bf16.mxu0 0
        %1578 = vmatpush1.bf16.xpose.msra.mxu0 0
        %1579 = vmatprep.subr.bf16.mxu0 0
        %1580 = vmatpush1.bf16.xpose.msra.mxu0 0
        %1581 = vmatprep.mubr.bf16.mxu0 0
        %1582 = vmatmul.mubr.bf16.gmra.mrb[0].mxu0 %v1502
        %v1583 = vpop.f32.mrb[0].mxu0
        %v1584 = vadd.f32 %v1040, %v1583
        %v1585 = vpop.f32.mrb[0].mxu0
        %v1586 = vpop.f32.mrb[0].mxu0
        %v1587 = vadd.f32 %v1040, %v1586
        %v1588 = vpop.f32.mrb[0].mxu0
        %1589 = vmatprep.mubr.bf16.mxu0 0
        %1590 = vmatmul.mubr.bf16.gmra.mrb[0].mxu0 %v1505
        %v1591 = vpop.f32.mrb[0].mxu0
        %v1592 = vadd.f32 %v1040, %v1591
        %v1593 = vpop.f32.mrb[0].mxu0
        %v1594 = vpop.f32.mrb[0].mxu0
        %v1595 = vadd.f32 %v1040, %v1594
        %v1596 = vpop.f32.mrb[0].mxu0
        %1597 = vmatprep.mubr.bf16.mxu0 0
        %1598 = vmatmul.mubr.bf16.gmra.mrb[0].mxu0 %v1508
        %v1599 = vpop.f32.mrb[0].mxu0
        %v1600 = vadd.f32 %v1040, %v1599
        %v1601 = vpop.f32.mrb[0].mxu0
        %v1602 = vpop.f32.mrb[0].mxu0
        %v1603 = vadd.f32 %v1040, %v1602
        %v1604 = vpop.f32.mrb[0].mxu0
        %1605 = vmatprep.mubr.bf16.mxu0 0
        %1606 = vmatmul.mubr.bf16.gmra.mrb[0].mxu0 %v1511
        %v1607 = vpop.f32.mrb[0].mxu0
        %v1608 = vadd.f32 %v1040, %v1607
        %v1609 = vpop.f32.mrb[0].mxu0
        %v1610 = vpop.f32.mrb[0].mxu0
        %v1611 = vadd.f32 %v1040, %v1610
        %v1612 = vpop.f32.mrb[0].mxu0
        %1613 = vmatprep.mubr.bf16.mxu0 0
        %1614 = vmatmul.mubr.bf16.gmra.mrb[0].mxu0 %v1514
        %v1615 = vpop.f32.mrb[0].mxu0
        %v1616 = vadd.f32 %v1040, %v1615
        %v1617 = vpop.f32.mrb[0].mxu0
        %v1618 = vpop.f32.mrb[0].mxu0
        %v1619 = vadd.f32 %v1040, %v1618
        %v1620 = vpop.f32.mrb[0].mxu0
        %1621 = vmatprep.mubr.bf16.mxu0 0
        %1622 = vmatmul.mubr.bf16.gmra.mrb[0].mxu0 %v1517
        %v1623 = vpop.f32.mrb[0].mxu0
        %v1624 = vadd.f32 %v1040, %v1623
        %v1625 = vpop.f32.mrb[0].mxu0
        %v1626 = vpop.f32.mrb[0].mxu0
        %v1627 = vadd.f32 %v1040, %v1626
        %v1628 = vpop.f32.mrb[0].mxu0
        %1629 = vmatprep.mubr.bf16.mxu0 0
        %1630 = vmatmul.mubr.bf16.gmra.mrb[0].mxu0 %v1520
        %v1631 = vpop.f32.mrb[0].mxu0
        %v1632 = vadd.f32 %v1040, %v1631
        %v1633 = vpop.f32.mrb[0].mxu0
        %v1634 = vpop.f32.mrb[0].mxu0
        %v1635 = vadd.f32 %v1040, %v1634
        %v1636 = vpop.f32.mrb[0].mxu0
        %1637 = vmatprep.mubr.bf16.mxu0 0
        %1638 = vmatmul.mubr.bf16.gmra.mrb[0].mxu0 %v1523
        %v1639 = vpop.f32.mrb[0].mxu0
        %v1640 = vadd.f32 %v1040, %v1639
        %v1641 = vpop.f32.mrb[0].mxu0
        %v1642 = vpop.f32.mrb[0].mxu0
        %v1643 = vadd.f32 %v1040, %v1642
        %v1644 = vpop.f32.mrb[0].mxu0
        %1645 = vdwg.mxu0
        %1646 = vmax.xlane.f32.xlu0 %v1584
        %v1647 = vpop.xlane.xlu0 %1646
        %1648 = vmax.xlane.f32.xlu0 %v1587
        %v1649 = vpop.xlane.xlu0 %1648
        %1650 = vmax.xlane.f32.xlu0 %v1592
        %v1651 = vpop.xlane.xlu0 %1650
        %1652 = vmax.xlane.f32.xlu0 %v1595
        %v1653 = vpop.xlane.xlu0 %1652
        %1654 = vmax.xlane.f32.xlu0 %v1600
        %v1655 = vpop.xlane.xlu0 %1654
        %1656 = vmax.xlane.f32.xlu0 %v1603
        %v1657 = vpop.xlane.xlu0 %1656
        %1658 = vmax.xlane.f32.xlu0 %v1608
        %v1659 = vpop.xlane.xlu0 %1658
        %1660 = vmax.xlane.f32.xlu0 %v1611
        %v1661 = vpop.xlane.xlu0 %1660
        %1662 = vmax.xlane.f32.xlu0 %v1616
        %v1663 = vpop.xlane.xlu0 %1662
        %1664 = vmax.xlane.f32.xlu0 %v1619
        %v1665 = vpop.xlane.xlu0 %1664
        %1666 = vmax.xlane.f32.xlu0 %v1624
        %v1667 = vpop.xlane.xlu0 %1666
        %1668 = vmax.xlane.f32.xlu0 %v1627
        %v1669 = vpop.xlane.xlu0 %1668
        %1670 = vmax.xlane.f32.xlu0 %v1632
        %v1671 = vpop.xlane.xlu0 %1670
        %1672 = vmax.xlane.f32.xlu0 %v1635
        %v1673 = vpop.xlane.xlu0 %1672
        %1674 = vmax.xlane.f32.xlu0 %v1640
        %v1675 = vpop.xlane.xlu0 %1674
        %1676 = vmax.xlane.f32.xlu0 %v1643
        %v1677 = vpop.xlane.xlu0 %1676
        %v1678 = vsub.f32 %v1584, %v1647
        %v1679 = vsub.f32 %v1587, %v1649
        %v1680 = vsub.f32 %v1592, %v1651
        %v1681 = vsub.f32 %v1595, %v1653
        %v1682 = vsub.f32 %v1600, %v1655
        %v1683 = vsub.f32 %v1603, %v1657
        %v1684 = vsub.f32 %v1608, %v1659
        %v1685 = vsub.f32 %v1611, %v1661
        %v1686 = vsub.f32 %v1616, %v1663
        %v1687 = vsub.f32 %v1619, %v1665
        %v1688 = vsub.f32 %v1624, %v1667
        %v1689 = vsub.f32 %v1627, %v1669
        %v1690 = vsub.f32 %v1632, %v1671
        %v1691 = vsub.f32 %v1635, %v1673
        %v1692 = vsub.f32 %v1640, %v1675
        %v1693 = vsub.f32 %v1643, %v1677
        %v1694 = vmul.f32 %v1678, 1.442695
        %v1695 = vpow.pop %v1694
        %v1696 = vmul.f32 %v1679, 1.442695
        %v1697 = vpow.pop %v1696
        %v1698 = vmul.f32 %v1680, 1.442695
        %v1699 = vpow.pop %v1698
        %v1700 = vmul.f32 %v1681, 1.442695
        %v1701 = vpow.pop %v1700
        %v1702 = vmul.f32 %v1682, 1.442695
        %v1703 = vpow.pop %v1702
        %v1704 = vmul.f32 %v1683, 1.442695
        %v1705 = vpow.pop %v1704
        %v1706 = vmul.f32 %v1684, 1.442695
        %v1707 = vpow.pop %v1706
        %v1708 = vmul.f32 %v1685, 1.442695
        %v1709 = vpow.pop %v1708
        %v1710 = vmul.f32 %v1686, 1.442695
        %v1711 = vpow.pop %v1710
        %v1712 = vmul.f32 %v1687, 1.442695
        %v1713 = vpow.pop %v1712
        %v1714 = vmul.f32 %v1688, 1.442695
        %v1715 = vpow.pop %v1714
        %v1716 = vmul.f32 %v1689, 1.442695
        %v1717 = vpow.pop %v1716
        %v1718 = vmul.f32 %v1690, 1.442695
        %v1719 = vpow.pop %v1718
        %v1720 = vmul.f32 %v1691, 1.442695
        %v1721 = vpow.pop %v1720
        %v1722 = vmul.f32 %v1692, 1.442695
        %v1723 = vpow.pop %v1722
        %v1724 = vmul.f32 %v1693, 1.442695
        %v1725 = vpow.pop %v1724
        %1726 = vadd.xlane.f32.xlu0 %v1695
        %v1727 = vpop.xlane.xlu0 %1726
        %1728 = vadd.xlane.f32.xlu0 %v1697
        %v1729 = vpop.xlane.xlu0 %1728
        %1730 = vadd.xlane.f32.xlu0 %v1699
        %v1731 = vpop.xlane.xlu0 %1730
        %1732 = vadd.xlane.f32.xlu0 %v1701
        %v1733 = vpop.xlane.xlu0 %1732
        %1734 = vadd.xlane.f32.xlu0 %v1703
        %v1735 = vpop.xlane.xlu0 %1734
        %1736 = vadd.xlane.f32.xlu0 %v1705
        %v1737 = vpop.xlane.xlu0 %1736
        %1738 = vadd.xlane.f32.xlu0 %v1707
        %v1739 = vpop.xlane.xlu0 %1738
        %1740 = vadd.xlane.f32.xlu0 %v1709
        %v1741 = vpop.xlane.xlu0 %1740
        %1742 = vadd.xlane.f32.xlu0 %v1711
        %v1743 = vpop.xlane.xlu0 %1742
        %1744 = vadd.xlane.f32.xlu0 %v1713
        %v1745 = vpop.xlane.xlu0 %1744
        %1746 = vadd.xlane.f32.xlu0 %v1715
        %v1747 = vpop.xlane.xlu0 %1746
        %1748 = vadd.xlane.f32.xlu0 %v1717
        %v1749 = vpop.xlane.xlu0 %1748
        %1750 = vadd.xlane.f32.xlu0 %v1719
        %v1751 = vpop.xlane.xlu0 %1750
        %1752 = vadd.xlane.f32.xlu0 %v1721
        %v1753 = vpop.xlane.xlu0 %1752
        %1754 = vadd.xlane.f32.xlu0 %v1723
        %v1755 = vpop.xlane.xlu0 %1754
        %1756 = vadd.xlane.f32.xlu0 %v1725
        %v1757 = vpop.xlane.xlu0 %1756
        %v1758 = vrcp.pop %v1727
        %v1759 = vrcp.pop %v1729
        %v1760 = vrcp.pop %v1731
        %v1761 = vrcp.pop %v1733
        %v1762 = vrcp.pop %v1735
        %v1763 = vrcp.pop %v1737
        %v1764 = vrcp.pop %v1739
        %v1765 = vrcp.pop %v1741
        %v1766 = vrcp.pop %v1743
        %v1767 = vrcp.pop %v1745
        %v1768 = vrcp.pop %v1747
        %v1769 = vrcp.pop %v1749
        %v1770 = vrcp.pop %v1751
        %v1771 = vrcp.pop %v1753
        %v1772 = vrcp.pop %v1755
        %v1773 = vrcp.pop %v1757
        %v1774 = vmul.f32 %v1695, %v1758
        %v1775 = vmul.f32 %v1697, %v1759
        %v1776 = vmul.f32 %v1699, %v1760
        %v1777 = vmul.f32 %v1701, %v1761
        %v1778 = vmul.f32 %v1703, %v1762
        %v1779 = vmul.f32 %v1705, %v1763
        %v1780 = vmul.f32 %v1707, %v1764
        %v1781 = vmul.f32 %v1709, %v1765
        %v1782 = vmul.f32 %v1711, %v1766
        %v1783 = vmul.f32 %v1713, %v1767
        %v1784 = vmul.f32 %v1715, %v1768
        %v1785 = vmul.f32 %v1717, %v1769
        %v1786 = vmul.f32 %v1719, %v1770
        %v1787 = vmul.f32 %v1721, %v1771
        %v1788 = vmul.f32 %v1723, %v1772
        %v1789 = vmul.f32 %v1725, %v1773
        %v1790 = vpack.c.bf16 %v1775, %v1774
        %v1791 = vpack.c.bf16 %v1777, %v1776
        %v1792 = vpack.c.bf16 %v1779, %v1778
        %v1793 = vpack.c.bf16 %v1781, %v1780
        %v1794 = vpack.c.bf16 %v1783, %v1782
        %v1795 = vpack.c.bf16 %v1785, %v1784
        %v1796 = vpack.c.bf16 %v1787, %v1786
        %v1797 = vpack.c.bf16 %v1789, %v1788
        %1806 = vrot.lane.b32.xlu0 %v1340, 64
        %v1807 = vpop.permute.xlu0 %1806
        %1808 = vrot.lane.b32.xlu0 %v1341, 64
        %v1809 = vpop.permute.xlu0 %1808
        %1810 = vrot.lane.b32.xlu0 %v1342, 64
        %v1811 = vpop.permute.xlu0 %1810
        %1812 = vrot.lane.b32.xlu0 %v1343, 64
        %v1813 = vpop.permute.xlu0 %1812
        %1814 = vrot.lane.b32.xlu0 %v1344, 64
        %v1815 = vpop.permute.xlu0 %1814
        %1816 = vrot.lane.b32.xlu0 %v1345, 64
        %v1817 = vpop.permute.xlu0 %1816
        %1818 = vrot.lane.b32.xlu0 %v1346, 64
        %v1819 = vpop.permute.xlu0 %1818
        %1820 = vrot.lane.b32.xlu0 %v1347, 64
        %v1821 = vpop.permute.xlu0 %1820
        %1830 = vmatprep.subr.bf16.mxu0 0
        %1831 = vmatpush1.bf16.msra.mxu0 %v1807
        %1832 = vmatprep.subr.bf16.mxu0 0
        %1833 = vmatpush1.bf16.msra.mxu0 %v1809
        %1834 = vmatprep.subr.bf16.mxu0 0
        %1835 = vmatpush1.bf16.msra.mxu0 %v1811
        %1836 = vmatprep.subr.bf16.mxu0 0
        %1837 = vmatpush1.bf16.msra.mxu0 %v1813
        %1838 = vmatprep.subr.bf16.mxu0 0
        %1839 = vmatpush1.bf16.msra.mxu0 %v1815
        %1840 = vmatprep.subr.bf16.mxu0 0
        %1841 = vmatpush1.bf16.msra.mxu0 %v1817
        %1842 = vmatprep.subr.bf16.mxu0 0
        %1843 = vmatpush1.bf16.msra.mxu0 %v1819
        %1844 = vmatprep.subr.bf16.mxu0 0
        %1845 = vmatpush1.bf16.msra.mxu0 %v1821
        %1846 = vmatprep.subr.bf16.mxu0 0
        %1847 = vmatpush1.bf16.msra.mxu0 0
        %1848 = vmatprep.subr.bf16.mxu0 0
        %1849 = vmatpush1.bf16.msra.mxu0 0
        %1850 = vmatprep.subr.bf16.mxu0 0
        %1851 = vmatpush1.bf16.msra.mxu0 0
        %1852 = vmatprep.subr.bf16.mxu0 0
        %1853 = vmatpush1.bf16.msra.mxu0 0
        %1854 = vmatprep.subr.bf16.mxu0 0
        %1855 = vmatpush1.bf16.msra.mxu0 0
        %1856 = vmatprep.subr.bf16.mxu0 0
        %1857 = vmatpush1.bf16.msra.mxu0 0
        %1858 = vmatprep.subr.bf16.mxu0 0
        %1859 = vmatpush1.bf16.msra.mxu0 0
        %1860 = vmatprep.subr.bf16.mxu0 0
        %1861 = vmatpush1.bf16.msra.mxu0 0
        %1862 = vmatprep.mubr.bf16.mxu0 0
        %1863 = vmatmul.mubr.bf16.gmra.mrb[0].mxu0 %v1790
        %v1864 = vpop.f32.mrb[0].mxu0
        %v1865 = vadd.f32 0.0, %v1864
        %v1866 = vpop.f32.mrb[0].mxu0
        %v1867 = vpop.f32.mrb[0].mxu0
        %v1868 = vadd.f32 0.0, %v1867
        %v1869 = vpop.f32.mrb[0].mxu0
        %1870 = vmatprep.mubr.bf16.mxu0 0
        %1871 = vmatmul.mubr.bf16.gmra.mrb[0].mxu0 %v1791
        %v1872 = vpop.f32.mrb[0].mxu0
        %v1873 = vadd.f32 0.0, %v1872
        %v1874 = vpop.f32.mrb[0].mxu0
        %v1875 = vpop.f32.mrb[0].mxu0
        %v1876 = vadd.f32 0.0, %v1875
        %v1877 = vpop.f32.mrb[0].mxu0
        %1878 = vmatprep.mubr.bf16.mxu0 0
        %1879 = vmatmul.mubr.bf16.gmra.mrb[0].mxu0 %v1792
        %v1880 = vpop.f32.mrb[0].mxu0
        %v1881 = vadd.f32 0.0, %v1880
        %v1882 = vpop.f32.mrb[0].mxu0
        %v1883 = vpop.f32.mrb[0].mxu0
        %v1884 = vadd.f32 0.0, %v1883
        %v1885 = vpop.f32.mrb[0].mxu0
        %1886 = vmatprep.mubr.bf16.mxu0 0
        %1887 = vmatmul.mubr.bf16.gmra.mrb[0].mxu0 %v1793
        %v1888 = vpop.f32.mrb[0].mxu0
        %v1889 = vadd.f32 0.0, %v1888
        %v1890 = vpop.f32.mrb[0].mxu0
        %v1891 = vpop.f32.mrb[0].mxu0
        %v1892 = vadd.f32 0.0, %v1891
        %v1893 = vpop.f32.mrb[0].mxu0
        %1894 = vmatprep.mubr.bf16.mxu0 0
        %1895 = vmatmul.mubr.bf16.gmra.mrb[0].mxu0 %v1794
        %v1896 = vpop.f32.mrb[0].mxu0
        %v1897 = vadd.f32 0.0, %v1896
        %v1898 = vpop.f32.mrb[0].mxu0
        %v1899 = vpop.f32.mrb[0].mxu0
        %v1900 = vadd.f32 0.0, %v1899
        %v1901 = vpop.f32.mrb[0].mxu0
        %1902 = vmatprep.mubr.bf16.mxu0 0
        %1903 = vmatmul.mubr.bf16.gmra.mrb[0].mxu0 %v1795
        %v1904 = vpop.f32.mrb[0].mxu0
        %v1905 = vadd.f32 0.0, %v1904
        %v1906 = vpop.f32.mrb[0].mxu0
        %v1907 = vpop.f32.mrb[0].mxu0
        %v1908 = vadd.f32 0.0, %v1907
        %v1909 = vpop.f32.mrb[0].mxu0
        %1910 = vmatprep.mubr.bf16.mxu0 0
        %1911 = vmatmul.mubr.bf16.gmra.mrb[0].mxu0 %v1796
        %v1912 = vpop.f32.mrb[0].mxu0
        %v1913 = vadd.f32 0.0, %v1912
        %v1914 = vpop.f32.mrb[0].mxu0
        %v1915 = vpop.f32.mrb[0].mxu0
        %v1916 = vadd.f32 0.0, %v1915
        %v1917 = vpop.f32.mrb[0].mxu0
        %1918 = vmatprep.mubr.bf16.mxu0 0
        %1919 = vmatmul.mubr.bf16.gmra.mrb[0].mxu0 %v1797
        %v1920 = vpop.f32.mrb[0].mxu0
        %v1921 = vadd.f32 0.0, %v1920
        %v1922 = vpop.f32.mrb[0].mxu0
        %v1923 = vpop.f32.mrb[0].mxu0
        %v1924 = vadd.f32 0.0, %v1923
        %v1925 = vpop.f32.mrb[0].mxu0
        %1926 = vdwg.mxu0
        %v1927 = vpack.c.bf16 %v1868, %v1865
        %v1928 = vpack.c.bf16 %v1876, %v1873
        %v1929 = vpack.c.bf16 %v1884, %v1881
        %v1930 = vpack.c.bf16 %v1892, %v1889
        %v1931 = vpack.c.bf16 %v1900, %v1897
        %v1932 = vpack.c.bf16 %v1908, %v1905
        %v1933 = vpack.c.bf16 %v1916, %v1913
        %v1934 = vpack.c.bf16 %v1924, %v1921
        %v1943 = vunpack.c.l.b16 %v617
        %v1944 = vunpack.c.l.b16 %v618
        %v1945 = vunpack.c.l.b16 %v619
        %v1946 = vunpack.c.l.b16 %v620
        %v1947 = vunpack.c.l.b16 %v621
        %v1948 = vunpack.c.l.b16 %v622
        %v1949 = vunpack.c.l.b16 %v623
        %v1950 = vunpack.c.l.b16 %v624
        %v1951 = vpack.c.b16 %v1944, %v1943
        %v1952 = vpack.c.b16 %v1946, %v1945
        %v1953 = vpack.c.b16 %v1948, %v1947
        %v1954 = vpack.c.b16 %v1950, %v1949
        %v1960 = vsel %vm1042, %v1927, 0
        %v1963 = vsel %vm1042, %v1928, 0
        %v1966 = vsel %vm1042, %v1929, 0
        %v1969 = vsel %vm1042, %v1930, 0
        %v1972 = vsel %vm1042, %v1931, 0
        %v1975 = vsel %vm1042, %v1932, 0
        %v1978 = vsel %vm1042, %v1933, 0
        %v1981 = vsel %vm1042, %v1934, 0
        %1983 = vmatprep.subr.bf16.mxu0 0
        %1984 = vmatpush1.bf16.msra.mxu0 %v1951
        %1985 = vmatprep.subr.bf16.mxu0 0
        %1986 = vmatpush1.bf16.msra.mxu0 %v1952
        %1987 = vmatprep.subr.bf16.mxu0 0
        %1988 = vmatpush1.bf16.msra.mxu0 %v1953
        %1989 = vmatprep.subr.bf16.mxu0 0
        %1990 = vmatpush1.bf16.msra.mxu0 %v1954
        %1991 = vmatprep.subr.bf16.mxu0 0
        %1992 = vmatpush1.bf16.msra.mxu0 0
        %1993 = vmatprep.subr.bf16.mxu0 0
        %1994 = vmatpush1.bf16.msra.mxu0 0
        %1995 = vmatprep.subr.bf16.mxu0 0
        %1996 = vmatpush1.bf16.msra.mxu0 0
        %1997 = vmatprep.subr.bf16.mxu0 0
        %1998 = vmatpush1.bf16.msra.mxu0 0
        %1999 = vmatprep.subr.bf16.mxu0 0
        %2000 = vmatpush1.bf16.msra.mxu0 0
        %2001 = vmatprep.subr.bf16.mxu0 0
        %2002 = vmatpush1.bf16.msra.mxu0 0
        %2003 = vmatprep.subr.bf16.mxu0 0
        %2004 = vmatpush1.bf16.msra.mxu0 0
        %2005 = vmatprep.subr.bf16.mxu0 0
        %2006 = vmatpush1.bf16.msra.mxu0 0
        %2007 = vmatprep.subr.bf16.mxu0 0
        %2008 = vmatpush1.bf16.msra.mxu0 0
        %2009 = vmatprep.subr.bf16.mxu0 0
        %2010 = vmatpush1.bf16.msra.mxu0 0
        %2011 = vmatprep.subr.bf16.mxu0 0
        %2012 = vmatpush1.bf16.msra.mxu0 0
        %2013 = vmatprep.subr.bf16.mxu0 0
        %2014 = vmatpush1.bf16.msra.mxu0 0
        %2015 = vmatprep.mubr.bf16.mxu0 0
        %2016 = vmatmul.mubr.bf16.gmra.mrb[0].mxu0 %v1960
        %v2017 = vpop.f32.mrb[0].mxu0
        %v2018 = vadd.f32 0.0, %v2017
        %v2019 = vpop.f32.mrb[0].mxu0
        %v2020 = vpop.f32.mrb[0].mxu0
        %v2021 = vadd.f32 0.0, %v2020
        %v2022 = vpop.f32.mrb[0].mxu0
        %2023 = vmatprep.mubr.bf16.mxu0 0
        %2024 = vmatmul.mubr.bf16.gmra.mrb[0].mxu0 %v1963
        %v2025 = vpop.f32.mrb[0].mxu0
        %v2026 = vadd.f32 0.0, %v2025
        %v2027 = vpop.f32.mrb[0].mxu0
        %v2028 = vpop.f32.mrb[0].mxu0
        %v2029 = vadd.f32 0.0, %v2028
        %v2030 = vpop.f32.mrb[0].mxu0
        %2031 = vmatprep.mubr.bf16.mxu0 0
        %2032 = vmatmul.mubr.bf16.gmra.mrb[0].mxu0 %v1966
        %v2033 = vpop.f32.mrb[0].mxu0
        %v2034 = vadd.f32 0.0, %v2033
        %v2035 = vpop.f32.mrb[0].mxu0
        %v2036 = vpop.f32.mrb[0].mxu0
        %v2037 = vadd.f32 0.0, %v2036
        %v2038 = vpop.f32.mrb[0].mxu0
        %2039 = vmatprep.mubr.bf16.mxu0 0
        %2040 = vmatmul.mubr.bf16.gmra.mrb[0].mxu0 %v1969
        %v2041 = vpop.f32.mrb[0].mxu0
        %v2042 = vadd.f32 0.0, %v2041
        %v2043 = vpop.f32.mrb[0].mxu0
        %v2044 = vpop.f32.mrb[0].mxu0
        %v2045 = vadd.f32 0.0, %v2044
        %v2046 = vpop.f32.mrb[0].mxu0
        %2047 = vmatprep.mubr.bf16.mxu0 0
        %2048 = vmatmul.mubr.bf16.gmra.mrb[0].mxu0 %v1972
        %v2049 = vpop.f32.mrb[0].mxu0
        %v2050 = vadd.f32 0.0, %v2049
        %v2051 = vpop.f32.mrb[0].mxu0
        %v2052 = vpop.f32.mrb[0].mxu0
        %v2053 = vadd.f32 0.0, %v2052
        %v2054 = vpop.f32.mrb[0].mxu0
        %2055 = vmatprep.mubr.bf16.mxu0 0
        %2056 = vmatmul.mubr.bf16.gmra.mrb[0].mxu0 %v1975
        %v2057 = vpop.f32.mrb[0].mxu0
        %v2058 = vadd.f32 0.0, %v2057
        %v2059 = vpop.f32.mrb[0].mxu0
        %v2060 = vpop.f32.mrb[0].mxu0
        %v2061 = vadd.f32 0.0, %v2060
        %v2062 = vpop.f32.mrb[0].mxu0
        %2063 = vmatprep.mubr.bf16.mxu0 0
        %2064 = vmatmul.mubr.bf16.gmra.mrb[0].mxu0 %v1978
        %v2065 = vpop.f32.mrb[0].mxu0
        %v2066 = vadd.f32 0.0, %v2065
        %v2067 = vpop.f32.mrb[0].mxu0
        %v2068 = vpop.f32.mrb[0].mxu0
        %v2069 = vadd.f32 0.0, %v2068
        %v2070 = vpop.f32.mrb[0].mxu0
        %2071 = vmatprep.mubr.bf16.mxu0 0
        %2072 = vmatmul.mubr.bf16.gmra.mrb[0].mxu0 %v1981
        %v2073 = vpop.f32.mrb[0].mxu0
        %v2074 = vadd.f32 0.0, %v2073
        %v2075 = vpop.f32.mrb[0].mxu0
        %v2076 = vpop.f32.mrb[0].mxu0
        %v2077 = vadd.f32 0.0, %v2076
        %v2078 = vpop.f32.mrb[0].mxu0
        %2079 = vdwg.mxu0
        %v2088 = vunpack.c.l.b16 %v609
        %v2089 = vunpack.c.l.b16 %v610
        %v2090 = vunpack.c.l.b16 %v611
        %v2091 = vunpack.c.l.b16 %v612
        %v2092 = vunpack.c.l.b16 %v613
        %v2093 = vunpack.c.l.b16 %v614
        %v2094 = vunpack.c.l.b16 %v615
        %v2095 = vunpack.c.l.b16 %v616
        %v2096 = vpack.c.b16 %v2089, %v2088
        %v2097 = vpack.c.b16 %v2091, %v2090
        %v2098 = vpack.c.b16 %v2093, %v2092
        %v2099 = vpack.c.b16 %v2095, %v2094
        %v2105 = vsel %vm1042, %v1445, 0
        %v2108 = vsel %vm1042, %v1446, 0
        %v2111 = vsel %vm1042, %v1447, 0
        %v2114 = vsel %vm1042, %v1448, 0
        %v2117 = vsel %vm1042, %v1449, 0
        %v2120 = vsel %vm1042, %v1450, 0
        %v2123 = vsel %vm1042, %v1451, 0
        %v2126 = vsel %vm1042, %v1452, 0
        %2128 = vmatprep.subr.bf16.mxu0 0
        %2129 = vmatpush1.bf16.msra.mxu0 %v2096
        %2130 = vmatprep.subr.bf16.mxu0 0
        %2131 = vmatpush1.bf16.msra.mxu0 %v2097
        %2132 = vmatprep.subr.bf16.mxu0 0
        %2133 = vmatpush1.bf16.msra.mxu0 %v2098
        %2134 = vmatprep.subr.bf16.mxu0 0
        %2135 = vmatpush1.bf16.msra.mxu0 %v2099
        %2136 = vmatprep.subr.bf16.mxu0 0
        %2137 = vmatpush1.bf16.msra.mxu0 0
        %2138 = vmatprep.subr.bf16.mxu0 0
        %2139 = vmatpush1.bf16.msra.mxu0 0
        %2140 = vmatprep.subr.bf16.mxu0 0
        %2141 = vmatpush1.bf16.msra.mxu0 0
        %2142 = vmatprep.subr.bf16.mxu0 0
        %2143 = vmatpush1.bf16.msra.mxu0 0
        %2144 = vmatprep.subr.bf16.mxu0 0
        %2145 = vmatpush1.bf16.msra.mxu0 0
        %2146 = vmatprep.subr.bf16.mxu0 0
        %2147 = vmatpush1.bf16.msra.mxu0 0
        %2148 = vmatprep.subr.bf16.mxu0 0
        %2149 = vmatpush1.bf16.msra.mxu0 0
        %2150 = vmatprep.subr.bf16.mxu0 0
        %2151 = vmatpush1.bf16.msra.mxu0 0
        %2152 = vmatprep.subr.bf16.mxu0 0
        %2153 = vmatpush1.bf16.msra.mxu0 0
        %2154 = vmatprep.subr.bf16.mxu0 0
        %2155 = vmatpush1.bf16.msra.mxu0 0
        %2156 = vmatprep.subr.bf16.mxu0 0
        %2157 = vmatpush1.bf16.msra.mxu0 0
        %2158 = vmatprep.subr.bf16.mxu0 0
        %2159 = vmatpush1.bf16.msra.mxu0 0
        %2160 = vmatprep.mubr.bf16.mxu0 0
        %2161 = vmatmul.mubr.bf16.gmra.mrb[0].mxu0 %v2105
        %v2162 = vpop.f32.mrb[0].mxu0
        %v2163 = vadd.f32 %v2018, %v2162
        %v2164 = vpop.f32.mrb[0].mxu0
        %v2165 = vpop.f32.mrb[0].mxu0
        %v2166 = vadd.f32 %v2021, %v2165
        %v2167 = vpop.f32.mrb[0].mxu0
        %2168 = vmatprep.mubr.bf16.mxu0 0
        %2169 = vmatmul.mubr.bf16.gmra.mrb[0].mxu0 %v2108
        %v2170 = vpop.f32.mrb[0].mxu0
        %v2171 = vadd.f32 %v2026, %v2170
        %v2172 = vpop.f32.mrb[0].mxu0
        %v2173 = vpop.f32.mrb[0].mxu0
        %v2174 = vadd.f32 %v2029, %v2173
        %v2175 = vpop.f32.mrb[0].mxu0
        %2176 = vmatprep.mubr.bf16.mxu0 0
        %2177 = vmatmul.mubr.bf16.gmra.mrb[0].mxu0 %v2111
        %v2178 = vpop.f32.mrb[0].mxu0
        %v2179 = vadd.f32 %v2034, %v2178
        %v2180 = vpop.f32.mrb[0].mxu0
        %v2181 = vpop.f32.mrb[0].mxu0
        %v2182 = vadd.f32 %v2037, %v2181
        %v2183 = vpop.f32.mrb[0].mxu0
        %2184 = vmatprep.mubr.bf16.mxu0 0
        %2185 = vmatmul.mubr.bf16.gmra.mrb[0].mxu0 %v2114
        %v2186 = vpop.f32.mrb[0].mxu0
        %v2187 = vadd.f32 %v2042, %v2186
        %v2188 = vpop.f32.mrb[0].mxu0
        %v2189 = vpop.f32.mrb[0].mxu0
        %v2190 = vadd.f32 %v2045, %v2189
        %v2191 = vpop.f32.mrb[0].mxu0
        %2192 = vmatprep.mubr.bf16.mxu0 0
        %2193 = vmatmul.mubr.bf16.gmra.mrb[0].mxu0 %v2117
        %v2194 = vpop.f32.mrb[0].mxu0
        %v2195 = vadd.f32 %v2050, %v2194
        %v2196 = vpop.f32.mrb[0].mxu0
        %v2197 = vpop.f32.mrb[0].mxu0
        %v2198 = vadd.f32 %v2053, %v2197
        %v2199 = vpop.f32.mrb[0].mxu0
        %2200 = vmatprep.mubr.bf16.mxu0 0
        %2201 = vmatmul.mubr.bf16.gmra.mrb[0].mxu0 %v2120
        %v2202 = vpop.f32.mrb[0].mxu0
        %v2203 = vadd.f32 %v2058, %v2202
        %v2204 = vpop.f32.mrb[0].mxu0
        %v2205 = vpop.f32.mrb[0].mxu0
        %v2206 = vadd.f32 %v2061, %v2205
        %v2207 = vpop.f32.mrb[0].mxu0
        %2208 = vmatprep.mubr.bf16.mxu0 0
        %2209 = vmatmul.mubr.bf16.gmra.mrb[0].mxu0 %v2123
        %v2210 = vpop.f32.mrb[0].mxu0
        %v2211 = vadd.f32 %v2066, %v2210
        %v2212 = vpop.f32.mrb[0].mxu0
        %v2213 = vpop.f32.mrb[0].mxu0
        %v2214 = vadd.f32 %v2069, %v2213
        %v2215 = vpop.f32.mrb[0].mxu0
        %2216 = vmatprep.mubr.bf16.mxu0 0
        %2217 = vmatmul.mubr.bf16.gmra.mrb[0].mxu0 %v2126
        %v2218 = vpop.f32.mrb[0].mxu0
        %v2219 = vadd.f32 %v2074, %v2218
        %v2220 = vpop.f32.mrb[0].mxu0
        %v2221 = vpop.f32.mrb[0].mxu0
        %v2222 = vadd.f32 %v2077, %v2221
        %v2223 = vpop.f32.mrb[0].mxu0
        %2224 = vdwg.mxu0
        %v2225 = vlaneseq
        %v2226 = vshrl.u32 %v2225, 7
        %v2227 = vsub.s32 0, %v2226
        %v2228 = vrot.slane %v608, %v2227
        %v2229 = vadd.f32 %v2163, %v2228
        %v2230 = vadd.f32 %v2166, %v2228
        %v2231 = vadd.f32 %v2171, %v2228
        %v2232 = vadd.f32 %v2174, %v2228
        %v2233 = vadd.f32 %v2179, %v2228
        %v2234 = vadd.f32 %v2182, %v2228
        %v2235 = vadd.f32 %v2187, %v2228
        %v2236 = vadd.f32 %v2190, %v2228
        %v2237 = vadd.f32 %v2195, %v2228
        %v2238 = vadd.f32 %v2198, %v2228
        %v2239 = vadd.f32 %v2203, %v2228
        %v2240 = vadd.f32 %v2206, %v2228
        %v2241 = vadd.f32 %v2211, %v2228
        %v2242 = vadd.f32 %v2214, %v2228
        %v2243 = vadd.f32 %v2219, %v2228
        %v2244 = vadd.f32 %v2222, %v2228
        %v2245 = vadd.f32 %v2229, %v592
        %v2246 = vadd.f32 %v2230, %v593
        %v2247 = vadd.f32 %v2231, %v594
        %v2248 = vadd.f32 %v2232, %v595
        %v2249 = vadd.f32 %v2233, %v596
        %v2250 = vadd.f32 %v2234, %v597
        %v2251 = vadd.f32 %v2235, %v598
        %v2252 = vadd.f32 %v2236, %v599
        %v2253 = vadd.f32 %v2237, %v600
        %v2254 = vadd.f32 %v2238, %v601
        %v2255 = vadd.f32 %v2239, %v602
        %v2256 = vadd.f32 %v2240, %v603
        %v2257 = vadd.f32 %v2241, %v604
        %v2258 = vadd.f32 %v2242, %v605
        %v2259 = vadd.f32 %v2243, %v606
        %v2260 = vadd.f32 %v2244, %v607
        %2261 = vadd.xlane.f32.xlu0 %v2245
        %v2262 = vpop.xlane.xlu0 %2261
        %2263 = vadd.xlane.f32.xlu0 %v2246
        %v2264 = vpop.xlane.xlu0 %2263
        %2265 = vadd.xlane.f32.xlu0 %v2247
        %v2266 = vpop.xlane.xlu0 %2265
        %2267 = vadd.xlane.f32.xlu0 %v2248
        %v2268 = vpop.xlane.xlu0 %2267
        %2269 = vadd.xlane.f32.xlu0 %v2249
        %v2270 = vpop.xlane.xlu0 %2269
        %2271 = vadd.xlane.f32.xlu0 %v2250
        %v2272 = vpop.xlane.xlu0 %2271
        %2273 = vadd.xlane.f32.xlu0 %v2251
        %v2274 = vpop.xlane.xlu0 %2273
        %2275 = vadd.xlane.f32.xlu0 %v2252
        %v2276 = vpop.xlane.xlu0 %2275
        %2277 = vadd.xlane.f32.xlu0 %v2253
        %v2278 = vpop.xlane.xlu0 %2277
        %2279 = vadd.xlane.f32.xlu0 %v2254
        %v2280 = vpop.xlane.xlu0 %2279
        %2281 = vadd.xlane.f32.xlu0 %v2255
        %v2282 = vpop.xlane.xlu0 %2281
        %2283 = vadd.xlane.f32.xlu0 %v2256
        %v2284 = vpop.xlane.xlu0 %2283
        %2285 = vadd.xlane.f32.xlu0 %v2257
        %v2286 = vpop.xlane.xlu0 %2285
        %2287 = vadd.xlane.f32.xlu0 %v2258
        %v2288 = vpop.xlane.xlu0 %2287
        %2289 = vadd.xlane.f32.xlu0 %v2259
        %v2290 = vpop.xlane.xlu0 %2289
        %2291 = vadd.xlane.f32.xlu0 %v2260
        %v2292 = vpop.xlane.xlu0 %2291
        %v2293 = vmul.f32 %v2262, %v423
        %v2294 = vmul.f32 %v2264, %v423
        %v2295 = vmul.f32 %v2266, %v423
        %v2296 = vmul.f32 %v2268, %v423
        %v2297 = vmul.f32 %v2270, %v423
        %v2298 = vmul.f32 %v2272, %v423
        %v2299 = vmul.f32 %v2274, %v423
        %v2300 = vmul.f32 %v2276, %v423
        %v2301 = vmul.f32 %v2278, %v423
        %v2302 = vmul.f32 %v2280, %v423
        %v2303 = vmul.f32 %v2282, %v423
        %v2304 = vmul.f32 %v2284, %v423
        %v2305 = vmul.f32 %v2286, %v423
        %v2306 = vmul.f32 %v2288, %v423
        %v2307 = vmul.f32 %v2290, %v423
        %v2308 = vmul.f32 %v2292, %v423
        %v2309 = vsub.f32 %v2245, %v2293
        %v2310 = vsub.f32 %v2246, %v2294
        %v2311 = vsub.f32 %v2247, %v2295
        %v2312 = vsub.f32 %v2248, %v2296
        %v2313 = vsub.f32 %v2249, %v2297
        %v2314 = vsub.f32 %v2250, %v2298
        %v2315 = vsub.f32 %v2251, %v2299
        %v2316 = vsub.f32 %v2252, %v2300
        %v2317 = vsub.f32 %v2253, %v2301
        %v2318 = vsub.f32 %v2254, %v2302
        %v2319 = vsub.f32 %v2255, %v2303
        %v2320 = vsub.f32 %v2256, %v2304
        %v2321 = vsub.f32 %v2257, %v2305
        %v2322 = vsub.f32 %v2258, %v2306
        %v2323 = vsub.f32 %v2259, %v2307
        %v2324 = vsub.f32 %v2260, %v2308
        %v2325 = vmul.f32 %v2309, %v2309
        %v2326 = vmul.f32 %v2310, %v2310
        %v2327 = vmul.f32 %v2311, %v2311
        %v2328 = vmul.f32 %v2312, %v2312
        %v2329 = vmul.f32 %v2313, %v2313
        %v2330 = vmul.f32 %v2314, %v2314
        %v2331 = vmul.f32 %v2315, %v2315
        %v2332 = vmul.f32 %v2316, %v2316
        %v2333 = vmul.f32 %v2317, %v2317
        %v2334 = vmul.f32 %v2318, %v2318
        %v2335 = vmul.f32 %v2319, %v2319
        %v2336 = vmul.f32 %v2320, %v2320
        %v2337 = vmul.f32 %v2321, %v2321
        %v2338 = vmul.f32 %v2322, %v2322
        %v2339 = vmul.f32 %v2323, %v2323
        %v2340 = vmul.f32 %v2324, %v2324
        %2341 = vadd.xlane.f32.xlu0 %v2325
        %v2342 = vpop.xlane.xlu0 %2341
        %2343 = vadd.xlane.f32.xlu0 %v2326
        %v2344 = vpop.xlane.xlu0 %2343
        %2345 = vadd.xlane.f32.xlu0 %v2327
        %v2346 = vpop.xlane.xlu0 %2345
        %2347 = vadd.xlane.f32.xlu0 %v2328
        %v2348 = vpop.xlane.xlu0 %2347
        %2349 = vadd.xlane.f32.xlu0 %v2329
        %v2350 = vpop.xlane.xlu0 %2349
        %2351 = vadd.xlane.f32.xlu0 %v2330
        %v2352 = vpop.xlane.xlu0 %2351
        %2353 = vadd.xlane.f32.xlu0 %v2331
        %v2354 = vpop.xlane.xlu0 %2353
        %2355 = vadd.xlane.f32.xlu0 %v2332
        %v2356 = vpop.xlane.xlu0 %2355
        %2357 = vadd.xlane.f32.xlu0 %v2333
        %v2358 = vpop.xlane.xlu0 %2357
        %2359 = vadd.xlane.f32.xlu0 %v2334
        %v2360 = vpop.xlane.xlu0 %2359
        %2361 = vadd.xlane.f32.xlu0 %v2335
        %v2362 = vpop.xlane.xlu0 %2361
        %2363 = vadd.xlane.f32.xlu0 %v2336
        %v2364 = vpop.xlane.xlu0 %2363
        %2365 = vadd.xlane.f32.xlu0 %v2337
        %v2366 = vpop.xlane.xlu0 %2365
        %2367 = vadd.xlane.f32.xlu0 %v2338
        %v2368 = vpop.xlane.xlu0 %2367
        %2369 = vadd.xlane.f32.xlu0 %v2339
        %v2370 = vpop.xlane.xlu0 %2369
        %2371 = vadd.xlane.f32.xlu0 %v2340
        %v2372 = vpop.xlane.xlu0 %2371
        %v2373 = vmul.f32 %v2342, %v423
        %v2374 = vmul.f32 %v2344, %v423
        %v2375 = vmul.f32 %v2346, %v423
        %v2376 = vmul.f32 %v2348, %v423
        %v2377 = vmul.f32 %v2350, %v423
        %v2378 = vmul.f32 %v2352, %v423
        %v2379 = vmul.f32 %v2354, %v423
        %v2380 = vmul.f32 %v2356, %v423
        %v2381 = vmul.f32 %v2358, %v423
        %v2382 = vmul.f32 %v2360, %v423
        %v2383 = vmul.f32 %v2362, %v423
        %v2384 = vmul.f32 %v2364, %v423
        %v2385 = vmul.f32 %v2366, %v423
        %v2386 = vmul.f32 %v2368, %v423
        %v2387 = vmul.f32 %v2370, %v423
        %v2388 = vmul.f32 %v2372, %v423
        %v2389 = vadd.f32 %v2373, 1e-12
        %v2390 = vadd.f32 %v2374, 1e-12
        %v2391 = vadd.f32 %v2375, 1e-12
        %v2392 = vadd.f32 %v2376, 1e-12
        %v2393 = vadd.f32 %v2377, 1e-12
        %v2394 = vadd.f32 %v2378, 1e-12
        %v2395 = vadd.f32 %v2379, 1e-12
        %v2396 = vadd.f32 %v2380, 1e-12
        %v2397 = vadd.f32 %v2381, 1e-12
        %v2398 = vadd.f32 %v2382, 1e-12
        %v2399 = vadd.f32 %v2383, 1e-12
        %v2400 = vadd.f32 %v2384, 1e-12
        %v2401 = vadd.f32 %v2385, 1e-12
        %v2402 = vadd.f32 %v2386, 1e-12
        %v2403 = vadd.f32 %v2387, 1e-12
        %v2404 = vadd.f32 %v2388, 1e-12
        %v2405 = vrsqrt.pop %v2389
        %v2406 = vrsqrt.pop %v2390
        %v2407 = vrsqrt.pop %v2391
        %v2408 = vrsqrt.pop %v2392
        %v2409 = vrsqrt.pop %v2393
        %v2410 = vrsqrt.pop %v2394
        %v2411 = vrsqrt.pop %v2395
        %v2412 = vrsqrt.pop %v2396
        %v2413 = vrsqrt.pop %v2397
        %v2414 = vrsqrt.pop %v2398
        %v2415 = vrsqrt.pop %v2399
        %v2416 = vrsqrt.pop %v2400
        %v2417 = vrsqrt.pop %v2401
        %v2418 = vrsqrt.pop %v2402
        %v2419 = vrsqrt.pop %v2403
        %v2420 = vrsqrt.pop %v2404
        %v2421 = vmul.f32 %v2309, %v2405
        %v2422 = vmul.f32 %v2310, %v2406
        %v2423 = vmul.f32 %v2311, %v2407
        %v2424 = vmul.f32 %v2312, %v2408
        %v2425 = vmul.f32 %v2313, %v2409
        %v2426 = vmul.f32 %v2314, %v2410
        %v2427 = vmul.f32 %v2315, %v2411
        %v2428 = vmul.f32 %v2316, %v2412
        %v2429 = vmul.f32 %v2317, %v2413
        %v2430 = vmul.f32 %v2318, %v2414
        %v2431 = vmul.f32 %v2319, %v2415
        %v2432 = vmul.f32 %v2320, %v2416
        %v2433 = vmul.f32 %v2321, %v2417
        %v2434 = vmul.f32 %v2322, %v2418
        %v2435 = vmul.f32 %v2323, %v2419
        %v2436 = vmul.f32 %v2324, %v2420
        %v2437 = vlaneseq
        %v2438 = vshrl.u32 %v2437, 7
        %v2439 = vsub.s32 1, %v2438
        %v2440 = vrot.slane %v608, %v2439
        %v2441 = vmul.f32 %v2421, %v2440
        %v2442 = vmul.f32 %v2422, %v2440
        %v2443 = vmul.f32 %v2423, %v2440
        %v2444 = vmul.f32 %v2424, %v2440
        %v2445 = vmul.f32 %v2425, %v2440
        %v2446 = vmul.f32 %v2426, %v2440
        %v2447 = vmul.f32 %v2427, %v2440
        %v2448 = vmul.f32 %v2428, %v2440
        %v2449 = vmul.f32 %v2429, %v2440
        %v2450 = vmul.f32 %v2430, %v2440
        %v2451 = vmul.f32 %v2431, %v2440
        %v2452 = vmul.f32 %v2432, %v2440
        %v2453 = vmul.f32 %v2433, %v2440
        %v2454 = vmul.f32 %v2434, %v2440
        %v2455 = vmul.f32 %v2435, %v2440
        %v2456 = vmul.f32 %v2436, %v2440
        %v2457 = vlaneseq
        %v2458 = vshrl.u32 %v2457, 7
        %v2459 = vsub.s32 2, %v2458
        %v2460 = vrot.slane %v608, %v2459
        %v2461 = vadd.f32 %v2441, %v2460
        %v2462 = vadd.f32 %v2442, %v2460
        %v2463 = vadd.f32 %v2443, %v2460
        %v2464 = vadd.f32 %v2444, %v2460
        %v2465 = vadd.f32 %v2445, %v2460
        %v2466 = vadd.f32 %v2446, %v2460
        %v2467 = vadd.f32 %v2447, %v2460
        %v2468 = vadd.f32 %v2448, %v2460
        %v2469 = vadd.f32 %v2449, %v2460
        %v2470 = vadd.f32 %v2450, %v2460
        %v2471 = vadd.f32 %v2451, %v2460
        %v2472 = vadd.f32 %v2452, %v2460
        %v2473 = vadd.f32 %v2453, %v2460
        %v2474 = vadd.f32 %v2454, %v2460
        %v2475 = vadd.f32 %v2455, %v2460
        %v2476 = vadd.f32 %v2456, %v2460
        %v2477 = vpack.c.bf16 %v2462, %v2461
        %v2478 = vpack.c.bf16 %v2464, %v2463
        %v2479 = vpack.c.bf16 %v2466, %v2465
        %v2480 = vpack.c.bf16 %v2468, %v2467
        %v2481 = vpack.c.bf16 %v2470, %v2469
        %v2482 = vpack.c.bf16 %v2472, %v2471
        %v2483 = vpack.c.bf16 %v2474, %v2473
        %v2484 = vpack.c.bf16 %v2476, %v2475
        %v2485 = vld [vmem:[%s5] sm:$0xff]
        %v2486 = vld [vmem:[%s5 + $0x8] sm:$0xff]
        %v2487 = vld [vmem:[%s5 + $0x10] sm:$0xff]
        %v2488 = vld [vmem:[%s5 + $0x18] sm:$0xff]
        %v2489 = vld [vmem:[%s5 + $0x20] sm:$0xff]
        %v2490 = vld [vmem:[%s5 + $0x28] sm:$0xff]
        %v2491 = vld [vmem:[%s5 + $0x30] sm:$0xff]
        %v2492 = vld [vmem:[%s5 + $0x38] sm:$0xff]
        %v2493 = vld [vmem:[%s5 + $0x40] sm:$0xff]
        %v2494 = vld [vmem:[%s5 + $0x48] sm:$0xff]
        %v2495 = vld [vmem:[%s5 + $0x50] sm:$0xff]
        %v2496 = vld [vmem:[%s5 + $0x58] sm:$0xff]
        %v2497 = vld [vmem:[%s5 + $0x60] sm:$0xff]
        %v2498 = vld [vmem:[%s5 + $0x68] sm:$0xff]
        %v2499 = vld [vmem:[%s5 + $0x70] sm:$0xff]
        %v2500 = vld [vmem:[%s5 + $0x78] sm:$0xff]
        %v2501 = vld [vmem:[%s8] sm:$0x3]
        %v2503 = vlaneseq
        %v2504 = vshrl.u32 %v2503, 7
        %v2505 = vsub.s32 0, %v2504
        %v2506 = vrot.slane %v2501, %v2505
        %v2507 = vlaneseq
        %v2508 = vshrl.u32 %v2507, 7
        %v2509 = vsub.s32 1, %v2508
        %v2510 = vrot.slane %v2501, %v2509
        %v2529 = vunpack.c.l.b16 %v2485
        %v2530 = vunpack.c.h.b16 %v2485
        %v2531 = vunpack.c.l.b16 %v2486
        %v2532 = vunpack.c.h.b16 %v2486
        %v2533 = vunpack.c.l.b16 %v2487
        %v2534 = vunpack.c.h.b16 %v2487
        %v2535 = vunpack.c.l.b16 %v2488
        %v2536 = vunpack.c.h.b16 %v2488
        %v2537 = vunpack.c.l.b16 %v2489
        %v2538 = vunpack.c.h.b16 %v2489
        %v2539 = vunpack.c.l.b16 %v2490
        %v2540 = vunpack.c.h.b16 %v2490
        %v2541 = vunpack.c.l.b16 %v2491
        %v2542 = vunpack.c.h.b16 %v2491
        %v2543 = vunpack.c.l.b16 %v2492
        %v2544 = vunpack.c.h.b16 %v2492
        %v2545 = vunpack.c.l.b16 %v2493
        %v2546 = vunpack.c.h.b16 %v2493
        %v2547 = vunpack.c.l.b16 %v2494
        %v2548 = vunpack.c.h.b16 %v2494
        %v2549 = vunpack.c.l.b16 %v2495
        %v2550 = vunpack.c.h.b16 %v2495
        %v2551 = vunpack.c.l.b16 %v2496
        %v2552 = vunpack.c.h.b16 %v2496
        %v2553 = vunpack.c.l.b16 %v2497
        %v2554 = vunpack.c.h.b16 %v2497
        %v2555 = vunpack.c.l.b16 %v2498
        %v2556 = vunpack.c.h.b16 %v2498
        %v2557 = vunpack.c.l.b16 %v2499
        %v2558 = vunpack.c.h.b16 %v2499
        %v2559 = vunpack.c.l.b16 %v2500
        %v2560 = vunpack.c.h.b16 %v2500
        %v2561 = vpack.c.b16 %v2531, %v2529
        %v2562 = vpack.c.b16 %v2532, %v2530
        %v2563 = vpack.c.b16 %v2535, %v2533
        %v2564 = vpack.c.b16 %v2536, %v2534
        %v2565 = vpack.c.b16 %v2539, %v2537
        %v2566 = vpack.c.b16 %v2540, %v2538
        %v2567 = vpack.c.b16 %v2543, %v2541
        %v2568 = vpack.c.b16 %v2544, %v2542
        %v2569 = vpack.c.b16 %v2547, %v2545
        %v2570 = vpack.c.b16 %v2548, %v2546
        %v2571 = vpack.c.b16 %v2551, %v2549
        %v2572 = vpack.c.b16 %v2552, %v2550
        %v2573 = vpack.c.b16 %v2555, %v2553
        %v2574 = vpack.c.b16 %v2556, %v2554
        %v2575 = vpack.c.b16 %v2559, %v2557
        %v2576 = vpack.c.b16 %v2560, %v2558
        %2593 = vmatprep.subr.bf16.mxu0 %v2562
        %2594 = vmatpush1.bf16.msra.mxu0 %v2561
        %2595 = vmatprep.subr.bf16.mxu0 %v2564
        %2596 = vmatpush1.bf16.msra.mxu0 %v2563
        %2597 = vmatprep.subr.bf16.mxu0 %v2566
        %2598 = vmatpush1.bf16.msra.mxu0 %v2565
        %2599 = vmatprep.subr.bf16.mxu0 %v2568
        %2600 = vmatpush1.bf16.msra.mxu0 %v2567
        %2601 = vmatprep.subr.bf16.mxu0 %v2570
        %2602 = vmatpush1.bf16.msra.mxu0 %v2569
        %2603 = vmatprep.subr.bf16.mxu0 %v2572
        %2604 = vmatpush1.bf16.msra.mxu0 %v2571
        %2605 = vmatprep.subr.bf16.mxu0 %v2574
        %2606 = vmatpush1.bf16.msra.mxu0 %v2573
        %2607 = vmatprep.subr.bf16.mxu0 %v2576
        %2608 = vmatpush1.bf16.msra.mxu0 %v2575
        %2609 = vmatprep.subr.bf16.mxu0 0
        %2610 = vmatpush1.bf16.msra.mxu0 0
        %2611 = vmatprep.subr.bf16.mxu0 0
        %2612 = vmatpush1.bf16.msra.mxu0 0
        %2613 = vmatprep.subr.bf16.mxu0 0
        %2614 = vmatpush1.bf16.msra.mxu0 0
        %2615 = vmatprep.subr.bf16.mxu0 0
        %2616 = vmatpush1.bf16.msra.mxu0 0
        %2617 = vmatprep.subr.bf16.mxu0 0
        %2618 = vmatpush1.bf16.msra.mxu0 0
        %2619 = vmatprep.subr.bf16.mxu0 0
        %2620 = vmatpush1.bf16.msra.mxu0 0
        %2621 = vmatprep.subr.bf16.mxu0 0
        %2622 = vmatpush1.bf16.msra.mxu0 0
        %2623 = vmatprep.subr.bf16.mxu0 0
        %2624 = vmatpush1.bf16.msra.mxu0 0
        %2625 = vmatprep.mubr.bf16.mxu0 0
        %2626 = vmatmul.mubr.bf16.gmra.mrb[0].mxu0 %v2477
        %v2627 = vpop.f32.mrb[0].mxu0
        %v2628 = vadd.f32 %v2506, %v2627
        %v2629 = vpop.f32.mrb[0].mxu0
        %v2630 = vadd.f32 %v2510, %v2629
        %v2631 = vpop.f32.mrb[0].mxu0
        %v2632 = vadd.f32 %v2506, %v2631
        %v2633 = vpop.f32.mrb[0].mxu0
        %v2634 = vadd.f32 %v2510, %v2633
        %2635 = vmatprep.mubr.bf16.mxu0 0
        %2636 = vmatmul.mubr.bf16.gmra.mrb[0].mxu0 %v2478
        %v2637 = vpop.f32.mrb[0].mxu0
        %v2638 = vadd.f32 %v2506, %v2637
        %v2639 = vpop.f32.mrb[0].mxu0
        %v2640 = vadd.f32 %v2510, %v2639
        %v2641 = vpop.f32.mrb[0].mxu0
        %v2642 = vadd.f32 %v2506, %v2641
        %v2643 = vpop.f32.mrb[0].mxu0
        %v2644 = vadd.f32 %v2510, %v2643
        %2645 = vmatprep.mubr.bf16.mxu0 0
        %2646 = vmatmul.mubr.bf16.gmra.mrb[0].mxu0 %v2479
        %v2647 = vpop.f32.mrb[0].mxu0
        %v2648 = vadd.f32 %v2506, %v2647
        %v2649 = vpop.f32.mrb[0].mxu0
        %v2650 = vadd.f32 %v2510, %v2649
        %v2651 = vpop.f32.mrb[0].mxu0
        %v2652 = vadd.f32 %v2506, %v2651
        %v2653 = vpop.f32.mrb[0].mxu0
        %v2654 = vadd.f32 %v2510, %v2653
        %2655 = vmatprep.mubr.bf16.mxu0 0
        %2656 = vmatmul.mubr.bf16.gmra.mrb[0].mxu0 %v2480
        %v2657 = vpop.f32.mrb[0].mxu0
        %v2658 = vadd.f32 %v2506, %v2657
        %v2659 = vpop.f32.mrb[0].mxu0
        %v2660 = vadd.f32 %v2510, %v2659
        %v2661 = vpop.f32.mrb[0].mxu0
        %v2662 = vadd.f32 %v2506, %v2661
        %v2663 = vpop.f32.mrb[0].mxu0
        %v2664 = vadd.f32 %v2510, %v2663
        %2665 = vmatprep.mubr.bf16.mxu0 0
        %2666 = vmatmul.mubr.bf16.gmra.mrb[0].mxu0 %v2481
        %v2667 = vpop.f32.mrb[0].mxu0
        %v2668 = vadd.f32 %v2506, %v2667
        %v2669 = vpop.f32.mrb[0].mxu0
        %v2670 = vadd.f32 %v2510, %v2669
        %v2671 = vpop.f32.mrb[0].mxu0
        %v2672 = vadd.f32 %v2506, %v2671
        %v2673 = vpop.f32.mrb[0].mxu0
        %v2674 = vadd.f32 %v2510, %v2673
        %2675 = vmatprep.mubr.bf16.mxu0 0
        %2676 = vmatmul.mubr.bf16.gmra.mrb[0].mxu0 %v2482
        %v2677 = vpop.f32.mrb[0].mxu0
        %v2678 = vadd.f32 %v2506, %v2677
        %v2679 = vpop.f32.mrb[0].mxu0
        %v2680 = vadd.f32 %v2510, %v2679
        %v2681 = vpop.f32.mrb[0].mxu0
        %v2682 = vadd.f32 %v2506, %v2681
        %v2683 = vpop.f32.mrb[0].mxu0
        %v2684 = vadd.f32 %v2510, %v2683
        %2685 = vmatprep.mubr.bf16.mxu0 0
        %2686 = vmatmul.mubr.bf16.gmra.mrb[0].mxu0 %v2483
        %v2687 = vpop.f32.mrb[0].mxu0
        %v2688 = vadd.f32 %v2506, %v2687
        %v2689 = vpop.f32.mrb[0].mxu0
        %v2690 = vadd.f32 %v2510, %v2689
        %v2691 = vpop.f32.mrb[0].mxu0
        %v2692 = vadd.f32 %v2506, %v2691
        %v2693 = vpop.f32.mrb[0].mxu0
        %v2694 = vadd.f32 %v2510, %v2693
        %2695 = vmatprep.mubr.bf16.mxu0 0
        %2696 = vmatmul.mubr.bf16.gmra.mrb[0].mxu0 %v2484
        %v2697 = vpop.f32.mrb[0].mxu0
        %v2698 = vadd.f32 %v2506, %v2697
        %v2699 = vpop.f32.mrb[0].mxu0
        %v2700 = vadd.f32 %v2510, %v2699
        %v2701 = vpop.f32.mrb[0].mxu0
        %v2702 = vadd.f32 %v2506, %v2701
        %v2703 = vpop.f32.mrb[0].mxu0
        %v2704 = vadd.f32 %v2510, %v2703
        %2705 = vdwg.mxu0
        %v2706 = vmul.f32 %v2628, 0.5
        %v2707 = vmul.f32 %v2630, 0.5
        %v2708 = vmul.f32 %v2632, 0.5
        %v2709 = vmul.f32 %v2634, 0.5
        %v2710 = vmul.f32 %v2638, 0.5
        %v2711 = vmul.f32 %v2640, 0.5
        %v2712 = vmul.f32 %v2642, 0.5
        %v2713 = vmul.f32 %v2644, 0.5
        %v2714 = vmul.f32 %v2648, 0.5
        %v2715 = vmul.f32 %v2650, 0.5
        %v2716 = vmul.f32 %v2652, 0.5
        %v2717 = vmul.f32 %v2654, 0.5
        %v2718 = vmul.f32 %v2658, 0.5
        %v2719 = vmul.f32 %v2660, 0.5
        %v2720 = vmul.f32 %v2662, 0.5
        %v2721 = vmul.f32 %v2664, 0.5
        %v2722 = vmul.f32 %v2668, 0.5
        %v2723 = vmul.f32 %v2670, 0.5
        %v2724 = vmul.f32 %v2672, 0.5
        %v2725 = vmul.f32 %v2674, 0.5
        %v2726 = vmul.f32 %v2678, 0.5
        %v2727 = vmul.f32 %v2680, 0.5
        %v2728 = vmul.f32 %v2682, 0.5
        %v2729 = vmul.f32 %v2684, 0.5
        %v2730 = vmul.f32 %v2688, 0.5
        %v2731 = vmul.f32 %v2690, 0.5
        %v2732 = vmul.f32 %v2692, 0.5
        %v2733 = vmul.f32 %v2694, 0.5
        %v2734 = vmul.f32 %v2698, 0.5
        %v2735 = vmul.f32 %v2700, 0.5
        %v2736 = vmul.f32 %v2702, 0.5
        %v2737 = vmul.f32 %v2704, 0.5
        %v2738 = vmul.f32 %v2628, 0.044715
        %v2739 = vmul.f32 %v2630, 0.044715
        %v2740 = vmul.f32 %v2632, 0.044715
        %v2741 = vmul.f32 %v2634, 0.044715
        %v2742 = vmul.f32 %v2638, 0.044715
        %v2743 = vmul.f32 %v2640, 0.044715
        %v2744 = vmul.f32 %v2642, 0.044715
        %v2745 = vmul.f32 %v2644, 0.044715
        %v2746 = vmul.f32 %v2648, 0.044715
        %v2747 = vmul.f32 %v2650, 0.044715
        %v2748 = vmul.f32 %v2652, 0.044715
        %v2749 = vmul.f32 %v2654, 0.044715
        %v2750 = vmul.f32 %v2658, 0.044715
        %v2751 = vmul.f32 %v2660, 0.044715
        %v2752 = vmul.f32 %v2662, 0.044715
        %v2753 = vmul.f32 %v2664, 0.044715
        %v2754 = vmul.f32 %v2668, 0.044715
        %v2755 = vmul.f32 %v2670, 0.044715
        %v2756 = vmul.f32 %v2672, 0.044715
        %v2757 = vmul.f32 %v2674, 0.044715
        %v2758 = vmul.f32 %v2678, 0.044715
        %v2759 = vmul.f32 %v2680, 0.044715
        %v2760 = vmul.f32 %v2682, 0.044715
        %v2761 = vmul.f32 %v2684, 0.044715
        %v2762 = vmul.f32 %v2688, 0.044715
        %v2763 = vmul.f32 %v2690, 0.044715
        %v2764 = vmul.f32 %v2692, 0.044715
        %v2765 = vmul.f32 %v2694, 0.044715
        %v2766 = vmul.f32 %v2698, 0.044715
        %v2767 = vmul.f32 %v2700, 0.044715
        %v2768 = vmul.f32 %v2702, 0.044715
        %v2769 = vmul.f32 %v2704, 0.044715
        %v2770 = vmul.f32 %v2738, %v2628
        %v2771 = vmul.f32 %v2739, %v2630
        %v2772 = vmul.f32 %v2740, %v2632
        %v2773 = vmul.f32 %v2741, %v2634
        %v2774 = vmul.f32 %v2742, %v2638
        %v2775 = vmul.f32 %v2743, %v2640
        %v2776 = vmul.f32 %v2744, %v2642
        %v2777 = vmul.f32 %v2745, %v2644
        %v2778 = vmul.f32 %v2746, %v2648
        %v2779 = vmul.f32 %v2747, %v2650
        %v2780 = vmul.f32 %v2748, %v2652
        %v2781 = vmul.f32 %v2749, %v2654
        %v2782 = vmul.f32 %v2750, %v2658
        %v2783 = vmul.f32 %v2751, %v2660
        %v2784 = vmul.f32 %v2752, %v2662
        %v2785 = vmul.f32 %v2753, %v2664
        %v2786 = vmul.f32 %v2754, %v2668
        %v2787 = vmul.f32 %v2755, %v2670
        %v2788 = vmul.f32 %v2756, %v2672
        %v2789 = vmul.f32 %v2757, %v2674
        %v2790 = vmul.f32 %v2758, %v2678
        %v2791 = vmul.f32 %v2759, %v2680
        %v2792 = vmul.f32 %v2760, %v2682
        %v2793 = vmul.f32 %v2761, %v2684
        %v2794 = vmul.f32 %v2762, %v2688
        %v2795 = vmul.f32 %v2763, %v2690
        %v2796 = vmul.f32 %v2764, %v2692
        %v2797 = vmul.f32 %v2765, %v2694
        %v2798 = vmul.f32 %v2766, %v2698
        %v2799 = vmul.f32 %v2767, %v2700
        %v2800 = vmul.f32 %v2768, %v2702
        %v2801 = vmul.f32 %v2769, %v2704
        %v2802 = vmul.f32 %v2770, %v2628
        %v2803 = vmul.f32 %v2771, %v2630
        %v2804 = vmul.f32 %v2772, %v2632
        %v2805 = vmul.f32 %v2773, %v2634
        %v2806 = vmul.f32 %v2774, %v2638
        %v2807 = vmul.f32 %v2775, %v2640
        %v2808 = vmul.f32 %v2776, %v2642
        %v2809 = vmul.f32 %v2777, %v2644
        %v2810 = vmul.f32 %v2778, %v2648
        %v2811 = vmul.f32 %v2779, %v2650
        %v2812 = vmul.f32 %v2780, %v2652
        %v2813 = vmul.f32 %v2781, %v2654
        %v2814 = vmul.f32 %v2782, %v2658
        %v2815 = vmul.f32 %v2783, %v2660
        %v2816 = vmul.f32 %v2784, %v2662
        %v2817 = vmul.f32 %v2785, %v2664
        %v2818 = vmul.f32 %v2786, %v2668
        %v2819 = vmul.f32 %v2787, %v2670
        %v2820 = vmul.f32 %v2788, %v2672
        %v2821 = vmul.f32 %v2789, %v2674
        %v2822 = vmul.f32 %v2790, %v2678
        %v2823 = vmul.f32 %v2791, %v2680
        %v2824 = vmul.f32 %v2792, %v2682
        %v2825 = vmul.f32 %v2793, %v2684
        %v2826 = vmul.f32 %v2794, %v2688
        %v2827 = vmul.f32 %v2795, %v2690
        %v2828 = vmul.f32 %v2796, %v2692
        %v2829 = vmul.f32 %v2797, %v2694
        %v2830 = vmul.f32 %v2798, %v2698
        %v2831 = vmul.f32 %v2799, %v2700
        %v2832 = vmul.f32 %v2800, %v2702
        %v2833 = vmul.f32 %v2801, %v2704
        %v2834 = vadd.f32 %v2628, %v2802
        %v2835 = vadd.f32 %v2630, %v2803
        %v2836 = vadd.f32 %v2632, %v2804
        %v2837 = vadd.f32 %v2634, %v2805
        %v2838 = vadd.f32 %v2638, %v2806
        %v2839 = vadd.f32 %v2640, %v2807
        %v2840 = vadd.f32 %v2642, %v2808
        %v2841 = vadd.f32 %v2644, %v2809
        %v2842 = vadd.f32 %v2648, %v2810
        %v2843 = vadd.f32 %v2650, %v2811
        %v2844 = vadd.f32 %v2652, %v2812
        %v2845 = vadd.f32 %v2654, %v2813
        %v2846 = vadd.f32 %v2658, %v2814
        %v2847 = vadd.f32 %v2660, %v2815
        %v2848 = vadd.f32 %v2662, %v2816
        %v2849 = vadd.f32 %v2664, %v2817
        %v2850 = vadd.f32 %v2668, %v2818
        %v2851 = vadd.f32 %v2670, %v2819
        %v2852 = vadd.f32 %v2672, %v2820
        %v2853 = vadd.f32 %v2674, %v2821
        %v2854 = vadd.f32 %v2678, %v2822
        %v2855 = vadd.f32 %v2680, %v2823
        %v2856 = vadd.f32 %v2682, %v2824
        %v2857 = vadd.f32 %v2684, %v2825
        %v2858 = vadd.f32 %v2688, %v2826
        %v2859 = vadd.f32 %v2690, %v2827
        %v2860 = vadd.f32 %v2692, %v2828
        %v2861 = vadd.f32 %v2694, %v2829
        %v2862 = vadd.f32 %v2698, %v2830
        %v2863 = vadd.f32 %v2700, %v2831
        %v2864 = vadd.f32 %v2702, %v2832
        %v2865 = vadd.f32 %v2704, %v2833
        %v2866 = vmul.f32 %v2834, 0.7978846
        %v2867 = vmul.f32 %v2835, 0.7978846
        %v2868 = vmul.f32 %v2836, 0.7978846
        %v2869 = vmul.f32 %v2837, 0.7978846
        %v2870 = vmul.f32 %v2838, 0.7978846
        %v2871 = vmul.f32 %v2839, 0.7978846
        %v2872 = vmul.f32 %v2840, 0.7978846
        %v2873 = vmul.f32 %v2841, 0.7978846
        %v2874 = vmul.f32 %v2842, 0.7978846
        %v2875 = vmul.f32 %v2843, 0.7978846
        %v2876 = vmul.f32 %v2844, 0.7978846
        %v2877 = vmul.f32 %v2845, 0.7978846
        %v2878 = vmul.f32 %v2846, 0.7978846
        %v2879 = vmul.f32 %v2847, 0.7978846
        %v2880 = vmul.f32 %v2848, 0.7978846
        %v2881 = vmul.f32 %v2849, 0.7978846
        %v2882 = vmul.f32 %v2850, 0.7978846
        %v2883 = vmul.f32 %v2851, 0.7978846
        %v2884 = vmul.f32 %v2852, 0.7978846
        %v2885 = vmul.f32 %v2853, 0.7978846
        %v2886 = vmul.f32 %v2854, 0.7978846
        %v2887 = vmul.f32 %v2855, 0.7978846
        %v2888 = vmul.f32 %v2856, 0.7978846
        %v2889 = vmul.f32 %v2857, 0.7978846
        %v2890 = vmul.f32 %v2858, 0.7978846
        %v2891 = vmul.f32 %v2859, 0.7978846
        %v2892 = vmul.f32 %v2860, 0.7978846
        %v2893 = vmul.f32 %v2861, 0.7978846
        %v2894 = vmul.f32 %v2862, 0.7978846
        %v2895 = vmul.f32 %v2863, 0.7978846
        %v2896 = vmul.f32 %v2864, 0.7978846
        %v2897 = vmul.f32 %v2865, 0.7978846
        %v2898 = vtanh.pop %v2866
        %v2899 = vtanh.pop %v2867
        %v2900 = vtanh.pop %v2868
        %v2901 = vtanh.pop %v2869
        %v2902 = vtanh.pop %v2870
        %v2903 = vtanh.pop %v2871
        %v2904 = vtanh.pop %v2872
        %v2905 = vtanh.pop %v2873
        %v2906 = vtanh.pop %v2874
        %v2907 = vtanh.pop %v2875
        %v2908 = vtanh.pop %v2876
        %v2909 = vtanh.pop %v2877
        %v2910 = vtanh.pop %v2878
        %v2911 = vtanh.pop %v2879
        %v2912 = vtanh.pop %v2880
        %v2913 = vtanh.pop %v2881
        %v2914 = vtanh.pop %v2882
        %v2915 = vtanh.pop %v2883
        %v2916 = vtanh.pop %v2884
        %v2917 = vtanh.pop %v2885
        %v2918 = vtanh.pop %v2886
        %v2919 = vtanh.pop %v2887
        %v2920 = vtanh.pop %v2888
        %v2921 = vtanh.pop %v2889
        %v2922 = vtanh.pop %v2890
        %v2923 = vtanh.pop %v2891
        %v2924 = vtanh.pop %v2892
        %v2925 = vtanh.pop %v2893
        %v2926 = vtanh.pop %v2894
        %v2927 = vtanh.pop %v2895
        %v2928 = vtanh.pop %v2896
        %v2929 = vtanh.pop %v2897
        %v2930 = vadd.f32 %v2898, 1.0
        %v2931 = vadd.f32 %v2899, 1.0
        %v2932 = vadd.f32 %v2900, 1.0
        %v2933 = vadd.f32 %v2901, 1.0
        %v2934 = vadd.f32 %v2902, 1.0
        %v2935 = vadd.f32 %v2903, 1.0
        %v2936 = vadd.f32 %v2904, 1.0
        %v2937 = vadd.f32 %v2905, 1.0
        %v2938 = vadd.f32 %v2906, 1.0
        %v2939 = vadd.f32 %v2907, 1.0
        %v2940 = vadd.f32 %v2908, 1.0
        %v2941 = vadd.f32 %v2909, 1.0
        %v2942 = vadd.f32 %v2910, 1.0
        %v2943 = vadd.f32 %v2911, 1.0
        %v2944 = vadd.f32 %v2912, 1.0
        %v2945 = vadd.f32 %v2913, 1.0
        %v2946 = vadd.f32 %v2914, 1.0
        %v2947 = vadd.f32 %v2915, 1.0
        %v2948 = vadd.f32 %v2916, 1.0
        %v2949 = vadd.f32 %v2917, 1.0
        %v2950 = vadd.f32 %v2918, 1.0
        %v2951 = vadd.f32 %v2919, 1.0
        %v2952 = vadd.f32 %v2920, 1.0
        %v2953 = vadd.f32 %v2921, 1.0
        %v2954 = vadd.f32 %v2922, 1.0
        %v2955 = vadd.f32 %v2923, 1.0
        %v2956 = vadd.f32 %v2924, 1.0
        %v2957 = vadd.f32 %v2925, 1.0
        %v2958 = vadd.f32 %v2926, 1.0
        %v2959 = vadd.f32 %v2927, 1.0
        %v2960 = vadd.f32 %v2928, 1.0
        %v2961 = vadd.f32 %v2929, 1.0
        %v2962 = vmul.f32 %v2706, %v2930
        %v2963 = vmul.f32 %v2707, %v2931
        %v2964 = vmul.f32 %v2708, %v2932
        %v2965 = vmul.f32 %v2709, %v2933
        %v2966 = vmul.f32 %v2710, %v2934
        %v2967 = vmul.f32 %v2711, %v2935
        %v2968 = vmul.f32 %v2712, %v2936
        %v2969 = vmul.f32 %v2713, %v2937
        %v2970 = vmul.f32 %v2714, %v2938
        %v2971 = vmul.f32 %v2715, %v2939
        %v2972 = vmul.f32 %v2716, %v2940
        %v2973 = vmul.f32 %v2717, %v2941
        %v2974 = vmul.f32 %v2718, %v2942
        %v2975 = vmul.f32 %v2719, %v2943
        %v2976 = vmul.f32 %v2720, %v2944
        %v2977 = vmul.f32 %v2721, %v2945
        %v2978 = vmul.f32 %v2722, %v2946
        %v2979 = vmul.f32 %v2723, %v2947
        %v2980 = vmul.f32 %v2724, %v2948
        %v2981 = vmul.f32 %v2725, %v2949
        %v2982 = vmul.f32 %v2726, %v2950
        %v2983 = vmul.f32 %v2727, %v2951
        %v2984 = vmul.f32 %v2728, %v2952
        %v2985 = vmul.f32 %v2729, %v2953
        %v2986 = vmul.f32 %v2730, %v2954
        %v2987 = vmul.f32 %v2731, %v2955
        %v2988 = vmul.f32 %v2732, %v2956
        %v2989 = vmul.f32 %v2733, %v2957
        %v2990 = vmul.f32 %v2734, %v2958
        %v2991 = vmul.f32 %v2735, %v2959
        %v2992 = vmul.f32 %v2736, %v2960
        %v2993 = vmul.f32 %v2737, %v2961
        %v2994 = vpack.c.bf16 %v2964, %v2962
        %v2995 = vpack.c.bf16 %v2965, %v2963
        %v2996 = vpack.c.bf16 %v2968, %v2966
        %v2997 = vpack.c.bf16 %v2969, %v2967
        %v2998 = vpack.c.bf16 %v2972, %v2970
        %v2999 = vpack.c.bf16 %v2973, %v2971
        %v3000 = vpack.c.bf16 %v2976, %v2974
        %v3001 = vpack.c.bf16 %v2977, %v2975
        %v3002 = vpack.c.bf16 %v2980, %v2978
        %v3003 = vpack.c.bf16 %v2981, %v2979
        %v3004 = vpack.c.bf16 %v2984, %v2982
        %v3005 = vpack.c.bf16 %v2985, %v2983
        %v3006 = vpack.c.bf16 %v2988, %v2986
        %v3007 = vpack.c.bf16 %v2989, %v2987
        %v3008 = vpack.c.bf16 %v2992, %v2990
        %v3009 = vpack.c.bf16 %v2993, %v2991
        %v3010 = vld [vmem:[%s6] sm:$0xf]
        %v3011 = vld [vmem:[%s6 + $0x4] sm:$0xf]
        %v3012 = vld [vmem:[%s6 + $0x8] sm:$0xf]
        %v3013 = vld [vmem:[%s6 + $0xc] sm:$0xf]
        %v3014 = vld [vmem:[%s6 + $0x10] sm:$0xf]
        %v3015 = vld [vmem:[%s6 + $0x14] sm:$0xf]
        %v3016 = vld [vmem:[%s6 + $0x18] sm:$0xf]
        %v3017 = vld [vmem:[%s6 + $0x1c] sm:$0xf]
        %v3018 = vld [vmem:[%s6 + $0x20] sm:$0xf]
        %v3019 = vld [vmem:[%s6 + $0x24] sm:$0xf]
        %v3020 = vld [vmem:[%s6 + $0x28] sm:$0xf]
        %v3021 = vld [vmem:[%s6 + $0x2c] sm:$0xf]
        %v3022 = vld [vmem:[%s6 + $0x30] sm:$0xf]
        %v3023 = vld [vmem:[%s6 + $0x34] sm:$0xf]
        %v3024 = vld [vmem:[%s6 + $0x38] sm:$0xf]
        %v3025 = vld [vmem:[%s6 + $0x3c] sm:$0xf]
        %v3026 = vld [vmem:[%s6 + $0x40] sm:$0xf]
        %v3027 = vld [vmem:[%s6 + $0x44] sm:$0xf]
        %v3028 = vld [vmem:[%s6 + $0x48] sm:$0xf]
        %v3029 = vld [vmem:[%s6 + $0x4c] sm:$0xf]
        %v3030 = vld [vmem:[%s6 + $0x50] sm:$0xf]
        %v3031 = vld [vmem:[%s6 + $0x54] sm:$0xf]
        %v3032 = vld [vmem:[%s6 + $0x58] sm:$0xf]
        %v3033 = vld [vmem:[%s6 + $0x5c] sm:$0xf]
        %v3034 = vld [vmem:[%s6 + $0x60] sm:$0xf]
        %v3035 = vld [vmem:[%s6 + $0x64] sm:$0xf]
        %v3036 = vld [vmem:[%s6 + $0x68] sm:$0xf]
        %v3037 = vld [vmem:[%s6 + $0x6c] sm:$0xf]
        %v3038 = vld [vmem:[%s6 + $0x70] sm:$0xf]
        %v3039 = vld [vmem:[%s6 + $0x74] sm:$0xf]
        %v3040 = vld [vmem:[%s6 + $0x78] sm:$0xf]
        %v3041 = vld [vmem:[%s6 + $0x7c] sm:$0xf]
        %v3042 = vlaneseq
        %v3043 = vshrl.u32 %v3042, 7
        %v3044 = vsub.s32 3, %v3043
        %v3045 = vrot.slane %v608, %v3044
        %v3078 = vunpack.c.l.b16 %v3010
        %v3079 = vunpack.c.l.b16 %v3011
        %v3080 = vunpack.c.l.b16 %v3012
        %v3081 = vunpack.c.l.b16 %v3013
        %v3082 = vunpack.c.l.b16 %v3014
        %v3083 = vunpack.c.l.b16 %v3015
        %v3084 = vunpack.c.l.b16 %v3016
        %v3085 = vunpack.c.l.b16 %v3017
        %v3086 = vunpack.c.l.b16 %v3018
        %v3087 = vunpack.c.l.b16 %v3019
        %v3088 = vunpack.c.l.b16 %v3020
        %v3089 = vunpack.c.l.b16 %v3021
        %v3090 = vunpack.c.l.b16 %v3022
        %v3091 = vunpack.c.l.b16 %v3023
        %v3092 = vunpack.c.l.b16 %v3024
        %v3093 = vunpack.c.l.b16 %v3025
        %v3094 = vunpack.c.l.b16 %v3026
        %v3095 = vunpack.c.l.b16 %v3027
        %v3096 = vunpack.c.l.b16 %v3028
        %v3097 = vunpack.c.l.b16 %v3029
        %v3098 = vunpack.c.l.b16 %v3030
        %v3099 = vunpack.c.l.b16 %v3031
        %v3100 = vunpack.c.l.b16 %v3032
        %v3101 = vunpack.c.l.b16 %v3033
        %v3102 = vunpack.c.l.b16 %v3034
        %v3103 = vunpack.c.l.b16 %v3035
        %v3104 = vunpack.c.l.b16 %v3036
        %v3105 = vunpack.c.l.b16 %v3037
        %v3106 = vunpack.c.l.b16 %v3038
        %v3107 = vunpack.c.l.b16 %v3039
        %v3108 = vunpack.c.l.b16 %v3040
        %v3109 = vunpack.c.l.b16 %v3041
        %v3110 = vpack.c.b16 %v3079, %v3078
        %v3111 = vpack.c.b16 %v3081, %v3080
        %v3112 = vpack.c.b16 %v3083, %v3082
        %v3113 = vpack.c.b16 %v3085, %v3084
        %v3114 = vpack.c.b16 %v3087, %v3086
        %v3115 = vpack.c.b16 %v3089, %v3088
        %v3116 = vpack.c.b16 %v3091, %v3090
        %v3117 = vpack.c.b16 %v3093, %v3092
        %v3118 = vpack.c.b16 %v3095, %v3094
        %v3119 = vpack.c.b16 %v3097, %v3096
        %v3120 = vpack.c.b16 %v3099, %v3098
        %v3121 = vpack.c.b16 %v3101, %v3100
        %v3122 = vpack.c.b16 %v3103, %v3102
        %v3123 = vpack.c.b16 %v3105, %v3104
        %v3124 = vpack.c.b16 %v3107, %v3106
        %v3125 = vpack.c.b16 %v3109, %v3108
        %3142 = vmatprep.subr.bf16.mxu0 0
        %3143 = vmatpush1.bf16.msra.mxu0 %v3110
        %3144 = vmatprep.subr.bf16.mxu0 0
        %3145 = vmatpush1.bf16.msra.mxu0 %v3111
        %3146 = vmatprep.subr.bf16.mxu0 0
        %3147 = vmatpush1.bf16.msra.mxu0 %v3112
        %3148 = vmatprep.subr.bf16.mxu0 0
        %3149 = vmatpush1.bf16.msra.mxu0 %v3113
        %3150 = vmatprep.subr.bf16.mxu0 0
        %3151 = vmatpush1.bf16.msra.mxu0 %v3114
        %3152 = vmatprep.subr.bf16.mxu0 0
        %3153 = vmatpush1.bf16.msra.mxu0 %v3115
        %3154 = vmatprep.subr.bf16.mxu0 0
        %3155 = vmatpush1.bf16.msra.mxu0 %v3116
        %3156 = vmatprep.subr.bf16.mxu0 0
        %3157 = vmatpush1.bf16.msra.mxu0 %v3117
        %3158 = vmatprep.subr.bf16.mxu0 0
        %3159 = vmatpush1.bf16.msra.mxu0 %v3118
        %3160 = vmatprep.subr.bf16.mxu0 0
        %3161 = vmatpush1.bf16.msra.mxu0 %v3119
        %3162 = vmatprep.subr.bf16.mxu0 0
        %3163 = vmatpush1.bf16.msra.mxu0 %v3120
        %3164 = vmatprep.subr.bf16.mxu0 0
        %3165 = vmatpush1.bf16.msra.mxu0 %v3121
        %3166 = vmatprep.subr.bf16.mxu0 0
        %3167 = vmatpush1.bf16.msra.mxu0 %v3122
        %3168 = vmatprep.subr.bf16.mxu0 0
        %3169 = vmatpush1.bf16.msra.mxu0 %v3123
        %3170 = vmatprep.subr.bf16.mxu0 0
        %3171 = vmatpush1.bf16.msra.mxu0 %v3124
        %3172 = vmatprep.subr.bf16.mxu0 0
        %3173 = vmatpush1.bf16.msra.mxu0 %v3125
        %3174 = vmatprep.mubr.bf16.mxu0 %v2995
        %3175 = vmatmul.mubr.bf16.gmra.mrb[0].mxu0 %v2994
        %v3176 = vpop.f32.mrb[0].mxu0
        %v3177 = vadd.f32 %v3045, %v3176
        %v3178 = vpop.f32.mrb[0].mxu0
        %v3179 = vpop.f32.mrb[0].mxu0
        %v3180 = vadd.f32 %v3045, %v3179
        %v3181 = vpop.f32.mrb[0].mxu0
        %3182 = vmatprep.mubr.bf16.mxu0 %v2997
        %3183 = vmatmul.mubr.bf16.gmra.mrb[0].mxu0 %v2996
        %v3184 = vpop.f32.mrb[0].mxu0
        %v3185 = vadd.f32 %v3045, %v3184
        %v3186 = vpop.f32.mrb[0].mxu0
        %v3187 = vpop.f32.mrb[0].mxu0
        %v3188 = vadd.f32 %v3045, %v3187
        %v3189 = vpop.f32.mrb[0].mxu0
        %3190 = vmatprep.mubr.bf16.mxu0 %v2999
        %3191 = vmatmul.mubr.bf16.gmra.mrb[0].mxu0 %v2998
        %v3192 = vpop.f32.mrb[0].mxu0
        %v3193 = vadd.f32 %v3045, %v3192
        %v3194 = vpop.f32.mrb[0].mxu0
        %v3195 = vpop.f32.mrb[0].mxu0
        %v3196 = vadd.f32 %v3045, %v3195
        %v3197 = vpop.f32.mrb[0].mxu0
        %3198 = vmatprep.mubr.bf16.mxu0 %v3001
        %3199 = vmatmul.mubr.bf16.gmra.mrb[0].mxu0 %v3000
        %v3200 = vpop.f32.mrb[0].mxu0
        %v3201 = vadd.f32 %v3045, %v3200
        %v3202 = vpop.f32.mrb[0].mxu0
        %v3203 = vpop.f32.mrb[0].mxu0
        %v3204 = vadd.f32 %v3045, %v3203
        %v3205 = vpop.f32.mrb[0].mxu0
        %3206 = vmatprep.mubr.bf16.mxu0 %v3003
        %3207 = vmatmul.mubr.bf16.gmra.mrb[0].mxu0 %v3002
        %v3208 = vpop.f32.mrb[0].mxu0
        %v3209 = vadd.f32 %v3045, %v3208
        %v3210 = vpop.f32.mrb[0].mxu0
        %v3211 = vpop.f32.mrb[0].mxu0
        %v3212 = vadd.f32 %v3045, %v3211
        %v3213 = vpop.f32.mrb[0].mxu0
        %3214 = vmatprep.mubr.bf16.mxu0 %v3005
        %3215 = vmatmul.mubr.bf16.gmra.mrb[0].mxu0 %v3004
        %v3216 = vpop.f32.mrb[0].mxu0
        %v3217 = vadd.f32 %v3045, %v3216
        %v3218 = vpop.f32.mrb[0].mxu0
        %v3219 = vpop.f32.mrb[0].mxu0
        %v3220 = vadd.f32 %v3045, %v3219
        %v3221 = vpop.f32.mrb[0].mxu0
        %3222 = vmatprep.mubr.bf16.mxu0 %v3007
        %3223 = vmatmul.mubr.bf16.gmra.mrb[0].mxu0 %v3006
        %v3224 = vpop.f32.mrb[0].mxu0
        %v3225 = vadd.f32 %v3045, %v3224
        %v3226 = vpop.f32.mrb[0].mxu0
        %v3227 = vpop.f32.mrb[0].mxu0
        %v3228 = vadd.f32 %v3045, %v3227
        %v3229 = vpop.f32.mrb[0].mxu0
        %3230 = vmatprep.mubr.bf16.mxu0 %v3009
        %3231 = vmatmul.mubr.bf16.gmra.mrb[0].mxu0 %v3008
        %v3232 = vpop.f32.mrb[0].mxu0
        %v3233 = vadd.f32 %v3045, %v3232
        %v3234 = vpop.f32.mrb[0].mxu0
        %v3235 = vpop.f32.mrb[0].mxu0
        %v3236 = vadd.f32 %v3045, %v3235
        %v3237 = vpop.f32.mrb[0].mxu0
        %3238 = vdwg.mxu0
        %v3239 = vadd.f32 %v3177, %v2461
        %v3240 = vadd.f32 %v3180, %v2462
        %v3241 = vadd.f32 %v3185, %v2463
        %v3242 = vadd.f32 %v3188, %v2464
        %v3243 = vadd.f32 %v3193, %v2465
        %v3244 = vadd.f32 %v3196, %v2466
        %v3245 = vadd.f32 %v3201, %v2467
        %v3246 = vadd.f32 %v3204, %v2468
        %v3247 = vadd.f32 %v3209, %v2469
        %v3248 = vadd.f32 %v3212, %v2470
        %v3249 = vadd.f32 %v3217, %v2471
        %v3250 = vadd.f32 %v3220, %v2472
        %v3251 = vadd.f32 %v3225, %v2473
        %v3252 = vadd.f32 %v3228, %v2474
        %v3253 = vadd.f32 %v3233, %v2475
        %v3254 = vadd.f32 %v3236, %v2476
        %3255 = vadd.xlane.f32.xlu0 %v3239
        %v3256 = vpop.xlane.xlu0 %3255
        %3257 = vadd.xlane.f32.xlu0 %v3240
        %v3258 = vpop.xlane.xlu0 %3257
        %3259 = vadd.xlane.f32.xlu0 %v3241
        %v3260 = vpop.xlane.xlu0 %3259
        %3261 = vadd.xlane.f32.xlu0 %v3242
        %v3262 = vpop.xlane.xlu0 %3261
        %3263 = vadd.xlane.f32.xlu0 %v3243
        %v3264 = vpop.xlane.xlu0 %3263
        %3265 = vadd.xlane.f32.xlu0 %v3244
        %v3266 = vpop.xlane.xlu0 %3265
        %3267 = vadd.xlane.f32.xlu0 %v3245
        %v3268 = vpop.xlane.xlu0 %3267
        %3269 = vadd.xlane.f32.xlu0 %v3246
        %v3270 = vpop.xlane.xlu0 %3269
        %3271 = vadd.xlane.f32.xlu0 %v3247
        %v3272 = vpop.xlane.xlu0 %3271
        %3273 = vadd.xlane.f32.xlu0 %v3248
        %v3274 = vpop.xlane.xlu0 %3273
        %3275 = vadd.xlane.f32.xlu0 %v3249
        %v3276 = vpop.xlane.xlu0 %3275
        %3277 = vadd.xlane.f32.xlu0 %v3250
        %v3278 = vpop.xlane.xlu0 %3277
        %3279 = vadd.xlane.f32.xlu0 %v3251
        %v3280 = vpop.xlane.xlu0 %3279
        %3281 = vadd.xlane.f32.xlu0 %v3252
        %v3282 = vpop.xlane.xlu0 %3281
        %3283 = vadd.xlane.f32.xlu0 %v3253
        %v3284 = vpop.xlane.xlu0 %3283
        %3285 = vadd.xlane.f32.xlu0 %v3254
        %v3286 = vpop.xlane.xlu0 %3285
        %v3287 = vmul.f32 %v3256, %v423
        %v3288 = vmul.f32 %v3258, %v423
        %v3289 = vmul.f32 %v3260, %v423
        %v3290 = vmul.f32 %v3262, %v423
        %v3291 = vmul.f32 %v3264, %v423
        %v3292 = vmul.f32 %v3266, %v423
        %v3293 = vmul.f32 %v3268, %v423
        %v3294 = vmul.f32 %v3270, %v423
        %v3295 = vmul.f32 %v3272, %v423
        %v3296 = vmul.f32 %v3274, %v423
        %v3297 = vmul.f32 %v3276, %v423
        %v3298 = vmul.f32 %v3278, %v423
        %v3299 = vmul.f32 %v3280, %v423
        %v3300 = vmul.f32 %v3282, %v423
        %v3301 = vmul.f32 %v3284, %v423
        %v3302 = vmul.f32 %v3286, %v423
        %v3303 = vsub.f32 %v3239, %v3287
        %v3304 = vsub.f32 %v3240, %v3288
        %v3305 = vsub.f32 %v3241, %v3289
        %v3306 = vsub.f32 %v3242, %v3290
        %v3307 = vsub.f32 %v3243, %v3291
        %v3308 = vsub.f32 %v3244, %v3292
        %v3309 = vsub.f32 %v3245, %v3293
        %v3310 = vsub.f32 %v3246, %v3294
        %v3311 = vsub.f32 %v3247, %v3295
        %v3312 = vsub.f32 %v3248, %v3296
        %v3313 = vsub.f32 %v3249, %v3297
        %v3314 = vsub.f32 %v3250, %v3298
        %v3315 = vsub.f32 %v3251, %v3299
        %v3316 = vsub.f32 %v3252, %v3300
        %v3317 = vsub.f32 %v3253, %v3301
        %v3318 = vsub.f32 %v3254, %v3302
        %v3319 = vmul.f32 %v3303, %v3303
        %v3320 = vmul.f32 %v3304, %v3304
        %v3321 = vmul.f32 %v3305, %v3305
        %v3322 = vmul.f32 %v3306, %v3306
        %v3323 = vmul.f32 %v3307, %v3307
        %v3324 = vmul.f32 %v3308, %v3308
        %v3325 = vmul.f32 %v3309, %v3309
        %v3326 = vmul.f32 %v3310, %v3310
        %v3327 = vmul.f32 %v3311, %v3311
        %v3328 = vmul.f32 %v3312, %v3312
        %v3329 = vmul.f32 %v3313, %v3313
        %v3330 = vmul.f32 %v3314, %v3314
        %v3331 = vmul.f32 %v3315, %v3315
        %v3332 = vmul.f32 %v3316, %v3316
        %v3333 = vmul.f32 %v3317, %v3317
        %v3334 = vmul.f32 %v3318, %v3318
        %3335 = vadd.xlane.f32.xlu0 %v3319
        %v3336 = vpop.xlane.xlu0 %3335
        %3337 = vadd.xlane.f32.xlu0 %v3320
        %v3338 = vpop.xlane.xlu0 %3337
        %3339 = vadd.xlane.f32.xlu0 %v3321
        %v3340 = vpop.xlane.xlu0 %3339
        %3341 = vadd.xlane.f32.xlu0 %v3322
        %v3342 = vpop.xlane.xlu0 %3341
        %3343 = vadd.xlane.f32.xlu0 %v3323
        %v3344 = vpop.xlane.xlu0 %3343
        %3345 = vadd.xlane.f32.xlu0 %v3324
        %v3346 = vpop.xlane.xlu0 %3345
        %3347 = vadd.xlane.f32.xlu0 %v3325
        %v3348 = vpop.xlane.xlu0 %3347
        %3349 = vadd.xlane.f32.xlu0 %v3326
        %v3350 = vpop.xlane.xlu0 %3349
        %3351 = vadd.xlane.f32.xlu0 %v3327
        %v3352 = vpop.xlane.xlu0 %3351
        %3353 = vadd.xlane.f32.xlu0 %v3328
        %v3354 = vpop.xlane.xlu0 %3353
        %3355 = vadd.xlane.f32.xlu0 %v3329
        %v3356 = vpop.xlane.xlu0 %3355
        %3357 = vadd.xlane.f32.xlu0 %v3330
        %v3358 = vpop.xlane.xlu0 %3357
        %3359 = vadd.xlane.f32.xlu0 %v3331
        %v3360 = vpop.xlane.xlu0 %3359
        %3361 = vadd.xlane.f32.xlu0 %v3332
        %v3362 = vpop.xlane.xlu0 %3361
        %3363 = vadd.xlane.f32.xlu0 %v3333
        %v3364 = vpop.xlane.xlu0 %3363
        %3365 = vadd.xlane.f32.xlu0 %v3334
        %v3366 = vpop.xlane.xlu0 %3365
        %v3367 = vmul.f32 %v3336, %v423
        %v3368 = vmul.f32 %v3338, %v423
        %v3369 = vmul.f32 %v3340, %v423
        %v3370 = vmul.f32 %v3342, %v423
        %v3371 = vmul.f32 %v3344, %v423
        %v3372 = vmul.f32 %v3346, %v423
        %v3373 = vmul.f32 %v3348, %v423
        %v3374 = vmul.f32 %v3350, %v423
        %v3375 = vmul.f32 %v3352, %v423
        %v3376 = vmul.f32 %v3354, %v423
        %v3377 = vmul.f32 %v3356, %v423
        %v3378 = vmul.f32 %v3358, %v423
        %v3379 = vmul.f32 %v3360, %v423
        %v3380 = vmul.f32 %v3362, %v423
        %v3381 = vmul.f32 %v3364, %v423
        %v3382 = vmul.f32 %v3366, %v423
        %v3383 = vadd.f32 %v3367, 1e-12
        %v3384 = vadd.f32 %v3368, 1e-12
        %v3385 = vadd.f32 %v3369, 1e-12
        %v3386 = vadd.f32 %v3370, 1e-12
        %v3387 = vadd.f32 %v3371, 1e-12
        %v3388 = vadd.f32 %v3372, 1e-12
        %v3389 = vadd.f32 %v3373, 1e-12
        %v3390 = vadd.f32 %v3374, 1e-12
        %v3391 = vadd.f32 %v3375, 1e-12
        %v3392 = vadd.f32 %v3376, 1e-12
        %v3393 = vadd.f32 %v3377, 1e-12
        %v3394 = vadd.f32 %v3378, 1e-12
        %v3395 = vadd.f32 %v3379, 1e-12
        %v3396 = vadd.f32 %v3380, 1e-12
        %v3397 = vadd.f32 %v3381, 1e-12
        %v3398 = vadd.f32 %v3382, 1e-12
        %v3399 = vrsqrt.pop %v3383
        %v3400 = vrsqrt.pop %v3384
        %v3401 = vrsqrt.pop %v3385
        %v3402 = vrsqrt.pop %v3386
        %v3403 = vrsqrt.pop %v3387
        %v3404 = vrsqrt.pop %v3388
        %v3405 = vrsqrt.pop %v3389
        %v3406 = vrsqrt.pop %v3390
        %v3407 = vrsqrt.pop %v3391
        %v3408 = vrsqrt.pop %v3392
        %v3409 = vrsqrt.pop %v3393
        %v3410 = vrsqrt.pop %v3394
        %v3411 = vrsqrt.pop %v3395
        %v3412 = vrsqrt.pop %v3396
        %v3413 = vrsqrt.pop %v3397
        %v3414 = vrsqrt.pop %v3398
        %v3415 = vmul.f32 %v3303, %v3399
        %v3416 = vmul.f32 %v3304, %v3400
        %v3417 = vmul.f32 %v3305, %v3401
        %v3418 = vmul.f32 %v3306, %v3402
        %v3419 = vmul.f32 %v3307, %v3403
        %v3420 = vmul.f32 %v3308, %v3404
        %v3421 = vmul.f32 %v3309, %v3405
        %v3422 = vmul.f32 %v3310, %v3406
        %v3423 = vmul.f32 %v3311, %v3407
        %v3424 = vmul.f32 %v3312, %v3408
        %v3425 = vmul.f32 %v3313, %v3409
        %v3426 = vmul.f32 %v3314, %v3410
        %v3427 = vmul.f32 %v3315, %v3411
        %v3428 = vmul.f32 %v3316, %v3412
        %v3429 = vmul.f32 %v3317, %v3413
        %v3430 = vmul.f32 %v3318, %v3414
        %v3431 = vlaneseq
        %v3432 = vshrl.u32 %v3431, 7
        %v3433 = vsub.s32 4, %v3432
        %v3434 = vrot.slane %v608, %v3433
        %v3435 = vmul.f32 %v3415, %v3434
        %v3436 = vmul.f32 %v3416, %v3434
        %v3437 = vmul.f32 %v3417, %v3434
        %v3438 = vmul.f32 %v3418, %v3434
        %v3439 = vmul.f32 %v3419, %v3434
        %v3440 = vmul.f32 %v3420, %v3434
        %v3441 = vmul.f32 %v3421, %v3434
        %v3442 = vmul.f32 %v3422, %v3434
        %v3443 = vmul.f32 %v3423, %v3434
        %v3444 = vmul.f32 %v3424, %v3434
        %v3445 = vmul.f32 %v3425, %v3434
        %v3446 = vmul.f32 %v3426, %v3434
        %v3447 = vmul.f32 %v3427, %v3434
        %v3448 = vmul.f32 %v3428, %v3434
        %v3449 = vmul.f32 %v3429, %v3434
        %v3450 = vmul.f32 %v3430, %v3434
        %v3451 = vlaneseq
        %v3452 = vshrl.u32 %v3451, 7
        %v3453 = vsub.s32 5, %v3452
        %v3454 = vrot.slane %v608, %v3453
        %v3455 = vadd.f32 %v3435, %v3454
        %v3456 = vadd.f32 %v3436, %v3454
        %v3457 = vadd.f32 %v3437, %v3454
        %v3458 = vadd.f32 %v3438, %v3454
        %v3459 = vadd.f32 %v3439, %v3454
        %v3460 = vadd.f32 %v3440, %v3454
        %v3461 = vadd.f32 %v3441, %v3454
        %v3462 = vadd.f32 %v3442, %v3454
        %v3463 = vadd.f32 %v3443, %v3454
        %v3464 = vadd.f32 %v3444, %v3454
        %v3465 = vadd.f32 %v3445, %v3454
        %v3466 = vadd.f32 %v3446, %v3454
        %v3467 = vadd.f32 %v3447, %v3454
        %v3468 = vadd.f32 %v3448, %v3454
        %v3469 = vadd.f32 %v3449, %v3454
        %v3470 = vadd.f32 %v3450, %v3454
        %s3471 = scalar_lea.vmem %s9, 8
        %v3472 = vld [vmem:[%s3471] sm:$0x3f]
        %s3473 = scalar_lea.vmem %s4, 64
        %v3474 = vld [vmem:[%s3473] sm:$0xf]
        %v3475 = vld [vmem:[%s3473 + $0x4] sm:$0xf]
        %v3476 = vld [vmem:[%s3473 + $0x8] sm:$0xf]
        %v3477 = vld [vmem:[%s3473 + $0xc] sm:$0xf]
        %v3478 = vld [vmem:[%s3473 + $0x10] sm:$0xf]
        %v3479 = vld [vmem:[%s3473 + $0x14] sm:$0xf]
        %v3480 = vld [vmem:[%s3473 + $0x18] sm:$0xf]
        %v3481 = vld [vmem:[%s3473 + $0x1c] sm:$0xf]
        %v3482 = vld [vmem:[%s3473 + $0x20] sm:$0xf]
        %v3483 = vld [vmem:[%s3473 + $0x24] sm:$0xf]
        %v3484 = vld [vmem:[%s3473 + $0x28] sm:$0xf]
        %v3485 = vld [vmem:[%s3473 + $0x2c] sm:$0xf]
        %v3486 = vld [vmem:[%s3473 + $0x30] sm:$0xf]
        %v3487 = vld [vmem:[%s3473 + $0x34] sm:$0xf]
        %v3488 = vld [vmem:[%s3473 + $0x38] sm:$0xf]
        %v3489 = vld [vmem:[%s3473 + $0x3c] sm:$0xf]
        %v3490 = vpack.c.bf16 %v3456, %v3455
        %v3491 = vpack.c.bf16 %v3458, %v3457
        %v3492 = vpack.c.bf16 %v3460, %v3459
        %v3493 = vpack.c.bf16 %v3462, %v3461
        %v3494 = vpack.c.bf16 %v3464, %v3463
        %v3495 = vpack.c.bf16 %v3466, %v3465
        %v3496 = vpack.c.bf16 %v3468, %v3467
        %v3497 = vpack.c.bf16 %v3470, %v3469
        %s3498 = scalar_lea.vmem %s3, 192
        %v3499 = vld [vmem:[%s3498] sm:$0xff]
        %v3500 = vld [vmem:[%s3498 + $0x8] sm:$0xf]
        %v3501 = vld [vmem:[%s3498 + $0xc] sm:$0xff]
        %v3502 = vld [vmem:[%s3498 + $0x14] sm:$0xf]
        %v3503 = vld [vmem:[%s3498 + $0x18] sm:$0xff]
        %v3504 = vld [vmem:[%s3498 + $0x20] sm:$0xf]
        %v3505 = vld [vmem:[%s3498 + $0x24] sm:$0xff]
        %v3506 = vld [vmem:[%s3498 + $0x2c] sm:$0xf]
        %v3507 = vld [vmem:[%s3498 + $0x30] sm:$0xff]
        %v3508 = vld [vmem:[%s3498 + $0x38] sm:$0xf]
        %v3509 = vld [vmem:[%s3498 + $0x3c] sm:$0xff]
        %v3510 = vld [vmem:[%s3498 + $0x44] sm:$0xf]
        %v3511 = vld [vmem:[%s3498 + $0x48] sm:$0xff]
        %v3512 = vld [vmem:[%s3498 + $0x50] sm:$0xf]
        %v3513 = vld [vmem:[%s3498 + $0x54] sm:$0xff]
        %v3514 = vld [vmem:[%s3498 + $0x5c] sm:$0xf]
        %v3515 = vld [vmem:[%s3498 + $0x60] sm:$0xff]
        %v3516 = vld [vmem:[%s3498 + $0x68] sm:$0xf]
        %v3517 = vld [vmem:[%s3498 + $0x6c] sm:$0xff]
        %v3518 = vld [vmem:[%s3498 + $0x74] sm:$0xf]
        %v3519 = vld [vmem:[%s3498 + $0x78] sm:$0xff]
        %v3520 = vld [vmem:[%s3498 + $0x80] sm:$0xf]
        %v3521 = vld [vmem:[%s3498 + $0x84] sm:$0xff]
        %v3522 = vld [vmem:[%s3498 + $0x8c] sm:$0xf]
        %v3523 = vld [vmem:[%s3498 + $0x90] sm:$0xff]
        %v3524 = vld [vmem:[%s3498 + $0x98] sm:$0xf]
        %v3525 = vld [vmem:[%s3498 + $0x9c] sm:$0xff]
        %v3526 = vld [vmem:[%s3498 + $0xa4] sm:$0xf]
        %v3527 = vld [vmem:[%s3498 + $0xa8] sm:$0xff]
        %v3528 = vld [vmem:[%s3498 + $0xb0] sm:$0xf]
        %v3529 = vld [vmem:[%s3498 + $0xb4] sm:$0xff]
        %v3530 = vld [vmem:[%s3498 + $0xbc] sm:$0xf]
        %s3531 = scalar_lea.vmem %s7, 3
        %v3532 = vld [vmem:[%s3531] sm:$0x7]
        %v3534 = vlaneseq
        %v3535 = vshrl.u32 %v3534, 7
        %v3536 = vsub.s32 0, %v3535
        %v3537 = vrot.slane %v3532, %v3536
        %v3538 = vlaneseq
        %v3539 = vshrl.u32 %v3538, 7
        %v3540 = vsub.s32 1, %v3539
        %v3541 = vrot.slane %v3532, %v3540
        %v3542 = vlaneseq
        %v3543 = vshrl.u32 %v3542, 7
        %v3544 = vsub.s32 2, %v3543
        %v3545 = vrot.slane %v3532, %v3544
        %v3581 = vunpack.c.l.b16 %v3499
        %v3582 = vunpack.c.h.b16 %v3499
        %v3583 = vunpack.c.l.b16 %v3500
        %v3584 = vunpack.c.l.b16 %v3501
        %v3585 = vunpack.c.h.b16 %v3501
        %v3586 = vunpack.c.l.b16 %v3502
        %v3587 = vunpack.c.l.b16 %v3503
        %v3588 = vunpack.c.h.b16 %v3503
        %v3589 = vunpack.c.l.b16 %v3504
        %v3590 = vunpack.c.l.b16 %v3505
        %v3591 = vunpack.c.h.b16 %v3505
        %v3592 = vunpack.c.l.b16 %v3506
        %v3593 = vunpack.c.l.b16 %v3507
        %v3594 = vunpack.c.h.b16 %v3507
        %v3595 = vunpack.c.l.b16 %v3508
        %v3596 = vunpack.c.l.b16 %v3509
        %v3597 = vunpack.c.h.b16 %v3509
        %v3598 = vunpack.c.l.b16 %v3510
        %v3599 = vunpack.c.l.b16 %v3511
        %v3600 = vunpack.c.h.b16 %v3511
        %v3601 = vunpack.c.l.b16 %v3512
        %v3602 = vunpack.c.l.b16 %v3513
        %v3603 = vunpack.c.h.b16 %v3513
        %v3604 = vunpack.c.l.b16 %v3514
        %v3605 = vunpack.c.l.b16 %v3515
        %v3606 = vunpack.c.h.b16 %v3515
        %v3607 = vunpack.c.l.b16 %v3516
        %v3608 = vunpack.c.l.b16 %v3517
        %v3609 = vunpack.c.h.b16 %v3517
        %v3610 = vunpack.c.l.b16 %v3518
        %v3611 = vunpack.c.l.b16 %v3519
        %v3612 = vunpack.c.h.b16 %v3519
        %v3613 = vunpack.c.l.b16 %v3520
        %v3614 = vunpack.c.l.b16 %v3521
        %v3615 = vunpack.c.h.b16 %v3521
        %v3616 = vunpack.c.l.b16 %v3522
        %v3617 = vunpack.c.l.b16 %v3523
        %v3618 = vunpack.c.h.b16 %v3523
        %v3619 = vunpack.c.l.b16 %v3524
        %v3620 = vunpack.c.l.b16 %v3525
        %v3621 = vunpack.c.h.b16 %v3525
        %v3622 = vunpack.c.l.b16 %v3526
        %v3623 = vunpack.c.l.b16 %v3527
        %v3624 = vunpack.c.h.b16 %v3527
        %v3625 = vunpack.c.l.b16 %v3528
        %v3626 = vunpack.c.l.b16 %v3529
        %v3627 = vunpack.c.h.b16 %v3529
        %v3628 = vunpack.c.l.b16 %v3530
        %v3629 = vpack.c.b16 %v3584, %v3581
        %v3630 = vpack.c.b16 %v3585, %v3582
        %v3631 = vpack.c.b16 %v3586, %v3583
        %v3632 = vpack.c.b16 %v3590, %v3587
        %v3633 = vpack.c.b16 %v3591, %v3588
        %v3634 = vpack.c.b16 %v3592, %v3589
        %v3635 = vpack.c.b16 %v3596, %v3593
        %v3636 = vpack.c.b16 %v3597, %v3594
        %v3637 = vpack.c.b16 %v3598, %v3595
        %v3638 = vpack.c.b16 %v3602, %v3599
        %v3639 = vpack.c.b16 %v3603, %v3600
        %v3640 = vpack.c.b16 %v3604, %v3601
        %v3641 = vpack.c.b16 %v3608, %v3605
        %v3642 = vpack.c.b16 %v3609, %v3606
        %v3643 = vpack.c.b16 %v3610, %v3607
        %v3644 = vpack.c.b16 %v3614, %v3611
        %v3645 = vpack.c.b16 %v3615, %v3612
        %v3646 = vpack.c.b16 %v3616, %v3613
        %v3647 = vpack.c.b16 %v3620, %v3617
        %v3648 = vpack.c.b16 %v3621, %v3618
        %v3649 = vpack.c.b16 %v3622, %v3619
        %v3650 = vpack.c.b16 %v3626, %v3623
        %v3651 = vpack.c.b16 %v3627, %v3624
        %v3652 = vpack.c.b16 %v3628, %v3625
        %3677 = vmatprep.subr.bf16.mxu0 %v3630
        %3678 = vmatpush1.bf16.msra.mxu0 %v3629
        %3679 = vmatprep.subr.bf16.mxu0 %v3633
        %3680 = vmatpush1.bf16.msra.mxu0 %v3632
        %3681 = vmatprep.subr.bf16.mxu0 %v3636
        %3682 = vmatpush1.bf16.msra.mxu0 %v3635
        %3683 = vmatprep.subr.bf16.mxu0 %v3639
        %3684 = vmatpush1.bf16.msra.mxu0 %v3638
        %3685 = vmatprep.subr.bf16.mxu0 %v3642
        %3686 = vmatpush1.bf16.msra.mxu0 %v3641
        %3687 = vmatprep.subr.bf16.mxu0 %v3645
        %3688 = vmatpush1.bf16.msra.mxu0 %v3644
        %3689 = vmatprep.subr.bf16.mxu0 %v3648
        %3690 = vmatpush1.bf16.msra.mxu0 %v3647
        %3691 = vmatprep.subr.bf16.mxu0 %v3651
        %3692 = vmatpush1.bf16.msra.mxu0 %v3650
        %3693 = vmatprep.subr.bf16.mxu0 0
        %3694 = vmatpush1.bf16.msra.mxu0 0
        %3695 = vmatprep.subr.bf16.mxu0 0
        %3696 = vmatpush1.bf16.msra.mxu0 0
        %3697 = vmatprep.subr.bf16.mxu0 0
        %3698 = vmatpush1.bf16.msra.mxu0 0
        %3699 = vmatprep.subr.bf16.mxu0 0
        %3700 = vmatpush1.bf16.msra.mxu0 0
        %3701 = vmatprep.subr.bf16.mxu0 0
        %3702 = vmatpush1.bf16.msra.mxu0 0
        %3703 = vmatprep.subr.bf16.mxu0 0
        %3704 = vmatpush1.bf16.msra.mxu0 0
        %3705 = vmatprep.subr.bf16.mxu0 0
        %3706 = vmatpush1.bf16.msra.mxu0 0
        %3707 = vmatprep.subr.bf16.mxu0 0
        %3708 = vmatpush1.bf16.msra.mxu0 0
        %3709 = vmatprep.mubr.bf16.mxu0 0
        %3710 = vmatmul.mubr.bf16.gmra.mrb[0].mxu0 %v3490
        %v3711 = vpop.f32.mrb[0].mxu0
        %v3712 = vadd.f32 %v3537, %v3711
        %v3713 = vpop.f32.mrb[0].mxu0
        %v3714 = vadd.f32 %v3541, %v3713
        %v3715 = vpop.f32.mrb[0].mxu0
        %v3716 = vadd.f32 %v3537, %v3715
        %v3717 = vpop.f32.mrb[0].mxu0
        %v3718 = vadd.f32 %v3541, %v3717
        %3719 = vmatprep.mubr.bf16.mxu0 0
        %3720 = vmatmul.mubr.bf16.gmra.mrb[0].mxu0 %v3491
        %v3721 = vpop.f32.mrb[0].mxu0
        %v3722 = vadd.f32 %v3537, %v3721
        %v3723 = vpop.f32.mrb[0].mxu0
        %v3724 = vadd.f32 %v3541, %v3723
        %v3725 = vpop.f32.mrb[0].mxu0
        %v3726 = vadd.f32 %v3537, %v3725
        %v3727 = vpop.f32.mrb[0].mxu0
        %v3728 = vadd.f32 %v3541, %v3727
        %3729 = vmatprep.mubr.bf16.mxu0 0
        %3730 = vmatmul.mubr.bf16.gmra.mrb[0].mxu0 %v3492
        %v3731 = vpop.f32.mrb[0].mxu0
        %v3732 = vadd.f32 %v3537, %v3731
        %v3733 = vpop.f32.mrb[0].mxu0
        %v3734 = vadd.f32 %v3541, %v3733
        %v3735 = vpop.f32.mrb[0].mxu0
        %v3736 = vadd.f32 %v3537, %v3735
        %v3737 = vpop.f32.mrb[0].mxu0
        %v3738 = vadd.f32 %v3541, %v3737
        %3739 = vmatprep.mubr.bf16.mxu0 0
        %3740 = vmatmul.mubr.bf16.gmra.mrb[0].mxu0 %v3493
        %v3741 = vpop.f32.mrb[0].mxu0
        %v3742 = vadd.f32 %v3537, %v3741
        %v3743 = vpop.f32.mrb[0].mxu0
        %v3744 = vadd.f32 %v3541, %v3743
        %v3745 = vpop.f32.mrb[0].mxu0
        %v3746 = vadd.f32 %v3537, %v3745
        %v3747 = vpop.f32.mrb[0].mxu0
        %v3748 = vadd.f32 %v3541, %v3747
        %3749 = vmatprep.mubr.bf16.mxu0 0
        %3750 = vmatmul.mubr.bf16.gmra.mrb[0].mxu0 %v3494
        %v3751 = vpop.f32.mrb[0].mxu0
        %v3752 = vadd.f32 %v3537, %v3751
        %v3753 = vpop.f32.mrb[0].mxu0
        %v3754 = vadd.f32 %v3541, %v3753
        %v3755 = vpop.f32.mrb[0].mxu0
        %v3756 = vadd.f32 %v3537, %v3755
        %v3757 = vpop.f32.mrb[0].mxu0
        %v3758 = vadd.f32 %v3541, %v3757
        %3759 = vmatprep.mubr.bf16.mxu0 0
        %3760 = vmatmul.mubr.bf16.gmra.mrb[0].mxu0 %v3495
        %v3761 = vpop.f32.mrb[0].mxu0
        %v3762 = vadd.f32 %v3537, %v3761
        %v3763 = vpop.f32.mrb[0].mxu0
        %v3764 = vadd.f32 %v3541, %v3763
        %v3765 = vpop.f32.mrb[0].mxu0
        %v3766 = vadd.f32 %v3537, %v3765
        %v3767 = vpop.f32.mrb[0].mxu0
        %v3768 = vadd.f32 %v3541, %v3767
        %3769 = vmatprep.mubr.bf16.mxu0 0
        %3770 = vmatmul.mubr.bf16.gmra.mrb[0].mxu0 %v3496
        %v3771 = vpop.f32.mrb[0].mxu0
        %v3772 = vadd.f32 %v3537, %v3771
        %v3773 = vpop.f32.mrb[0].mxu0
        %v3774 = vadd.f32 %v3541, %v3773
        %v3775 = vpop.f32.mrb[0].mxu0
        %v3776 = vadd.f32 %v3537, %v3775
        %v3777 = vpop.f32.mrb[0].mxu0
        %v3778 = vadd.f32 %v3541, %v3777
        %3779 = vmatprep.mubr.bf16.mxu0 0
        %3780 = vmatmul.mubr.bf16.gmra.mrb[0].mxu0 %v3497
        %v3781 = vpop.f32.mrb[0].mxu0
        %v3782 = vadd.f32 %v3537, %v3781
        %v3783 = vpop.f32.mrb[0].mxu0
        %v3784 = vadd.f32 %v3541, %v3783
        %v3785 = vpop.f32.mrb[0].mxu0
        %v3786 = vadd.f32 %v3537, %v3785
        %v3787 = vpop.f32.mrb[0].mxu0
        %v3788 = vadd.f32 %v3541, %v3787
        %3789 = vdwg.mxu0
        %3790 = vmatprep.subr.bf16.mxu0 0
        %3791 = vmatpush1.bf16.msra.mxu0 %v3631
        %3792 = vmatprep.subr.bf16.mxu0 0
        %3793 = vmatpush1.bf16.msra.mxu0 %v3634
        %3794 = vmatprep.subr.bf16.mxu0 0
        %3795 = vmatpush1.bf16.msra.mxu0 %v3637
        %3796 = vmatprep.subr.bf16.mxu0 0
        %3797 = vmatpush1.bf16.msra.mxu0 %v3640
        %3798 = vmatprep.subr.bf16.mxu0 0
        %3799 = vmatpush1.bf16.msra.mxu0 %v3643
        %3800 = vmatprep.subr.bf16.mxu0 0
        %3801 = vmatpush1.bf16.msra.mxu0 %v3646
        %3802 = vmatprep.subr.bf16.mxu0 0
        %3803 = vmatpush1.bf16.msra.mxu0 %v3649
        %3804 = vmatprep.subr.bf16.mxu0 0
        %3805 = vmatpush1.bf16.msra.mxu0 %v3652
        %3806 = vmatprep.subr.bf16.mxu0 0
        %3807 = vmatpush1.bf16.msra.mxu0 0
        %3808 = vmatprep.subr.bf16.mxu0 0
        %3809 = vmatpush1.bf16.msra.mxu0 0
        %3810 = vmatprep.subr.bf16.mxu0 0
        %3811 = vmatpush1.bf16.msra.mxu0 0
        %3812 = vmatprep.subr.bf16.mxu0 0
        %3813 = vmatpush1.bf16.msra.mxu0 0
        %3814 = vmatprep.subr.bf16.mxu0 0
        %3815 = vmatpush1.bf16.msra.mxu0 0
        %3816 = vmatprep.subr.bf16.mxu0 0
        %3817 = vmatpush1.bf16.msra.mxu0 0
        %3818 = vmatprep.subr.bf16.mxu0 0
        %3819 = vmatpush1.bf16.msra.mxu0 0
        %3820 = vmatprep.subr.bf16.mxu0 0
        %3821 = vmatpush1.bf16.msra.mxu0 0
        %3822 = vmatprep.mubr.bf16.mxu0 0
        %3823 = vmatmul.mubr.bf16.gmra.mrb[0].mxu0 %v3490
        %v3824 = vpop.f32.mrb[0].mxu0
        %v3825 = vadd.f32 %v3545, %v3824
        %v3826 = vpop.f32.mrb[0].mxu0
        %v3827 = vpop.f32.mrb[0].mxu0
        %v3828 = vadd.f32 %v3545, %v3827
        %v3829 = vpop.f32.mrb[0].mxu0
        %3830 = vmatprep.mubr.bf16.mxu0 0
        %3831 = vmatmul.mubr.bf16.gmra.mrb[0].mxu0 %v3491
        %v3832 = vpop.f32.mrb[0].mxu0
        %v3833 = vadd.f32 %v3545, %v3832
        %v3834 = vpop.f32.mrb[0].mxu0
        %v3835 = vpop.f32.mrb[0].mxu0
        %v3836 = vadd.f32 %v3545, %v3835
        %v3837 = vpop.f32.mrb[0].mxu0
        %3838 = vmatprep.mubr.bf16.mxu0 0
        %3839 = vmatmul.mubr.bf16.gmra.mrb[0].mxu0 %v3492
        %v3840 = vpop.f32.mrb[0].mxu0
        %v3841 = vadd.f32 %v3545, %v3840
        %v3842 = vpop.f32.mrb[0].mxu0
        %v3843 = vpop.f32.mrb[0].mxu0
        %v3844 = vadd.f32 %v3545, %v3843
        %v3845 = vpop.f32.mrb[0].mxu0
        %3846 = vmatprep.mubr.bf16.mxu0 0
        %3847 = vmatmul.mubr.bf16.gmra.mrb[0].mxu0 %v3493
        %v3848 = vpop.f32.mrb[0].mxu0
        %v3849 = vadd.f32 %v3545, %v3848
        %v3850 = vpop.f32.mrb[0].mxu0
        %v3851 = vpop.f32.mrb[0].mxu0
        %v3852 = vadd.f32 %v3545, %v3851
        %v3853 = vpop.f32.mrb[0].mxu0
        %3854 = vmatprep.mubr.bf16.mxu0 0
        %3855 = vmatmul.mubr.bf16.gmra.mrb[0].mxu0 %v3494
        %v3856 = vpop.f32.mrb[0].mxu0
        %v3857 = vadd.f32 %v3545, %v3856
        %v3858 = vpop.f32.mrb[0].mxu0
        %v3859 = vpop.f32.mrb[0].mxu0
        %v3860 = vadd.f32 %v3545, %v3859
        %v3861 = vpop.f32.mrb[0].mxu0
        %3862 = vmatprep.mubr.bf16.mxu0 0
        %3863 = vmatmul.mubr.bf16.gmra.mrb[0].mxu0 %v3495
        %v3864 = vpop.f32.mrb[0].mxu0
        %v3865 = vadd.f32 %v3545, %v3864
        %v3866 = vpop.f32.mrb[0].mxu0
        %v3867 = vpop.f32.mrb[0].mxu0
        %v3868 = vadd.f32 %v3545, %v3867
        %v3869 = vpop.f32.mrb[0].mxu0
        %3870 = vmatprep.mubr.bf16.mxu0 0
        %3871 = vmatmul.mubr.bf16.gmra.mrb[0].mxu0 %v3496
        %v3872 = vpop.f32.mrb[0].mxu0
        %v3873 = vadd.f32 %v3545, %v3872
        %v3874 = vpop.f32.mrb[0].mxu0
        %v3875 = vpop.f32.mrb[0].mxu0
        %v3876 = vadd.f32 %v3545, %v3875
        %v3877 = vpop.f32.mrb[0].mxu0
        %3878 = vmatprep.mubr.bf16.mxu0 0
        %3879 = vmatmul.mubr.bf16.gmra.mrb[0].mxu0 %v3497
        %v3880 = vpop.f32.mrb[0].mxu0
        %v3881 = vadd.f32 %v3545, %v3880
        %v3882 = vpop.f32.mrb[0].mxu0
        %v3883 = vpop.f32.mrb[0].mxu0
        %v3884 = vadd.f32 %v3545, %v3883
        %v3885 = vpop.f32.mrb[0].mxu0
        %3886 = vdwg.mxu0
        %v3887 = vpack.c.bf16 %v3716, %v3712
        %v3888 = vpack.c.bf16 %v3726, %v3722
        %v3889 = vpack.c.bf16 %v3736, %v3732
        %v3890 = vpack.c.bf16 %v3746, %v3742
        %v3891 = vpack.c.bf16 %v3756, %v3752
        %v3892 = vpack.c.bf16 %v3766, %v3762
        %v3893 = vpack.c.bf16 %v3776, %v3772
        %v3894 = vpack.c.bf16 %v3786, %v3782
        %v3895 = vpack.c.bf16 %v3718, %v3714
        %v3896 = vpack.c.bf16 %v3728, %v3724
        %v3897 = vpack.c.bf16 %v3738, %v3734
        %v3898 = vpack.c.bf16 %v3748, %v3744
        %v3899 = vpack.c.bf16 %v3758, %v3754
        %v3900 = vpack.c.bf16 %v3768, %v3764
        %v3901 = vpack.c.bf16 %v3778, %v3774
        %v3902 = vpack.c.bf16 %v3788, %v3784
        %v3904 = vsel %vm1042, %v3887, 0
        %v3907 = vsel %vm1042, %v3888, 0
        %v3910 = vsel %vm1042, %v3889, 0
        %v3913 = vsel %vm1042, %v3890, 0
        %v3916 = vsel %vm1042, %v3891, 0
        %v3919 = vsel %vm1042, %v3892, 0
        %v3922 = vsel %vm1042, %v3893, 0
        %v3925 = vsel %vm1042, %v3894, 0
        %v3928 = vsel %vm1042, %v3895, 0
        %v3931 = vsel %vm1042, %v3896, 0
        %v3934 = vsel %vm1042, %v3897, 0
        %v3937 = vsel %vm1042, %v3898, 0
        %v3940 = vsel %vm1042, %v3899, 0
        %v3943 = vsel %vm1042, %v3900, 0
        %v3946 = vsel %vm1042, %v3901, 0
        %v3949 = vsel %vm1042, %v3902, 0
        %3951 = vmatprep.subr.bf16.mxu0 0
        %3952 = vmatpush1.bf16.xpose.msra.mxu0 %v3928
        %3953 = vmatprep.subr.bf16.mxu0 0
        %3954 = vmatpush1.bf16.xpose.msra.mxu0 %v3931
        %3955 = vmatprep.subr.bf16.mxu0 0
        %3956 = vmatpush1.bf16.xpose.msra.mxu0 %v3934
        %3957 = vmatprep.subr.bf16.mxu0 0
        %3958 = vmatpush1.bf16.xpose.msra.mxu0 %v3937
        %3959 = vmatprep.subr.bf16.mxu0 0
        %3960 = vmatpush1.bf16.xpose.msra.mxu0 %v3940
        %3961 = vmatprep.subr.bf16.mxu0 0
        %3962 = vmatpush1.bf16.xpose.msra.mxu0 %v3943
        %3963 = vmatprep.subr.bf16.mxu0 0
        %3964 = vmatpush1.bf16.xpose.msra.mxu0 %v3946
        %3965 = vmatprep.subr.bf16.mxu0 0
        %3966 = vmatpush1.bf16.xpose.msra.mxu0 %v3949
        %3967 = vmatprep.subr.bf16.mxu0 0
        %3968 = vmatpush1.bf16.xpose.msra.mxu0 0
        %3969 = vmatprep.subr.bf16.mxu0 0
        %3970 = vmatpush1.bf16.xpose.msra.mxu0 0
        %3971 = vmatprep.subr.bf16.mxu0 0
        %3972 = vmatpush1.bf16.xpose.msra.mxu0 0
        %3973 = vmatprep.subr.bf16.mxu0 0
        %3974 = vmatpush1.bf16.xpose.msra.mxu0 0
        %3975 = vmatprep.subr.bf16.mxu0 0
        %3976 = vmatpush1.bf16.xpose.msra.mxu0 0
        %3977 = vmatprep.subr.bf16.mxu0 0
        %3978 = vmatpush1.bf16.xpose.msra.mxu0 0
        %3979 = vmatprep.subr.bf16.mxu0 0
        %3980 = vmatpush1.bf16.xpose.msra.mxu0 0
        %3981 = vmatprep.subr.bf16.mxu0 0
        %3982 = vmatpush1.bf16.xpose.msra.mxu0 0
        %3983 = vmatprep.mubr.bf16.mxu0 0
        %3984 = vmatmul.mubr.bf16.gmra.mrb[0].mxu0 %v3904
        %v3985 = vpop.f32.mrb[0].mxu0
        %v3986 = vadd.f32 %v1040, %v3985
        %v3987 = vpop.f32.mrb[0].mxu0
        %v3988 = vpop.f32.mrb[0].mxu0
        %v3989 = vadd.f32 %v1040, %v3988
        %v3990 = vpop.f32.mrb[0].mxu0
        %3991 = vmatprep.mubr.bf16.mxu0 0
        %3992 = vmatmul.mubr.bf16.gmra.mrb[0].mxu0 %v3907
        %v3993 = vpop.f32.mrb[0].mxu0
        %v3994 = vadd.f32 %v1040, %v3993
        %v3995 = vpop.f32.mrb[0].mxu0
        %v3996 = vpop.f32.mrb[0].mxu0
        %v3997 = vadd.f32 %v1040, %v3996
        %v3998 = vpop.f32.mrb[0].mxu0
        %3999 = vmatprep.mubr.bf16.mxu0 0
        %4000 = vmatmul.mubr.bf16.gmra.mrb[0].mxu0 %v3910
        %v4001 = vpop.f32.mrb[0].mxu0
        %v4002 = vadd.f32 %v1040, %v4001
        %v4003 = vpop.f32.mrb[0].mxu0
        %v4004 = vpop.f32.mrb[0].mxu0
        %v4005 = vadd.f32 %v1040, %v4004
        %v4006 = vpop.f32.mrb[0].mxu0
        %4007 = vmatprep.mubr.bf16.mxu0 0
        %4008 = vmatmul.mubr.bf16.gmra.mrb[0].mxu0 %v3913
        %v4009 = vpop.f32.mrb[0].mxu0
        %v4010 = vadd.f32 %v1040, %v4009
        %v4011 = vpop.f32.mrb[0].mxu0
        %v4012 = vpop.f32.mrb[0].mxu0
        %v4013 = vadd.f32 %v1040, %v4012
        %v4014 = vpop.f32.mrb[0].mxu0
        %4015 = vmatprep.mubr.bf16.mxu0 0
        %4016 = vmatmul.mubr.bf16.gmra.mrb[0].mxu0 %v3916
        %v4017 = vpop.f32.mrb[0].mxu0
        %v4018 = vadd.f32 %v1040, %v4017
        %v4019 = vpop.f32.mrb[0].mxu0
        %v4020 = vpop.f32.mrb[0].mxu0
        %v4021 = vadd.f32 %v1040, %v4020
        %v4022 = vpop.f32.mrb[0].mxu0
        %4023 = vmatprep.mubr.bf16.mxu0 0
        %4024 = vmatmul.mubr.bf16.gmra.mrb[0].mxu0 %v3919
        %v4025 = vpop.f32.mrb[0].mxu0
        %v4026 = vadd.f32 %v1040, %v4025
        %v4027 = vpop.f32.mrb[0].mxu0
        %v4028 = vpop.f32.mrb[0].mxu0
        %v4029 = vadd.f32 %v1040, %v4028
        %v4030 = vpop.f32.mrb[0].mxu0
        %4031 = vmatprep.mubr.bf16.mxu0 0
        %4032 = vmatmul.mubr.bf16.gmra.mrb[0].mxu0 %v3922
        %v4033 = vpop.f32.mrb[0].mxu0
        %v4034 = vadd.f32 %v1040, %v4033
        %v4035 = vpop.f32.mrb[0].mxu0
        %v4036 = vpop.f32.mrb[0].mxu0
        %v4037 = vadd.f32 %v1040, %v4036
        %v4038 = vpop.f32.mrb[0].mxu0
        %4039 = vmatprep.mubr.bf16.mxu0 0
        %4040 = vmatmul.mubr.bf16.gmra.mrb[0].mxu0 %v3925
        %v4041 = vpop.f32.mrb[0].mxu0
        %v4042 = vadd.f32 %v1040, %v4041
        %v4043 = vpop.f32.mrb[0].mxu0
        %v4044 = vpop.f32.mrb[0].mxu0
        %v4045 = vadd.f32 %v1040, %v4044
        %v4046 = vpop.f32.mrb[0].mxu0
        %4047 = vdwg.mxu0
        %4048 = vmax.xlane.f32.xlu0 %v3986
        %v4049 = vpop.xlane.xlu0 %4048
        %4050 = vmax.xlane.f32.xlu0 %v3989
        %v4051 = vpop.xlane.xlu0 %4050
        %4052 = vmax.xlane.f32.xlu0 %v3994
        %v4053 = vpop.xlane.xlu0 %4052
        %4054 = vmax.xlane.f32.xlu0 %v3997
        %v4055 = vpop.xlane.xlu0 %4054
        %4056 = vmax.xlane.f32.xlu0 %v4002
        %v4057 = vpop.xlane.xlu0 %4056
        %4058 = vmax.xlane.f32.xlu0 %v4005
        %v4059 = vpop.xlane.xlu0 %4058
        %4060 = vmax.xlane.f32.xlu0 %v4010
        %v4061 = vpop.xlane.xlu0 %4060
        %4062 = vmax.xlane.f32.xlu0 %v4013
        %v4063 = vpop.xlane.xlu0 %4062
        %4064 = vmax.xlane.f32.xlu0 %v4018
        %v4065 = vpop.xlane.xlu0 %4064
        %4066 = vmax.xlane.f32.xlu0 %v4021
        %v4067 = vpop.xlane.xlu0 %4066
        %4068 = vmax.xlane.f32.xlu0 %v4026
        %v4069 = vpop.xlane.xlu0 %4068
        %4070 = vmax.xlane.f32.xlu0 %v4029
        %v4071 = vpop.xlane.xlu0 %4070
        %4072 = vmax.xlane.f32.xlu0 %v4034
        %v4073 = vpop.xlane.xlu0 %4072
        %4074 = vmax.xlane.f32.xlu0 %v4037
        %v4075 = vpop.xlane.xlu0 %4074
        %4076 = vmax.xlane.f32.xlu0 %v4042
        %v4077 = vpop.xlane.xlu0 %4076
        %4078 = vmax.xlane.f32.xlu0 %v4045
        %v4079 = vpop.xlane.xlu0 %4078
        %v4080 = vsub.f32 %v3986, %v4049
        %v4081 = vsub.f32 %v3989, %v4051
        %v4082 = vsub.f32 %v3994, %v4053
        %v4083 = vsub.f32 %v3997, %v4055
        %v4084 = vsub.f32 %v4002, %v4057
        %v4085 = vsub.f32 %v4005, %v4059
        %v4086 = vsub.f32 %v4010, %v4061
        %v4087 = vsub.f32 %v4013, %v4063
        %v4088 = vsub.f32 %v4018, %v4065
        %v4089 = vsub.f32 %v4021, %v4067
        %v4090 = vsub.f32 %v4026, %v4069
        %v4091 = vsub.f32 %v4029, %v4071
        %v4092 = vsub.f32 %v4034, %v4073
        %v4093 = vsub.f32 %v4037, %v4075
        %v4094 = vsub.f32 %v4042, %v4077
        %v4095 = vsub.f32 %v4045, %v4079
        %v4096 = vmul.f32 %v4080, 1.442695
        %v4097 = vpow.pop %v4096
        %v4098 = vmul.f32 %v4081, 1.442695
        %v4099 = vpow.pop %v4098
        %v4100 = vmul.f32 %v4082, 1.442695
        %v4101 = vpow.pop %v4100
        %v4102 = vmul.f32 %v4083, 1.442695
        %v4103 = vpow.pop %v4102
        %v4104 = vmul.f32 %v4084, 1.442695
        %v4105 = vpow.pop %v4104
        %v4106 = vmul.f32 %v4085, 1.442695
        %v4107 = vpow.pop %v4106
        %v4108 = vmul.f32 %v4086, 1.442695
        %v4109 = vpow.pop %v4108
        %v4110 = vmul.f32 %v4087, 1.442695
        %v4111 = vpow.pop %v4110
        %v4112 = vmul.f32 %v4088, 1.442695
        %v4113 = vpow.pop %v4112
        %v4114 = vmul.f32 %v4089, 1.442695
        %v4115 = vpow.pop %v4114
        %v4116 = vmul.f32 %v4090, 1.442695
        %v4117 = vpow.pop %v4116
        %v4118 = vmul.f32 %v4091, 1.442695
        %v4119 = vpow.pop %v4118
        %v4120 = vmul.f32 %v4092, 1.442695
        %v4121 = vpow.pop %v4120
        %v4122 = vmul.f32 %v4093, 1.442695
        %v4123 = vpow.pop %v4122
        %v4124 = vmul.f32 %v4094, 1.442695
        %v4125 = vpow.pop %v4124
        %v4126 = vmul.f32 %v4095, 1.442695
        %v4127 = vpow.pop %v4126
        %4128 = vadd.xlane.f32.xlu0 %v4097
        %v4129 = vpop.xlane.xlu0 %4128
        %4130 = vadd.xlane.f32.xlu0 %v4099
        %v4131 = vpop.xlane.xlu0 %4130
        %4132 = vadd.xlane.f32.xlu0 %v4101
        %v4133 = vpop.xlane.xlu0 %4132
        %4134 = vadd.xlane.f32.xlu0 %v4103
        %v4135 = vpop.xlane.xlu0 %4134
        %4136 = vadd.xlane.f32.xlu0 %v4105
        %v4137 = vpop.xlane.xlu0 %4136
        %4138 = vadd.xlane.f32.xlu0 %v4107
        %v4139 = vpop.xlane.xlu0 %4138
        %4140 = vadd.xlane.f32.xlu0 %v4109
        %v4141 = vpop.xlane.xlu0 %4140
        %4142 = vadd.xlane.f32.xlu0 %v4111
        %v4143 = vpop.xlane.xlu0 %4142
        %4144 = vadd.xlane.f32.xlu0 %v4113
        %v4145 = vpop.xlane.xlu0 %4144
        %4146 = vadd.xlane.f32.xlu0 %v4115
        %v4147 = vpop.xlane.xlu0 %4146
        %4148 = vadd.xlane.f32.xlu0 %v4117
        %v4149 = vpop.xlane.xlu0 %4148
        %4150 = vadd.xlane.f32.xlu0 %v4119
        %v4151 = vpop.xlane.xlu0 %4150
        %4152 = vadd.xlane.f32.xlu0 %v4121
        %v4153 = vpop.xlane.xlu0 %4152
        %4154 = vadd.xlane.f32.xlu0 %v4123
        %v4155 = vpop.xlane.xlu0 %4154
        %4156 = vadd.xlane.f32.xlu0 %v4125
        %v4157 = vpop.xlane.xlu0 %4156
        %4158 = vadd.xlane.f32.xlu0 %v4127
        %v4159 = vpop.xlane.xlu0 %4158
        %v4160 = vrcp.pop %v4129
        %v4161 = vrcp.pop %v4131
        %v4162 = vrcp.pop %v4133
        %v4163 = vrcp.pop %v4135
        %v4164 = vrcp.pop %v4137
        %v4165 = vrcp.pop %v4139
        %v4166 = vrcp.pop %v4141
        %v4167 = vrcp.pop %v4143
        %v4168 = vrcp.pop %v4145
        %v4169 = vrcp.pop %v4147
        %v4170 = vrcp.pop %v4149
        %v4171 = vrcp.pop %v4151
        %v4172 = vrcp.pop %v4153
        %v4173 = vrcp.pop %v4155
        %v4174 = vrcp.pop %v4157
        %v4175 = vrcp.pop %v4159
        %v4176 = vmul.f32 %v4097, %v4160
        %v4177 = vmul.f32 %v4099, %v4161
        %v4178 = vmul.f32 %v4101, %v4162
        %v4179 = vmul.f32 %v4103, %v4163
        %v4180 = vmul.f32 %v4105, %v4164
        %v4181 = vmul.f32 %v4107, %v4165
        %v4182 = vmul.f32 %v4109, %v4166
        %v4183 = vmul.f32 %v4111, %v4167
        %v4184 = vmul.f32 %v4113, %v4168
        %v4185 = vmul.f32 %v4115, %v4169
        %v4186 = vmul.f32 %v4117, %v4170
        %v4187 = vmul.f32 %v4119, %v4171
        %v4188 = vmul.f32 %v4121, %v4172
        %v4189 = vmul.f32 %v4123, %v4173
        %v4190 = vmul.f32 %v4125, %v4174
        %v4191 = vmul.f32 %v4127, %v4175
        %v4192 = vpack.c.bf16 %v4177, %v4176
        %v4193 = vpack.c.bf16 %v4179, %v4178
        %v4194 = vpack.c.bf16 %v4181, %v4180
        %v4195 = vpack.c.bf16 %v4183, %v4182
        %v4196 = vpack.c.bf16 %v4185, %v4184
        %v4197 = vpack.c.bf16 %v4187, %v4186
        %v4198 = vpack.c.bf16 %v4189, %v4188
        %v4199 = vpack.c.bf16 %v4191, %v4190
        %v4200 = vpack.c.bf16 %v3828, %v3825
        %v4201 = vpack.c.bf16 %v3836, %v3833
        %v4202 = vpack.c.bf16 %v3844, %v3841
        %v4203 = vpack.c.bf16 %v3852, %v3849
        %v4204 = vpack.c.bf16 %v3860, %v3857
        %v4205 = vpack.c.bf16 %v3868, %v3865
        %v4206 = vpack.c.bf16 %v3876, %v3873
        %v4207 = vpack.c.bf16 %v3884, %v3881
        %4208 = vmatprep.subr.bf16.mxu0 0
        %4209 = vmatpush1.bf16.msra.mxu0 %v4200
        %4210 = vmatprep.subr.bf16.mxu0 0
        %4211 = vmatpush1.bf16.msra.mxu0 %v4201
        %4212 = vmatprep.subr.bf16.mxu0 0
        %4213 = vmatpush1.bf16.msra.mxu0 %v4202
        %4214 = vmatprep.subr.bf16.mxu0 0
        %4215 = vmatpush1.bf16.msra.mxu0 %v4203
        %4216 = vmatprep.subr.bf16.mxu0 0
        %4217 = vmatpush1.bf16.msra.mxu0 %v4204
        %4218 = vmatprep.subr.bf16.mxu0 0
        %4219 = vmatpush1.bf16.msra.mxu0 %v4205
        %4220 = vmatprep.subr.bf16.mxu0 0
        %4221 = vmatpush1.bf16.msra.mxu0 %v4206
        %4222 = vmatprep.subr.bf16.mxu0 0
        %4223 = vmatpush1.bf16.msra.mxu0 %v4207
        %4224 = vmatprep.subr.bf16.mxu0 0
        %4225 = vmatpush1.bf16.msra.mxu0 0
        %4226 = vmatprep.subr.bf16.mxu0 0
        %4227 = vmatpush1.bf16.msra.mxu0 0
        %4228 = vmatprep.subr.bf16.mxu0 0
        %4229 = vmatpush1.bf16.msra.mxu0 0
        %4230 = vmatprep.subr.bf16.mxu0 0
        %4231 = vmatpush1.bf16.msra.mxu0 0
        %4232 = vmatprep.subr.bf16.mxu0 0
        %4233 = vmatpush1.bf16.msra.mxu0 0
        %4234 = vmatprep.subr.bf16.mxu0 0
        %4235 = vmatpush1.bf16.msra.mxu0 0
        %4236 = vmatprep.subr.bf16.mxu0 0
        %4237 = vmatpush1.bf16.msra.mxu0 0
        %4238 = vmatprep.subr.bf16.mxu0 0
        %4239 = vmatpush1.bf16.msra.mxu0 0
        %4240 = vmatprep.mubr.bf16.mxu0 0
        %4241 = vmatmul.mubr.bf16.gmra.mrb[0].mxu0 %v4192
        %v4242 = vpop.f32.mrb[0].mxu0
        %v4243 = vadd.f32 0.0, %v4242
        %v4244 = vpop.f32.mrb[0].mxu0
        %v4245 = vpop.f32.mrb[0].mxu0
        %v4246 = vadd.f32 0.0, %v4245
        %v4247 = vpop.f32.mrb[0].mxu0
        %4248 = vmatprep.mubr.bf16.mxu0 0
        %4249 = vmatmul.mubr.bf16.gmra.mrb[0].mxu0 %v4193
        %v4250 = vpop.f32.mrb[0].mxu0
        %v4251 = vadd.f32 0.0, %v4250
        %v4252 = vpop.f32.mrb[0].mxu0
        %v4253 = vpop.f32.mrb[0].mxu0
        %v4254 = vadd.f32 0.0, %v4253
        %v4255 = vpop.f32.mrb[0].mxu0
        %4256 = vmatprep.mubr.bf16.mxu0 0
        %4257 = vmatmul.mubr.bf16.gmra.mrb[0].mxu0 %v4194
        %v4258 = vpop.f32.mrb[0].mxu0
        %v4259 = vadd.f32 0.0, %v4258
        %v4260 = vpop.f32.mrb[0].mxu0
        %v4261 = vpop.f32.mrb[0].mxu0
        %v4262 = vadd.f32 0.0, %v4261
        %v4263 = vpop.f32.mrb[0].mxu0
        %4264 = vmatprep.mubr.bf16.mxu0 0
        %4265 = vmatmul.mubr.bf16.gmra.mrb[0].mxu0 %v4195
        %v4266 = vpop.f32.mrb[0].mxu0
        %v4267 = vadd.f32 0.0, %v4266
        %v4268 = vpop.f32.mrb[0].mxu0
        %v4269 = vpop.f32.mrb[0].mxu0
        %v4270 = vadd.f32 0.0, %v4269
        %v4271 = vpop.f32.mrb[0].mxu0
        %4272 = vmatprep.mubr.bf16.mxu0 0
        %4273 = vmatmul.mubr.bf16.gmra.mrb[0].mxu0 %v4196
        %v4274 = vpop.f32.mrb[0].mxu0
        %v4275 = vadd.f32 0.0, %v4274
        %v4276 = vpop.f32.mrb[0].mxu0
        %v4277 = vpop.f32.mrb[0].mxu0
        %v4278 = vadd.f32 0.0, %v4277
        %v4279 = vpop.f32.mrb[0].mxu0
        %4280 = vmatprep.mubr.bf16.mxu0 0
        %4281 = vmatmul.mubr.bf16.gmra.mrb[0].mxu0 %v4197
        %v4282 = vpop.f32.mrb[0].mxu0
        %v4283 = vadd.f32 0.0, %v4282
        %v4284 = vpop.f32.mrb[0].mxu0
        %v4285 = vpop.f32.mrb[0].mxu0
        %v4286 = vadd.f32 0.0, %v4285
        %v4287 = vpop.f32.mrb[0].mxu0
        %4288 = vmatprep.mubr.bf16.mxu0 0
        %4289 = vmatmul.mubr.bf16.gmra.mrb[0].mxu0 %v4198
        %v4290 = vpop.f32.mrb[0].mxu0
        %v4291 = vadd.f32 0.0, %v4290
        %v4292 = vpop.f32.mrb[0].mxu0
        %v4293 = vpop.f32.mrb[0].mxu0
        %v4294 = vadd.f32 0.0, %v4293
        %v4295 = vpop.f32.mrb[0].mxu0
        %4296 = vmatprep.mubr.bf16.mxu0 0
        %4297 = vmatmul.mubr.bf16.gmra.mrb[0].mxu0 %v4199
        %v4298 = vpop.f32.mrb[0].mxu0
        %v4299 = vadd.f32 0.0, %v4298
        %v4300 = vpop.f32.mrb[0].mxu0
        %v4301 = vpop.f32.mrb[0].mxu0
        %v4302 = vadd.f32 0.0, %v4301
        %v4303 = vpop.f32.mrb[0].mxu0
        %4304 = vdwg.mxu0
        %v4305 = vpack.c.bf16 %v4246, %v4243
        %v4306 = vpack.c.bf16 %v4254, %v4251
        %v4307 = vpack.c.bf16 %v4262, %v4259
        %v4308 = vpack.c.bf16 %v4270, %v4267
        %v4309 = vpack.c.bf16 %v4278, %v4275
        %v4310 = vpack.c.bf16 %v4286, %v4283
        %v4311 = vpack.c.bf16 %v4294, %v4291
        %v4312 = vpack.c.bf16 %v4302, %v4299
        %4321 = vrot.lane.b32.xlu0 %v3887, 64
        %v4322 = vpop.permute.xlu0 %4321
        %4323 = vrot.lane.b32.xlu0 %v3888, 64
        %v4324 = vpop.permute.xlu0 %4323
        %4325 = vrot.lane.b32.xlu0 %v3889, 64
        %v4326 = vpop.permute.xlu0 %4325
        %4327 = vrot.lane.b32.xlu0 %v3890, 64
        %v4328 = vpop.permute.xlu0 %4327
        %4329 = vrot.lane.b32.xlu0 %v3891, 64
        %v4330 = vpop.permute.xlu0 %4329
        %4331 = vrot.lane.b32.xlu0 %v3892, 64
        %v4332 = vpop.permute.xlu0 %4331
        %4333 = vrot.lane.b32.xlu0 %v3893, 64
        %v4334 = vpop.permute.xlu0 %4333
        %4335 = vrot.lane.b32.xlu0 %v3894, 64
        %v4336 = vpop.permute.xlu0 %4335
        %4345 = vrot.lane.b32.xlu0 %v3895, 64
        %v4346 = vpop.permute.xlu0 %4345
        %4347 = vrot.lane.b32.xlu0 %v3896, 64
        %v4348 = vpop.permute.xlu0 %4347
        %4349 = vrot.lane.b32.xlu0 %v3897, 64
        %v4350 = vpop.permute.xlu0 %4349
        %4351 = vrot.lane.b32.xlu0 %v3898, 64
        %v4352 = vpop.permute.xlu0 %4351
        %4353 = vrot.lane.b32.xlu0 %v3899, 64
        %v4354 = vpop.permute.xlu0 %4353
        %4355 = vrot.lane.b32.xlu0 %v3900, 64
        %v4356 = vpop.permute.xlu0 %4355
        %4357 = vrot.lane.b32.xlu0 %v3901, 64
        %v4358 = vpop.permute.xlu0 %4357
        %4359 = vrot.lane.b32.xlu0 %v3902, 64
        %v4360 = vpop.permute.xlu0 %4359
        %v4362 = vsel %vm1042, %v4322, 0
        %v4365 = vsel %vm1042, %v4324, 0
        %v4368 = vsel %vm1042, %v4326, 0
        %v4371 = vsel %vm1042, %v4328, 0
        %v4374 = vsel %vm1042, %v4330, 0
        %v4377 = vsel %vm1042, %v4332, 0
        %v4380 = vsel %vm1042, %v4334, 0
        %v4383 = vsel %vm1042, %v4336, 0
        %v4386 = vsel %vm1042, %v4346, 0
        %v4389 = vsel %vm1042, %v4348, 0
        %v4392 = vsel %vm1042, %v4350, 0
        %v4395 = vsel %vm1042, %v4352, 0
        %v4398 = vsel %vm1042, %v4354, 0
        %v4401 = vsel %vm1042, %v4356, 0
        %v4404 = vsel %vm1042, %v4358, 0
        %v4407 = vsel %vm1042, %v4360, 0
        %4409 = vmatprep.subr.bf16.mxu0 0
        %4410 = vmatpush1.bf16.xpose.msra.mxu0 %v4386
        %4411 = vmatprep.subr.bf16.mxu0 0
        %4412 = vmatpush1.bf16.xpose.msra.mxu0 %v4389
        %4413 = vmatprep.subr.bf16.mxu0 0
        %4414 = vmatpush1.bf16.xpose.msra.mxu0 %v4392
        %4415 = vmatprep.subr.bf16.mxu0 0
        %4416 = vmatpush1.bf16.xpose.msra.mxu0 %v4395
        %4417 = vmatprep.subr.bf16.mxu0 0
        %4418 = vmatpush1.bf16.xpose.msra.mxu0 %v4398
        %4419 = vmatprep.subr.bf16.mxu0 0
        %4420 = vmatpush1.bf16.xpose.msra.mxu0 %v4401
        %4421 = vmatprep.subr.bf16.mxu0 0
        %4422 = vmatpush1.bf16.xpose.msra.mxu0 %v4404
        %4423 = vmatprep.subr.bf16.mxu0 0
        %4424 = vmatpush1.bf16.xpose.msra.mxu0 %v4407
        %4425 = vmatprep.subr.bf16.mxu0 0
        %4426 = vmatpush1.bf16.xpose.msra.mxu0 0
        %4427 = vmatprep.subr.bf16.mxu0 0
        %4428 = vmatpush1.bf16.xpose.msra.mxu0 0
        %4429 = vmatprep.subr.bf16.mxu0 0
        %4430 = vmatpush1.bf16.xpose.msra.mxu0 0
        %4431 = vmatprep.subr.bf16.mxu0 0
        %4432 = vmatpush1.bf16.xpose.msra.mxu0 0
        %4433 = vmatprep.subr.bf16.mxu0 0
        %4434 = vmatpush1.bf16.xpose.msra.mxu0 0
        %4435 = vmatprep.subr.bf16.mxu0 0
        %4436 = vmatpush1.bf16.xpose.msra.mxu0 0
        %4437 = vmatprep.subr.bf16.mxu0 0
        %4438 = vmatpush1.bf16.xpose.msra.mxu0 0
        %4439 = vmatprep.subr.bf16.mxu0 0
        %4440 = vmatpush1.bf16.xpose.msra.mxu0 0
        %4441 = vmatprep.mubr.bf16.mxu0 0
        %4442 = vmatmul.mubr.bf16.gmra.mrb[0].mxu0 %v4362
        %v4443 = vpop.f32.mrb[0].mxu0
        %v4444 = vadd.f32 %v1040, %v4443
        %v4445 = vpop.f32.mrb[0].mxu0
        %v4446 = vpop.f32.mrb[0].mxu0
        %v4447 = vadd.f32 %v1040, %v4446
        %v4448 = vpop.f32.mrb[0].mxu0
        %4449 = vmatprep.mubr.bf16.mxu0 0
        %4450 = vmatmul.mubr.bf16.gmra.mrb[0].mxu0 %v4365
        %v4451 = vpop.f32.mrb[0].mxu0
        %v4452 = vadd.f32 %v1040, %v4451
        %v4453 = vpop.f32.mrb[0].mxu0
        %v4454 = vpop.f32.mrb[0].mxu0
        %v4455 = vadd.f32 %v1040, %v4454
        %v4456 = vpop.f32.mrb[0].mxu0
        %4457 = vmatprep.mubr.bf16.mxu0 0
        %4458 = vmatmul.mubr.bf16.gmra.mrb[0].mxu0 %v4368
        %v4459 = vpop.f32.mrb[0].mxu0
        %v4460 = vadd.f32 %v1040, %v4459
        %v4461 = vpop.f32.mrb[0].mxu0
        %v4462 = vpop.f32.mrb[0].mxu0
        %v4463 = vadd.f32 %v1040, %v4462
        %v4464 = vpop.f32.mrb[0].mxu0
        %4465 = vmatprep.mubr.bf16.mxu0 0
        %4466 = vmatmul.mubr.bf16.gmra.mrb[0].mxu0 %v4371
        %v4467 = vpop.f32.mrb[0].mxu0
        %v4468 = vadd.f32 %v1040, %v4467
        %v4469 = vpop.f32.mrb[0].mxu0
        %v4470 = vpop.f32.mrb[0].mxu0
        %v4471 = vadd.f32 %v1040, %v4470
        %v4472 = vpop.f32.mrb[0].mxu0
        %4473 = vmatprep.mubr.bf16.mxu0 0
        %4474 = vmatmul.mubr.bf16.gmra.mrb[0].mxu0 %v4374
        %v4475 = vpop.f32.mrb[0].mxu0
        %v4476 = vadd.f32 %v1040, %v4475
        %v4477 = vpop.f32.mrb[0].mxu0
        %v4478 = vpop.f32.mrb[0].mxu0
        %v4479 = vadd.f32 %v1040, %v4478
        %v4480 = vpop.f32.mrb[0].mxu0
        %4481 = vmatprep.mubr.bf16.mxu0 0
        %4482 = vmatmul.mubr.bf16.gmra.mrb[0].mxu0 %v4377
        %v4483 = vpop.f32.mrb[0].mxu0
        %v4484 = vadd.f32 %v1040, %v4483
        %v4485 = vpop.f32.mrb[0].mxu0
        %v4486 = vpop.f32.mrb[0].mxu0
        %v4487 = vadd.f32 %v1040, %v4486
        %v4488 = vpop.f32.mrb[0].mxu0
        %4489 = vmatprep.mubr.bf16.mxu0 0
        %4490 = vmatmul.mubr.bf16.gmra.mrb[0].mxu0 %v4380
        %v4491 = vpop.f32.mrb[0].mxu0
        %v4492 = vadd.f32 %v1040, %v4491
        %v4493 = vpop.f32.mrb[0].mxu0
        %v4494 = vpop.f32.mrb[0].mxu0
        %v4495 = vadd.f32 %v1040, %v4494
        %v4496 = vpop.f32.mrb[0].mxu0
        %4497 = vmatprep.mubr.bf16.mxu0 0
        %4498 = vmatmul.mubr.bf16.gmra.mrb[0].mxu0 %v4383
        %v4499 = vpop.f32.mrb[0].mxu0
        %v4500 = vadd.f32 %v1040, %v4499
        %v4501 = vpop.f32.mrb[0].mxu0
        %v4502 = vpop.f32.mrb[0].mxu0
        %v4503 = vadd.f32 %v1040, %v4502
        %v4504 = vpop.f32.mrb[0].mxu0
        %4505 = vdwg.mxu0
        %4506 = vmax.xlane.f32.xlu0 %v4444
        %v4507 = vpop.xlane.xlu0 %4506
        %4508 = vmax.xlane.f32.xlu0 %v4447
        %v4509 = vpop.xlane.xlu0 %4508
        %4510 = vmax.xlane.f32.xlu0 %v4452
        %v4511 = vpop.xlane.xlu0 %4510
        %4512 = vmax.xlane.f32.xlu0 %v4455
        %v4513 = vpop.xlane.xlu0 %4512
        %4514 = vmax.xlane.f32.xlu0 %v4460
        %v4515 = vpop.xlane.xlu0 %4514
        %4516 = vmax.xlane.f32.xlu0 %v4463
        %v4517 = vpop.xlane.xlu0 %4516
        %4518 = vmax.xlane.f32.xlu0 %v4468
        %v4519 = vpop.xlane.xlu0 %4518
        %4520 = vmax.xlane.f32.xlu0 %v4471
        %v4521 = vpop.xlane.xlu0 %4520
        %4522 = vmax.xlane.f32.xlu0 %v4476
        %v4523 = vpop.xlane.xlu0 %4522
        %4524 = vmax.xlane.f32.xlu0 %v4479
        %v4525 = vpop.xlane.xlu0 %4524
        %4526 = vmax.xlane.f32.xlu0 %v4484
        %v4527 = vpop.xlane.xlu0 %4526
        %4528 = vmax.xlane.f32.xlu0 %v4487
        %v4529 = vpop.xlane.xlu0 %4528
        %4530 = vmax.xlane.f32.xlu0 %v4492
        %v4531 = vpop.xlane.xlu0 %4530
        %4532 = vmax.xlane.f32.xlu0 %v4495
        %v4533 = vpop.xlane.xlu0 %4532
        %4534 = vmax.xlane.f32.xlu0 %v4500
        %v4535 = vpop.xlane.xlu0 %4534
        %4536 = vmax.xlane.f32.xlu0 %v4503
        %v4537 = vpop.xlane.xlu0 %4536
        %v4538 = vsub.f32 %v4444, %v4507
        %v4539 = vsub.f32 %v4447, %v4509
        %v4540 = vsub.f32 %v4452, %v4511
        %v4541 = vsub.f32 %v4455, %v4513
        %v4542 = vsub.f32 %v4460, %v4515
        %v4543 = vsub.f32 %v4463, %v4517
        %v4544 = vsub.f32 %v4468, %v4519
        %v4545 = vsub.f32 %v4471, %v4521
        %v4546 = vsub.f32 %v4476, %v4523
        %v4547 = vsub.f32 %v4479, %v4525
        %v4548 = vsub.f32 %v4484, %v4527
        %v4549 = vsub.f32 %v4487, %v4529
        %v4550 = vsub.f32 %v4492, %v4531
        %v4551 = vsub.f32 %v4495, %v4533
        %v4552 = vsub.f32 %v4500, %v4535
        %v4553 = vsub.f32 %v4503, %v4537
        %v4554 = vmul.f32 %v4538, 1.442695
        %v4555 = vpow.pop %v4554
        %v4556 = vmul.f32 %v4539, 1.442695
        %v4557 = vpow.pop %v4556
        %v4558 = vmul.f32 %v4540, 1.442695
        %v4559 = vpow.pop %v4558
        %v4560 = vmul.f32 %v4541, 1.442695
        %v4561 = vpow.pop %v4560
        %v4562 = vmul.f32 %v4542, 1.442695
        %v4563 = vpow.pop %v4562
        %v4564 = vmul.f32 %v4543, 1.442695
        %v4565 = vpow.pop %v4564
        %v4566 = vmul.f32 %v4544, 1.442695
        %v4567 = vpow.pop %v4566
        %v4568 = vmul.f32 %v4545, 1.442695
        %v4569 = vpow.pop %v4568
        %v4570 = vmul.f32 %v4546, 1.442695
        %v4571 = vpow.pop %v4570
        %v4572 = vmul.f32 %v4547, 1.442695
        %v4573 = vpow.pop %v4572
        %v4574 = vmul.f32 %v4548, 1.442695
        %v4575 = vpow.pop %v4574
        %v4576 = vmul.f32 %v4549, 1.442695
        %v4577 = vpow.pop %v4576
        %v4578 = vmul.f32 %v4550, 1.442695
        %v4579 = vpow.pop %v4578
        %v4580 = vmul.f32 %v4551, 1.442695
        %v4581 = vpow.pop %v4580
        %v4582 = vmul.f32 %v4552, 1.442695
        %v4583 = vpow.pop %v4582
        %v4584 = vmul.f32 %v4553, 1.442695
        %v4585 = vpow.pop %v4584
        %4586 = vadd.xlane.f32.xlu0 %v4555
        %v4587 = vpop.xlane.xlu0 %4586
        %4588 = vadd.xlane.f32.xlu0 %v4557
        %v4589 = vpop.xlane.xlu0 %4588
        %4590 = vadd.xlane.f32.xlu0 %v4559
        %v4591 = vpop.xlane.xlu0 %4590
        %4592 = vadd.xlane.f32.xlu0 %v4561
        %v4593 = vpop.xlane.xlu0 %4592
        %4594 = vadd.xlane.f32.xlu0 %v4563
        %v4595 = vpop.xlane.xlu0 %4594
        %4596 = vadd.xlane.f32.xlu0 %v4565
        %v4597 = vpop.xlane.xlu0 %4596
        %4598 = vadd.xlane.f32.xlu0 %v4567
        %v4599 = vpop.xlane.xlu0 %4598
        %4600 = vadd.xlane.f32.xlu0 %v4569
        %v4601 = vpop.xlane.xlu0 %4600
        %4602 = vadd.xlane.f32.xlu0 %v4571
        %v4603 = vpop.xlane.xlu0 %4602
        %4604 = vadd.xlane.f32.xlu0 %v4573
        %v4605 = vpop.xlane.xlu0 %4604
        %4606 = vadd.xlane.f32.xlu0 %v4575
        %v4607 = vpop.xlane.xlu0 %4606
        %4608 = vadd.xlane.f32.xlu0 %v4577
        %v4609 = vpop.xlane.xlu0 %4608
        %4610 = vadd.xlane.f32.xlu0 %v4579
        %v4611 = vpop.xlane.xlu0 %4610
        %4612 = vadd.xlane.f32.xlu0 %v4581
        %v4613 = vpop.xlane.xlu0 %4612
        %4614 = vadd.xlane.f32.xlu0 %v4583
        %v4615 = vpop.xlane.xlu0 %4614
        %4616 = vadd.xlane.f32.xlu0 %v4585
        %v4617 = vpop.xlane.xlu0 %4616
        %v4618 = vrcp.pop %v4587
        %v4619 = vrcp.pop %v4589
        %v4620 = vrcp.pop %v4591
        %v4621 = vrcp.pop %v4593
        %v4622 = vrcp.pop %v4595
        %v4623 = vrcp.pop %v4597
        %v4624 = vrcp.pop %v4599
        %v4625 = vrcp.pop %v4601
        %v4626 = vrcp.pop %v4603
        %v4627 = vrcp.pop %v4605
        %v4628 = vrcp.pop %v4607
        %v4629 = vrcp.pop %v4609
        %v4630 = vrcp.pop %v4611
        %v4631 = vrcp.pop %v4613
        %v4632 = vrcp.pop %v4615
        %v4633 = vrcp.pop %v4617
        %v4634 = vmul.f32 %v4555, %v4618
        %v4635 = vmul.f32 %v4557, %v4619
        %v4636 = vmul.f32 %v4559, %v4620
        %v4637 = vmul.f32 %v4561, %v4621
        %v4638 = vmul.f32 %v4563, %v4622
        %v4639 = vmul.f32 %v4565, %v4623
        %v4640 = vmul.f32 %v4567, %v4624
        %v4641 = vmul.f32 %v4569, %v4625
        %v4642 = vmul.f32 %v4571, %v4626
        %v4643 = vmul.f32 %v4573, %v4627
        %v4644 = vmul.f32 %v4575, %v4628
        %v4645 = vmul.f32 %v4577, %v4629
        %v4646 = vmul.f32 %v4579, %v4630
        %v4647 = vmul.f32 %v4581, %v4631
        %v4648 = vmul.f32 %v4583, %v4632
        %v4649 = vmul.f32 %v4585, %v4633
        %v4650 = vpack.c.bf16 %v4635, %v4634
        %v4651 = vpack.c.bf16 %v4637, %v4636
        %v4652 = vpack.c.bf16 %v4639, %v4638
        %v4653 = vpack.c.bf16 %v4641, %v4640
        %v4654 = vpack.c.bf16 %v4643, %v4642
        %v4655 = vpack.c.bf16 %v4645, %v4644
        %v4656 = vpack.c.bf16 %v4647, %v4646
        %v4657 = vpack.c.bf16 %v4649, %v4648
        %4666 = vrot.lane.b32.xlu0 %v4200, 64
        %v4667 = vpop.permute.xlu0 %4666
        %4668 = vrot.lane.b32.xlu0 %v4201, 64
        %v4669 = vpop.permute.xlu0 %4668
        %4670 = vrot.lane.b32.xlu0 %v4202, 64
        %v4671 = vpop.permute.xlu0 %4670
        %4672 = vrot.lane.b32.xlu0 %v4203, 64
        %v4673 = vpop.permute.xlu0 %4672
        %4674 = vrot.lane.b32.xlu0 %v4204, 64
        %v4675 = vpop.permute.xlu0 %4674
        %4676 = vrot.lane.b32.xlu0 %v4205, 64
        %v4677 = vpop.permute.xlu0 %4676
        %4678 = vrot.lane.b32.xlu0 %v4206, 64
        %v4679 = vpop.permute.xlu0 %4678
        %4680 = vrot.lane.b32.xlu0 %v4207, 64
        %v4681 = vpop.permute.xlu0 %4680
        %4690 = vmatprep.subr.bf16.mxu0 0
        %4691 = vmatpush1.bf16.msra.mxu0 %v4667
        %4692 = vmatprep.subr.bf16.mxu0 0
        %4693 = vmatpush1.bf16.msra.mxu0 %v4669
        %4694 = vmatprep.subr.bf16.mxu0 0
        %4695 = vmatpush1.bf16.msra.mxu0 %v4671
        %4696 = vmatprep.subr.bf16.mxu0 0
        %4697 = vmatpush1.bf16.msra.mxu0 %v4673
        %4698 = vmatprep.subr.bf16.mxu0 0
        %4699 = vmatpush1.bf16.msra.mxu0 %v4675
        %4700 = vmatprep.subr.bf16.mxu0 0
        %4701 = vmatpush1.bf16.msra.mxu0 %v4677
        %4702 = vmatprep.subr.bf16.mxu0 0
        %4703 = vmatpush1.bf16.msra.mxu0 %v4679
        %4704 = vmatprep.subr.bf16.mxu0 0
        %4705 = vmatpush1.bf16.msra.mxu0 %v4681
        %4706 = vmatprep.subr.bf16.mxu0 0
        %4707 = vmatpush1.bf16.msra.mxu0 0
        %4708 = vmatprep.subr.bf16.mxu0 0
        %4709 = vmatpush1.bf16.msra.mxu0 0
        %4710 = vmatprep.subr.bf16.mxu0 0
        %4711 = vmatpush1.bf16.msra.mxu0 0
        %4712 = vmatprep.subr.bf16.mxu0 0
        %4713 = vmatpush1.bf16.msra.mxu0 0
        %4714 = vmatprep.subr.bf16.mxu0 0
        %4715 = vmatpush1.bf16.msra.mxu0 0
        %4716 = vmatprep.subr.bf16.mxu0 0
        %4717 = vmatpush1.bf16.msra.mxu0 0
        %4718 = vmatprep.subr.bf16.mxu0 0
        %4719 = vmatpush1.bf16.msra.mxu0 0
        %4720 = vmatprep.subr.bf16.mxu0 0
        %4721 = vmatpush1.bf16.msra.mxu0 0
        %4722 = vmatprep.mubr.bf16.mxu0 0
        %4723 = vmatmul.mubr.bf16.gmra.mrb[0].mxu0 %v4650
        %v4724 = vpop.f32.mrb[0].mxu0
        %v4725 = vadd.f32 0.0, %v4724
        %v4726 = vpop.f32.mrb[0].mxu0
        %v4727 = vpop.f32.mrb[0].mxu0
        %v4728 = vadd.f32 0.0, %v4727
        %v4729 = vpop.f32.mrb[0].mxu0
        %4730 = vmatprep.mubr.bf16.mxu0 0
        %4731 = vmatmul.mubr.bf16.gmra.mrb[0].mxu0 %v4651
        %v4732 = vpop.f32.mrb[0].mxu0
        %v4733 = vadd.f32 0.0, %v4732
        %v4734 = vpop.f32.mrb[0].mxu0
        %v4735 = vpop.f32.mrb[0].mxu0
        %v4736 = vadd.f32 0.0, %v4735
        %v4737 = vpop.f32.mrb[0].mxu0
        %4738 = vmatprep.mubr.bf16.mxu0 0
        %4739 = vmatmul.mubr.bf16.gmra.mrb[0].mxu0 %v4652
        %v4740 = vpop.f32.mrb[0].mxu0
        %v4741 = vadd.f32 0.0, %v4740
        %v4742 = vpop.f32.mrb[0].mxu0
        %v4743 = vpop.f32.mrb[0].mxu0
        %v4744 = vadd.f32 0.0, %v4743
        %v4745 = vpop.f32.mrb[0].mxu0
        %4746 = vmatprep.mubr.bf16.mxu0 0
        %4747 = vmatmul.mubr.bf16.gmra.mrb[0].mxu0 %v4653
        %v4748 = vpop.f32.mrb[0].mxu0
        %v4749 = vadd.f32 0.0, %v4748
        %v4750 = vpop.f32.mrb[0].mxu0
        %v4751 = vpop.f32.mrb[0].mxu0
        %v4752 = vadd.f32 0.0, %v4751
        %v4753 = vpop.f32.mrb[0].mxu0
        %4754 = vmatprep.mubr.bf16.mxu0 0
        %4755 = vmatmul.mubr.bf16.gmra.mrb[0].mxu0 %v4654
        %v4756 = vpop.f32.mrb[0].mxu0
        %v4757 = vadd.f32 0.0, %v4756
        %v4758 = vpop.f32.mrb[0].mxu0
        %v4759 = vpop.f32.mrb[0].mxu0
        %v4760 = vadd.f32 0.0, %v4759
        %v4761 = vpop.f32.mrb[0].mxu0
        %4762 = vmatprep.mubr.bf16.mxu0 0
        %4763 = vmatmul.mubr.bf16.gmra.mrb[0].mxu0 %v4655
        %v4764 = vpop.f32.mrb[0].mxu0
        %v4765 = vadd.f32 0.0, %v4764
        %v4766 = vpop.f32.mrb[0].mxu0
        %v4767 = vpop.f32.mrb[0].mxu0
        %v4768 = vadd.f32 0.0, %v4767
        %v4769 = vpop.f32.mrb[0].mxu0
        %4770 = vmatprep.mubr.bf16.mxu0 0
        %4771 = vmatmul.mubr.bf16.gmra.mrb[0].mxu0 %v4656
        %v4772 = vpop.f32.mrb[0].mxu0
        %v4773 = vadd.f32 0.0, %v4772
        %v4774 = vpop.f32.mrb[0].mxu0
        %v4775 = vpop.f32.mrb[0].mxu0
        %v4776 = vadd.f32 0.0, %v4775
        %v4777 = vpop.f32.mrb[0].mxu0
        %4778 = vmatprep.mubr.bf16.mxu0 0
        %4779 = vmatmul.mubr.bf16.gmra.mrb[0].mxu0 %v4657
        %v4780 = vpop.f32.mrb[0].mxu0
        %v4781 = vadd.f32 0.0, %v4780
        %v4782 = vpop.f32.mrb[0].mxu0
        %v4783 = vpop.f32.mrb[0].mxu0
        %v4784 = vadd.f32 0.0, %v4783
        %v4785 = vpop.f32.mrb[0].mxu0
        %4786 = vdwg.mxu0
        %v4787 = vpack.c.bf16 %v4728, %v4725
        %v4788 = vpack.c.bf16 %v4736, %v4733
        %v4789 = vpack.c.bf16 %v4744, %v4741
        %v4790 = vpack.c.bf16 %v4752, %v4749
        %v4791 = vpack.c.bf16 %v4760, %v4757
        %v4792 = vpack.c.bf16 %v4768, %v4765
        %v4793 = vpack.c.bf16 %v4776, %v4773
        %v4794 = vpack.c.bf16 %v4784, %v4781
        %v4803 = vunpack.c.l.b16 %v3482
        %v4804 = vunpack.c.l.b16 %v3483
        %v4805 = vunpack.c.l.b16 %v3484
        %v4806 = vunpack.c.l.b16 %v3485
        %v4807 = vunpack.c.l.b16 %v3486
        %v4808 = vunpack.c.l.b16 %v3487
        %v4809 = vunpack.c.l.b16 %v3488
        %v4810 = vunpack.c.l.b16 %v3489
        %v4811 = vpack.c.b16 %v4804, %v4803
        %v4812 = vpack.c.b16 %v4806, %v4805
        %v4813 = vpack.c.b16 %v4808, %v4807
        %v4814 = vpack.c.b16 %v4810, %v4809
        %v4820 = vsel %vm1042, %v4787, 0
        %v4823 = vsel %vm1042, %v4788, 0
        %v4826 = vsel %vm1042, %v4789, 0
        %v4829 = vsel %vm1042, %v4790, 0
        %v4832 = vsel %vm1042, %v4791, 0
        %v4835 = vsel %vm1042, %v4792, 0
        %v4838 = vsel %vm1042, %v4793, 0
        %v4841 = vsel %vm1042, %v4794, 0
        %4843 = vmatprep.subr.bf16.mxu0 0
        %4844 = vmatpush1.bf16.msra.mxu0 %v4811
        %4845 = vmatprep.subr.bf16.mxu0 0
        %4846 = vmatpush1.bf16.msra.mxu0 %v4812
        %4847 = vmatprep.subr.bf16.mxu0 0
        %4848 = vmatpush1.bf16.msra.mxu0 %v4813
        %4849 = vmatprep.subr.bf16.mxu0 0
        %4850 = vmatpush1.bf16.msra.mxu0 %v4814
        %4851 = vmatprep.subr.bf16.mxu0 0
        %4852 = vmatpush1.bf16.msra.mxu0 0
        %4853 = vmatprep.subr.bf16.mxu0 0
        %4854 = vmatpush1.bf16.msra.mxu0 0
        %4855 = vmatprep.subr.bf16.mxu0 0
        %4856 = vmatpush1.bf16.msra.mxu0 0
        %4857 = vmatprep.subr.bf16.mxu0 0
        %4858 = vmatpush1.bf16.msra.mxu0 0
        %4859 = vmatprep.subr.bf16.mxu0 0
        %4860 = vmatpush1.bf16.msra.mxu0 0
        %4861 = vmatprep.subr.bf16.mxu0 0
        %4862 = vmatpush1.bf16.msra.mxu0 0
        %4863 = vmatprep.subr.bf16.mxu0 0
        %4864 = vmatpush1.bf16.msra.mxu0 0
        %4865 = vmatprep.subr.bf16.mxu0 0
        %4866 = vmatpush1.bf16.msra.mxu0 0
        %4867 = vmatprep.subr.bf16.mxu0 0
        %4868 = vmatpush1.bf16.msra.mxu0 0
        %4869 = vmatprep.subr.bf16.mxu0 0
        %4870 = vmatpush1.bf16.msra.mxu0 0
        %4871 = vmatprep.subr.bf16.mxu0 0
        %4872 = vmatpush1.bf16.msra.mxu0 0
        %4873 = vmatprep.subr.bf16.mxu0 0
        %4874 = vmatpush1.bf16.msra.mxu0 0
        %4875 = vmatprep.mubr.bf16.mxu0 0
        %4876 = vmatmul.mubr.bf16.gmra.mrb[0].mxu0 %v4820
        %v4877 = vpop.f32.mrb[0].mxu0
        %v4878 = vadd.f32 0.0, %v4877
        %v4879 = vpop.f32.mrb[0].mxu0
        %v4880 = vpop.f32.mrb[0].mxu0
        %v4881 = vadd.f32 0.0, %v4880
        %v4882 = vpop.f32.mrb[0].mxu0
        %4883 = vmatprep.mubr.bf16.mxu0 0
        %4884 = vmatmul.mubr.bf16.gmra.mrb[0].mxu0 %v4823
        %v4885 = vpop.f32.mrb[0].mxu0
        %v4886 = vadd.f32 0.0, %v4885
        %v4887 = vpop.f32.mrb[0].mxu0
        %v4888 = vpop.f32.mrb[0].mxu0
        %v4889 = vadd.f32 0.0, %v4888
        %v4890 = vpop.f32.mrb[0].mxu0
        %4891 = vmatprep.mubr.bf16.mxu0 0
        %4892 = vmatmul.mubr.bf16.gmra.mrb[0].mxu0 %v4826
        %v4893 = vpop.f32.mrb[0].mxu0
        %v4894 = vadd.f32 0.0, %v4893
        %v4895 = vpop.f32.mrb[0].mxu0
        %v4896 = vpop.f32.mrb[0].mxu0
        %v4897 = vadd.f32 0.0, %v4896
        %v4898 = vpop.f32.mrb[0].mxu0
        %4899 = vmatprep.mubr.bf16.mxu0 0
        %4900 = vmatmul.mubr.bf16.gmra.mrb[0].mxu0 %v4829
        %v4901 = vpop.f32.mrb[0].mxu0
        %v4902 = vadd.f32 0.0, %v4901
        %v4903 = vpop.f32.mrb[0].mxu0
        %v4904 = vpop.f32.mrb[0].mxu0
        %v4905 = vadd.f32 0.0, %v4904
        %v4906 = vpop.f32.mrb[0].mxu0
        %4907 = vmatprep.mubr.bf16.mxu0 0
        %4908 = vmatmul.mubr.bf16.gmra.mrb[0].mxu0 %v4832
        %v4909 = vpop.f32.mrb[0].mxu0
        %v4910 = vadd.f32 0.0, %v4909
        %v4911 = vpop.f32.mrb[0].mxu0
        %v4912 = vpop.f32.mrb[0].mxu0
        %v4913 = vadd.f32 0.0, %v4912
        %v4914 = vpop.f32.mrb[0].mxu0
        %4915 = vmatprep.mubr.bf16.mxu0 0
        %4916 = vmatmul.mubr.bf16.gmra.mrb[0].mxu0 %v4835
        %v4917 = vpop.f32.mrb[0].mxu0
        %v4918 = vadd.f32 0.0, %v4917
        %v4919 = vpop.f32.mrb[0].mxu0
        %v4920 = vpop.f32.mrb[0].mxu0
        %v4921 = vadd.f32 0.0, %v4920
        %v4922 = vpop.f32.mrb[0].mxu0
        %4923 = vmatprep.mubr.bf16.mxu0 0
        %4924 = vmatmul.mubr.bf16.gmra.mrb[0].mxu0 %v4838
        %v4925 = vpop.f32.mrb[0].mxu0
        %v4926 = vadd.f32 0.0, %v4925
        %v4927 = vpop.f32.mrb[0].mxu0
        %v4928 = vpop.f32.mrb[0].mxu0
        %v4929 = vadd.f32 0.0, %v4928
        %v4930 = vpop.f32.mrb[0].mxu0
        %4931 = vmatprep.mubr.bf16.mxu0 0
        %4932 = vmatmul.mubr.bf16.gmra.mrb[0].mxu0 %v4841
        %v4933 = vpop.f32.mrb[0].mxu0
        %v4934 = vadd.f32 0.0, %v4933
        %v4935 = vpop.f32.mrb[0].mxu0
        %v4936 = vpop.f32.mrb[0].mxu0
        %v4937 = vadd.f32 0.0, %v4936
        %v4938 = vpop.f32.mrb[0].mxu0
        %4939 = vdwg.mxu0
        %v4948 = vunpack.c.l.b16 %v3474
        %v4949 = vunpack.c.l.b16 %v3475
        %v4950 = vunpack.c.l.b16 %v3476
        %v4951 = vunpack.c.l.b16 %v3477
        %v4952 = vunpack.c.l.b16 %v3478
        %v4953 = vunpack.c.l.b16 %v3479
        %v4954 = vunpack.c.l.b16 %v3480
        %v4955 = vunpack.c.l.b16 %v3481
        %v4956 = vpack.c.b16 %v4949, %v4948
        %v4957 = vpack.c.b16 %v4951, %v4950
        %v4958 = vpack.c.b16 %v4953, %v4952
        %v4959 = vpack.c.b16 %v4955, %v4954
        %v4965 = vsel %vm1042, %v4305, 0
        %v4968 = vsel %vm1042, %v4306, 0
        %v4971 = vsel %vm1042, %v4307, 0
        %v4974 = vsel %vm1042, %v4308, 0
        %v4977 = vsel %vm1042, %v4309, 0
        %v4980 = vsel %vm1042, %v4310, 0
        %v4983 = vsel %vm1042, %v4311, 0
        %v4986 = vsel %vm1042, %v4312, 0
        %4988 = vmatprep.subr.bf16.mxu0 0
        %4989 = vmatpush1.bf16.msra.mxu0 %v4956
        %4990 = vmatprep.subr.bf16.mxu0 0
        %4991 = vmatpush1.bf16.msra.mxu0 %v4957
        %4992 = vmatprep.subr.bf16.mxu0 0
        %4993 = vmatpush1.bf16.msra.mxu0 %v4958
        %4994 = vmatprep.subr.bf16.mxu0 0
        %4995 = vmatpush1.bf16.msra.mxu0 %v4959
        %4996 = vmatprep.subr.bf16.mxu0 0
        %4997 = vmatpush1.bf16.msra.mxu0 0
        %4998 = vmatprep.subr.bf16.mxu0 0
        %4999 = vmatpush1.bf16.msra.mxu0 0
        %5000 = vmatprep.subr.bf16.mxu0 0
        %5001 = vmatpush1.bf16.msra.mxu0 0
        %5002 = vmatprep.subr.bf16.mxu0 0
        %5003 = vmatpush1.bf16.msra.mxu0 0
        %5004 = vmatprep.subr.bf16.mxu0 0
        %5005 = vmatpush1.bf16.msra.mxu0 0
        %5006 = vmatprep.subr.bf16.mxu0 0
        %5007 = vmatpush1.bf16.msra.mxu0 0
        %5008 = vmatprep.subr.bf16.mxu0 0
        %5009 = vmatpush1.bf16.msra.mxu0 0
        %5010 = vmatprep.subr.bf16.mxu0 0
        %5011 = vmatpush1.bf16.msra.mxu0 0
        %5012 = vmatprep.subr.bf16.mxu0 0
        %5013 = vmatpush1.bf16.msra.mxu0 0
        %5014 = vmatprep.subr.bf16.mxu0 0
        %5015 = vmatpush1.bf16.msra.mxu0 0
        %5016 = vmatprep.subr.bf16.mxu0 0
        %5017 = vmatpush1.bf16.msra.mxu0 0
        %5018 = vmatprep.subr.bf16.mxu0 0
        %5019 = vmatpush1.bf16.msra.mxu0 0
        %5020 = vmatprep.mubr.bf16.mxu0 0
        %5021 = vmatmul.mubr.bf16.gmra.mrb[0].mxu0 %v4965
        %v5022 = vpop.f32.mrb[0].mxu0
        %v5023 = vadd.f32 %v4878, %v5022
        %v5024 = vpop.f32.mrb[0].mxu0
        %v5025 = vpop.f32.mrb[0].mxu0
        %v5026 = vadd.f32 %v4881, %v5025
        %v5027 = vpop.f32.mrb[0].mxu0
        %5028 = vmatprep.mubr.bf16.mxu0 0
        %5029 = vmatmul.mubr.bf16.gmra.mrb[0].mxu0 %v4968
        %v5030 = vpop.f32.mrb[0].mxu0
        %v5031 = vadd.f32 %v4886, %v5030
        %v5032 = vpop.f32.mrb[0].mxu0
        %v5033 = vpop.f32.mrb[0].mxu0
        %v5034 = vadd.f32 %v4889, %v5033
        %v5035 = vpop.f32.mrb[0].mxu0
        %5036 = vmatprep.mubr.bf16.mxu0 0
        %5037 = vmatmul.mubr.bf16.gmra.mrb[0].mxu0 %v4971
        %v5038 = vpop.f32.mrb[0].mxu0
        %v5039 = vadd.f32 %v4894, %v5038
        %v5040 = vpop.f32.mrb[0].mxu0
        %v5041 = vpop.f32.mrb[0].mxu0
        %v5042 = vadd.f32 %v4897, %v5041
        %v5043 = vpop.f32.mrb[0].mxu0
        %5044 = vmatprep.mubr.bf16.mxu0 0
        %5045 = vmatmul.mubr.bf16.gmra.mrb[0].mxu0 %v4974
        %v5046 = vpop.f32.mrb[0].mxu0
        %v5047 = vadd.f32 %v4902, %v5046
        %v5048 = vpop.f32.mrb[0].mxu0
        %v5049 = vpop.f32.mrb[0].mxu0
        %v5050 = vadd.f32 %v4905, %v5049
        %v5051 = vpop.f32.mrb[0].mxu0
        %5052 = vmatprep.mubr.bf16.mxu0 0
        %5053 = vmatmul.mubr.bf16.gmra.mrb[0].mxu0 %v4977
        %v5054 = vpop.f32.mrb[0].mxu0
        %v5055 = vadd.f32 %v4910, %v5054
        %v5056 = vpop.f32.mrb[0].mxu0
        %v5057 = vpop.f32.mrb[0].mxu0
        %v5058 = vadd.f32 %v4913, %v5057
        %v5059 = vpop.f32.mrb[0].mxu0
        %5060 = vmatprep.mubr.bf16.mxu0 0
        %5061 = vmatmul.mubr.bf16.gmra.mrb[0].mxu0 %v4980
        %v5062 = vpop.f32.mrb[0].mxu0
        %v5063 = vadd.f32 %v4918, %v5062
        %v5064 = vpop.f32.mrb[0].mxu0
        %v5065 = vpop.f32.mrb[0].mxu0
        %v5066 = vadd.f32 %v4921, %v5065
        %v5067 = vpop.f32.mrb[0].mxu0
        %5068 = vmatprep.mubr.bf16.mxu0 0
        %5069 = vmatmul.mubr.bf16.gmra.mrb[0].mxu0 %v4983
        %v5070 = vpop.f32.mrb[0].mxu0
        %v5071 = vadd.f32 %v4926, %v5070
        %v5072 = vpop.f32.mrb[0].mxu0
        %v5073 = vpop.f32.mrb[0].mxu0
        %v5074 = vadd.f32 %v4929, %v5073
        %v5075 = vpop.f32.mrb[0].mxu0
        %5076 = vmatprep.mubr.bf16.mxu0 0
        %5077 = vmatmul.mubr.bf16.gmra.mrb[0].mxu0 %v4986
        %v5078 = vpop.f32.mrb[0].mxu0
        %v5079 = vadd.f32 %v4934, %v5078
        %v5080 = vpop.f32.mrb[0].mxu0
        %v5081 = vpop.f32.mrb[0].mxu0
        %v5082 = vadd.f32 %v4937, %v5081
        %v5083 = vpop.f32.mrb[0].mxu0
        %5084 = vdwg.mxu0
        %v5085 = vlaneseq
        %v5086 = vshrl.u32 %v5085, 7
        %v5087 = vsub.s32 0, %v5086
        %v5088 = vrot.slane %v3472, %v5087
        %v5089 = vadd.f32 %v5023, %v5088
        %v5090 = vadd.f32 %v5026, %v5088
        %v5091 = vadd.f32 %v5031, %v5088
        %v5092 = vadd.f32 %v5034, %v5088
        %v5093 = vadd.f32 %v5039, %v5088
        %v5094 = vadd.f32 %v5042, %v5088
        %v5095 = vadd.f32 %v5047, %v5088
        %v5096 = vadd.f32 %v5050, %v5088
        %v5097 = vadd.f32 %v5055, %v5088
        %v5098 = vadd.f32 %v5058, %v5088
        %v5099 = vadd.f32 %v5063, %v5088
        %v5100 = vadd.f32 %v5066, %v5088
        %v5101 = vadd.f32 %v5071, %v5088
        %v5102 = vadd.f32 %v5074, %v5088
        %v5103 = vadd.f32 %v5079, %v5088
        %v5104 = vadd.f32 %v5082, %v5088
        %v5105 = vadd.f32 %v5089, %v3455
        %v5106 = vadd.f32 %v5090, %v3456
        %v5107 = vadd.f32 %v5091, %v3457
        %v5108 = vadd.f32 %v5092, %v3458
        %v5109 = vadd.f32 %v5093, %v3459
        %v5110 = vadd.f32 %v5094, %v3460
        %v5111 = vadd.f32 %v5095, %v3461
        %v5112 = vadd.f32 %v5096, %v3462
        %v5113 = vadd.f32 %v5097, %v3463
        %v5114 = vadd.f32 %v5098, %v3464
        %v5115 = vadd.f32 %v5099, %v3465
        %v5116 = vadd.f32 %v5100, %v3466
        %v5117 = vadd.f32 %v5101, %v3467
        %v5118 = vadd.f32 %v5102, %v3468
        %v5119 = vadd.f32 %v5103, %v3469
        %v5120 = vadd.f32 %v5104, %v3470
        %5121 = vadd.xlane.f32.xlu0 %v5105
        %v5122 = vpop.xlane.xlu0 %5121
        %5123 = vadd.xlane.f32.xlu0 %v5106
        %v5124 = vpop.xlane.xlu0 %5123
        %5125 = vadd.xlane.f32.xlu0 %v5107
        %v5126 = vpop.xlane.xlu0 %5125
        %5127 = vadd.xlane.f32.xlu0 %v5108
        %v5128 = vpop.xlane.xlu0 %5127
        %5129 = vadd.xlane.f32.xlu0 %v5109
        %v5130 = vpop.xlane.xlu0 %5129
        %5131 = vadd.xlane.f32.xlu0 %v5110
        %v5132 = vpop.xlane.xlu0 %5131
        %5133 = vadd.xlane.f32.xlu0 %v5111
        %v5134 = vpop.xlane.xlu0 %5133
        %5135 = vadd.xlane.f32.xlu0 %v5112
        %v5136 = vpop.xlane.xlu0 %5135
        %5137 = vadd.xlane.f32.xlu0 %v5113
        %v5138 = vpop.xlane.xlu0 %5137
        %5139 = vadd.xlane.f32.xlu0 %v5114
        %v5140 = vpop.xlane.xlu0 %5139
        %5141 = vadd.xlane.f32.xlu0 %v5115
        %v5142 = vpop.xlane.xlu0 %5141
        %5143 = vadd.xlane.f32.xlu0 %v5116
        %v5144 = vpop.xlane.xlu0 %5143
        %5145 = vadd.xlane.f32.xlu0 %v5117
        %v5146 = vpop.xlane.xlu0 %5145
        %5147 = vadd.xlane.f32.xlu0 %v5118
        %v5148 = vpop.xlane.xlu0 %5147
        %5149 = vadd.xlane.f32.xlu0 %v5119
        %v5150 = vpop.xlane.xlu0 %5149
        %5151 = vadd.xlane.f32.xlu0 %v5120
        %v5152 = vpop.xlane.xlu0 %5151
        %v5153 = vmul.f32 %v5122, %v423
        %v5154 = vmul.f32 %v5124, %v423
        %v5155 = vmul.f32 %v5126, %v423
        %v5156 = vmul.f32 %v5128, %v423
        %v5157 = vmul.f32 %v5130, %v423
        %v5158 = vmul.f32 %v5132, %v423
        %v5159 = vmul.f32 %v5134, %v423
        %v5160 = vmul.f32 %v5136, %v423
        %v5161 = vmul.f32 %v5138, %v423
        %v5162 = vmul.f32 %v5140, %v423
        %v5163 = vmul.f32 %v5142, %v423
        %v5164 = vmul.f32 %v5144, %v423
        %v5165 = vmul.f32 %v5146, %v423
        %v5166 = vmul.f32 %v5148, %v423
        %v5167 = vmul.f32 %v5150, %v423
        %v5168 = vmul.f32 %v5152, %v423
        %v5169 = vsub.f32 %v5105, %v5153
        %v5170 = vsub.f32 %v5106, %v5154
        %v5171 = vsub.f32 %v5107, %v5155
        %v5172 = vsub.f32 %v5108, %v5156
        %v5173 = vsub.f32 %v5109, %v5157
        %v5174 = vsub.f32 %v5110, %v5158
        %v5175 = vsub.f32 %v5111, %v5159
        %v5176 = vsub.f32 %v5112, %v5160
        %v5177 = vsub.f32 %v5113, %v5161
        %v5178 = vsub.f32 %v5114, %v5162
        %v5179 = vsub.f32 %v5115, %v5163
        %v5180 = vsub.f32 %v5116, %v5164
        %v5181 = vsub.f32 %v5117, %v5165
        %v5182 = vsub.f32 %v5118, %v5166
        %v5183 = vsub.f32 %v5119, %v5167
        %v5184 = vsub.f32 %v5120, %v5168
        %v5185 = vmul.f32 %v5169, %v5169
        %v5186 = vmul.f32 %v5170, %v5170
        %v5187 = vmul.f32 %v5171, %v5171
        %v5188 = vmul.f32 %v5172, %v5172
        %v5189 = vmul.f32 %v5173, %v5173
        %v5190 = vmul.f32 %v5174, %v5174
        %v5191 = vmul.f32 %v5175, %v5175
        %v5192 = vmul.f32 %v5176, %v5176
        %v5193 = vmul.f32 %v5177, %v5177
        %v5194 = vmul.f32 %v5178, %v5178
        %v5195 = vmul.f32 %v5179, %v5179
        %v5196 = vmul.f32 %v5180, %v5180
        %v5197 = vmul.f32 %v5181, %v5181
        %v5198 = vmul.f32 %v5182, %v5182
        %v5199 = vmul.f32 %v5183, %v5183
        %v5200 = vmul.f32 %v5184, %v5184
        %5201 = vadd.xlane.f32.xlu0 %v5185
        %v5202 = vpop.xlane.xlu0 %5201
        %5203 = vadd.xlane.f32.xlu0 %v5186
        %v5204 = vpop.xlane.xlu0 %5203
        %5205 = vadd.xlane.f32.xlu0 %v5187
        %v5206 = vpop.xlane.xlu0 %5205
        %5207 = vadd.xlane.f32.xlu0 %v5188
        %v5208 = vpop.xlane.xlu0 %5207
        %5209 = vadd.xlane.f32.xlu0 %v5189
        %v5210 = vpop.xlane.xlu0 %5209
        %5211 = vadd.xlane.f32.xlu0 %v5190
        %v5212 = vpop.xlane.xlu0 %5211
        %5213 = vadd.xlane.f32.xlu0 %v5191
        %v5214 = vpop.xlane.xlu0 %5213
        %5215 = vadd.xlane.f32.xlu0 %v5192
        %v5216 = vpop.xlane.xlu0 %5215
        %5217 = vadd.xlane.f32.xlu0 %v5193
        %v5218 = vpop.xlane.xlu0 %5217
        %5219 = vadd.xlane.f32.xlu0 %v5194
        %v5220 = vpop.xlane.xlu0 %5219
        %5221 = vadd.xlane.f32.xlu0 %v5195
        %v5222 = vpop.xlane.xlu0 %5221
        %5223 = vadd.xlane.f32.xlu0 %v5196
        %v5224 = vpop.xlane.xlu0 %5223
        %5225 = vadd.xlane.f32.xlu0 %v5197
        %v5226 = vpop.xlane.xlu0 %5225
        %5227 = vadd.xlane.f32.xlu0 %v5198
        %v5228 = vpop.xlane.xlu0 %5227
        %5229 = vadd.xlane.f32.xlu0 %v5199
        %v5230 = vpop.xlane.xlu0 %5229
        %5231 = vadd.xlane.f32.xlu0 %v5200
        %v5232 = vpop.xlane.xlu0 %5231
        %v5233 = vmul.f32 %v5202, %v423
        %v5234 = vmul.f32 %v5204, %v423
        %v5235 = vmul.f32 %v5206, %v423
        %v5236 = vmul.f32 %v5208, %v423
        %v5237 = vmul.f32 %v5210, %v423
        %v5238 = vmul.f32 %v5212, %v423
        %v5239 = vmul.f32 %v5214, %v423
        %v5240 = vmul.f32 %v5216, %v423
        %v5241 = vmul.f32 %v5218, %v423
        %v5242 = vmul.f32 %v5220, %v423
        %v5243 = vmul.f32 %v5222, %v423
        %v5244 = vmul.f32 %v5224, %v423
        %v5245 = vmul.f32 %v5226, %v423
        %v5246 = vmul.f32 %v5228, %v423
        %v5247 = vmul.f32 %v5230, %v423
        %v5248 = vmul.f32 %v5232, %v423
        %v5249 = vadd.f32 %v5233, 1e-12
        %v5250 = vadd.f32 %v5234, 1e-12
        %v5251 = vadd.f32 %v5235, 1e-12
        %v5252 = vadd.f32 %v5236, 1e-12
        %v5253 = vadd.f32 %v5237, 1e-12
        %v5254 = vadd.f32 %v5238, 1e-12
        %v5255 = vadd.f32 %v5239, 1e-12
        %v5256 = vadd.f32 %v5240, 1e-12
        %v5257 = vadd.f32 %v5241, 1e-12
        %v5258 = vadd.f32 %v5242, 1e-12
        %v5259 = vadd.f32 %v5243, 1e-12
        %v5260 = vadd.f32 %v5244, 1e-12
        %v5261 = vadd.f32 %v5245, 1e-12
        %v5262 = vadd.f32 %v5246, 1e-12
        %v5263 = vadd.f32 %v5247, 1e-12
        %v5264 = vadd.f32 %v5248, 1e-12
        %v5265 = vrsqrt.pop %v5249
        %v5266 = vrsqrt.pop %v5250
        %v5267 = vrsqrt.pop %v5251
        %v5268 = vrsqrt.pop %v5252
        %v5269 = vrsqrt.pop %v5253
        %v5270 = vrsqrt.pop %v5254
        %v5271 = vrsqrt.pop %v5255
        %v5272 = vrsqrt.pop %v5256
        %v5273 = vrsqrt.pop %v5257
        %v5274 = vrsqrt.pop %v5258
        %v5275 = vrsqrt.pop %v5259
        %v5276 = vrsqrt.pop %v5260
        %v5277 = vrsqrt.pop %v5261
        %v5278 = vrsqrt.pop %v5262
        %v5279 = vrsqrt.pop %v5263
        %v5280 = vrsqrt.pop %v5264
        %v5281 = vmul.f32 %v5169, %v5265
        %v5282 = vmul.f32 %v5170, %v5266
        %v5283 = vmul.f32 %v5171, %v5267
        %v5284 = vmul.f32 %v5172, %v5268
        %v5285 = vmul.f32 %v5173, %v5269
        %v5286 = vmul.f32 %v5174, %v5270
        %v5287 = vmul.f32 %v5175, %v5271
        %v5288 = vmul.f32 %v5176, %v5272
        %v5289 = vmul.f32 %v5177, %v5273
        %v5290 = vmul.f32 %v5178, %v5274
        %v5291 = vmul.f32 %v5179, %v5275
        %v5292 = vmul.f32 %v5180, %v5276
        %v5293 = vmul.f32 %v5181, %v5277
        %v5294 = vmul.f32 %v5182, %v5278
        %v5295 = vmul.f32 %v5183, %v5279
        %v5296 = vmul.f32 %v5184, %v5280
        %v5297 = vlaneseq
        %v5298 = vshrl.u32 %v5297, 7
        %v5299 = vsub.s32 1, %v5298
        %v5300 = vrot.slane %v3472, %v5299
        %v5301 = vmul.f32 %v5281, %v5300
        %v5302 = vmul.f32 %v5282, %v5300
        %v5303 = vmul.f32 %v5283, %v5300
        %v5304 = vmul.f32 %v5284, %v5300
        %v5305 = vmul.f32 %v5285, %v5300
        %v5306 = vmul.f32 %v5286, %v5300
        %v5307 = vmul.f32 %v5287, %v5300
        %v5308 = vmul.f32 %v5288, %v5300
        %v5309 = vmul.f32 %v5289, %v5300
        %v5310 = vmul.f32 %v5290, %v5300
        %v5311 = vmul.f32 %v5291, %v5300
        %v5312 = vmul.f32 %v5292, %v5300
        %v5313 = vmul.f32 %v5293, %v5300
        %v5314 = vmul.f32 %v5294, %v5300
        %v5315 = vmul.f32 %v5295, %v5300
        %v5316 = vmul.f32 %v5296, %v5300
        %v5317 = vlaneseq
        %v5318 = vshrl.u32 %v5317, 7
        %v5319 = vsub.s32 2, %v5318
        %v5320 = vrot.slane %v3472, %v5319
        %v5321 = vadd.f32 %v5301, %v5320
        %v5322 = vadd.f32 %v5302, %v5320
        %v5323 = vadd.f32 %v5303, %v5320
        %v5324 = vadd.f32 %v5304, %v5320
        %v5325 = vadd.f32 %v5305, %v5320
        %v5326 = vadd.f32 %v5306, %v5320
        %v5327 = vadd.f32 %v5307, %v5320
        %v5328 = vadd.f32 %v5308, %v5320
        %v5329 = vadd.f32 %v5309, %v5320
        %v5330 = vadd.f32 %v5310, %v5320
        %v5331 = vadd.f32 %v5311, %v5320
        %v5332 = vadd.f32 %v5312, %v5320
        %v5333 = vadd.f32 %v5313, %v5320
        %v5334 = vadd.f32 %v5314, %v5320
        %v5335 = vadd.f32 %v5315, %v5320
        %v5336 = vadd.f32 %v5316, %v5320
        %v5337 = vpack.c.bf16 %v5322, %v5321
        %v5338 = vpack.c.bf16 %v5324, %v5323
        %v5339 = vpack.c.bf16 %v5326, %v5325
        %v5340 = vpack.c.bf16 %v5328, %v5327
        %v5341 = vpack.c.bf16 %v5330, %v5329
        %v5342 = vpack.c.bf16 %v5332, %v5331
        %v5343 = vpack.c.bf16 %v5334, %v5333
        %v5344 = vpack.c.bf16 %v5336, %v5335
        %s5345 = scalar_lea.vmem %s5, 128
        %v5346 = vld [vmem:[%s5345] sm:$0xff]
        %v5347 = vld [vmem:[%s5345 + $0x8] sm:$0xff]
        %v5348 = vld [vmem:[%s5345 + $0x10] sm:$0xff]
        %v5349 = vld [vmem:[%s5345 + $0x18] sm:$0xff]
        %v5350 = vld [vmem:[%s5345 + $0x20] sm:$0xff]
        %v5351 = vld [vmem:[%s5345 + $0x28] sm:$0xff]
        %v5352 = vld [vmem:[%s5345 + $0x30] sm:$0xff]
        %v5353 = vld [vmem:[%s5345 + $0x38] sm:$0xff]
        %v5354 = vld [vmem:[%s5345 + $0x40] sm:$0xff]
        %v5355 = vld [vmem:[%s5345 + $0x48] sm:$0xff]
        %v5356 = vld [vmem:[%s5345 + $0x50] sm:$0xff]
        %v5357 = vld [vmem:[%s5345 + $0x58] sm:$0xff]
        %v5358 = vld [vmem:[%s5345 + $0x60] sm:$0xff]
        %v5359 = vld [vmem:[%s5345 + $0x68] sm:$0xff]
        %v5360 = vld [vmem:[%s5345 + $0x70] sm:$0xff]
        %v5361 = vld [vmem:[%s5345 + $0x78] sm:$0xff]
        %s5362 = scalar_lea.vmem %s8, 2
        %v5363 = vld [vmem:[%s5362] sm:$0x3]
        %v5365 = vlaneseq
        %v5366 = vshrl.u32 %v5365, 7
        %v5367 = vsub.s32 0, %v5366
        %v5368 = vrot.slane %v5363, %v5367
        %v5369 = vlaneseq
        %v5370 = vshrl.u32 %v5369, 7
        %v5371 = vsub.s32 1, %v5370
        %v5372 = vrot.slane %v5363, %v5371
        %v5391 = vunpack.c.l.b16 %v5346
        %v5392 = vunpack.c.h.b16 %v5346
        %v5393 = vunpack.c.l.b16 %v5347
        %v5394 = vunpack.c.h.b16 %v5347
        %v5395 = vunpack.c.l.b16 %v5348
        %v5396 = vunpack.c.h.b16 %v5348
        %v5397 = vunpack.c.l.b16 %v5349
        %v5398 = vunpack.c.h.b16 %v5349
        %v5399 = vunpack.c.l.b16 %v5350
        %v5400 = vunpack.c.h.b16 %v5350
        %v5401 = vunpack.c.l.b16 %v5351
        %v5402 = vunpack.c.h.b16 %v5351
        %v5403 = vunpack.c.l.b16 %v5352
        %v5404 = vunpack.c.h.b16 %v5352
        %v5405 = vunpack.c.l.b16 %v5353
        %v5406 = vunpack.c.h.b16 %v5353
        %v5407 = vunpack.c.l.b16 %v5354
        %v5408 = vunpack.c.h.b16 %v5354
        %v5409 = vunpack.c.l.b16 %v5355
        %v5410 = vunpack.c.h.b16 %v5355
        %v5411 = vunpack.c.l.b16 %v5356
        %v5412 = vunpack.c.h.b16 %v5356
        %v5413 = vunpack.c.l.b16 %v5357
        %v5414 = vunpack.c.h.b16 %v5357
        %v5415 = vunpack.c.l.b16 %v5358
        %v5416 = vunpack.c.h.b16 %v5358
        %v5417 = vunpack.c.l.b16 %v5359
        %v5418 = vunpack.c.h.b16 %v5359
        %v5419 = vunpack.c.l.b16 %v5360
        %v5420 = vunpack.c.h.b16 %v5360
        %v5421 = vunpack.c.l.b16 %v5361
        %v5422 = vunpack.c.h.b16 %v5361
        %v5423 = vpack.c.b16 %v5393, %v5391
        %v5424 = vpack.c.b16 %v5394, %v5392
        %v5425 = vpack.c.b16 %v5397, %v5395
        %v5426 = vpack.c.b16 %v5398, %v5396
        %v5427 = vpack.c.b16 %v5401, %v5399
        %v5428 = vpack.c.b16 %v5402, %v5400
        %v5429 = vpack.c.b16 %v5405, %v5403
        %v5430 = vpack.c.b16 %v5406, %v5404
        %v5431 = vpack.c.b16 %v5409, %v5407
        %v5432 = vpack.c.b16 %v5410, %v5408
        %v5433 = vpack.c.b16 %v5413, %v5411
        %v5434 = vpack.c.b16 %v5414, %v5412
        %v5435 = vpack.c.b16 %v5417, %v5415
        %v5436 = vpack.c.b16 %v5418, %v5416
        %v5437 = vpack.c.b16 %v5421, %v5419
        %v5438 = vpack.c.b16 %v5422, %v5420
        %5455 = vmatprep.subr.bf16.mxu0 %v5424
        %5456 = vmatpush1.bf16.msra.mxu0 %v5423
        %5457 = vmatprep.subr.bf16.mxu0 %v5426
        %5458 = vmatpush1.bf16.msra.mxu0 %v5425
        %5459 = vmatprep.subr.bf16.mxu0 %v5428
        %5460 = vmatpush1.bf16.msra.mxu0 %v5427
        %5461 = vmatprep.subr.bf16.mxu0 %v5430
        %5462 = vmatpush1.bf16.msra.mxu0 %v5429
        %5463 = vmatprep.subr.bf16.mxu0 %v5432
        %5464 = vmatpush1.bf16.msra.mxu0 %v5431
        %5465 = vmatprep.subr.bf16.mxu0 %v5434
        %5466 = vmatpush1.bf16.msra.mxu0 %v5433
        %5467 = vmatprep.subr.bf16.mxu0 %v5436
        %5468 = vmatpush1.bf16.msra.mxu0 %v5435
        %5469 = vmatprep.subr.bf16.mxu0 %v5438
        %5470 = vmatpush1.bf16.msra.mxu0 %v5437
        %5471 = vmatprep.subr.bf16.mxu0 0
        %5472 = vmatpush1.bf16.msra.mxu0 0
        %5473 = vmatprep.subr.bf16.mxu0 0
        %5474 = vmatpush1.bf16.msra.mxu0 0
        %5475 = vmatprep.subr.bf16.mxu0 0
        %5476 = vmatpush1.bf16.msra.mxu0 0
        %5477 = vmatprep.subr.bf16.mxu0 0
        %5478 = vmatpush1.bf16.msra.mxu0 0
        %5479 = vmatprep.subr.bf16.mxu0 0
        %5480 = vmatpush1.bf16.msra.mxu0 0
        %5481 = vmatprep.subr.bf16.mxu0 0
        %5482 = vmatpush1.bf16.msra.mxu0 0
        %5483 = vmatprep.subr.bf16.mxu0 0
        %5484 = vmatpush1.bf16.msra.mxu0 0
        %5485 = vmatprep.subr.bf16.mxu0 0
        %5486 = vmatpush1.bf16.msra.mxu0 0
        %5487 = vmatprep.mubr.bf16.mxu0 0
        %5488 = vmatmul.mubr.bf16.gmra.mrb[0].mxu0 %v5337
        %v5489 = vpop.f32.mrb[0].mxu0
        %v5490 = vadd.f32 %v5368, %v5489
        %v5491 = vpop.f32.mrb[0].mxu0
        %v5492 = vadd.f32 %v5372, %v5491
        %v5493 = vpop.f32.mrb[0].mxu0
        %v5494 = vadd.f32 %v5368, %v5493
        %v5495 = vpop.f32.mrb[0].mxu0
        %v5496 = vadd.f32 %v5372, %v5495
        %5497 = vmatprep.mubr.bf16.mxu0 0
        %5498 = vmatmul.mubr.bf16.gmra.mrb[0].mxu0 %v5338
        %v5499 = vpop.f32.mrb[0].mxu0
        %v5500 = vadd.f32 %v5368, %v5499
        %v5501 = vpop.f32.mrb[0].mxu0
        %v5502 = vadd.f32 %v5372, %v5501
        %v5503 = vpop.f32.mrb[0].mxu0
        %v5504 = vadd.f32 %v5368, %v5503
        %v5505 = vpop.f32.mrb[0].mxu0
        %v5506 = vadd.f32 %v5372, %v5505
        %5507 = vmatprep.mubr.bf16.mxu0 0
        %5508 = vmatmul.mubr.bf16.gmra.mrb[0].mxu0 %v5339
        %v5509 = vpop.f32.mrb[0].mxu0
        %v5510 = vadd.f32 %v5368, %v5509
        %v5511 = vpop.f32.mrb[0].mxu0
        %v5512 = vadd.f32 %v5372, %v5511
        %v5513 = vpop.f32.mrb[0].mxu0
        %v5514 = vadd.f32 %v5368, %v5513
        %v5515 = vpop.f32.mrb[0].mxu0
        %v5516 = vadd.f32 %v5372, %v5515
        %5517 = vmatprep.mubr.bf16.mxu0 0
        %5518 = vmatmul.mubr.bf16.gmra.mrb[0].mxu0 %v5340
        %v5519 = vpop.f32.mrb[0].mxu0
        %v5520 = vadd.f32 %v5368, %v5519
        %v5521 = vpop.f32.mrb[0].mxu0
        %v5522 = vadd.f32 %v5372, %v5521
        %v5523 = vpop.f32.mrb[0].mxu0
        %v5524 = vadd.f32 %v5368, %v5523
        %v5525 = vpop.f32.mrb[0].mxu0
        %v5526 = vadd.f32 %v5372, %v5525
        %5527 = vmatprep.mubr.bf16.mxu0 0
        %5528 = vmatmul.mubr.bf16.gmra.mrb[0].mxu0 %v5341
        %v5529 = vpop.f32.mrb[0].mxu0
        %v5530 = vadd.f32 %v5368, %v5529
        %v5531 = vpop.f32.mrb[0].mxu0
        %v5532 = vadd.f32 %v5372, %v5531
        %v5533 = vpop.f32.mrb[0].mxu0
        %v5534 = vadd.f32 %v5368, %v5533
        %v5535 = vpop.f32.mrb[0].mxu0
        %v5536 = vadd.f32 %v5372, %v5535
        %5537 = vmatprep.mubr.bf16.mxu0 0
        %5538 = vmatmul.mubr.bf16.gmra.mrb[0].mxu0 %v5342
        %v5539 = vpop.f32.mrb[0].mxu0
        %v5540 = vadd.f32 %v5368, %v5539
        %v5541 = vpop.f32.mrb[0].mxu0
        %v5542 = vadd.f32 %v5372, %v5541
        %v5543 = vpop.f32.mrb[0].mxu0
        %v5544 = vadd.f32 %v5368, %v5543
        %v5545 = vpop.f32.mrb[0].mxu0
        %v5546 = vadd.f32 %v5372, %v5545
        %5547 = vmatprep.mubr.bf16.mxu0 0
        %5548 = vmatmul.mubr.bf16.gmra.mrb[0].mxu0 %v5343
        %v5549 = vpop.f32.mrb[0].mxu0
        %v5550 = vadd.f32 %v5368, %v5549
        %v5551 = vpop.f32.mrb[0].mxu0
        %v5552 = vadd.f32 %v5372, %v5551
        %v5553 = vpop.f32.mrb[0].mxu0
        %v5554 = vadd.f32 %v5368, %v5553
        %v5555 = vpop.f32.mrb[0].mxu0
        %v5556 = vadd.f32 %v5372, %v5555
        %5557 = vmatprep.mubr.bf16.mxu0 0
        %5558 = vmatmul.mubr.bf16.gmra.mrb[0].mxu0 %v5344
        %v5559 = vpop.f32.mrb[0].mxu0
        %v5560 = vadd.f32 %v5368, %v5559
        %v5561 = vpop.f32.mrb[0].mxu0
        %v5562 = vadd.f32 %v5372, %v5561
        %v5563 = vpop.f32.mrb[0].mxu0
        %v5564 = vadd.f32 %v5368, %v5563
        %v5565 = vpop.f32.mrb[0].mxu0
        %v5566 = vadd.f32 %v5372, %v5565
        %5567 = vdwg.mxu0
        %v5568 = vmul.f32 %v5490, 0.5
        %v5569 = vmul.f32 %v5492, 0.5
        %v5570 = vmul.f32 %v5494, 0.5
        %v5571 = vmul.f32 %v5496, 0.5
        %v5572 = vmul.f32 %v5500, 0.5
        %v5573 = vmul.f32 %v5502, 0.5
        %v5574 = vmul.f32 %v5504, 0.5
        %v5575 = vmul.f32 %v5506, 0.5
        %v5576 = vmul.f32 %v5510, 0.5
        %v5577 = vmul.f32 %v5512, 0.5
        %v5578 = vmul.f32 %v5514, 0.5
        %v5579 = vmul.f32 %v5516, 0.5
        %v5580 = vmul.f32 %v5520, 0.5
        %v5581 = vmul.f32 %v5522, 0.5
        %v5582 = vmul.f32 %v5524, 0.5
        %v5583 = vmul.f32 %v5526, 0.5
        %v5584 = vmul.f32 %v5530, 0.5
        %v5585 = vmul.f32 %v5532, 0.5
        %v5586 = vmul.f32 %v5534, 0.5
        %v5587 = vmul.f32 %v5536, 0.5
        %v5588 = vmul.f32 %v5540, 0.5
        %v5589 = vmul.f32 %v5542, 0.5
        %v5590 = vmul.f32 %v5544, 0.5
        %v5591 = vmul.f32 %v5546, 0.5
        %v5592 = vmul.f32 %v5550, 0.5
        %v5593 = vmul.f32 %v5552, 0.5
        %v5594 = vmul.f32 %v5554, 0.5
        %v5595 = vmul.f32 %v5556, 0.5
        %v5596 = vmul.f32 %v5560, 0.5
        %v5597 = vmul.f32 %v5562, 0.5
        %v5598 = vmul.f32 %v5564, 0.5
        %v5599 = vmul.f32 %v5566, 0.5
        %v5600 = vmul.f32 %v5490, 0.044715
        %v5601 = vmul.f32 %v5492, 0.044715
        %v5602 = vmul.f32 %v5494, 0.044715
        %v5603 = vmul.f32 %v5496, 0.044715
        %v5604 = vmul.f32 %v5500, 0.044715
        %v5605 = vmul.f32 %v5502, 0.044715
        %v5606 = vmul.f32 %v5504, 0.044715
        %v5607 = vmul.f32 %v5506, 0.044715
        %v5608 = vmul.f32 %v5510, 0.044715
        %v5609 = vmul.f32 %v5512, 0.044715
        %v5610 = vmul.f32 %v5514, 0.044715
        %v5611 = vmul.f32 %v5516, 0.044715
        %v5612 = vmul.f32 %v5520, 0.044715
        %v5613 = vmul.f32 %v5522, 0.044715
        %v5614 = vmul.f32 %v5524, 0.044715
        %v5615 = vmul.f32 %v5526, 0.044715
        %v5616 = vmul.f32 %v5530, 0.044715
        %v5617 = vmul.f32 %v5532, 0.044715
        %v5618 = vmul.f32 %v5534, 0.044715
        %v5619 = vmul.f32 %v5536, 0.044715
        %v5620 = vmul.f32 %v5540, 0.044715
        %v5621 = vmul.f32 %v5542, 0.044715
        %v5622 = vmul.f32 %v5544, 0.044715
        %v5623 = vmul.f32 %v5546, 0.044715
        %v5624 = vmul.f32 %v5550, 0.044715
        %v5625 = vmul.f32 %v5552, 0.044715
        %v5626 = vmul.f32 %v5554, 0.044715
        %v5627 = vmul.f32 %v5556, 0.044715
        %v5628 = vmul.f32 %v5560, 0.044715
        %v5629 = vmul.f32 %v5562, 0.044715
        %v5630 = vmul.f32 %v5564, 0.044715
        %v5631 = vmul.f32 %v5566, 0.044715
        %v5632 = vmul.f32 %v5600, %v5490
        %v5633 = vmul.f32 %v5601, %v5492
        %v5634 = vmul.f32 %v5602, %v5494
        %v5635 = vmul.f32 %v5603, %v5496
        %v5636 = vmul.f32 %v5604, %v5500
        %v5637 = vmul.f32 %v5605, %v5502
        %v5638 = vmul.f32 %v5606, %v5504
        %v5639 = vmul.f32 %v5607, %v5506
        %v5640 = vmul.f32 %v5608, %v5510
        %v5641 = vmul.f32 %v5609, %v5512
        %v5642 = vmul.f32 %v5610, %v5514
        %v5643 = vmul.f32 %v5611, %v5516
        %v5644 = vmul.f32 %v5612, %v5520
        %v5645 = vmul.f32 %v5613, %v5522
        %v5646 = vmul.f32 %v5614, %v5524
        %v5647 = vmul.f32 %v5615, %v5526
        %v5648 = vmul.f32 %v5616, %v5530
        %v5649 = vmul.f32 %v5617, %v5532
        %v5650 = vmul.f32 %v5618, %v5534
        %v5651 = vmul.f32 %v5619, %v5536
        %v5652 = vmul.f32 %v5620, %v5540
        %v5653 = vmul.f32 %v5621, %v5542
        %v5654 = vmul.f32 %v5622, %v5544
        %v5655 = vmul.f32 %v5623, %v5546
        %v5656 = vmul.f32 %v5624, %v5550
        %v5657 = vmul.f32 %v5625, %v5552
        %v5658 = vmul.f32 %v5626, %v5554
        %v5659 = vmul.f32 %v5627, %v5556
        %v5660 = vmul.f32 %v5628, %v5560
        %v5661 = vmul.f32 %v5629, %v5562
        %v5662 = vmul.f32 %v5630, %v5564
        %v5663 = vmul.f32 %v5631, %v5566
        %v5664 = vmul.f32 %v5632, %v5490
        %v5665 = vmul.f32 %v5633, %v5492
        %v5666 = vmul.f32 %v5634, %v5494
        %v5667 = vmul.f32 %v5635, %v5496
        %v5668 = vmul.f32 %v5636, %v5500
        %v5669 = vmul.f32 %v5637, %v5502
        %v5670 = vmul.f32 %v5638, %v5504
        %v5671 = vmul.f32 %v5639, %v5506
        %v5672 = vmul.f32 %v5640, %v5510
        %v5673 = vmul.f32 %v5641, %v5512
        %v5674 = vmul.f32 %v5642, %v5514
        %v5675 = vmul.f32 %v5643, %v5516
        %v5676 = vmul.f32 %v5644, %v5520
        %v5677 = vmul.f32 %v5645, %v5522
        %v5678 = vmul.f32 %v5646, %v5524
        %v5679 = vmul.f32 %v5647, %v5526
        %v5680 = vmul.f32 %v5648, %v5530
        %v5681 = vmul.f32 %v5649, %v5532
        %v5682 = vmul.f32 %v5650, %v5534
        %v5683 = vmul.f32 %v5651, %v5536
        %v5684 = vmul.f32 %v5652, %v5540
        %v5685 = vmul.f32 %v5653, %v5542
        %v5686 = vmul.f32 %v5654, %v5544
        %v5687 = vmul.f32 %v5655, %v5546
        %v5688 = vmul.f32 %v5656, %v5550
        %v5689 = vmul.f32 %v5657, %v5552
        %v5690 = vmul.f32 %v5658, %v5554
        %v5691 = vmul.f32 %v5659, %v5556
        %v5692 = vmul.f32 %v5660, %v5560
        %v5693 = vmul.f32 %v5661, %v5562
        %v5694 = vmul.f32 %v5662, %v5564
        %v5695 = vmul.f32 %v5663, %v5566
        %v5696 = vadd.f32 %v5490, %v5664
        %v5697 = vadd.f32 %v5492, %v5665
        %v5698 = vadd.f32 %v5494, %v5666
        %v5699 = vadd.f32 %v5496, %v5667
        %v5700 = vadd.f32 %v5500, %v5668
        %v5701 = vadd.f32 %v5502, %v5669
        %v5702 = vadd.f32 %v5504, %v5670
        %v5703 = vadd.f32 %v5506, %v5671
        %v5704 = vadd.f32 %v5510, %v5672
        %v5705 = vadd.f32 %v5512, %v5673
        %v5706 = vadd.f32 %v5514, %v5674
        %v5707 = vadd.f32 %v5516, %v5675
        %v5708 = vadd.f32 %v5520, %v5676
        %v5709 = vadd.f32 %v5522, %v5677
        %v5710 = vadd.f32 %v5524, %v5678
        %v5711 = vadd.f32 %v5526, %v5679
        %v5712 = vadd.f32 %v5530, %v5680
        %v5713 = vadd.f32 %v5532, %v5681
        %v5714 = vadd.f32 %v5534, %v5682
        %v5715 = vadd.f32 %v5536, %v5683
        %v5716 = vadd.f32 %v5540, %v5684
        %v5717 = vadd.f32 %v5542, %v5685
        %v5718 = vadd.f32 %v5544, %v5686
        %v5719 = vadd.f32 %v5546, %v5687
        %v5720 = vadd.f32 %v5550, %v5688
        %v5721 = vadd.f32 %v5552, %v5689
        %v5722 = vadd.f32 %v5554, %v5690
        %v5723 = vadd.f32 %v5556, %v5691
        %v5724 = vadd.f32 %v5560, %v5692
        %v5725 = vadd.f32 %v5562, %v5693
        %v5726 = vadd.f32 %v5564, %v5694
        %v5727 = vadd.f32 %v5566, %v5695
        %v5728 = vmul.f32 %v5696, 0.7978846
        %v5729 = vmul.f32 %v5697, 0.7978846
        %v5730 = vmul.f32 %v5698, 0.7978846
        %v5731 = vmul.f32 %v5699, 0.7978846
        %v5732 = vmul.f32 %v5700, 0.7978846
        %v5733 = vmul.f32 %v5701, 0.7978846
        %v5734 = vmul.f32 %v5702, 0.7978846
        %v5735 = vmul.f32 %v5703, 0.7978846
        %v5736 = vmul.f32 %v5704, 0.7978846
        %v5737 = vmul.f32 %v5705, 0.7978846
        %v5738 = vmul.f32 %v5706, 0.7978846
        %v5739 = vmul.f32 %v5707, 0.7978846
        %v5740 = vmul.f32 %v5708, 0.7978846
        %v5741 = vmul.f32 %v5709, 0.7978846
        %v5742 = vmul.f32 %v5710, 0.7978846
        %v5743 = vmul.f32 %v5711, 0.7978846
        %v5744 = vmul.f32 %v5712, 0.7978846
        %v5745 = vmul.f32 %v5713, 0.7978846
        %v5746 = vmul.f32 %v5714, 0.7978846
        %v5747 = vmul.f32 %v5715, 0.7978846
        %v5748 = vmul.f32 %v5716, 0.7978846
        %v5749 = vmul.f32 %v5717, 0.7978846
        %v5750 = vmul.f32 %v5718, 0.7978846
        %v5751 = vmul.f32 %v5719, 0.7978846
        %v5752 = vmul.f32 %v5720, 0.7978846
        %v5753 = vmul.f32 %v5721, 0.7978846
        %v5754 = vmul.f32 %v5722, 0.7978846
        %v5755 = vmul.f32 %v5723, 0.7978846
        %v5756 = vmul.f32 %v5724, 0.7978846
        %v5757 = vmul.f32 %v5725, 0.7978846
        %v5758 = vmul.f32 %v5726, 0.7978846
        %v5759 = vmul.f32 %v5727, 0.7978846
        %v5760 = vtanh.pop %v5728
        %v5761 = vtanh.pop %v5729
        %v5762 = vtanh.pop %v5730
        %v5763 = vtanh.pop %v5731
        %v5764 = vtanh.pop %v5732
        %v5765 = vtanh.pop %v5733
        %v5766 = vtanh.pop %v5734
        %v5767 = vtanh.pop %v5735
        %v5768 = vtanh.pop %v5736
        %v5769 = vtanh.pop %v5737
        %v5770 = vtanh.pop %v5738
        %v5771 = vtanh.pop %v5739
        %v5772 = vtanh.pop %v5740
        %v5773 = vtanh.pop %v5741
        %v5774 = vtanh.pop %v5742
        %v5775 = vtanh.pop %v5743
        %v5776 = vtanh.pop %v5744
        %v5777 = vtanh.pop %v5745
        %v5778 = vtanh.pop %v5746
        %v5779 = vtanh.pop %v5747
        %v5780 = vtanh.pop %v5748
        %v5781 = vtanh.pop %v5749
        %v5782 = vtanh.pop %v5750
        %v5783 = vtanh.pop %v5751
        %v5784 = vtanh.pop %v5752
        %v5785 = vtanh.pop %v5753
        %v5786 = vtanh.pop %v5754
        %v5787 = vtanh.pop %v5755
        %v5788 = vtanh.pop %v5756
        %v5789 = vtanh.pop %v5757
        %v5790 = vtanh.pop %v5758
        %v5791 = vtanh.pop %v5759
        %v5792 = vadd.f32 %v5760, 1.0
        %v5793 = vadd.f32 %v5761, 1.0
        %v5794 = vadd.f32 %v5762, 1.0
        %v5795 = vadd.f32 %v5763, 1.0
        %v5796 = vadd.f32 %v5764, 1.0
        %v5797 = vadd.f32 %v5765, 1.0
        %v5798 = vadd.f32 %v5766, 1.0
        %v5799 = vadd.f32 %v5767, 1.0
        %v5800 = vadd.f32 %v5768, 1.0
        %v5801 = vadd.f32 %v5769, 1.0
        %v5802 = vadd.f32 %v5770, 1.0
        %v5803 = vadd.f32 %v5771, 1.0
        %v5804 = vadd.f32 %v5772, 1.0
        %v5805 = vadd.f32 %v5773, 1.0
        %v5806 = vadd.f32 %v5774, 1.0
        %v5807 = vadd.f32 %v5775, 1.0
        %v5808 = vadd.f32 %v5776, 1.0
        %v5809 = vadd.f32 %v5777, 1.0
        %v5810 = vadd.f32 %v5778, 1.0
        %v5811 = vadd.f32 %v5779, 1.0
        %v5812 = vadd.f32 %v5780, 1.0
        %v5813 = vadd.f32 %v5781, 1.0
        %v5814 = vadd.f32 %v5782, 1.0
        %v5815 = vadd.f32 %v5783, 1.0
        %v5816 = vadd.f32 %v5784, 1.0
        %v5817 = vadd.f32 %v5785, 1.0
        %v5818 = vadd.f32 %v5786, 1.0
        %v5819 = vadd.f32 %v5787, 1.0
        %v5820 = vadd.f32 %v5788, 1.0
        %v5821 = vadd.f32 %v5789, 1.0
        %v5822 = vadd.f32 %v5790, 1.0
        %v5823 = vadd.f32 %v5791, 1.0
        %v5824 = vmul.f32 %v5568, %v5792
        %v5825 = vmul.f32 %v5569, %v5793
        %v5826 = vmul.f32 %v5570, %v5794
        %v5827 = vmul.f32 %v5571, %v5795
        %v5828 = vmul.f32 %v5572, %v5796
        %v5829 = vmul.f32 %v5573, %v5797
        %v5830 = vmul.f32 %v5574, %v5798
        %v5831 = vmul.f32 %v5575, %v5799
        %v5832 = vmul.f32 %v5576, %v5800
        %v5833 = vmul.f32 %v5577, %v5801
        %v5834 = vmul.f32 %v5578, %v5802
        %v5835 = vmul.f32 %v5579, %v5803
        %v5836 = vmul.f32 %v5580, %v5804
        %v5837 = vmul.f32 %v5581, %v5805
        %v5838 = vmul.f32 %v5582, %v5806
        %v5839 = vmul.f32 %v5583, %v5807
        %v5840 = vmul.f32 %v5584, %v5808
        %v5841 = vmul.f32 %v5585, %v5809
        %v5842 = vmul.f32 %v5586, %v5810
        %v5843 = vmul.f32 %v5587, %v5811
        %v5844 = vmul.f32 %v5588, %v5812
        %v5845 = vmul.f32 %v5589, %v5813
        %v5846 = vmul.f32 %v5590, %v5814
        %v5847 = vmul.f32 %v5591, %v5815
        %v5848 = vmul.f32 %v5592, %v5816
        %v5849 = vmul.f32 %v5593, %v5817
        %v5850 = vmul.f32 %v5594, %v5818
        %v5851 = vmul.f32 %v5595, %v5819
        %v5852 = vmul.f32 %v5596, %v5820
        %v5853 = vmul.f32 %v5597, %v5821
        %v5854 = vmul.f32 %v5598, %v5822
        %v5855 = vmul.f32 %v5599, %v5823
        %v5856 = vpack.c.bf16 %v5826, %v5824
        %v5857 = vpack.c.bf16 %v5827, %v5825
        %v5858 = vpack.c.bf16 %v5830, %v5828
        %v5859 = vpack.c.bf16 %v5831, %v5829
        %v5860 = vpack.c.bf16 %v5834, %v5832
        %v5861 = vpack.c.bf16 %v5835, %v5833
        %v5862 = vpack.c.bf16 %v5838, %v5836
        %v5863 = vpack.c.bf16 %v5839, %v5837
        %v5864 = vpack.c.bf16 %v5842, %v5840
        %v5865 = vpack.c.bf16 %v5843, %v5841
        %v5866 = vpack.c.bf16 %v5846, %v5844
        %v5867 = vpack.c.bf16 %v5847, %v5845
        %v5868 = vpack.c.bf16 %v5850, %v5848
        %v5869 = vpack.c.bf16 %v5851, %v5849
        %v5870 = vpack.c.bf16 %v5854, %v5852
        %v5871 = vpack.c.bf16 %v5855, %v5853
        %s5872 = scalar_lea.vmem %s6, 128
        %v5873 = vld [vmem:[%s5872] sm:$0xf]
        %v5874 = vld [vmem:[%s5872 + $0x4] sm:$0xf]
        %v5875 = vld [vmem:[%s5872 + $0x8] sm:$0xf]
        %v5876 = vld [vmem:[%s5872 + $0xc] sm:$0xf]
        %v5877 = vld [vmem:[%s5872 + $0x10] sm:$0xf]
        %v5878 = vld [vmem:[%s5872 + $0x14] sm:$0xf]
        %v5879 = vld [vmem:[%s5872 + $0x18] sm:$0xf]
        %v5880 = vld [vmem:[%s5872 + $0x1c] sm:$0xf]
        %v5881 = vld [vmem:[%s5872 + $0x20] sm:$0xf]
        %v5882 = vld [vmem:[%s5872 + $0x24] sm:$0xf]
        %v5883 = vld [vmem:[%s5872 + $0x28] sm:$0xf]
        %v5884 = vld [vmem:[%s5872 + $0x2c] sm:$0xf]
        %v5885 = vld [vmem:[%s5872 + $0x30] sm:$0xf]
        %v5886 = vld [vmem:[%s5872 + $0x34] sm:$0xf]
        %v5887 = vld [vmem:[%s5872 + $0x38] sm:$0xf]
        %v5888 = vld [vmem:[%s5872 + $0x3c] sm:$0xf]
        %v5889 = vld [vmem:[%s5872 + $0x40] sm:$0xf]
        %v5890 = vld [vmem:[%s5872 + $0x44] sm:$0xf]
        %v5891 = vld [vmem:[%s5872 + $0x48] sm:$0xf]
        %v5892 = vld [vmem:[%s5872 + $0x4c] sm:$0xf]
        %v5893 = vld [vmem:[%s5872 + $0x50] sm:$0xf]
        %v5894 = vld [vmem:[%s5872 + $0x54] sm:$0xf]
        %v5895 = vld [vmem:[%s5872 + $0x58] sm:$0xf]
        %v5896 = vld [vmem:[%s5872 + $0x5c] sm:$0xf]
        %v5897 = vld [vmem:[%s5872 + $0x60] sm:$0xf]
        %v5898 = vld [vmem:[%s5872 + $0x64] sm:$0xf]
        %v5899 = vld [vmem:[%s5872 + $0x68] sm:$0xf]
        %v5900 = vld [vmem:[%s5872 + $0x6c] sm:$0xf]
        %v5901 = vld [vmem:[%s5872 + $0x70] sm:$0xf]
        %v5902 = vld [vmem:[%s5872 + $0x74] sm:$0xf]
        %v5903 = vld [vmem:[%s5872 + $0x78] sm:$0xf]
        %v5904 = vld [vmem:[%s5872 + $0x7c] sm:$0xf]
        %v5905 = vlaneseq
        %v5906 = vshrl.u32 %v5905, 7
        %v5907 = vsub.s32 3, %v5906
        %v5908 = vrot.slane %v3472, %v5907
        %v5941 = vunpack.c.l.b16 %v5873
        %v5942 = vunpack.c.l.b16 %v5874
        %v5943 = vunpack.c.l.b16 %v5875
        %v5944 = vunpack.c.l.b16 %v5876
        %v5945 = vunpack.c.l.b16 %v5877
        %v5946 = vunpack.c.l.b16 %v5878
        %v5947 = vunpack.c.l.b16 %v5879
        %v5948 = vunpack.c.l.b16 %v5880
        %v5949 = vunpack.c.l.b16 %v5881
        %v5950 = vunpack.c.l.b16 %v5882
        %v5951 = vunpack.c.l.b16 %v5883
        %v5952 = vunpack.c.l.b16 %v5884
        %v5953 = vunpack.c.l.b16 %v5885
        %v5954 = vunpack.c.l.b16 %v5886
        %v5955 = vunpack.c.l.b16 %v5887
        %v5956 = vunpack.c.l.b16 %v5888
        %v5957 = vunpack.c.l.b16 %v5889
        %v5958 = vunpack.c.l.b16 %v5890
        %v5959 = vunpack.c.l.b16 %v5891
        %v5960 = vunpack.c.l.b16 %v5892
        %v5961 = vunpack.c.l.b16 %v5893
        %v5962 = vunpack.c.l.b16 %v5894
        %v5963 = vunpack.c.l.b16 %v5895
        %v5964 = vunpack.c.l.b16 %v5896
        %v5965 = vunpack.c.l.b16 %v5897
        %v5966 = vunpack.c.l.b16 %v5898
        %v5967 = vunpack.c.l.b16 %v5899
        %v5968 = vunpack.c.l.b16 %v5900
        %v5969 = vunpack.c.l.b16 %v5901
        %v5970 = vunpack.c.l.b16 %v5902
        %v5971 = vunpack.c.l.b16 %v5903
        %v5972 = vunpack.c.l.b16 %v5904
        %v5973 = vpack.c.b16 %v5942, %v5941
        %v5974 = vpack.c.b16 %v5944, %v5943
        %v5975 = vpack.c.b16 %v5946, %v5945
        %v5976 = vpack.c.b16 %v5948, %v5947
        %v5977 = vpack.c.b16 %v5950, %v5949
        %v5978 = vpack.c.b16 %v5952, %v5951
        %v5979 = vpack.c.b16 %v5954, %v5953
        %v5980 = vpack.c.b16 %v5956, %v5955
        %v5981 = vpack.c.b16 %v5958, %v5957
        %v5982 = vpack.c.b16 %v5960, %v5959
        %v5983 = vpack.c.b16 %v5962, %v5961
        %v5984 = vpack.c.b16 %v5964, %v5963
        %v5985 = vpack.c.b16 %v5966, %v5965
        %v5986 = vpack.c.b16 %v5968, %v5967
        %v5987 = vpack.c.b16 %v5970, %v5969
        %v5988 = vpack.c.b16 %v5972, %v5971
        %6005 = vmatprep.subr.bf16.mxu0 0
        %6006 = vmatpush1.bf16.msra.mxu0 %v5973
        %6007 = vmatprep.subr.bf16.mxu0 0
        %6008 = vmatpush1.bf16.msra.mxu0 %v5974
        %6009 = vmatprep.subr.bf16.mxu0 0
        %6010 = vmatpush1.bf16.msra.mxu0 %v5975
        %6011 = vmatprep.subr.bf16.mxu0 0
        %6012 = vmatpush1.bf16.msra.mxu0 %v5976
        %6013 = vmatprep.subr.bf16.mxu0 0
        %6014 = vmatpush1.bf16.msra.mxu0 %v5977
        %6015 = vmatprep.subr.bf16.mxu0 0
        %6016 = vmatpush1.bf16.msra.mxu0 %v5978
        %6017 = vmatprep.subr.bf16.mxu0 0
        %6018 = vmatpush1.bf16.msra.mxu0 %v5979
        %6019 = vmatprep.subr.bf16.mxu0 0
        %6020 = vmatpush1.bf16.msra.mxu0 %v5980
        %6021 = vmatprep.subr.bf16.mxu0 0
        %6022 = vmatpush1.bf16.msra.mxu0 %v5981
        %6023 = vmatprep.subr.bf16.mxu0 0
        %6024 = vmatpush1.bf16.msra.mxu0 %v5982
        %6025 = vmatprep.subr.bf16.mxu0 0
        %6026 = vmatpush1.bf16.msra.mxu0 %v5983
        %6027 = vmatprep.subr.bf16.mxu0 0
        %6028 = vmatpush1.bf16.msra.mxu0 %v5984
        %6029 = vmatprep.subr.bf16.mxu0 0
        %6030 = vmatpush1.bf16.msra.mxu0 %v5985
        %6031 = vmatprep.subr.bf16.mxu0 0
        %6032 = vmatpush1.bf16.msra.mxu0 %v5986
        %6033 = vmatprep.subr.bf16.mxu0 0
        %6034 = vmatpush1.bf16.msra.mxu0 %v5987
        %6035 = vmatprep.subr.bf16.mxu0 0
        %6036 = vmatpush1.bf16.msra.mxu0 %v5988
        %6037 = vmatprep.mubr.bf16.mxu0 %v5857
        %6038 = vmatmul.mubr.bf16.gmra.mrb[0].mxu0 %v5856
        %v6039 = vpop.f32.mrb[0].mxu0
        %v6040 = vadd.f32 %v5908, %v6039
        %v6041 = vpop.f32.mrb[0].mxu0
        %v6042 = vpop.f32.mrb[0].mxu0
        %v6043 = vadd.f32 %v5908, %v6042
        %v6044 = vpop.f32.mrb[0].mxu0
        %6045 = vmatprep.mubr.bf16.mxu0 %v5859
        %6046 = vmatmul.mubr.bf16.gmra.mrb[0].mxu0 %v5858
        %v6047 = vpop.f32.mrb[0].mxu0
        %v6048 = vadd.f32 %v5908, %v6047
        %v6049 = vpop.f32.mrb[0].mxu0
        %v6050 = vpop.f32.mrb[0].mxu0
        %v6051 = vadd.f32 %v5908, %v6050
        %v6052 = vpop.f32.mrb[0].mxu0
        %6053 = vmatprep.mubr.bf16.mxu0 %v5861
        %6054 = vmatmul.mubr.bf16.gmra.mrb[0].mxu0 %v5860
        %v6055 = vpop.f32.mrb[0].mxu0
        %v6056 = vadd.f32 %v5908, %v6055
        %v6057 = vpop.f32.mrb[0].mxu0
        %v6058 = vpop.f32.mrb[0].mxu0
        %v6059 = vadd.f32 %v5908, %v6058
        %v6060 = vpop.f32.mrb[0].mxu0
        %6061 = vmatprep.mubr.bf16.mxu0 %v5863
        %6062 = vmatmul.mubr.bf16.gmra.mrb[0].mxu0 %v5862
        %v6063 = vpop.f32.mrb[0].mxu0
        %v6064 = vadd.f32 %v5908, %v6063
        %v6065 = vpop.f32.mrb[0].mxu0
        %v6066 = vpop.f32.mrb[0].mxu0
        %v6067 = vadd.f32 %v5908, %v6066
        %v6068 = vpop.f32.mrb[0].mxu0
        %6069 = vmatprep.mubr.bf16.mxu0 %v5865
        %6070 = vmatmul.mubr.bf16.gmra.mrb[0].mxu0 %v5864
        %v6071 = vpop.f32.mrb[0].mxu0
        %v6072 = vadd.f32 %v5908, %v6071
        %v6073 = vpop.f32.mrb[0].mxu0
        %v6074 = vpop.f32.mrb[0].mxu0
        %v6075 = vadd.f32 %v5908, %v6074
        %v6076 = vpop.f32.mrb[0].mxu0
        %6077 = vmatprep.mubr.bf16.mxu0 %v5867
        %6078 = vmatmul.mubr.bf16.gmra.mrb[0].mxu0 %v5866
        %v6079 = vpop.f32.mrb[0].mxu0
        %v6080 = vadd.f32 %v5908, %v6079
        %v6081 = vpop.f32.mrb[0].mxu0
        %v6082 = vpop.f32.mrb[0].mxu0
        %v6083 = vadd.f32 %v5908, %v6082
        %v6084 = vpop.f32.mrb[0].mxu0
        %6085 = vmatprep.mubr.bf16.mxu0 %v5869
        %6086 = vmatmul.mubr.bf16.gmra.mrb[0].mxu0 %v5868
        %v6087 = vpop.f32.mrb[0].mxu0
        %v6088 = vadd.f32 %v5908, %v6087
        %v6089 = vpop.f32.mrb[0].mxu0
        %v6090 = vpop.f32.mrb[0].mxu0
        %v6091 = vadd.f32 %v5908, %v6090
        %v6092 = vpop.f32.mrb[0].mxu0
        %6093 = vmatprep.mubr.bf16.mxu0 %v5871
        %6094 = vmatmul.mubr.bf16.gmra.mrb[0].mxu0 %v5870
        %v6095 = vpop.f32.mrb[0].mxu0
        %v6096 = vadd.f32 %v5908, %v6095
        %v6097 = vpop.f32.mrb[0].mxu0
        %v6098 = vpop.f32.mrb[0].mxu0
        %v6099 = vadd.f32 %v5908, %v6098
        %v6100 = vpop.f32.mrb[0].mxu0
        %6101 = vdwg.mxu0
        %v6102 = vadd.f32 %v6040, %v5321
        %v6103 = vadd.f32 %v6043, %v5322
        %v6104 = vadd.f32 %v6048, %v5323
        %v6105 = vadd.f32 %v6051, %v5324
        %v6106 = vadd.f32 %v6056, %v5325
        %v6107 = vadd.f32 %v6059, %v5326
        %v6108 = vadd.f32 %v6064, %v5327
        %v6109 = vadd.f32 %v6067, %v5328
        %v6110 = vadd.f32 %v6072, %v5329
        %v6111 = vadd.f32 %v6075, %v5330
        %v6112 = vadd.f32 %v6080, %v5331
        %v6113 = vadd.f32 %v6083, %v5332
        %v6114 = vadd.f32 %v6088, %v5333
        %v6115 = vadd.f32 %v6091, %v5334
        %v6116 = vadd.f32 %v6096, %v5335
        %v6117 = vadd.f32 %v6099, %v5336
        %6118 = vadd.xlane.f32.xlu0 %v6102
        %v6119 = vpop.xlane.xlu0 %6118
        %6120 = vadd.xlane.f32.xlu0 %v6103
        %v6121 = vpop.xlane.xlu0 %6120
        %6122 = vadd.xlane.f32.xlu0 %v6104
        %v6123 = vpop.xlane.xlu0 %6122
        %6124 = vadd.xlane.f32.xlu0 %v6105
        %v6125 = vpop.xlane.xlu0 %6124
        %6126 = vadd.xlane.f32.xlu0 %v6106
        %v6127 = vpop.xlane.xlu0 %6126
        %6128 = vadd.xlane.f32.xlu0 %v6107
        %v6129 = vpop.xlane.xlu0 %6128
        %6130 = vadd.xlane.f32.xlu0 %v6108
        %v6131 = vpop.xlane.xlu0 %6130
        %6132 = vadd.xlane.f32.xlu0 %v6109
        %v6133 = vpop.xlane.xlu0 %6132
        %6134 = vadd.xlane.f32.xlu0 %v6110
        %v6135 = vpop.xlane.xlu0 %6134
        %6136 = vadd.xlane.f32.xlu0 %v6111
        %v6137 = vpop.xlane.xlu0 %6136
        %6138 = vadd.xlane.f32.xlu0 %v6112
        %v6139 = vpop.xlane.xlu0 %6138
        %6140 = vadd.xlane.f32.xlu0 %v6113
        %v6141 = vpop.xlane.xlu0 %6140
        %6142 = vadd.xlane.f32.xlu0 %v6114
        %v6143 = vpop.xlane.xlu0 %6142
        %6144 = vadd.xlane.f32.xlu0 %v6115
        %v6145 = vpop.xlane.xlu0 %6144
        %6146 = vadd.xlane.f32.xlu0 %v6116
        %v6147 = vpop.xlane.xlu0 %6146
        %6148 = vadd.xlane.f32.xlu0 %v6117
        %v6149 = vpop.xlane.xlu0 %6148
        %v6150 = vmul.f32 %v6119, %v423
        %v6151 = vmul.f32 %v6121, %v423
        %v6152 = vmul.f32 %v6123, %v423
        %v6153 = vmul.f32 %v6125, %v423
        %v6154 = vmul.f32 %v6127, %v423
        %v6155 = vmul.f32 %v6129, %v423
        %v6156 = vmul.f32 %v6131, %v423
        %v6157 = vmul.f32 %v6133, %v423
        %v6158 = vmul.f32 %v6135, %v423
        %v6159 = vmul.f32 %v6137, %v423
        %v6160 = vmul.f32 %v6139, %v423
        %v6161 = vmul.f32 %v6141, %v423
        %v6162 = vmul.f32 %v6143, %v423
        %v6163 = vmul.f32 %v6145, %v423
        %v6164 = vmul.f32 %v6147, %v423
        %v6165 = vmul.f32 %v6149, %v423
        %v6166 = vsub.f32 %v6102, %v6150
        %v6167 = vsub.f32 %v6103, %v6151
        %v6168 = vsub.f32 %v6104, %v6152
        %v6169 = vsub.f32 %v6105, %v6153
        %v6170 = vsub.f32 %v6106, %v6154
        %v6171 = vsub.f32 %v6107, %v6155
        %v6172 = vsub.f32 %v6108, %v6156
        %v6173 = vsub.f32 %v6109, %v6157
        %v6174 = vsub.f32 %v6110, %v6158
        %v6175 = vsub.f32 %v6111, %v6159
        %v6176 = vsub.f32 %v6112, %v6160
        %v6177 = vsub.f32 %v6113, %v6161
        %v6178 = vsub.f32 %v6114, %v6162
        %v6179 = vsub.f32 %v6115, %v6163
        %v6180 = vsub.f32 %v6116, %v6164
        %v6181 = vsub.f32 %v6117, %v6165
        %v6182 = vmul.f32 %v6166, %v6166
        %v6183 = vmul.f32 %v6167, %v6167
        %v6184 = vmul.f32 %v6168, %v6168
        %v6185 = vmul.f32 %v6169, %v6169
        %v6186 = vmul.f32 %v6170, %v6170
        %v6187 = vmul.f32 %v6171, %v6171
        %v6188 = vmul.f32 %v6172, %v6172
        %v6189 = vmul.f32 %v6173, %v6173
        %v6190 = vmul.f32 %v6174, %v6174
        %v6191 = vmul.f32 %v6175, %v6175
        %v6192 = vmul.f32 %v6176, %v6176
        %v6193 = vmul.f32 %v6177, %v6177
        %v6194 = vmul.f32 %v6178, %v6178
        %v6195 = vmul.f32 %v6179, %v6179
        %v6196 = vmul.f32 %v6180, %v6180
        %v6197 = vmul.f32 %v6181, %v6181
        %6198 = vadd.xlane.f32.xlu0 %v6182
        %v6199 = vpop.xlane.xlu0 %6198
        %6200 = vadd.xlane.f32.xlu0 %v6183
        %v6201 = vpop.xlane.xlu0 %6200
        %6202 = vadd.xlane.f32.xlu0 %v6184
        %v6203 = vpop.xlane.xlu0 %6202
        %6204 = vadd.xlane.f32.xlu0 %v6185
        %v6205 = vpop.xlane.xlu0 %6204
        %6206 = vadd.xlane.f32.xlu0 %v6186
        %v6207 = vpop.xlane.xlu0 %6206
        %6208 = vadd.xlane.f32.xlu0 %v6187
        %v6209 = vpop.xlane.xlu0 %6208
        %6210 = vadd.xlane.f32.xlu0 %v6188
        %v6211 = vpop.xlane.xlu0 %6210
        %6212 = vadd.xlane.f32.xlu0 %v6189
        %v6213 = vpop.xlane.xlu0 %6212
        %6214 = vadd.xlane.f32.xlu0 %v6190
        %v6215 = vpop.xlane.xlu0 %6214
        %6216 = vadd.xlane.f32.xlu0 %v6191
        %v6217 = vpop.xlane.xlu0 %6216
        %6218 = vadd.xlane.f32.xlu0 %v6192
        %v6219 = vpop.xlane.xlu0 %6218
        %6220 = vadd.xlane.f32.xlu0 %v6193
        %v6221 = vpop.xlane.xlu0 %6220
        %6222 = vadd.xlane.f32.xlu0 %v6194
        %v6223 = vpop.xlane.xlu0 %6222
        %6224 = vadd.xlane.f32.xlu0 %v6195
        %v6225 = vpop.xlane.xlu0 %6224
        %6226 = vadd.xlane.f32.xlu0 %v6196
        %v6227 = vpop.xlane.xlu0 %6226
        %6228 = vadd.xlane.f32.xlu0 %v6197
        %v6229 = vpop.xlane.xlu0 %6228
        %v6230 = vmul.f32 %v6199, %v423
        %v6231 = vmul.f32 %v6201, %v423
        %v6232 = vmul.f32 %v6203, %v423
        %v6233 = vmul.f32 %v6205, %v423
        %v6234 = vmul.f32 %v6207, %v423
        %v6235 = vmul.f32 %v6209, %v423
        %v6236 = vmul.f32 %v6211, %v423
        %v6237 = vmul.f32 %v6213, %v423
        %v6238 = vmul.f32 %v6215, %v423
        %v6239 = vmul.f32 %v6217, %v423
        %v6240 = vmul.f32 %v6219, %v423
        %v6241 = vmul.f32 %v6221, %v423
        %v6242 = vmul.f32 %v6223, %v423
        %v6243 = vmul.f32 %v6225, %v423
        %v6244 = vmul.f32 %v6227, %v423
        %v6245 = vmul.f32 %v6229, %v423
        %v6246 = vadd.f32 %v6230, 1e-12
        %v6247 = vadd.f32 %v6231, 1e-12
        %v6248 = vadd.f32 %v6232, 1e-12
        %v6249 = vadd.f32 %v6233, 1e-12
        %v6250 = vadd.f32 %v6234, 1e-12
        %v6251 = vadd.f32 %v6235, 1e-12
        %v6252 = vadd.f32 %v6236, 1e-12
        %v6253 = vadd.f32 %v6237, 1e-12
        %v6254 = vadd.f32 %v6238, 1e-12
        %v6255 = vadd.f32 %v6239, 1e-12
        %v6256 = vadd.f32 %v6240, 1e-12
        %v6257 = vadd.f32 %v6241, 1e-12
        %v6258 = vadd.f32 %v6242, 1e-12
        %v6259 = vadd.f32 %v6243, 1e-12
        %v6260 = vadd.f32 %v6244, 1e-12
        %v6261 = vadd.f32 %v6245, 1e-12
        %v6262 = vrsqrt.pop %v6246
        %v6263 = vrsqrt.pop %v6247
        %v6264 = vrsqrt.pop %v6248
        %v6265 = vrsqrt.pop %v6249
        %v6266 = vrsqrt.pop %v6250
        %v6267 = vrsqrt.pop %v6251
        %v6268 = vrsqrt.pop %v6252
        %v6269 = vrsqrt.pop %v6253
        %v6270 = vrsqrt.pop %v6254
        %v6271 = vrsqrt.pop %v6255
        %v6272 = vrsqrt.pop %v6256
        %v6273 = vrsqrt.pop %v6257
        %v6274 = vrsqrt.pop %v6258
        %v6275 = vrsqrt.pop %v6259
        %v6276 = vrsqrt.pop %v6260
        %v6277 = vrsqrt.pop %v6261
        %v6278 = vmul.f32 %v6166, %v6262
        %v6279 = vmul.f32 %v6167, %v6263
        %v6280 = vmul.f32 %v6168, %v6264
        %v6281 = vmul.f32 %v6169, %v6265
        %v6282 = vmul.f32 %v6170, %v6266
        %v6283 = vmul.f32 %v6171, %v6267
        %v6284 = vmul.f32 %v6172, %v6268
        %v6285 = vmul.f32 %v6173, %v6269
        %v6286 = vmul.f32 %v6174, %v6270
        %v6287 = vmul.f32 %v6175, %v6271
        %v6288 = vmul.f32 %v6176, %v6272
        %v6289 = vmul.f32 %v6177, %v6273
        %v6290 = vmul.f32 %v6178, %v6274
        %v6291 = vmul.f32 %v6179, %v6275
        %v6292 = vmul.f32 %v6180, %v6276
        %v6293 = vmul.f32 %v6181, %v6277
        %v6294 = vlaneseq
        %v6295 = vshrl.u32 %v6294, 7
        %v6296 = vsub.s32 4, %v6295
        %v6297 = vrot.slane %v3472, %v6296
        %v6298 = vmul.f32 %v6278, %v6297
        %v6299 = vmul.f32 %v6279, %v6297
        %v6300 = vmul.f32 %v6280, %v6297
        %v6301 = vmul.f32 %v6281, %v6297
        %v6302 = vmul.f32 %v6282, %v6297
        %v6303 = vmul.f32 %v6283, %v6297
        %v6304 = vmul.f32 %v6284, %v6297
        %v6305 = vmul.f32 %v6285, %v6297
        %v6306 = vmul.f32 %v6286, %v6297
        %v6307 = vmul.f32 %v6287, %v6297
        %v6308 = vmul.f32 %v6288, %v6297
        %v6309 = vmul.f32 %v6289, %v6297
        %v6310 = vmul.f32 %v6290, %v6297
        %v6311 = vmul.f32 %v6291, %v6297
        %v6312 = vmul.f32 %v6292, %v6297
        %v6313 = vmul.f32 %v6293, %v6297
        %v6314 = vlaneseq
        %v6315 = vshrl.u32 %v6314, 7
        %v6316 = vsub.s32 5, %v6315
        %v6317 = vrot.slane %v3472, %v6316
        %v6318 = vadd.f32 %v6298, %v6317
        %v6319 = vadd.f32 %v6299, %v6317
        %v6320 = vadd.f32 %v6300, %v6317
        %v6321 = vadd.f32 %v6301, %v6317
        %v6322 = vadd.f32 %v6302, %v6317
        %v6323 = vadd.f32 %v6303, %v6317
        %v6324 = vadd.f32 %v6304, %v6317
        %v6325 = vadd.f32 %v6305, %v6317
        %v6326 = vadd.f32 %v6306, %v6317
        %v6327 = vadd.f32 %v6307, %v6317
        %v6328 = vadd.f32 %v6308, %v6317
        %v6329 = vadd.f32 %v6309, %v6317
        %v6330 = vadd.f32 %v6310, %v6317
        %v6331 = vadd.f32 %v6311, %v6317
        %v6332 = vadd.f32 %v6312, %v6317
        %v6333 = vadd.f32 %v6313, %v6317
        %6334 = vst [vmem:[%s363] sm:$0xff] %v6318
        %6335 = vst [vmem:[%s363 + $0x8] sm:$0xff] %v6319
        %6336 = vst [vmem:[%s363 + $0x10] sm:$0xff] %v6320
        %6337 = vst [vmem:[%s363 + $0x18] sm:$0xff] %v6321
        %6338 = vst [vmem:[%s363 + $0x20] sm:$0xff] %v6322
        %6339 = vst [vmem:[%s363 + $0x28] sm:$0xff] %v6323
        %6340 = vst [vmem:[%s363 + $0x30] sm:$0xff] %v6324
        %6341 = vst [vmem:[%s363 + $0x38] sm:$0xff] %v6325
        %6342 = vst [vmem:[%s363 + $0x40] sm:$0xff] %v6326
        %6343 = vst [vmem:[%s363 + $0x48] sm:$0xff] %v6327
        %6344 = vst [vmem:[%s363 + $0x50] sm:$0xff] %v6328
        %6345 = vst [vmem:[%s363 + $0x58] sm:$0xff] %v6329
        %6346 = vst [vmem:[%s363 + $0x60] sm:$0xff] %v6330
        %6347 = vst [vmem:[%s363 + $0x68] sm:$0xff] %v6331
        %6348 = vst [vmem:[%s363 + $0x70] sm:$0xff] %v6332
        %6349 = vst [vmem:[%s363 + $0x78] sm:$0xff] %v6333
        %s6350 = sand.u32 %s252, 1
        %s6351 = scalar_lea.sflag [#allocation3], %s6350
        %s6352 = sand.u32 %s252, 1
        %s6353 = smul.addr %s6352, 128
        %s6354 = scalar_lea.vmem [#allocation2], %s6353
        // Predicated region
        $region61: #{scibert_forward.1} parent=59 // pred_check
          %p6355 = pneg %p262
        $region62: #{scibert_forward.1} parent=59 // pred_check_branch
          %6357 = sbr.rel (%p6355) target = $region64
        $region63: #{scibert_forward.1} parent=59 // pred_region
          %s6359 = ssub.s32 2048, 2048
          %6360 = vsyncadd %s6351, %s6359
          %s6361 = smul.addr %s24, 16
          %s6362 = smul.addr %s6361, 128
          %s6363 = scalar_lea.hbm %s10, %s6362
          %s6364 = sshll.u32 %s6354, 4
          %s6365 = int_to_ptr.vmem [resolvable:$true] %s6364
          %6370 = dma.vmem_to_hbm [thread:$0]  %s6365, 2048, %s6363, %s6351, 128, 128, 8
        $region64: #{scibert_forward.1} parent=59 // pred_fallthru
          _
      $region60: #{scibert_forward.1} parent=5 // pred_fallthru
        _
      %p6371 = scmp.le.s32.totalorder 2, %s19
      // Predicated region
      $region65: #{scibert_forward.1} parent=5 // pred_check
        %p6372 = pneg %p6371
      $region66: #{scibert_forward.1} parent=5 // pred_check_branch
        %6374 = sbr.rel (%p6372) target = $region68
      $region67: #{scibert_forward.1} parent=5 // pred_region
        %s6375 = ssub.s32 %s19, 2
        // Predicated region
        $region69: #{scibert_forward.1} parent=67 // pred_check
          %p6376 = pneg %p268
        $region70: #{scibert_forward.1} parent=67 // pred_check_branch
          %6378 = sbr.rel (%p6376) target = $region72
        $region71: #{scibert_forward.1} parent=67 // pred_region
          %s6379 = sand.u32 %s253, 1
          %s6380 = scalar_lea.sflag [#allocation3], %s6379
          %s6381 = sand.u32 %s253, 1
          %s6382 = smul.addr %s6381, 128
          %s6383 = scalar_lea.vmem [#allocation2], %s6382
          %6384 = dma.done %s6380, 2048
        $region72: #{scibert_forward.1} parent=67 // pred_fallthru
          _
      $region68: #{scibert_forward.1} parent=5 // pred_fallthru
        _
    $region6: #{scibert_forward.1} parent=1 // loop_footer
      %s23 = sadd.s32 1, %s19
    $region7: #{scibert_forward.1} parent=1 // loop_footer_branch
      %18 = sbr.rel target = $region3
    $region8: #{scibert_forward.1} parent=1 // loop_exit
      _
    %6385 = vsyncpa [#allocation3], 1
    %s6386 = scalar_lea.sflag [#allocation3], 1
    %6387 = vsyncpa %s6386, 1

</llo_original>
